<compile_context>
chip_gen: v6e
topology: v6e:2x2x1
jax: 0.10.0
libtpu: 0.0.40
codegen_flags: <defaults>
</compile_context>

<pallas_src>
from functools import partial

import jax
import jax.numpy as jnp
from jax.experimental import pallas as pl
from jax.experimental.pallas import tpu as pltpu

EPS = 1e-5  # nn.InstanceNorm2d default eps


def _instance_norm(z, inv_n):
    """Per-channel normalization over rows (spatial). z: (H*W, C) f32.

    Two-pass statistics (mean, then centered sum of squares), biased variance
    like PyTorch InstanceNorm2d (affine=False)."""
    mean = jnp.sum(z, axis=0, keepdims=True) * inv_n
    zc = z - mean
    var = jnp.sum(zc * zc, axis=0, keepdims=True) * inv_n
    return zc * jax.lax.rsqrt(var + EPS)


def _conv3x3(xf, w_ref, b_ref, sel_l, sel_r, H, W, C):
    """3x3 stride-1 conv with ReflectionPad2d(1), no im2col materialization.

    xf:    (H*W, C) f32 input (row index = y*W + x).
    w_ref: (3, 3*C, C) bf16 VMEM ref, [kh, kw*C + ci, co].
    b_ref: (1, C) f32 VMEM ref.
    sel_l/sel_r: (Hp*W, 1) bool edge-fixup selectors (rotate-direction aware).
    Returns (H*W, C) f32."""
    HW = H * W
    Np = (H + 2) * W

    # ReflectionPad2d(1) along H only: outer-dim concat (tile aligned, cheap).
    flat = jnp.concatenate(
        [xf[W:2 * W], xf, xf[(H - 2) * W:(H - 1) * W]], axis=0)       # (Np, C)

    # W-direction neighbours via XLU rotate (non-negative shifts only);
    # reflection at the image edge columns is a single select per side.
    r_a = pltpu.roll(flat, 1, 0)        # neighbour candidate A
    r_b = pltpu.roll(flat, Np - 1, 0)   # neighbour candidate B (== shift -1)
    left = jnp.where(sel_l, r_b, r_a).astype(jnp.bfloat16)
    right = jnp.where(sel_r, r_a, r_b).astype(jnp.bfloat16)

    # (Np, 3C) tap matrix (kw-major, ci-minor), bf16 MXU operand.
    taps = jnp.concatenate([left, flat.astype(jnp.bfloat16), right], axis=1)

    # Three accumulating MXU dots (K = 3*C), f32 accumulation.
    acc = None
    for kh in range(3):
        blk = taps[kh * W:kh * W + HW, :]                              # (HW, 3C)
        part = jnp.dot(blk, w_ref[kh], preferred_element_type=jnp.float32)
        acc = part if acc is None else acc + part
    return acc + b_ref[...]


def _resblock_kernel(x_ref, w1_ref, b1_ref, w2_ref, b2_ref, out_ref, *, H, W, C):
    inv_n = 1.0 / float(H * W)
    Np = (H + 2) * W

    # 1-vreg probe: detect the hardware rotate-direction convention and fold it
    # into the edge-fixup selectors (no extra per-element work either way).
    probe = jax.lax.broadcasted_iota(jnp.int32, (8, 128), 0)
    not_std = jnp.logical_not(pltpu.roll(probe, 1, 0)[0:1, 0:1] == 7)  # (1,1) bool

    col = jax.lax.broadcasted_iota(jnp.int32, (Np, 1), 0) % W
    sel_l = jnp.logical_xor(col == 0, not_std)
    sel_r = jnp.logical_xor(col == W - 1, not_std)

    # --- stage 1: reflect-pad -> conv3x3 -> InstanceNorm -> LeakyReLU(0.2) ---
    xf = x_ref[0].reshape(H * W, C).astype(jnp.float32)
    z = _conv3x3(xf, w1_ref, b1_ref, sel_l, sel_r, H, W, C)
    z = _instance_norm(z, inv_n)
    z = jnp.where(z >= 0.0, z, 0.2 * z)
    # TODO(synk): nn.Dropout(0.5) is applied with eval-mode (identity) semantics.

    # --- stage 2: reflect-pad -> conv3x3 -> InstanceNorm -> SiLU ---
    z = _conv3x3(z, w2_ref, b2_ref, sel_l, sel_r, H, W, C)
    z = _instance_norm(z, inv_n)
    z = z * jax.nn.sigmoid(z)

    # Residual add: re-read the input block (no f32 copy kept live across both
    # stages); single dtype cast at the final store.
    out_ref[0] = (x_ref[0].astype(jnp.float32) + z.reshape(H, W, C)
                  ).astype(out_ref.dtype)


def resblock_forward(x_nhwc, w1, b1, w2, b2):
    """x_nhwc: (B, H, W, C). w1, w2: HWIO (3, 3, C, C). b1, b2: (C,)."""
    B, H, W, C = x_nhwc.shape
    if H < 2 or W < 2:
        raise ValueError("ReflectionPad2d(1) requires H >= 2 and W >= 2")
    dtype = x_nhwc.dtype
    item = jnp.dtype(dtype).itemsize

    # Wrapper-side parameter prep: HWIO -> (3, 3*C, C), cast once.
    # bf16 weights feed the MXU natively (f32 matmul is ~3x slower); biases f32.
    w1f = w1.astype(jnp.bfloat16).reshape(3, 3 * C, C)
    w2f = w2.astype(jnp.bfloat16).reshape(3, 3 * C, C)
    b1r = b1.astype(jnp.float32).reshape(1, C)
    b2r = b2.astype(jnp.float32).reshape(1, C)

    # Generation-aware scoped-VMEM hint (v7x only has 64 MiB per TensorCore).
    try:
        vmem_cap = int(pltpu.get_tpu_info().vmem_capacity_bytes)
    except Exception:
        vmem_cap = 64 << 20
    Np = (H + 2) * W
    io_bytes = 2 * 2 * H * W * C * item                       # dbl-buffered in/out
    par_bytes = 2 * 2 * (9 * C * C * 2 + C * 4)               # weights + biases
    tmp_bytes = (3 * Np * C * 4        # padded flat + two rotates (f32)
                 + 2 * Np * C * 2      # left/right (bf16)
                 + Np * 3 * C * 2      # tap matrix (bf16)
                 + 5 * H * W * C * 4)  # f32 accumulator / norm temporaries
    vmem_limit = int(min(max(io_bytes + par_bytes + tmp_bytes + (8 << 20), 24 << 20),
                         (vmem_cap * 7) // 8))

    cost = pl.CostEstimate(
        flops=2 * 2 * B * H * W * 9 * C * C,
        transcendentals=2 * B * H * W * C,
        bytes_accessed=2 * B * H * W * C * item + 2 * (9 * C * C * 2 + C * 4),
    )

    kernel = partial(_resblock_kernel, H=H, W=W, C=C)
    x_spec = pl.BlockSpec((1, H, W, C), lambda b: (b, 0, 0, 0))
    out_spec = pl.BlockSpec((1, H, W, C), lambda b: (b, 0, 0, 0))

    def run(single_buffer_params):
        if single_buffer_params:
            # Parameters never change across the grid: single-buffer them.
            def pspec(shape):
                return pl.BlockSpec(shape, lambda b: (0,) * len(shape),
                                    pipeline_mode=pl.Buffered(1))
        else:
            def pspec(shape):
                return pl.BlockSpec(shape, lambda b: (0,) * len(shape))
        return pl.pallas_call(
            kernel,
            out_shape=jax.ShapeDtypeStruct((B, H, W, C), dtype),
            grid=(B,),
            in_specs=[x_spec,
                      pspec((3, 3 * C, C)), pspec((1, C)),
                      pspec((3, 3 * C, C)), pspec((1, C))],
            out_specs=out_spec,
            compiler_params=pltpu.CompilerParams(
                # Batch is the only parallel axis; B >= 2 is needed to occupy
                # both TensorCores on v7x.
                dimension_semantics=("parallel",),
                vmem_limit_bytes=vmem_limit,
            ),
            cost_estimate=cost,
        )(x_nhwc, w1f, b1r, w2f, b2r)

    try:
        return jax.block_until_ready(run(True))
    except Exception:
        # Fallback for JAX builds where Buffered(1) isn't accepted by the TPU
        # pallas_call pipeline; semantics are identical.
        return run(False)


# ---------------- pure-JAX reference (sanity check only) ----------------
def _reference(x_nhwc, w1, b1, w2, b2):
    def conv_in(x, w, b):
        xp = jnp.pad(x, ((0, 0), (1, 1), (1, 1), (0, 0)), mode="reflect")
        y = jax.lax.conv_general_dilated(
            xp, w, window_strides=(1, 1), padding="VALID",
            dimension_numbers=("NHWC", "HWIO", "NHWC"),
            precision=jax.lax.Precision.HIGHEST) + b[None, None, None, :]
        mean = jnp.mean(y, axis=(1, 2), keepdims=True)
        var = jnp.mean((y - mean) ** 2, axis=(1, 2), keepdims=True)
        return (y - mean) * jax.lax.rsqrt(var + EPS)

    z = conv_in(x_nhwc, w1, b1)
    z = jnp.where(z >= 0, z, 0.2 * z)        # LeakyReLU(0.2)
    z = conv_in(z, w2, b2)                   # (dropout = identity in eval)
    z = z * jax.nn.sigmoid(z)                # SiLU
    return x_nhwc + z


if __name__ == "__main__":
    B, C, H, W = 2, 4, 16, 16

    key = jax.random.PRNGKey(0)
    k_x, k_w1, k_b1, k_w2, k_b2 = jax.random.split(key, 5)

    # NCHW input (PyTorch convention), transposed to NHWC for the kernel.
    x_nchw = jax.random.normal(k_x, (B, C, H, W), jnp.float32)
    x_nhwc = jnp.transpose(x_nchw, (0, 2, 3, 1))

    # Deterministic synthetic Conv2d(C, C, 3) parameters in HWIO layout.
    w1 = jax.random.normal(k_w1, (3, 3, C, C), jnp.float32) * 0.1
    b1 = jax.random.normal(k_b1, (C,), jnp.float32) * 0.1
    w2 = jax.random.normal(k_w2, (3, 3, C, C), jnp.float32) * 0.1
    b2 = jax.random.normal(k_b2, (C,), jnp.float32) * 0.1

    out_nhwc = jax.block_until_ready(resblock_forward(x_nhwc, w1, b1, w2, b2))

    # sanity check vs pure-JAX f32 reference (tolerance loosened for bf16 MXU
    # operands with f32 accumulation).
    ref = _reference(x_nhwc, w1, b1, w2, b2)
    assert out_nhwc.shape == (B, H, W, C)
    assert jnp.allclose(out_nhwc, ref, atol=8e-2, rtol=8e-2), \
        float(jnp.max(jnp.abs(out_nhwc - ref)))

    # back to NCHW to mirror the PyTorch output layout
    out_nchw = jnp.transpose(out_nhwc, (0, 3, 1, 2))
    jax.block_until_ready(out_nchw)

    print("KERNEL_OK")
</pallas_src>

<mosaic_0001>
module attributes {stable_mosaic.version = 11 : i64} {
  func.func @_resblock_kernel(%arg0: i32, %arg1: memref<1x16x16x4xf32, #tpu.memory_space<vmem>>, %arg2: memref<3x12x4xbf16, #tpu.memory_space<vmem>>, %arg3: memref<1x4xf32, #tpu.memory_space<vmem>>, %arg4: memref<3x12x4xbf16, #tpu.memory_space<vmem>>, %arg5: memref<1x4xf32, #tpu.memory_space<vmem>>, %arg6: memref<1x16x16x4xf32, #tpu.memory_space<vmem>>) attributes {dimension_semantics = [#tpu.dimension_semantics<parallel>], iteration_bounds = array<i64: 2>, scalar_prefetch = 0 : i64, scratch_operands = 0 : i64, tpu.core_type = #tpu.core_type<tc>, window_params = [{transform_indices = @transform_0, window_bounds = array<i64: 1, 16, 16, 4>}, {pipeline_mode = #tpu.pipeline_mode<synchronous>, transform_indices = @transform_1, window_bounds = array<i64: 3, 12, 4>}, {pipeline_mode = #tpu.pipeline_mode<synchronous>, transform_indices = @transform_2, window_bounds = array<i64: 1, 4>}, {pipeline_mode = #tpu.pipeline_mode<synchronous>, transform_indices = @transform_3, window_bounds = array<i64: 3, 12, 4>}, {pipeline_mode = #tpu.pipeline_mode<synchronous>, transform_indices = @transform_4, window_bounds = array<i64: 1, 4>}, {transform_indices = @transform_5, window_bounds = array<i64: 1, 16, 16, 4>}]} {
    %0 = tpu.iota {dimensions = array<i32: 0>} : vector<8x128xi32>
    %c1_i32 = arith.constant 1 : i32
    %1 = tpu.dynamic_rotate %0 by %c1_i32 dim 0 : vector<8x128xi32>, i32 -> vector<8x128xi32>
    %2 = vector.extract_strided_slice %1 {offsets = [0, 0], sizes = [1, 1], strides = [1, 1]} : vector<8x128xi32> to vector<1x1xi32>
    %c7_i32 = arith.constant 7 : i32
    %3 = vector.broadcast %c7_i32 : i32 to vector<1x1xi32>
    %4 = arith.cmpi eq, %2, %3 : vector<1x1xi32>
    %cst = arith.constant dense<true> : vector<1x1xi1>
    %5 = arith.xori %4, %cst : vector<1x1xi1>
    %6 = tpu.iota {dimensions = array<i32: 0>} : vector<288x1xi32>
    %c16_i32 = arith.constant 16 : i32
    %c0_i32 = arith.constant 0 : i32
    %7 = arith.cmpi eq, %c16_i32, %c0_i32 : i32
    %c1_i32_0 = arith.constant 1 : i32
    %8 = arith.select %7, %c1_i32_0, %c16_i32 : i32
    %9 = vector.broadcast %8 : i32 to vector<288x1xi32>
    %10 = arith.remsi %6, %9 : vector<288x1xi32>
    %c0_i32_1 = arith.constant 0 : i32
    %11 = vector.broadcast %c0_i32_1 : i32 to vector<288x1xi32>
    %12 = arith.cmpi ne, %10, %11 : vector<288x1xi32>
    %c0_i32_2 = arith.constant 0 : i32
    %13 = vector.broadcast %c0_i32_2 : i32 to vector<288x1xi32>
    %14 = arith.cmpi slt, %10, %13 : vector<288x1xi32>
    %c0_i32_3 = arith.constant 0 : i32
    %15 = arith.cmpi slt, %8, %c0_i32_3 : i32
    %16 = vector.broadcast %15 : i1 to vector<288x1xi1>
    %17 = vector.broadcast %16 : vector<288x1xi1> to vector<288x1xi1>
    %18 = arith.xori %14, %17 : vector<288x1xi1>
    %19 = arith.andi %18, %12 : vector<288x1xi1>
    %20 = vector.broadcast %8 : i32 to vector<288x1xi32>
    %21 = arith.addi %10, %20 : vector<288x1xi32>
    %22 = arith.select %19, %21, %10 : vector<288x1xi1>, vector<288x1xi32>
    %c0_i32_4 = arith.constant 0 : i32
    %23 = vector.broadcast %c0_i32_4 : i32 to vector<288x1xi32>
    %24 = arith.cmpi eq, %22, %23 : vector<288x1xi32>
    %25 = vector.broadcast %5 : vector<1x1xi1> to vector<288x1xi1>
    %26 = arith.xori %24, %25 : vector<288x1xi1>
    %c15_i32 = arith.constant 15 : i32
    %27 = vector.broadcast %c15_i32 : i32 to vector<288x1xi32>
    %28 = arith.cmpi eq, %22, %27 : vector<288x1xi32>
    %29 = vector.broadcast %5 : vector<1x1xi1> to vector<288x1xi1>
    %30 = arith.xori %28, %29 : vector<288x1xi1>
    %c0 = arith.constant 0 : index
    %c0_5 = arith.constant 0 : index
    %c0_6 = arith.constant 0 : index
    %c0_7 = arith.constant 0 : index
    %31 = vector.load %arg1[%c0, %c0_5, %c0_6, %c0_7] : memref<1x16x16x4xf32, #tpu.memory_space<vmem>>, vector<1x16x16x4xf32>
    %32 = vector.shape_cast %31 : vector<1x16x16x4xf32> to vector<16x16x4xf32>
    %33 = vector.shape_cast %32 : vector<16x16x4xf32> to vector<256x4xf32>
    %34 = vector.extract_strided_slice %33 {offsets = [16, 0], sizes = [16, 4], strides = [1, 1]} : vector<256x4xf32> to vector<16x4xf32>
    %35 = vector.extract_strided_slice %33 {offsets = [224, 0], sizes = [16, 4], strides = [1, 1]} : vector<256x4xf32> to vector<16x4xf32>
    %36 = tpu.concatenate %34, %33, %35 in 0 : vector<16x4xf32>, vector<256x4xf32>, vector<16x4xf32> -> vector<288x4xf32>
    %c1_i32_8 = arith.constant 1 : i32
    %37 = tpu.dynamic_rotate %36 by %c1_i32_8 dim 0 : vector<288x4xf32>, i32 -> vector<288x4xf32>
    %c287_i32 = arith.constant 287 : i32
    %38 = tpu.dynamic_rotate %36 by %c287_i32 dim 0 : vector<288x4xf32>, i32 -> vector<288x4xf32>
    %39 = vector.shape_cast %26 : vector<288x1xi1> to vector<288x1xi1>
    %40 = vector.broadcast %39 : vector<288x1xi1> to vector<288x4xi1>
    %41 = arith.select %40, %38, %37 : vector<288x4xi1>, vector<288x4xf32>
    %42 = arith.truncf %41 : vector<288x4xf32> to vector<288x4xbf16>
    %43 = vector.shape_cast %30 : vector<288x1xi1> to vector<288x1xi1>
    %44 = vector.broadcast %43 : vector<288x1xi1> to vector<288x4xi1>
    %45 = arith.select %44, %37, %38 : vector<288x4xi1>, vector<288x4xf32>
    %46 = arith.truncf %45 : vector<288x4xf32> to vector<288x4xbf16>
    %47 = arith.truncf %36 : vector<288x4xf32> to vector<288x4xbf16>
    %48 = tpu.concatenate %42, %47, %46 in 1 : vector<288x4xbf16>, vector<288x4xbf16>, vector<288x4xbf16> -> vector<288x12xbf16>
    %49 = vector.extract_strided_slice %48 {offsets = [0, 0], sizes = [256, 12], strides = [1, 1]} : vector<288x12xbf16> to vector<256x12xbf16>
    %c0_9 = arith.constant 0 : index
    %c0_10 = arith.constant 0 : index
    %c0_11 = arith.constant 0 : index
    %50 = vector.load %arg2[%c0_9, %c0_10, %c0_11] : memref<3x12x4xbf16, #tpu.memory_space<vmem>>, vector<1x12x4xbf16>
    %51 = vector.shape_cast %50 : vector<1x12x4xbf16> to vector<12x4xbf16>
    %cst_12 = arith.constant dense<0.000000e+00> : vector<256x4xf32>
    %52 = tpu.matmul %49, %51, %cst_12 {dimension_numbers = #tpu.dot_dimension_numbers<[1], [0], [0], [1], [0, 0, 1, 1], [], []>} : vector<256x12xbf16>, vector<12x4xbf16>, vector<256x4xf32> -> vector<256x4xf32>
    %53 = vector.extract_strided_slice %48 {offsets = [16, 0], sizes = [256, 12], strides = [1, 1]} : vector<288x12xbf16> to vector<256x12xbf16>
    %c1 = arith.constant 1 : index
    %c0_13 = arith.constant 0 : index
    %c0_14 = arith.constant 0 : index
    %54 = vector.load %arg2[%c1, %c0_13, %c0_14] : memref<3x12x4xbf16, #tpu.memory_space<vmem>>, vector<1x12x4xbf16>
    %55 = vector.shape_cast %54 : vector<1x12x4xbf16> to vector<12x4xbf16>
    %cst_15 = arith.constant dense<0.000000e+00> : vector<256x4xf32>
    %56 = tpu.matmul %53, %55, %cst_15 {dimension_numbers = #tpu.dot_dimension_numbers<[1], [0], [0], [1], [0, 0, 1, 1], [], []>} : vector<256x12xbf16>, vector<12x4xbf16>, vector<256x4xf32> -> vector<256x4xf32>
    %57 = arith.addf %52, %56 : vector<256x4xf32>
    %58 = vector.extract_strided_slice %48 {offsets = [32, 0], sizes = [256, 12], strides = [1, 1]} : vector<288x12xbf16> to vector<256x12xbf16>
    %c2 = arith.constant 2 : index
    %c0_16 = arith.constant 0 : index
    %c0_17 = arith.constant 0 : index
    %59 = vector.load %arg2[%c2, %c0_16, %c0_17] : memref<3x12x4xbf16, #tpu.memory_space<vmem>>, vector<1x12x4xbf16>
    %60 = vector.shape_cast %59 : vector<1x12x4xbf16> to vector<12x4xbf16>
    %cst_18 = arith.constant dense<0.000000e+00> : vector<256x4xf32>
    %61 = tpu.matmul %58, %60, %cst_18 {dimension_numbers = #tpu.dot_dimension_numbers<[1], [0], [0], [1], [0, 0, 1, 1], [], []>} : vector<256x12xbf16>, vector<12x4xbf16>, vector<256x4xf32> -> vector<256x4xf32>
    %62 = arith.addf %57, %61 : vector<256x4xf32>
    %c0_19 = arith.constant 0 : index
    %c0_20 = arith.constant 0 : index
    %63 = vector.load %arg3[%c0_19, %c0_20] : memref<1x4xf32, #tpu.memory_space<vmem>>, vector<1x4xf32>
    %64 = vector.broadcast %63 : vector<1x4xf32> to vector<256x4xf32>
    %65 = arith.addf %62, %64 : vector<256x4xf32>
    %cst_21 = arith.constant dense<0.000000e+00> : vector<4xf32>
    %66 = vector.multi_reduction <add>, %65, %cst_21 [0] : vector<256x4xf32> to vector<4xf32>
    %67 = vector.shape_cast %66 : vector<4xf32> to vector<1x4xf32>
    %cst_22 = arith.constant 3.906250e-03 : f32
    %68 = vector.broadcast %cst_22 : f32 to vector<1x4xf32>
    %69 = arith.mulf %67, %68 : vector<1x4xf32>
    %70 = vector.broadcast %69 : vector<1x4xf32> to vector<256x4xf32>
    %71 = arith.subf %65, %70 : vector<256x4xf32>
    %72 = arith.mulf %71, %71 : vector<256x4xf32>
    %cst_23 = arith.constant dense<0.000000e+00> : vector<4xf32>
    %73 = vector.multi_reduction <add>, %72, %cst_23 [0] : vector<256x4xf32> to vector<4xf32>
    %74 = vector.shape_cast %73 : vector<4xf32> to vector<1x4xf32>
    %cst_24 = arith.constant 3.906250e-03 : f32
    %75 = vector.broadcast %cst_24 : f32 to vector<1x4xf32>
    %76 = arith.mulf %74, %75 : vector<1x4xf32>
    %cst_25 = arith.constant 9.99999974E-6 : f32
    %77 = vector.broadcast %cst_25 : f32 to vector<1x4xf32>
    %78 = arith.addf %76, %77 : vector<1x4xf32>
    %79 = math.rsqrt %78 : vector<1x4xf32>
    %80 = vector.broadcast %79 : vector<1x4xf32> to vector<256x4xf32>
    %81 = arith.mulf %71, %80 : vector<256x4xf32>
    %cst_26 = arith.constant 0.000000e+00 : f32
    %82 = vector.broadcast %cst_26 : f32 to vector<256x4xf32>
    %83 = arith.cmpf oge, %81, %82 : vector<256x4xf32>
    %cst_27 = arith.constant 2.000000e-01 : f32
    %84 = vector.broadcast %cst_27 : f32 to vector<256x4xf32>
    %85 = arith.mulf %84, %81 : vector<256x4xf32>
    %86 = arith.select %83, %81, %85 : vector<256x4xi1>, vector<256x4xf32>
    %87 = vector.extract_strided_slice %86 {offsets = [16, 0], sizes = [16, 4], strides = [1, 1]} : vector<256x4xf32> to vector<16x4xf32>
    %88 = vector.extract_strided_slice %86 {offsets = [224, 0], sizes = [16, 4], strides = [1, 1]} : vector<256x4xf32> to vector<16x4xf32>
    %89 = tpu.concatenate %87, %86, %88 in 0 : vector<16x4xf32>, vector<256x4xf32>, vector<16x4xf32> -> vector<288x4xf32>
    %c1_i32_28 = arith.constant 1 : i32
    %90 = tpu.dynamic_rotate %89 by %c1_i32_28 dim 0 : vector<288x4xf32>, i32 -> vector<288x4xf32>
    %c287_i32_29 = arith.constant 287 : i32
    %91 = tpu.dynamic_rotate %89 by %c287_i32_29 dim 0 : vector<288x4xf32>, i32 -> vector<288x4xf32>
    %92 = vector.shape_cast %26 : vector<288x1xi1> to vector<288x1xi1>
    %93 = vector.broadcast %92 : vector<288x1xi1> to vector<288x4xi1>
    %94 = arith.select %93, %91, %90 : vector<288x4xi1>, vector<288x4xf32>
    %95 = arith.truncf %94 : vector<288x4xf32> to vector<288x4xbf16>
    %96 = vector.shape_cast %30 : vector<288x1xi1> to vector<288x1xi1>
    %97 = vector.broadcast %96 : vector<288x1xi1> to vector<288x4xi1>
    %98 = arith.select %97, %90, %91 : vector<288x4xi1>, vector<288x4xf32>
    %99 = arith.truncf %98 : vector<288x4xf32> to vector<288x4xbf16>
    %100 = arith.truncf %89 : vector<288x4xf32> to vector<288x4xbf16>
    %101 = tpu.concatenate %95, %100, %99 in 1 : vector<288x4xbf16>, vector<288x4xbf16>, vector<288x4xbf16> -> vector<288x12xbf16>
    %102 = vector.extract_strided_slice %101 {offsets = [0, 0], sizes = [256, 12], strides = [1, 1]} : vector<288x12xbf16> to vector<256x12xbf16>
    %c0_30 = arith.constant 0 : index
    %c0_31 = arith.constant 0 : index
    %c0_32 = arith.constant 0 : index
    %103 = vector.load %arg4[%c0_30, %c0_31, %c0_32] : memref<3x12x4xbf16, #tpu.memory_space<vmem>>, vector<1x12x4xbf16>
    %104 = vector.shape_cast %103 : vector<1x12x4xbf16> to vector<12x4xbf16>
    %cst_33 = arith.constant dense<0.000000e+00> : vector<256x4xf32>
    %105 = tpu.matmul %102, %104, %cst_33 {dimension_numbers = #tpu.dot_dimension_numbers<[1], [0], [0], [1], [0, 0, 1, 1], [], []>} : vector<256x12xbf16>, vector<12x4xbf16>, vector<256x4xf32> -> vector<256x4xf32>
    %106 = vector.extract_strided_slice %101 {offsets = [16, 0], sizes = [256, 12], strides = [1, 1]} : vector<288x12xbf16> to vector<256x12xbf16>
    %c1_34 = arith.constant 1 : index
    %c0_35 = arith.constant 0 : index
    %c0_36 = arith.constant 0 : index
    %107 = vector.load %arg4[%c1_34, %c0_35, %c0_36] : memref<3x12x4xbf16, #tpu.memory_space<vmem>>, vector<1x12x4xbf16>
    %108 = vector.shape_cast %107 : vector<1x12x4xbf16> to vector<12x4xbf16>
    %cst_37 = arith.constant dense<0.000000e+00> : vector<256x4xf32>
    %109 = tpu.matmul %106, %108, %cst_37 {dimension_numbers = #tpu.dot_dimension_numbers<[1], [0], [0], [1], [0, 0, 1, 1], [], []>} : vector<256x12xbf16>, vector<12x4xbf16>, vector<256x4xf32> -> vector<256x4xf32>
    %110 = arith.addf %105, %109 : vector<256x4xf32>
    %111 = vector.extract_strided_slice %101 {offsets = [32, 0], sizes = [256, 12], strides = [1, 1]} : vector<288x12xbf16> to vector<256x12xbf16>
    %c2_38 = arith.constant 2 : index
    %c0_39 = arith.constant 0 : index
    %c0_40 = arith.constant 0 : index
    %112 = vector.load %arg4[%c2_38, %c0_39, %c0_40] : memref<3x12x4xbf16, #tpu.memory_space<vmem>>, vector<1x12x4xbf16>
    %113 = vector.shape_cast %112 : vector<1x12x4xbf16> to vector<12x4xbf16>
    %cst_41 = arith.constant dense<0.000000e+00> : vector<256x4xf32>
    %114 = tpu.matmul %111, %113, %cst_41 {dimension_numbers = #tpu.dot_dimension_numbers<[1], [0], [0], [1], [0, 0, 1, 1], [], []>} : vector<256x12xbf16>, vector<12x4xbf16>, vector<256x4xf32> -> vector<256x4xf32>
    %115 = arith.addf %110, %114 : vector<256x4xf32>
    %c0_42 = arith.constant 0 : index
    %c0_43 = arith.constant 0 : index
    %116 = vector.load %arg5[%c0_42, %c0_43] : memref<1x4xf32, #tpu.memory_space<vmem>>, vector<1x4xf32>
    %117 = vector.broadcast %116 : vector<1x4xf32> to vector<256x4xf32>
    %118 = arith.addf %115, %117 : vector<256x4xf32>
    %cst_44 = arith.constant dense<0.000000e+00> : vector<4xf32>
    %119 = vector.multi_reduction <add>, %118, %cst_44 [0] : vector<256x4xf32> to vector<4xf32>
    %120 = vector.shape_cast %119 : vector<4xf32> to vector<1x4xf32>
    %cst_45 = arith.constant 3.906250e-03 : f32
    %121 = vector.broadcast %cst_45 : f32 to vector<1x4xf32>
    %122 = arith.mulf %120, %121 : vector<1x4xf32>
    %123 = vector.broadcast %122 : vector<1x4xf32> to vector<256x4xf32>
    %124 = arith.subf %118, %123 : vector<256x4xf32>
    %125 = arith.mulf %124, %124 : vector<256x4xf32>
    %cst_46 = arith.constant dense<0.000000e+00> : vector<4xf32>
    %126 = vector.multi_reduction <add>, %125, %cst_46 [0] : vector<256x4xf32> to vector<4xf32>
    %127 = vector.shape_cast %126 : vector<4xf32> to vector<1x4xf32>
    %cst_47 = arith.constant 3.906250e-03 : f32
    %128 = vector.broadcast %cst_47 : f32 to vector<1x4xf32>
    %129 = arith.mulf %127, %128 : vector<1x4xf32>
    %cst_48 = arith.constant 9.99999974E-6 : f32
    %130 = vector.broadcast %cst_48 : f32 to vector<1x4xf32>
    %131 = arith.addf %129, %130 : vector<1x4xf32>
    %132 = math.rsqrt %131 : vector<1x4xf32>
    %133 = vector.broadcast %132 : vector<1x4xf32> to vector<256x4xf32>
    %134 = arith.mulf %124, %133 : vector<256x4xf32>
    %135 = arith.negf %134 : vector<256x4xf32>
    %136 = math.exp %135 : vector<256x4xf32>
    %cst_49 = arith.constant 1.000000e+00 : f32
    %137 = vector.broadcast %cst_49 : f32 to vector<256x4xf32>
    %138 = arith.addf %137, %136 : vector<256x4xf32>
    %139 = arith.divf %137, %138 : vector<256x4xf32>
    %140 = arith.mulf %134, %139 : vector<256x4xf32>
    %c0_50 = arith.constant 0 : index
    %c0_51 = arith.constant 0 : index
    %c0_52 = arith.constant 0 : index
    %c0_53 = arith.constant 0 : index
    %141 = vector.load %arg1[%c0_50, %c0_51, %c0_52, %c0_53] : memref<1x16x16x4xf32, #tpu.memory_space<vmem>>, vector<1x16x16x4xf32>
    %142 = vector.shape_cast %141 : vector<1x16x16x4xf32> to vector<16x16x4xf32>
    %143 = vector.shape_cast %140 : vector<256x4xf32> to vector<16x16x4xf32>
    %144 = arith.addf %142, %143 : vector<16x16x4xf32>
    %c0_54 = arith.constant 0 : index
    %c0_55 = arith.constant 0 : index
    %c0_56 = arith.constant 0 : index
    %c0_57 = arith.constant 0 : index
    %145 = vector.load %arg6[%c0_54, %c0_55, %c0_56, %c0_57] : memref<1x16x16x4xf32, #tpu.memory_space<vmem>>, vector<1x16x16x4xf32>
    %146 = vector.shape_cast %145 : vector<1x16x16x4xf32> to vector<16x16x4xf32>
    %147 = vector.shape_cast %144 : vector<16x16x4xf32> to vector<1x16x16x4xf32>
    tpu.vector_store %arg6[%c0_54, %c0_55, %c0_56, %c0_57], %147 {strides = array<i32>} : memref<1x16x16x4xf32, #tpu.memory_space<vmem>>, vector<1x16x16x4xf32>,
    return
  }
  func.func @transform_0(%arg0: i32) -> (i32, i32, i32, i32) {
    %c0_i32 = arith.constant 0 : i32
    %c0_i32_0 = arith.constant 0 : i32
    %c0_i32_1 = arith.constant 0 : i32
    %c0_i32_2 = arith.constant 0 : i32
    return %arg0, %c0_i32, %c0_i32_0, %c0_i32_1 : i32, i32, i32, i32
  }
  func.func @transform_1(%arg0: i32) -> (i32, i32, i32) {
    %c0_i32 = arith.constant 0 : i32
    %c0_i32_0 = arith.constant 0 : i32
    %c0_i32_1 = arith.constant 0 : i32
    %c0_i32_2 = arith.constant 0 : i32
    return %c0_i32, %c0_i32_0, %c0_i32_1 : i32, i32, i32
  }
  func.func @transform_2(%arg0: i32) -> (i32, i32) {
    %c0_i32 = arith.constant 0 : i32
    %c0_i32_0 = arith.constant 0 : i32
    %c0_i32_1 = arith.constant 0 : i32
    return %c0_i32, %c0_i32_0 : i32, i32
  }
  func.func @transform_3(%arg0: i32) -> (i32, i32, i32) {
    %c0_i32 = arith.constant 0 : i32
    %c0_i32_0 = arith.constant 0 : i32
    %c0_i32_1 = arith.constant 0 : i32
    %c0_i32_2 = arith.constant 0 : i32
    return %c0_i32, %c0_i32_0, %c0_i32_1 : i32, i32, i32
  }
  func.func @transform_4(%arg0: i32) -> (i32, i32) {
    %c0_i32 = arith.constant 0 : i32
    %c0_i32_0 = arith.constant 0 : i32
    %c0_i32_1 = arith.constant 0 : i32
    return %c0_i32, %c0_i32_0 : i32, i32
  }
  func.func @transform_5(%arg0: i32) -> (i32, i32, i32, i32) {
    %c0_i32 = arith.constant 0 : i32
    %c0_i32_0 = arith.constant 0 : i32
    %c0_i32_1 = arith.constant 0 : i32
    %c0_i32_2 = arith.constant 0 : i32
    return %arg0, %c0_i32, %c0_i32_0, %c0_i32_1 : i32, i32, i32, i32
  }
}

module attributes {stable_mosaic.version = 11 : i64} {
  func.func @_resblock_kernel(%arg0: i32, %arg1: memref<1x16x16x4xf32, #tpu.memory_space<vmem>>, %arg2: memref<3x12x4xbf16, #tpu.memory_space<vmem>>, %arg3: memref<1x4xf32, #tpu.memory_space<vmem>>, %arg4: memref<3x12x4xbf16, #tpu.memory_space<vmem>>, %arg5: memref<1x4xf32, #tpu.memory_space<vmem>>, %arg6: memref<1x16x16x4xf32, #tpu.memory_space<vmem>>) attributes {dimension_semantics = [#tpu.dimension_semantics<parallel>], iteration_bounds = array<i64: 2>, scalar_prefetch = 0 : i64, scratch_operands = 0 : i64, tpu.core_type = #tpu.core_type<tc>, window_params = [{transform_indices = @transform_0, window_bounds = array<i64: 1, 16, 16, 4>}, {pipeline_mode = #tpu.pipeline_mode<synchronous>, transform_indices = @transform_1, window_bounds = array<i64: 3, 12, 4>}, {pipeline_mode = #tpu.pipeline_mode<synchronous>, transform_indices = @transform_2, window_bounds = array<i64: 1, 4>}, {pipeline_mode = #tpu.pipeline_mode<synchronous>, transform_indices = @transform_3, window_bounds = array<i64: 3, 12, 4>}, {pipeline_mode = #tpu.pipeline_mode<synchronous>, transform_indices = @transform_4, window_bounds = array<i64: 1, 4>}, {transform_indices = @transform_5, window_bounds = array<i64: 1, 16, 16, 4>}]} {
    %0 = tpu.iota {dimensions = array<i32: 0>} : vector<8x128xi32>
    %c1_i32 = arith.constant 1 : i32
    %1 = tpu.dynamic_rotate %0 by %c1_i32 dim 0 : vector<8x128xi32>, i32 -> vector<8x128xi32>
    %2 = vector.extract_strided_slice %1 {offsets = [0, 0], sizes = [1, 1], strides = [1, 1]} : vector<8x128xi32> to vector<1x1xi32>
    %c7_i32 = arith.constant 7 : i32
    %3 = vector.broadcast %c7_i32 : i32 to vector<1x1xi32>
    %4 = arith.cmpi eq, %2, %3 : vector<1x1xi32>
    %cst = arith.constant dense<true> : vector<1x1xi1>
    %5 = arith.xori %4, %cst : vector<1x1xi1>
    %6 = tpu.iota {dimensions = array<i32: 0>} : vector<288x1xi32>
    %c16_i32 = arith.constant 16 : i32
    %c0_i32 = arith.constant 0 : i32
    %7 = arith.cmpi eq, %c16_i32, %c0_i32 : i32
    %c1_i32_0 = arith.constant 1 : i32
    %8 = arith.select %7, %c1_i32_0, %c16_i32 : i32
    %9 = vector.broadcast %8 : i32 to vector<288x1xi32>
    %10 = arith.remsi %6, %9 : vector<288x1xi32>
    %c0_i32_1 = arith.constant 0 : i32
    %11 = vector.broadcast %c0_i32_1 : i32 to vector<288x1xi32>
    %12 = arith.cmpi ne, %10, %11 : vector<288x1xi32>
    %c0_i32_2 = arith.constant 0 : i32
    %13 = vector.broadcast %c0_i32_2 : i32 to vector<288x1xi32>
    %14 = arith.cmpi slt, %10, %13 : vector<288x1xi32>
    %c0_i32_3 = arith.constant 0 : i32
    %15 = arith.cmpi slt, %8, %c0_i32_3 : i32
    %16 = vector.broadcast %15 : i1 to vector<288x1xi1>
    %17 = vector.broadcast %16 : vector<288x1xi1> to vector<288x1xi1>
    %18 = arith.xori %14, %17 : vector<288x1xi1>
    %19 = arith.andi %18, %12 : vector<288x1xi1>
    %20 = vector.broadcast %8 : i32 to vector<288x1xi32>
    %21 = arith.addi %10, %20 : vector<288x1xi32>
    %22 = arith.select %19, %21, %10 : vector<288x1xi1>, vector<288x1xi32>
    %c0_i32_4 = arith.constant 0 : i32
    %23 = vector.broadcast %c0_i32_4 : i32 to vector<288x1xi32>
    %24 = arith.cmpi eq, %22, %23 : vector<288x1xi32>
    %25 = vector.broadcast %5 : vector<1x1xi1> to vector<288x1xi1>
    %26 = arith.xori %24, %25 : vector<288x1xi1>
    %c15_i32 = arith.constant 15 : i32
    %27 = vector.broadcast %c15_i32 : i32 to vector<288x1xi32>
    %28 = arith.cmpi eq, %22, %27 : vector<288x1xi32>
    %29 = vector.broadcast %5 : vector<1x1xi1> to vector<288x1xi1>
    %30 = arith.xori %28, %29 : vector<288x1xi1>
    %c0 = arith.constant 0 : index
    %c0_5 = arith.constant 0 : index
    %c0_6 = arith.constant 0 : index
    %c0_7 = arith.constant 0 : index
    %31 = vector.load %arg1[%c0, %c0_5, %c0_6, %c0_7] : memref<1x16x16x4xf32, #tpu.memory_space<vmem>>, vector<1x16x16x4xf32>
    %32 = vector.shape_cast %31 : vector<1x16x16x4xf32> to vector<16x16x4xf32>
    %33 = vector.shape_cast %32 : vector<16x16x4xf32> to vector<256x4xf32>
    %34 = vector.extract_strided_slice %33 {offsets = [16, 0], sizes = [16, 4], strides = [1, 1]} : vector<256x4xf32> to vector<16x4xf32>
    %35 = vector.extract_strided_slice %33 {offsets = [224, 0], sizes = [16, 4], strides = [1, 1]} : vector<256x4xf32> to vector<16x4xf32>
    %36 = tpu.concatenate %34, %33, %35 in 0 : vector<16x4xf32>, vector<256x4xf32>, vector<16x4xf32> -> vector<288x4xf32>
    %c1_i32_8 = arith.constant 1 : i32
    %37 = tpu.dynamic_rotate %36 by %c1_i32_8 dim 0 : vector<288x4xf32>, i32 -> vector<288x4xf32>
    %c287_i32 = arith.constant 287 : i32
    %38 = tpu.dynamic_rotate %36 by %c287_i32 dim 0 : vector<288x4xf32>, i32 -> vector<288x4xf32>
    %39 = vector.shape_cast %26 : vector<288x1xi1> to vector<288x1xi1>
    %40 = vector.broadcast %39 : vector<288x1xi1> to vector<288x4xi1>
    %41 = arith.select %40, %38, %37 : vector<288x4xi1>, vector<288x4xf32>
    %42 = arith.truncf %41 : vector<288x4xf32> to vector<288x4xbf16>
    %43 = vector.shape_cast %30 : vector<288x1xi1> to vector<288x1xi1>
    %44 = vector.broadcast %43 : vector<288x1xi1> to vector<288x4xi1>
    %45 = arith.select %44, %37, %38 : vector<288x4xi1>, vector<288x4xf32>
    %46 = arith.truncf %45 : vector<288x4xf32> to vector<288x4xbf16>
    %47 = arith.truncf %36 : vector<288x4xf32> to vector<288x4xbf16>
    %48 = tpu.concatenate %42, %47, %46 in 1 : vector<288x4xbf16>, vector<288x4xbf16>, vector<288x4xbf16> -> vector<288x12xbf16>
    %49 = vector.extract_strided_slice %48 {offsets = [0, 0], sizes = [256, 12], strides = [1, 1]} : vector<288x12xbf16> to vector<256x12xbf16>
    %c0_9 = arith.constant 0 : index
    %c0_10 = arith.constant 0 : index
    %c0_11 = arith.constant 0 : index
    %50 = vector.load %arg2[%c0_9, %c0_10, %c0_11] : memref<3x12x4xbf16, #tpu.memory_space<vmem>>, vector<1x12x4xbf16>
    %51 = vector.shape_cast %50 : vector<1x12x4xbf16> to vector<12x4xbf16>
    %cst_12 = arith.constant dense<0.000000e+00> : vector<256x4xf32>
    %52 = tpu.matmul %49, %51, %cst_12 {dimension_numbers = #tpu.dot_dimension_numbers<[1], [0], [0], [1], [0, 0, 1, 1], [], []>} : vector<256x12xbf16>, vector<12x4xbf16>, vector<256x4xf32> -> vector<256x4xf32>
    %53 = vector.extract_strided_slice %48 {offsets = [16, 0], sizes = [256, 12], strides = [1, 1]} : vector<288x12xbf16> to vector<256x12xbf16>
    %c1 = arith.constant 1 : index
    %c0_13 = arith.constant 0 : index
    %c0_14 = arith.constant 0 : index
    %54 = vector.load %arg2[%c1, %c0_13, %c0_14] : memref<3x12x4xbf16, #tpu.memory_space<vmem>>, vector<1x12x4xbf16>
    %55 = vector.shape_cast %54 : vector<1x12x4xbf16> to vector<12x4xbf16>
    %cst_15 = arith.constant dense<0.000000e+00> : vector<256x4xf32>
    %56 = tpu.matmul %53, %55, %cst_15 {dimension_numbers = #tpu.dot_dimension_numbers<[1], [0], [0], [1], [0, 0, 1, 1], [], []>} : vector<256x12xbf16>, vector<12x4xbf16>, vector<256x4xf32> -> vector<256x4xf32>
    %57 = arith.addf %52, %56 : vector<256x4xf32>
    %58 = vector.extract_strided_slice %48 {offsets = [32, 0], sizes = [256, 12], strides = [1, 1]} : vector<288x12xbf16> to vector<256x12xbf16>
    %c2 = arith.constant 2 : index
    %c0_16 = arith.constant 0 : index
    %c0_17 = arith.constant 0 : index
    %59 = vector.load %arg2[%c2, %c0_16, %c0_17] : memref<3x12x4xbf16, #tpu.memory_space<vmem>>, vector<1x12x4xbf16>
    %60 = vector.shape_cast %59 : vector<1x12x4xbf16> to vector<12x4xbf16>
    %cst_18 = arith.constant dense<0.000000e+00> : vector<256x4xf32>
    %61 = tpu.matmul %58, %60, %cst_18 {dimension_numbers = #tpu.dot_dimension_numbers<[1], [0], [0], [1], [0, 0, 1, 1], [], []>} : vector<256x12xbf16>, vector<12x4xbf16>, vector<256x4xf32> -> vector<256x4xf32>
    %62 = arith.addf %57, %61 : vector<256x4xf32>
    %c0_19 = arith.constant 0 : index
    %c0_20 = arith.constant 0 : index
    %63 = vector.load %arg3[%c0_19, %c0_20] : memref<1x4xf32, #tpu.memory_space<vmem>>, vector<1x4xf32>
    %64 = vector.broadcast %63 : vector<1x4xf32> to vector<256x4xf32>
    %65 = arith.addf %62, %64 : vector<256x4xf32>
    %cst_21 = arith.constant dense<0.000000e+00> : vector<4xf32>
    %66 = vector.multi_reduction <add>, %65, %cst_21 [0] : vector<256x4xf32> to vector<4xf32>
    %67 = vector.shape_cast %66 : vector<4xf32> to vector<1x4xf32>
    %cst_22 = arith.constant 3.906250e-03 : f32
    %68 = vector.broadcast %cst_22 : f32 to vector<1x4xf32>
    %69 = arith.mulf %67, %68 : vector<1x4xf32>
    %70 = vector.broadcast %69 : vector<1x4xf32> to vector<256x4xf32>
    %71 = arith.subf %65, %70 : vector<256x4xf32>
    %72 = arith.mulf %71, %71 : vector<256x4xf32>
    %cst_23 = arith.constant dense<0.000000e+00> : vector<4xf32>
    %73 = vector.multi_reduction <add>, %72, %cst_23 [0] : vector<256x4xf32> to vector<4xf32>
    %74 = vector.shape_cast %73 : vector<4xf32> to vector<1x4xf32>
    %cst_24 = arith.constant 3.906250e-03 : f32
    %75 = vector.broadcast %cst_24 : f32 to vector<1x4xf32>
    %76 = arith.mulf %74, %75 : vector<1x4xf32>
    %cst_25 = arith.constant 9.99999974E-6 : f32
    %77 = vector.broadcast %cst_25 : f32 to vector<1x4xf32>
    %78 = arith.addf %76, %77 : vector<1x4xf32>
    %79 = math.rsqrt %78 : vector<1x4xf32>
    %80 = vector.broadcast %79 : vector<1x4xf32> to vector<256x4xf32>
    %81 = arith.mulf %71, %80 : vector<256x4xf32>
    %cst_26 = arith.constant 0.000000e+00 : f32
    %82 = vector.broadcast %cst_26 : f32 to vector<256x4xf32>
    %83 = arith.cmpf oge, %81, %82 : vector<256x4xf32>
    %cst_27 = arith.constant 2.000000e-01 : f32
    %84 = vector.broadcast %cst_27 : f32 to vector<256x4xf32>
    %85 = arith.mulf %84, %81 : vector<256x4xf32>
    %86 = arith.select %83, %81, %85 : vector<256x4xi1>, vector<256x4xf32>
    %87 = vector.extract_strided_slice %86 {offsets = [16, 0], sizes = [16, 4], strides = [1, 1]} : vector<256x4xf32> to vector<16x4xf32>
    %88 = vector.extract_strided_slice %86 {offsets = [224, 0], sizes = [16, 4], strides = [1, 1]} : vector<256x4xf32> to vector<16x4xf32>
    %89 = tpu.concatenate %87, %86, %88 in 0 : vector<16x4xf32>, vector<256x4xf32>, vector<16x4xf32> -> vector<288x4xf32>
    %c1_i32_28 = arith.constant 1 : i32
    %90 = tpu.dynamic_rotate %89 by %c1_i32_28 dim 0 : vector<288x4xf32>, i32 -> vector<288x4xf32>
    %c287_i32_29 = arith.constant 287 : i32
    %91 = tpu.dynamic_rotate %89 by %c287_i32_29 dim 0 : vector<288x4xf32>, i32 -> vector<288x4xf32>
    %92 = vector.shape_cast %26 : vector<288x1xi1> to vector<288x1xi1>
    %93 = vector.broadcast %92 : vector<288x1xi1> to vector<288x4xi1>
    %94 = arith.select %93, %91, %90 : vector<288x4xi1>, vector<288x4xf32>
    %95 = arith.truncf %94 : vector<288x4xf32> to vector<288x4xbf16>
    %96 = vector.shape_cast %30 : vector<288x1xi1> to vector<288x1xi1>
    %97 = vector.broadcast %96 : vector<288x1xi1> to vector<288x4xi1>
    %98 = arith.select %97, %90, %91 : vector<288x4xi1>, vector<288x4xf32>
    %99 = arith.truncf %98 : vector<288x4xf32> to vector<288x4xbf16>
    %100 = arith.truncf %89 : vector<288x4xf32> to vector<288x4xbf16>
    %101 = tpu.concatenate %95, %100, %99 in 1 : vector<288x4xbf16>, vector<288x4xbf16>, vector<288x4xbf16> -> vector<288x12xbf16>
    %102 = vector.extract_strided_slice %101 {offsets = [0, 0], sizes = [256, 12], strides = [1, 1]} : vector<288x12xbf16> to vector<256x12xbf16>
    %c0_30 = arith.constant 0 : index
    %c0_31 = arith.constant 0 : index
    %c0_32 = arith.constant 0 : index
    %103 = vector.load %arg4[%c0_30, %c0_31, %c0_32] : memref<3x12x4xbf16, #tpu.memory_space<vmem>>, vector<1x12x4xbf16>
    %104 = vector.shape_cast %103 : vector<1x12x4xbf16> to vector<12x4xbf16>
    %cst_33 = arith.constant dense<0.000000e+00> : vector<256x4xf32>
    %105 = tpu.matmul %102, %104, %cst_33 {dimension_numbers = #tpu.dot_dimension_numbers<[1], [0], [0], [1], [0, 0, 1, 1], [], []>} : vector<256x12xbf16>, vector<12x4xbf16>, vector<256x4xf32> -> vector<256x4xf32>
    %106 = vector.extract_strided_slice %101 {offsets = [16, 0], sizes = [256, 12], strides = [1, 1]} : vector<288x12xbf16> to vector<256x12xbf16>
    %c1_34 = arith.constant 1 : index
    %c0_35 = arith.constant 0 : index
    %c0_36 = arith.constant 0 : index
    %107 = vector.load %arg4[%c1_34, %c0_35, %c0_36] : memref<3x12x4xbf16, #tpu.memory_space<vmem>>, vector<1x12x4xbf16>
    %108 = vector.shape_cast %107 : vector<1x12x4xbf16> to vector<12x4xbf16>
    %cst_37 = arith.constant dense<0.000000e+00> : vector<256x4xf32>
    %109 = tpu.matmul %106, %108, %cst_37 {dimension_numbers = #tpu.dot_dimension_numbers<[1], [0], [0], [1], [0, 0, 1, 1], [], []>} : vector<256x12xbf16>, vector<12x4xbf16>, vector<256x4xf32> -> vector<256x4xf32>
    %110 = arith.addf %105, %109 : vector<256x4xf32>
    %111 = vector.extract_strided_slice %101 {offsets = [32, 0], sizes = [256, 12], strides = [1, 1]} : vector<288x12xbf16> to vector<256x12xbf16>
    %c2_38 = arith.constant 2 : index
    %c0_39 = arith.constant 0 : index
    %c0_40 = arith.constant 0 : index
    %112 = vector.load %arg4[%c2_38, %c0_39, %c0_40] : memref<3x12x4xbf16, #tpu.memory_space<vmem>>, vector<1x12x4xbf16>
    %113 = vector.shape_cast %112 : vector<1x12x4xbf16> to vector<12x4xbf16>
    %cst_41 = arith.constant dense<0.000000e+00> : vector<256x4xf32>
    %114 = tpu.matmul %111, %113, %cst_41 {dimension_numbers = #tpu.dot_dimension_numbers<[1], [0], [0], [1], [0, 0, 1, 1], [], []>} : vector<256x12xbf16>, vector<12x4xbf16>, vector<256x4xf32> -> vector<256x4xf32>
    %115 = arith.addf %110, %114 : vector<256x4xf32>
    %c0_42 = arith.constant 0 : index
    %c0_43 = arith.constant 0 : index
    %116 = vector.load %arg5[%c0_42, %c0_43] : memref<1x4xf32, #tpu.memory_space<vmem>>, vector<1x4xf32>
    %117 = vector.broadcast %116 : vector<1x4xf32> to vector<256x4xf32>
    %118 = arith.addf %115, %117 : vector<256x4xf32>
    %cst_44 = arith.constant dense<0.000000e+00> : vector<4xf32>
    %119 = vector.multi_reduction <add>, %118, %cst_44 [0] : vector<256x4xf32> to vector<4xf32>
    %120 = vector.shape_cast %119 : vector<4xf32> to vector<1x4xf32>
    %cst_45 = arith.constant 3.906250e-03 : f32
    %121 = vector.broadcast %cst_45 : f32 to vector<1x4xf32>
    %122 = arith.mulf %120, %121 : vector<1x4xf32>
    %123 = vector.broadcast %122 : vector<1x4xf32> to vector<256x4xf32>
    %124 = arith.subf %118, %123 : vector<256x4xf32>
    %125 = arith.mulf %124, %124 : vector<256x4xf32>
    %cst_46 = arith.constant dense<0.000000e+00> : vector<4xf32>
    %126 = vector.multi_reduction <add>, %125, %cst_46 [0] : vector<256x4xf32> to vector<4xf32>
    %127 = vector.shape_cast %126 : vector<4xf32> to vector<1x4xf32>
    %cst_47 = arith.constant 3.906250e-03 : f32
    %128 = vector.broadcast %cst_47 : f32 to vector<1x4xf32>
    %129 = arith.mulf %127, %128 : vector<1x4xf32>
    %cst_48 = arith.constant 9.99999974E-6 : f32
    %130 = vector.broadcast %cst_48 : f32 to vector<1x4xf32>
    %131 = arith.addf %129, %130 : vector<1x4xf32>
    %132 = math.rsqrt %131 : vector<1x4xf32>
    %133 = vector.broadcast %132 : vector<1x4xf32> to vector<256x4xf32>
    %134 = arith.mulf %124, %133 : vector<256x4xf32>
    %135 = arith.negf %134 : vector<256x4xf32>
    %136 = math.exp %135 : vector<256x4xf32>
    %cst_49 = arith.constant 1.000000e+00 : f32
    %137 = vector.broadcast %cst_49 : f32 to vector<256x4xf32>
    %138 = arith.addf %137, %136 : vector<256x4xf32>
    %139 = arith.divf %137, %138 : vector<256x4xf32>
    %140 = arith.mulf %134, %139 : vector<256x4xf32>
    %c0_50 = arith.constant 0 : index
    %c0_51 = arith.constant 0 : index
    %c0_52 = arith.constant 0 : index
    %c0_53 = arith.constant 0 : index
    %141 = vector.load %arg1[%c0_50, %c0_51, %c0_52, %c0_53] : memref<1x16x16x4xf32, #tpu.memory_space<vmem>>, vector<1x16x16x4xf32>
    %142 = vector.shape_cast %141 : vector<1x16x16x4xf32> to vector<16x16x4xf32>
    %143 = vector.shape_cast %140 : vector<256x4xf32> to vector<16x16x4xf32>
    %144 = arith.addf %142, %143 : vector<16x16x4xf32>
    %c0_54 = arith.constant 0 : index
    %c0_55 = arith.constant 0 : index
    %c0_56 = arith.constant 0 : index
    %c0_57 = arith.constant 0 : index
    %145 = vector.load %arg6[%c0_54, %c0_55, %c0_56, %c0_57] : memref<1x16x16x4xf32, #tpu.memory_space<vmem>>, vector<1x16x16x4xf32>
    %146 = vector.shape_cast %145 : vector<1x16x16x4xf32> to vector<16x16x4xf32>
    %147 = vector.shape_cast %144 : vector<16x16x4xf32> to vector<1x16x16x4xf32>
    tpu.vector_store %arg6[%c0_54, %c0_55, %c0_56, %c0_57], %147 {strides = array<i32>} : memref<1x16x16x4xf32, #tpu.memory_space<vmem>>, vector<1x16x16x4xf32>,
    return
  }
  func.func @transform_0(%arg0: i32) -> (i32, i32, i32, i32) {
    %c0_i32 = arith.constant 0 : i32
    %c0_i32_0 = arith.constant 0 : i32
    %c0_i32_1 = arith.constant 0 : i32
    %c0_i32_2 = arith.constant 0 : i32
    return %arg0, %c0_i32, %c0_i32_0, %c0_i32_1 : i32, i32, i32, i32
  }
  func.func @transform_1(%arg0: i32) -> (i32, i32, i32) {
    %c0_i32 = arith.constant 0 : i32
    %c0_i32_0 = arith.constant 0 : i32
    %c0_i32_1 = arith.constant 0 : i32
    %c0_i32_2 = arith.constant 0 : i32
    return %c0_i32, %c0_i32_0, %c0_i32_1 : i32, i32, i32
  }
  func.func @transform_2(%arg0: i32) -> (i32, i32) {
    %c0_i32 = arith.constant 0 : i32
    %c0_i32_0 = arith.constant 0 : i32
    %c0_i32_1 = arith.constant 0 : i32
    return %c0_i32, %c0_i32_0 : i32, i32
  }
  func.func @transform_3(%arg0: i32) -> (i32, i32, i32) {
    %c0_i32 = arith.constant 0 : i32
    %c0_i32_0 = arith.constant 0 : i32
    %c0_i32_1 = arith.constant 0 : i32
    %c0_i32_2 = arith.constant 0 : i32
    return %c0_i32, %c0_i32_0, %c0_i32_1 : i32, i32, i32
  }
  func.func @transform_4(%arg0: i32) -> (i32, i32) {
    %c0_i32 = arith.constant 0 : i32
    %c0_i32_0 = arith.constant 0 : i32
    %c0_i32_1 = arith.constant 0 : i32
    return %c0_i32, %c0_i32_0 : i32, i32
  }
  func.func @transform_5(%arg0: i32) -> (i32, i32, i32, i32) {
    %c0_i32 = arith.constant 0 : i32
    %c0_i32_0 = arith.constant 0 : i32
    %c0_i32_1 = arith.constant 0 : i32
    %c0_i32_2 = arith.constant 0 : i32
    return %arg0, %c0_i32, %c0_i32_0, %c0_i32_1 : i32, i32, i32, i32
  }
}

</mosaic_0001>

<llo_original>
// kernel: tpu_custom_call.1
$region0: #{tpu_custom_call.1}
  #allocation0 [shape = 'u32[]', space=smem, size = 0x4, offset = 0x4, fixed_abs, tag = 'smem constant byte address 0x4 - core index']
  #allocation1 [shape = 'u32[144,128]{1,0:T(1,128)}', space=vmem, size = 0x12000, scoped, tag = 'internal scratch']
  %s0 = inlined_call_operand.vmem [shape: f32[2,16,16,4], index: 0, kind: input, shape index: {}]
  %s1 = inlined_call_operand.vmem [shape: bf16[3,12,4], index: 1, kind: input, shape index: {}]
  %s2 = inlined_call_operand.vmem [shape: f32[1,4], index: 2, kind: input, shape index: {}]
  %s3 = inlined_call_operand.vmem [shape: bf16[3,12,4], index: 3, kind: input, shape index: {}]
  %s4 = inlined_call_operand.vmem [shape: f32[1,4], index: 4, kind: input, shape index: {}]
  %s5 = inlined_call_operand.vmem [shape: f32[2,16,16,4], index: 5, kind: output, shape index: {}]
  %s6 = sld [smem:[#allocation0]]
  $region53: #{tpu_custom_call.1} parent=0
    _
  %s8 = ssub.s32 1, %s6
  %s9 = scalar_select 0, %s8, %s6
  loop: start=0, step=1, limit=4
  $region2: #{tpu_custom_call.1} parent=0 // loop_pre_header
    _
  $region3: #{tpu_custom_call.1} parent=0 // loop_header
    %s11 = sphi 0, %s15
    %p12 = scmp.ge.s32.totalorder %s11, 4
    %s21 = sphi 0, %s23
    %s24 = sphi 0, %s21
    %s25 = sphi 0, %s24
    %s41 = sphi 0, %s25
    %s45 = sphi 0, %s45
    %s47 = sphi 0, %s45
    %s48 = sphi 0, %s47
    %s62 = sphi 0, %s48
    %s66 = sphi 0, %s66
    %s68 = sphi 0, %s66
    %s69 = sphi 0, %s68
    %s83 = sphi 0, %s69
    %s87 = sphi 0, %s87
    %s89 = sphi 0, %s87
    %s90 = sphi 0, %s89
    %s104 = sphi 0, %s90
    %s108 = sphi 0, %s108
    %s110 = sphi 0, %s108
    %s111 = sphi 0, %s110
    %s125 = sphi 0, %s111
    %s131 = sphi 0, %s133
    %s134 = sphi 0, %s131
    %s135 = sphi 0, %s134
    %s151 = sphi 0, %s135
  $region4: #{tpu_custom_call.1} parent=0 // loop_header_branch
    %14 = sbr.rel (%p12) target = $region8
  $region5: #{tpu_custom_call.1} parent=0 // loop_body
    %s16 = ssub.s32 %s11, 1
    %s17 = ssub.s32 %s11, 2
    %s18 = sadd.s32 %s11, 1
    %s19 = ssub.s32 %s11, %s18
    %p20 = scmp.eq.s32.totalorder %s19, 0
    %s22 = sadd.s32 %s21, 1
    %s23 = scalar_select %p20, %s21, %s22
    %p26 = pneg %p20
    %p27 = scmp.eq.s32.totalorder %s11, 1
    %p28 = por %p26, %p27
    %p29 = scmp.ne.s32.totalorder %s21, %s24
    %p30 = scmp.eq.s32.totalorder %s11, 0
    %p31 = por %p29, %p30
    %p32 = scmp.ne.s32.totalorder %s21, %s24
    %p33 = scmp.eq.s32.totalorder %s16, 1
    %p34 = por %p32, %p33
    %p35 = scmp.ne.s32.totalorder %s24, %s25
    %p36 = scmp.eq.s32.totalorder %s16, 0
    %p37 = por %p35, %p36
    %p38 = scmp.ne.s32.totalorder %s24, %s25
    %p39 = scmp.eq.s32.totalorder %s17, 1
    %p40 = por %p38, %p39
    %p42 = scmp.ne.s32.totalorder %s25, %s41
    %p43 = scmp.eq.s32.totalorder %s17, 0
    %p44 = por %p42, %p43
    %s46 = sadd.s32 %s45, 1
    %p49 = scmp.eq.s32.totalorder %s11, 1
    %p50 = scmp.ne.s32.totalorder %s45, %s47
    %p51 = scmp.eq.s32.totalorder %s11, 0
    %p52 = por %p50, %p51
    %p53 = scmp.ne.s32.totalorder %s45, %s47
    %p54 = scmp.eq.s32.totalorder %s16, 1
    %p55 = por %p53, %p54
    %p56 = scmp.ne.s32.totalorder %s47, %s48
    %p57 = scmp.eq.s32.totalorder %s16, 0
    %p58 = por %p56, %p57
    %p59 = scmp.ne.s32.totalorder %s47, %s48
    %p60 = scmp.eq.s32.totalorder %s17, 1
    %p61 = por %p59, %p60
    %p63 = scmp.ne.s32.totalorder %s48, %s62
    %p64 = scmp.eq.s32.totalorder %s17, 0
    %p65 = por %p63, %p64
    %s67 = sadd.s32 %s66, 1
    %p70 = scmp.eq.s32.totalorder %s11, 1
    %p71 = scmp.ne.s32.totalorder %s66, %s68
    %p72 = scmp.eq.s32.totalorder %s11, 0
    %p73 = por %p71, %p72
    %p74 = scmp.ne.s32.totalorder %s66, %s68
    %p75 = scmp.eq.s32.totalorder %s16, 1
    %p76 = por %p74, %p75
    %p77 = scmp.ne.s32.totalorder %s68, %s69
    %p78 = scmp.eq.s32.totalorder %s16, 0
    %p79 = por %p77, %p78
    %p80 = scmp.ne.s32.totalorder %s68, %s69
    %p81 = scmp.eq.s32.totalorder %s17, 1
    %p82 = por %p80, %p81
    %p84 = scmp.ne.s32.totalorder %s69, %s83
    %p85 = scmp.eq.s32.totalorder %s17, 0
    %p86 = por %p84, %p85
    %s88 = sadd.s32 %s87, 1
    %p91 = scmp.eq.s32.totalorder %s11, 1
    %p92 = scmp.ne.s32.totalorder %s87, %s89
    %p93 = scmp.eq.s32.totalorder %s11, 0
    %p94 = por %p92, %p93
    %p95 = scmp.ne.s32.totalorder %s87, %s89
    %p96 = scmp.eq.s32.totalorder %s16, 1
    %p97 = por %p95, %p96
    %p98 = scmp.ne.s32.totalorder %s89, %s90
    %p99 = scmp.eq.s32.totalorder %s16, 0
    %p100 = por %p98, %p99
    %p101 = scmp.ne.s32.totalorder %s89, %s90
    %p102 = scmp.eq.s32.totalorder %s17, 1
    %p103 = por %p101, %p102
    %p105 = scmp.ne.s32.totalorder %s90, %s104
    %p106 = scmp.eq.s32.totalorder %s17, 0
    %p107 = por %p105, %p106
    %s109 = sadd.s32 %s108, 1
    %p112 = scmp.eq.s32.totalorder %s11, 1
    %p113 = scmp.ne.s32.totalorder %s108, %s110
    %p114 = scmp.eq.s32.totalorder %s11, 0
    %p115 = por %p113, %p114
    %p116 = scmp.ne.s32.totalorder %s108, %s110
    %p117 = scmp.eq.s32.totalorder %s16, 1
    %p118 = por %p116, %p117
    %p119 = scmp.ne.s32.totalorder %s110, %s111
    %p120 = scmp.eq.s32.totalorder %s16, 0
    %p121 = por %p119, %p120
    %p122 = scmp.ne.s32.totalorder %s110, %s111
    %p123 = scmp.eq.s32.totalorder %s17, 1
    %p124 = por %p122, %p123
    %p126 = scmp.ne.s32.totalorder %s111, %s125
    %p127 = scmp.eq.s32.totalorder %s17, 0
    %p128 = por %p126, %p127
    %s129 = ssub.s32 %s11, %s18
    %p130 = scmp.eq.s32.totalorder %s129, 0
    %s132 = sadd.s32 %s131, 1
    %s133 = scalar_select %p130, %s131, %s132
    %p136 = pneg %p130
    %p137 = scmp.eq.s32.totalorder %s11, 1
    %p138 = por %p136, %p137
    %p139 = scmp.ne.s32.totalorder %s131, %s134
    %p140 = scmp.eq.s32.totalorder %s11, 0
    %p141 = por %p139, %p140
    %p142 = scmp.ne.s32.totalorder %s131, %s134
    %p143 = scmp.eq.s32.totalorder %s16, 1
    %p144 = por %p142, %p143
    %p145 = scmp.ne.s32.totalorder %s134, %s135
    %p146 = scmp.eq.s32.totalorder %s16, 0
    %p147 = por %p145, %p146
    %p148 = scmp.ne.s32.totalorder %s134, %s135
    %p149 = scmp.eq.s32.totalorder %s17, 1
    %p150 = por %p148, %p149
    %p152 = scmp.ne.s32.totalorder %s135, %s151
    %p153 = scmp.eq.s32.totalorder %s17, 0
    %p154 = por %p152, %p153
    %p155 = scmp.le.s32.totalorder 1, %s11
    %p156 = scmp.lt.s32.totalorder %s11, 3
    %p157 = pnand %p155, %p156
    %p158 = pneg %p157
    // Predicated region
    $region9: #{tpu_custom_call.1} parent=5 // pred_check
      _
    $region10: #{tpu_custom_call.1} parent=5 // pred_check_branch
      %160 = sbr.rel (%p157) target = $region12
    $region11: #{tpu_custom_call.1} parent=5 // pred_region
      %s161 = ssub.s32 %s11, 1
      // Predicated region
      $region13: #{tpu_custom_call.1} parent=11 // pred_check
        %p162 = pneg %p58
      $region14: #{tpu_custom_call.1} parent=11 // pred_check_branch
        %164 = sbr.rel (%p162) target = $region16
      $region15: #{tpu_custom_call.1} parent=11 // pred_region
        _
      $region16: #{tpu_custom_call.1} parent=11 // pred_fallthru
        _
      // Predicated region
      $region17: #{tpu_custom_call.1} parent=11 // pred_check
        %p165 = pneg %p79
      $region18: #{tpu_custom_call.1} parent=11 // pred_check_branch
        %167 = sbr.rel (%p165) target = $region20
      $region19: #{tpu_custom_call.1} parent=11 // pred_region
        _
      $region20: #{tpu_custom_call.1} parent=11 // pred_fallthru
        _
      // Predicated region
      $region21: #{tpu_custom_call.1} parent=11 // pred_check
        %p168 = pneg %p100
      $region22: #{tpu_custom_call.1} parent=11 // pred_check_branch
        %170 = sbr.rel (%p168) target = $region24
      $region23: #{tpu_custom_call.1} parent=11 // pred_region
        _
      $region24: #{tpu_custom_call.1} parent=11 // pred_fallthru
        _
      // Predicated region
      $region25: #{tpu_custom_call.1} parent=11 // pred_check
        %p171 = pneg %p121
      $region26: #{tpu_custom_call.1} parent=11 // pred_check_branch
        %173 = sbr.rel (%p171) target = $region28
      $region27: #{tpu_custom_call.1} parent=11 // pred_region
        _
      $region28: #{tpu_custom_call.1} parent=11 // pred_fallthru
        _
    $region12: #{tpu_custom_call.1} parent=5 // pred_fallthru
      _
    %p174 = scmp.lt.s32.totalorder %s11, 2
    // Predicated region
    $region29: #{tpu_custom_call.1} parent=5 // pred_check
      %p175 = pneg %p174
    $region30: #{tpu_custom_call.1} parent=5 // pred_check_branch
      %177 = sbr.rel (%p175) target = $region32
    $region31: #{tpu_custom_call.1} parent=5 // pred_region
      // Predicated region
      $region33: #{tpu_custom_call.1} parent=31 // pred_check
        %p178 = pneg %p31
      $region34: #{tpu_custom_call.1} parent=31 // pred_check_branch
        %180 = sbr.rel (%p178) target = $region36
      $region35: #{tpu_custom_call.1} parent=31 // pred_region
        %p181 = scmp.lt.s32.totalorder %s11, 1
        %s182 = scalar_select %p181, %s11, 1
        %s183 = smul.addr %s182, 32
        %s184 = smul.addr %s183, 8
        %s185 = scalar_lea.vmem %s0, %s184
      $region36: #{tpu_custom_call.1} parent=31 // pred_fallthru
        _
    $region32: #{tpu_custom_call.1} parent=5 // pred_fallthru
      _
    %p186 = scmp.le.s32.totalorder 1, %s11
    %p187 = scmp.lt.s32.totalorder %s11, 3
    %p188 = pnand %p186, %p187
    %p189 = pneg %p188
    // Predicated region
    $region37: #{tpu_custom_call.1} parent=5 // pred_check
      _
    $region38: #{tpu_custom_call.1} parent=5 // pred_check_branch
      %191 = sbr.rel (%p188) target = $region40
    $region39: #{tpu_custom_call.1} parent=5 // pred_region
      %s192 = ssub.s32 %s11, 1
      %p193 = scmp.lt.s32.totalorder %s16, 1
      %s194 = scalar_select %p193, %s16, 1
      %s195 = smul.addr %s194, 32
      %s196 = smul.addr %s195, 8
      %s197 = scalar_lea.vmem %s0, %s196
      %p198 = pneg %p37
      %p199 = pneg %p34
      %p200 = pneg %p58
      %p201 = pneg %p55
      %p202 = pneg %p79
      %p203 = pneg %p76
      %p204 = pneg %p100
      %p205 = pneg %p97
      %p206 = pneg %p121
      %p207 = pneg %p118
      %p208 = pneg %p147
      %p209 = pneg %p144
      %p210 = scmp.lt.s32.totalorder %s16, 1
      %s211 = scalar_select %p210, %s16, 1
      %s212 = smul.addr %s211, 32
      %s213 = smul.addr %s212, 8
      %s214 = scalar_lea.vmem %s5, %s213
      %p215 = scmp.lt.s32.totalorder %s16, 1
      %s216 = scalar_select %p215, %s16, 1
      %s217 = smul.addr %s216, 32
      %s218 = smul.addr %s217, 8
      %s219 = scalar_lea.vmem %s0, %s218
      %p220 = scmp.lt.s32.totalorder %s16, 1
      %s221 = scalar_select %p220, %s16, 1
      %s222 = smul.addr %s221, 32
      %s223 = smul.addr %s222, 8
      %s224 = scalar_lea.vmem %s5, %s223
      %v226 = vlaneseq
      %v227 = vshrl.u32 %v226, 7
      %v228 = vrot.slane %v227, 7
      %vm229 = vcmp.eq.s32.totalorder %v228, 7
      %vm230 = vmxor %vm229, 1
      %v231 = vadd.s32 %v227, 8
      %v232 = vadd.s32 %v227, 16
      %v233 = vadd.s32 %v227, 24
      %v234 = vadd.s32 %v227, 32
      %v235 = vadd.s32 %v227, 40
      %v236 = vadd.s32 %v227, 48
      %v237 = vadd.s32 %v227, 56
      %v238 = vadd.s32 %v227, 64
      %v239 = vadd.s32 %v227, 72
      %v240 = vadd.s32 %v227, 80
      %v241 = vadd.s32 %v227, 88
      %v242 = vadd.s32 %v227, 96
      %v243 = vadd.s32 %v227, 104
      %v244 = vadd.s32 %v227, 112
      %v245 = vadd.s32 %v227, 120
      %v246 = vadd.s32 %v227, 128
      %v247 = vadd.s32 %v227, 136
      %v248 = vadd.s32 %v227, 144
      %v249 = vadd.s32 %v227, 152
      %v250 = vadd.s32 %v227, 160
      %v251 = vadd.s32 %v227, 168
      %v252 = vadd.s32 %v227, 176
      %v253 = vadd.s32 %v227, 184
      %v254 = vadd.s32 %v227, 192
      %v255 = vadd.s32 %v227, 200
      %v256 = vadd.s32 %v227, 208
      %v257 = vadd.s32 %v227, 216
      %v258 = vadd.s32 %v227, 224
      %v259 = vadd.s32 %v227, 232
      %v260 = vadd.s32 %v227, 240
      %v261 = vadd.s32 %v227, 248
      %v262 = vadd.s32 %v227, 256
      %v263 = vadd.s32 %v227, 264
      %v264 = vadd.s32 %v227, 272
      %v265 = vadd.s32 %v227, 280
      %vm266 = vcmp.lt.s32.totalorder %v227, 0
      %v267 = vsub.s32 0, %v227
      %v268 = vsel %vm266, %v267, %v227
      %v269 = vshrl.u32 %v268, 4
      %v270 = vand.u32 %v268, 15
      %v271 = vsub.s32 0, %v270
      %v272 = vsel %vm266, %v271, %v270
      %vm273 = vcmp.lt.s32.totalorder %v231, 0
      %v274 = vsub.s32 0, %v231
      %v275 = vsel %vm273, %v274, %v231
      %v276 = vshrl.u32 %v275, 4
      %v277 = vand.u32 %v275, 15
      %v278 = vsub.s32 0, %v277
      %v279 = vsel %vm273, %v278, %v277
      %vm280 = vcmp.lt.s32.totalorder %v232, 0
      %v281 = vsub.s32 0, %v232
      %v282 = vsel %vm280, %v281, %v232
      %v283 = vshrl.u32 %v282, 4
      %v284 = vand.u32 %v282, 15
      %v285 = vsub.s32 0, %v284
      %v286 = vsel %vm280, %v285, %v284
      %vm287 = vcmp.lt.s32.totalorder %v233, 0
      %v288 = vsub.s32 0, %v233
      %v289 = vsel %vm287, %v288, %v233
      %v290 = vshrl.u32 %v289, 4
      %v291 = vand.u32 %v289, 15
      %v292 = vsub.s32 0, %v291
      %v293 = vsel %vm287, %v292, %v291
      %vm294 = vcmp.lt.s32.totalorder %v234, 0
      %v295 = vsub.s32 0, %v234
      %v296 = vsel %vm294, %v295, %v234
      %v297 = vshrl.u32 %v296, 4
      %v298 = vand.u32 %v296, 15
      %v299 = vsub.s32 0, %v298
      %v300 = vsel %vm294, %v299, %v298
      %vm301 = vcmp.lt.s32.totalorder %v235, 0
      %v302 = vsub.s32 0, %v235
      %v303 = vsel %vm301, %v302, %v235
      %v304 = vshrl.u32 %v303, 4
      %v305 = vand.u32 %v303, 15
      %v306 = vsub.s32 0, %v305
      %v307 = vsel %vm301, %v306, %v305
      %vm308 = vcmp.lt.s32.totalorder %v236, 0
      %v309 = vsub.s32 0, %v236
      %v310 = vsel %vm308, %v309, %v236
      %v311 = vshrl.u32 %v310, 4
      %v312 = vand.u32 %v310, 15
      %v313 = vsub.s32 0, %v312
      %v314 = vsel %vm308, %v313, %v312
      %vm315 = vcmp.lt.s32.totalorder %v237, 0
      %v316 = vsub.s32 0, %v237
      %v317 = vsel %vm315, %v316, %v237
      %v318 = vshrl.u32 %v317, 4
      %v319 = vand.u32 %v317, 15
      %v320 = vsub.s32 0, %v319
      %v321 = vsel %vm315, %v320, %v319
      %vm322 = vcmp.lt.s32.totalorder %v238, 0
      %v323 = vsub.s32 0, %v238
      %v324 = vsel %vm322, %v323, %v238
      %v325 = vshrl.u32 %v324, 4
      %v326 = vand.u32 %v324, 15
      %v327 = vsub.s32 0, %v326
      %v328 = vsel %vm322, %v327, %v326
      %vm329 = vcmp.lt.s32.totalorder %v239, 0
      %v330 = vsub.s32 0, %v239
      %v331 = vsel %vm329, %v330, %v239
      %v332 = vshrl.u32 %v331, 4
      %v333 = vand.u32 %v331, 15
      %v334 = vsub.s32 0, %v333
      %v335 = vsel %vm329, %v334, %v333
      %vm336 = vcmp.lt.s32.totalorder %v240, 0
      %v337 = vsub.s32 0, %v240
      %v338 = vsel %vm336, %v337, %v240
      %v339 = vshrl.u32 %v338, 4
      %v340 = vand.u32 %v338, 15
      %v341 = vsub.s32 0, %v340
      %v342 = vsel %vm336, %v341, %v340
      %vm343 = vcmp.lt.s32.totalorder %v241, 0
      %v344 = vsub.s32 0, %v241
      %v345 = vsel %vm343, %v344, %v241
      %v346 = vshrl.u32 %v345, 4
      %v347 = vand.u32 %v345, 15
      %v348 = vsub.s32 0, %v347
      %v349 = vsel %vm343, %v348, %v347
      %vm350 = vcmp.lt.s32.totalorder %v242, 0
      %v351 = vsub.s32 0, %v242
      %v352 = vsel %vm350, %v351, %v242
      %v353 = vshrl.u32 %v352, 4
      %v354 = vand.u32 %v352, 15
      %v355 = vsub.s32 0, %v354
      %v356 = vsel %vm350, %v355, %v354
      %vm357 = vcmp.lt.s32.totalorder %v243, 0
      %v358 = vsub.s32 0, %v243
      %v359 = vsel %vm357, %v358, %v243
      %v360 = vshrl.u32 %v359, 4
      %v361 = vand.u32 %v359, 15
      %v362 = vsub.s32 0, %v361
      %v363 = vsel %vm357, %v362, %v361
      %vm364 = vcmp.lt.s32.totalorder %v244, 0
      %v365 = vsub.s32 0, %v244
      %v366 = vsel %vm364, %v365, %v244
      %v367 = vshrl.u32 %v366, 4
      %v368 = vand.u32 %v366, 15
      %v369 = vsub.s32 0, %v368
      %v370 = vsel %vm364, %v369, %v368
      %vm371 = vcmp.lt.s32.totalorder %v245, 0
      %v372 = vsub.s32 0, %v245
      %v373 = vsel %vm371, %v372, %v245
      %v374 = vshrl.u32 %v373, 4
      %v375 = vand.u32 %v373, 15
      %v376 = vsub.s32 0, %v375
      %v377 = vsel %vm371, %v376, %v375
      %vm378 = vcmp.lt.s32.totalorder %v246, 0
      %v379 = vsub.s32 0, %v246
      %v380 = vsel %vm378, %v379, %v246
      %v381 = vshrl.u32 %v380, 4
      %v382 = vand.u32 %v380, 15
      %v383 = vsub.s32 0, %v382
      %v384 = vsel %vm378, %v383, %v382
      %vm385 = vcmp.lt.s32.totalorder %v247, 0
      %v386 = vsub.s32 0, %v247
      %v387 = vsel %vm385, %v386, %v247
      %v388 = vshrl.u32 %v387, 4
      %v389 = vand.u32 %v387, 15
      %v390 = vsub.s32 0, %v389
      %v391 = vsel %vm385, %v390, %v389
      %vm392 = vcmp.lt.s32.totalorder %v248, 0
      %v393 = vsub.s32 0, %v248
      %v394 = vsel %vm392, %v393, %v248
      %v395 = vshrl.u32 %v394, 4
      %v396 = vand.u32 %v394, 15
      %v397 = vsub.s32 0, %v396
      %v398 = vsel %vm392, %v397, %v396
      %vm399 = vcmp.lt.s32.totalorder %v249, 0
      %v400 = vsub.s32 0, %v249
      %v401 = vsel %vm399, %v400, %v249
      %v402 = vshrl.u32 %v401, 4
      %v403 = vand.u32 %v401, 15
      %v404 = vsub.s32 0, %v403
      %v405 = vsel %vm399, %v404, %v403
      %vm406 = vcmp.lt.s32.totalorder %v250, 0
      %v407 = vsub.s32 0, %v250
      %v408 = vsel %vm406, %v407, %v250
      %v409 = vshrl.u32 %v408, 4
      %v410 = vand.u32 %v408, 15
      %v411 = vsub.s32 0, %v410
      %v412 = vsel %vm406, %v411, %v410
      %vm413 = vcmp.lt.s32.totalorder %v251, 0
      %v414 = vsub.s32 0, %v251
      %v415 = vsel %vm413, %v414, %v251
      %v416 = vshrl.u32 %v415, 4
      %v417 = vand.u32 %v415, 15
      %v418 = vsub.s32 0, %v417
      %v419 = vsel %vm413, %v418, %v417
      %vm420 = vcmp.lt.s32.totalorder %v252, 0
      %v421 = vsub.s32 0, %v252
      %v422 = vsel %vm420, %v421, %v252
      %v423 = vshrl.u32 %v422, 4
      %v424 = vand.u32 %v422, 15
      %v425 = vsub.s32 0, %v424
      %v426 = vsel %vm420, %v425, %v424
      %vm427 = vcmp.lt.s32.totalorder %v253, 0
      %v428 = vsub.s32 0, %v253
      %v429 = vsel %vm427, %v428, %v253
      %v430 = vshrl.u32 %v429, 4
      %v431 = vand.u32 %v429, 15
      %v432 = vsub.s32 0, %v431
      %v433 = vsel %vm427, %v432, %v431
      %vm434 = vcmp.lt.s32.totalorder %v254, 0
      %v435 = vsub.s32 0, %v254
      %v436 = vsel %vm434, %v435, %v254
      %v437 = vshrl.u32 %v436, 4
      %v438 = vand.u32 %v436, 15
      %v439 = vsub.s32 0, %v438
      %v440 = vsel %vm434, %v439, %v438
      %vm441 = vcmp.lt.s32.totalorder %v255, 0
      %v442 = vsub.s32 0, %v255
      %v443 = vsel %vm441, %v442, %v255
      %v444 = vshrl.u32 %v443, 4
      %v445 = vand.u32 %v443, 15
      %v446 = vsub.s32 0, %v445
      %v447 = vsel %vm441, %v446, %v445
      %vm448 = vcmp.lt.s32.totalorder %v256, 0
      %v449 = vsub.s32 0, %v256
      %v450 = vsel %vm448, %v449, %v256
      %v451 = vshrl.u32 %v450, 4
      %v452 = vand.u32 %v450, 15
      %v453 = vsub.s32 0, %v452
      %v454 = vsel %vm448, %v453, %v452
      %vm455 = vcmp.lt.s32.totalorder %v257, 0
      %v456 = vsub.s32 0, %v257
      %v457 = vsel %vm455, %v456, %v257
      %v458 = vshrl.u32 %v457, 4
      %v459 = vand.u32 %v457, 15
      %v460 = vsub.s32 0, %v459
      %v461 = vsel %vm455, %v460, %v459
      %vm462 = vcmp.lt.s32.totalorder %v258, 0
      %v463 = vsub.s32 0, %v258
      %v464 = vsel %vm462, %v463, %v258
      %v465 = vshrl.u32 %v464, 4
      %v466 = vand.u32 %v464, 15
      %v467 = vsub.s32 0, %v466
      %v468 = vsel %vm462, %v467, %v466
      %vm469 = vcmp.lt.s32.totalorder %v259, 0
      %v470 = vsub.s32 0, %v259
      %v471 = vsel %vm469, %v470, %v259
      %v472 = vshrl.u32 %v471, 4
      %v473 = vand.u32 %v471, 15
      %v474 = vsub.s32 0, %v473
      %v475 = vsel %vm469, %v474, %v473
      %vm476 = vcmp.lt.s32.totalorder %v260, 0
      %v477 = vsub.s32 0, %v260
      %v478 = vsel %vm476, %v477, %v260
      %v479 = vshrl.u32 %v478, 4
      %v480 = vand.u32 %v478, 15
      %v481 = vsub.s32 0, %v480
      %v482 = vsel %vm476, %v481, %v480
      %vm483 = vcmp.lt.s32.totalorder %v261, 0
      %v484 = vsub.s32 0, %v261
      %v485 = vsel %vm483, %v484, %v261
      %v486 = vshrl.u32 %v485, 4
      %v487 = vand.u32 %v485, 15
      %v488 = vsub.s32 0, %v487
      %v489 = vsel %vm483, %v488, %v487
      %vm490 = vcmp.lt.s32.totalorder %v262, 0
      %v491 = vsub.s32 0, %v262
      %v492 = vsel %vm490, %v491, %v262
      %v493 = vshrl.u32 %v492, 4
      %v494 = vand.u32 %v492, 15
      %v495 = vsub.s32 0, %v494
      %v496 = vsel %vm490, %v495, %v494
      %vm497 = vcmp.lt.s32.totalorder %v263, 0
      %v498 = vsub.s32 0, %v263
      %v499 = vsel %vm497, %v498, %v263
      %v500 = vshrl.u32 %v499, 4
      %v501 = vand.u32 %v499, 15
      %v502 = vsub.s32 0, %v501
      %v503 = vsel %vm497, %v502, %v501
      %vm504 = vcmp.lt.s32.totalorder %v264, 0
      %v505 = vsub.s32 0, %v264
      %v506 = vsel %vm504, %v505, %v264
      %v507 = vshrl.u32 %v506, 4
      %v508 = vand.u32 %v506, 15
      %v509 = vsub.s32 0, %v508
      %v510 = vsel %vm504, %v509, %v508
      %vm511 = vcmp.lt.s32.totalorder %v265, 0
      %v512 = vsub.s32 0, %v265
      %v513 = vsel %vm511, %v512, %v265
      %v514 = vshrl.u32 %v513, 4
      %v515 = vand.u32 %v513, 15
      %v516 = vsub.s32 0, %v515
      %v517 = vsel %vm511, %v516, %v515
      %vm518 = vcmp.ne.s32.totalorder %v272, 0
      %vm519 = vcmp.ne.s32.totalorder %v279, 0
      %vm520 = vcmp.ne.s32.totalorder %v286, 0
      %vm521 = vcmp.ne.s32.totalorder %v293, 0
      %vm522 = vcmp.ne.s32.totalorder %v300, 0
      %vm523 = vcmp.ne.s32.totalorder %v307, 0
      %vm524 = vcmp.ne.s32.totalorder %v314, 0
      %vm525 = vcmp.ne.s32.totalorder %v321, 0
      %vm526 = vcmp.ne.s32.totalorder %v328, 0
      %vm527 = vcmp.ne.s32.totalorder %v335, 0
      %vm528 = vcmp.ne.s32.totalorder %v342, 0
      %vm529 = vcmp.ne.s32.totalorder %v349, 0
      %vm530 = vcmp.ne.s32.totalorder %v356, 0
      %vm531 = vcmp.ne.s32.totalorder %v363, 0
      %vm532 = vcmp.ne.s32.totalorder %v370, 0
      %vm533 = vcmp.ne.s32.totalorder %v377, 0
      %vm534 = vcmp.ne.s32.totalorder %v384, 0
      %vm535 = vcmp.ne.s32.totalorder %v391, 0
      %vm536 = vcmp.ne.s32.totalorder %v398, 0
      %vm537 = vcmp.ne.s32.totalorder %v405, 0
      %vm538 = vcmp.ne.s32.totalorder %v412, 0
      %vm539 = vcmp.ne.s32.totalorder %v419, 0
      %vm540 = vcmp.ne.s32.totalorder %v426, 0
      %vm541 = vcmp.ne.s32.totalorder %v433, 0
      %vm542 = vcmp.ne.s32.totalorder %v440, 0
      %vm543 = vcmp.ne.s32.totalorder %v447, 0
      %vm544 = vcmp.ne.s32.totalorder %v454, 0
      %vm545 = vcmp.ne.s32.totalorder %v461, 0
      %vm546 = vcmp.ne.s32.totalorder %v468, 0
      %vm547 = vcmp.ne.s32.totalorder %v475, 0
      %vm548 = vcmp.ne.s32.totalorder %v482, 0
      %vm549 = vcmp.ne.s32.totalorder %v489, 0
      %vm550 = vcmp.ne.s32.totalorder %v496, 0
      %vm551 = vcmp.ne.s32.totalorder %v503, 0
      %vm552 = vcmp.ne.s32.totalorder %v510, 0
      %vm553 = vcmp.ne.s32.totalorder %v517, 0
      %vm554 = vcmp.lt.s32.totalorder %v272, 0
      %vm555 = vcmp.lt.s32.totalorder %v279, 0
      %vm556 = vcmp.lt.s32.totalorder %v286, 0
      %vm557 = vcmp.lt.s32.totalorder %v293, 0
      %vm558 = vcmp.lt.s32.totalorder %v300, 0
      %vm559 = vcmp.lt.s32.totalorder %v307, 0
      %vm560 = vcmp.lt.s32.totalorder %v314, 0
      %vm561 = vcmp.lt.s32.totalorder %v321, 0
      %vm562 = vcmp.lt.s32.totalorder %v328, 0
      %vm563 = vcmp.lt.s32.totalorder %v335, 0
      %vm564 = vcmp.lt.s32.totalorder %v342, 0
      %vm565 = vcmp.lt.s32.totalorder %v349, 0
      %vm566 = vcmp.lt.s32.totalorder %v356, 0
      %vm567 = vcmp.lt.s32.totalorder %v363, 0
      %vm568 = vcmp.lt.s32.totalorder %v370, 0
      %vm569 = vcmp.lt.s32.totalorder %v377, 0
      %vm570 = vcmp.lt.s32.totalorder %v384, 0
      %vm571 = vcmp.lt.s32.totalorder %v391, 0
      %vm572 = vcmp.lt.s32.totalorder %v398, 0
      %vm573 = vcmp.lt.s32.totalorder %v405, 0
      %vm574 = vcmp.lt.s32.totalorder %v412, 0
      %vm575 = vcmp.lt.s32.totalorder %v419, 0
      %vm576 = vcmp.lt.s32.totalorder %v426, 0
      %vm577 = vcmp.lt.s32.totalorder %v433, 0
      %vm578 = vcmp.lt.s32.totalorder %v440, 0
      %vm579 = vcmp.lt.s32.totalorder %v447, 0
      %vm580 = vcmp.lt.s32.totalorder %v454, 0
      %vm581 = vcmp.lt.s32.totalorder %v461, 0
      %vm582 = vcmp.lt.s32.totalorder %v468, 0
      %vm583 = vcmp.lt.s32.totalorder %v475, 0
      %vm584 = vcmp.lt.s32.totalorder %v482, 0
      %vm585 = vcmp.lt.s32.totalorder %v489, 0
      %vm586 = vcmp.lt.s32.totalorder %v496, 0
      %vm587 = vcmp.lt.s32.totalorder %v503, 0
      %vm588 = vcmp.lt.s32.totalorder %v510, 0
      %vm589 = vcmp.lt.s32.totalorder %v517, 0
      %vm590 = vmand %vm554, %vm518
      %vm591 = vmand %vm555, %vm519
      %vm592 = vmand %vm556, %vm520
      %vm593 = vmand %vm557, %vm521
      %vm594 = vmand %vm558, %vm522
      %vm595 = vmand %vm559, %vm523
      %vm596 = vmand %vm560, %vm524
      %vm597 = vmand %vm561, %vm525
      %vm598 = vmand %vm562, %vm526
      %vm599 = vmand %vm563, %vm527
      %vm600 = vmand %vm564, %vm528
      %vm601 = vmand %vm565, %vm529
      %vm602 = vmand %vm566, %vm530
      %vm603 = vmand %vm567, %vm531
      %vm604 = vmand %vm568, %vm532
      %vm605 = vmand %vm569, %vm533
      %vm606 = vmand %vm570, %vm534
      %vm607 = vmand %vm571, %vm535
      %vm608 = vmand %vm572, %vm536
      %vm609 = vmand %vm573, %vm537
      %vm610 = vmand %vm574, %vm538
      %vm611 = vmand %vm575, %vm539
      %vm612 = vmand %vm576, %vm540
      %vm613 = vmand %vm577, %vm541
      %vm614 = vmand %vm578, %vm542
      %vm615 = vmand %vm579, %vm543
      %vm616 = vmand %vm580, %vm544
      %vm617 = vmand %vm581, %vm545
      %vm618 = vmand %vm582, %vm546
      %vm619 = vmand %vm583, %vm547
      %vm620 = vmand %vm584, %vm548
      %vm621 = vmand %vm585, %vm549
      %vm622 = vmand %vm586, %vm550
      %vm623 = vmand %vm587, %vm551
      %vm624 = vmand %vm588, %vm552
      %vm625 = vmand %vm589, %vm553
      %v626 = vadd.s32 %v272, 16
      %v627 = vadd.s32 %v279, 16
      %v628 = vadd.s32 %v286, 16
      %v629 = vadd.s32 %v293, 16
      %v630 = vadd.s32 %v300, 16
      %v631 = vadd.s32 %v307, 16
      %v632 = vadd.s32 %v314, 16
      %v633 = vadd.s32 %v321, 16
      %v634 = vadd.s32 %v328, 16
      %v635 = vadd.s32 %v335, 16
      %v636 = vadd.s32 %v342, 16
      %v637 = vadd.s32 %v349, 16
      %v638 = vadd.s32 %v356, 16
      %v639 = vadd.s32 %v363, 16
      %v640 = vadd.s32 %v370, 16
      %v641 = vadd.s32 %v377, 16
      %v642 = vadd.s32 %v384, 16
      %v643 = vadd.s32 %v391, 16
      %v644 = vadd.s32 %v398, 16
      %v645 = vadd.s32 %v405, 16
      %v646 = vadd.s32 %v412, 16
      %v647 = vadd.s32 %v419, 16
      %v648 = vadd.s32 %v426, 16
      %v649 = vadd.s32 %v433, 16
      %v650 = vadd.s32 %v440, 16
      %v651 = vadd.s32 %v447, 16
      %v652 = vadd.s32 %v454, 16
      %v653 = vadd.s32 %v461, 16
      %v654 = vadd.s32 %v468, 16
      %v655 = vadd.s32 %v475, 16
      %v656 = vadd.s32 %v482, 16
      %v657 = vadd.s32 %v489, 16
      %v658 = vadd.s32 %v496, 16
      %v659 = vadd.s32 %v503, 16
      %v660 = vadd.s32 %v510, 16
      %v661 = vadd.s32 %v517, 16
      %v662 = vsel %vm590, %v626, %v272
      %v663 = vsel %vm591, %v627, %v279
      %v664 = vsel %vm592, %v628, %v286
      %v665 = vsel %vm593, %v629, %v293
      %v666 = vsel %vm594, %v630, %v300
      %v667 = vsel %vm595, %v631, %v307
      %v668 = vsel %vm596, %v632, %v314
      %v669 = vsel %vm597, %v633, %v321
      %v670 = vsel %vm598, %v634, %v328
      %v671 = vsel %vm599, %v635, %v335
      %v672 = vsel %vm600, %v636, %v342
      %v673 = vsel %vm601, %v637, %v349
      %v674 = vsel %vm602, %v638, %v356
      %v675 = vsel %vm603, %v639, %v363
      %v676 = vsel %vm604, %v640, %v370
      %v677 = vsel %vm605, %v641, %v377
      %v678 = vsel %vm606, %v642, %v384
      %v679 = vsel %vm607, %v643, %v391
      %v680 = vsel %vm608, %v644, %v398
      %v681 = vsel %vm609, %v645, %v405
      %v682 = vsel %vm610, %v646, %v412
      %v683 = vsel %vm611, %v647, %v419
      %v684 = vsel %vm612, %v648, %v426
      %v685 = vsel %vm613, %v649, %v433
      %v686 = vsel %vm614, %v650, %v440
      %v687 = vsel %vm615, %v651, %v447
      %v688 = vsel %vm616, %v652, %v454
      %v689 = vsel %vm617, %v653, %v461
      %v690 = vsel %vm618, %v654, %v468
      %v691 = vsel %vm619, %v655, %v475
      %v692 = vsel %vm620, %v656, %v482
      %v693 = vsel %vm621, %v657, %v489
      %v694 = vsel %vm622, %v658, %v496
      %v695 = vsel %vm623, %v659, %v503
      %v696 = vsel %vm624, %v660, %v510
      %v697 = vsel %vm625, %v661, %v517
      %vm698 = vcmp.eq.s32.totalorder %v662, 0
      %vm699 = vcmp.eq.s32.totalorder %v663, 0
      %vm700 = vcmp.eq.s32.totalorder %v664, 0
      %vm701 = vcmp.eq.s32.totalorder %v665, 0
      %vm702 = vcmp.eq.s32.totalorder %v666, 0
      %vm703 = vcmp.eq.s32.totalorder %v667, 0
      %vm704 = vcmp.eq.s32.totalorder %v668, 0
      %vm705 = vcmp.eq.s32.totalorder %v669, 0
      %vm706 = vcmp.eq.s32.totalorder %v670, 0
      %vm707 = vcmp.eq.s32.totalorder %v671, 0
      %vm708 = vcmp.eq.s32.totalorder %v672, 0
      %vm709 = vcmp.eq.s32.totalorder %v673, 0
      %vm710 = vcmp.eq.s32.totalorder %v674, 0
      %vm711 = vcmp.eq.s32.totalorder %v675, 0
      %vm712 = vcmp.eq.s32.totalorder %v676, 0
      %vm713 = vcmp.eq.s32.totalorder %v677, 0
      %vm714 = vcmp.eq.s32.totalorder %v678, 0
      %vm715 = vcmp.eq.s32.totalorder %v679, 0
      %vm716 = vcmp.eq.s32.totalorder %v680, 0
      %vm717 = vcmp.eq.s32.totalorder %v681, 0
      %vm718 = vcmp.eq.s32.totalorder %v682, 0
      %vm719 = vcmp.eq.s32.totalorder %v683, 0
      %vm720 = vcmp.eq.s32.totalorder %v684, 0
      %vm721 = vcmp.eq.s32.totalorder %v685, 0
      %vm722 = vcmp.eq.s32.totalorder %v686, 0
      %vm723 = vcmp.eq.s32.totalorder %v687, 0
      %vm724 = vcmp.eq.s32.totalorder %v688, 0
      %vm725 = vcmp.eq.s32.totalorder %v689, 0
      %vm726 = vcmp.eq.s32.totalorder %v690, 0
      %vm727 = vcmp.eq.s32.totalorder %v691, 0
      %vm728 = vcmp.eq.s32.totalorder %v692, 0
      %vm729 = vcmp.eq.s32.totalorder %v693, 0
      %vm730 = vcmp.eq.s32.totalorder %v694, 0
      %vm731 = vcmp.eq.s32.totalorder %v695, 0
      %vm732 = vcmp.eq.s32.totalorder %v696, 0
      %vm733 = vcmp.eq.s32.totalorder %v697, 0
      %v734 = vsel %vm230, 1, 0
      %v735 = vlaneseq
      %v736 = vshrl.u32 %v735, 7
      %v737 = vsub.s32 0, %v736
      %v738 = vrot.slane %v734, %v737
      %vm739 = vcmp.eq.s32.totalorder %v738, 1
      %vm740 = vmxor %vm698, %vm739
      %vm741 = vmxor %vm699, %vm739
      %vm742 = vmxor %vm700, %vm739
      %vm743 = vmxor %vm701, %vm739
      %vm744 = vmxor %vm702, %vm739
      %vm745 = vmxor %vm703, %vm739
      %vm746 = vmxor %vm704, %vm739
      %vm747 = vmxor %vm705, %vm739
      %vm748 = vmxor %vm706, %vm739
      %vm749 = vmxor %vm707, %vm739
      %vm750 = vmxor %vm708, %vm739
      %vm751 = vmxor %vm709, %vm739
      %vm752 = vmxor %vm710, %vm739
      %vm753 = vmxor %vm711, %vm739
      %vm754 = vmxor %vm712, %vm739
      %vm755 = vmxor %vm713, %vm739
      %vm756 = vmxor %vm714, %vm739
      %vm757 = vmxor %vm715, %vm739
      %vm758 = vmxor %vm716, %vm739
      %vm759 = vmxor %vm717, %vm739
      %vm760 = vmxor %vm718, %vm739
      %vm761 = vmxor %vm719, %vm739
      %vm762 = vmxor %vm720, %vm739
      %vm763 = vmxor %vm721, %vm739
      %vm764 = vmxor %vm722, %vm739
      %vm765 = vmxor %vm723, %vm739
      %vm766 = vmxor %vm724, %vm739
      %vm767 = vmxor %vm725, %vm739
      %vm768 = vmxor %vm726, %vm739
      %vm769 = vmxor %vm727, %vm739
      %vm770 = vmxor %vm728, %vm739
      %vm771 = vmxor %vm729, %vm739
      %vm772 = vmxor %vm730, %vm739
      %vm773 = vmxor %vm731, %vm739
      %vm774 = vmxor %vm732, %vm739
      %vm775 = vmxor %vm733, %vm739
      %vm776 = vcmp.eq.s32.totalorder %v662, 15
      %vm777 = vcmp.eq.s32.totalorder %v663, 15
      %vm778 = vcmp.eq.s32.totalorder %v664, 15
      %vm779 = vcmp.eq.s32.totalorder %v665, 15
      %vm780 = vcmp.eq.s32.totalorder %v666, 15
      %vm781 = vcmp.eq.s32.totalorder %v667, 15
      %vm782 = vcmp.eq.s32.totalorder %v668, 15
      %vm783 = vcmp.eq.s32.totalorder %v669, 15
      %vm784 = vcmp.eq.s32.totalorder %v670, 15
      %vm785 = vcmp.eq.s32.totalorder %v671, 15
      %vm786 = vcmp.eq.s32.totalorder %v672, 15
      %vm787 = vcmp.eq.s32.totalorder %v673, 15
      %vm788 = vcmp.eq.s32.totalorder %v674, 15
      %vm789 = vcmp.eq.s32.totalorder %v675, 15
      %vm790 = vcmp.eq.s32.totalorder %v676, 15
      %vm791 = vcmp.eq.s32.totalorder %v677, 15
      %vm792 = vcmp.eq.s32.totalorder %v678, 15
      %vm793 = vcmp.eq.s32.totalorder %v679, 15
      %vm794 = vcmp.eq.s32.totalorder %v680, 15
      %vm795 = vcmp.eq.s32.totalorder %v681, 15
      %vm796 = vcmp.eq.s32.totalorder %v682, 15
      %vm797 = vcmp.eq.s32.totalorder %v683, 15
      %vm798 = vcmp.eq.s32.totalorder %v684, 15
      %vm799 = vcmp.eq.s32.totalorder %v685, 15
      %vm800 = vcmp.eq.s32.totalorder %v686, 15
      %vm801 = vcmp.eq.s32.totalorder %v687, 15
      %vm802 = vcmp.eq.s32.totalorder %v688, 15
      %vm803 = vcmp.eq.s32.totalorder %v689, 15
      %vm804 = vcmp.eq.s32.totalorder %v690, 15
      %vm805 = vcmp.eq.s32.totalorder %v691, 15
      %vm806 = vcmp.eq.s32.totalorder %v692, 15
      %vm807 = vcmp.eq.s32.totalorder %v693, 15
      %vm808 = vcmp.eq.s32.totalorder %v694, 15
      %vm809 = vcmp.eq.s32.totalorder %v695, 15
      %vm810 = vcmp.eq.s32.totalorder %v696, 15
      %vm811 = vcmp.eq.s32.totalorder %v697, 15
      %vm812 = vmxor %vm776, %vm739
      %vm813 = vmxor %vm777, %vm739
      %vm814 = vmxor %vm778, %vm739
      %vm815 = vmxor %vm779, %vm739
      %vm816 = vmxor %vm780, %vm739
      %vm817 = vmxor %vm781, %vm739
      %vm818 = vmxor %vm782, %vm739
      %vm819 = vmxor %vm783, %vm739
      %vm820 = vmxor %vm784, %vm739
      %vm821 = vmxor %vm785, %vm739
      %vm822 = vmxor %vm786, %vm739
      %vm823 = vmxor %vm787, %vm739
      %vm824 = vmxor %vm788, %vm739
      %vm825 = vmxor %vm789, %vm739
      %vm826 = vmxor %vm790, %vm739
      %vm827 = vmxor %vm791, %vm739
      %vm828 = vmxor %vm792, %vm739
      %vm829 = vmxor %vm793, %vm739
      %vm830 = vmxor %vm794, %vm739
      %vm831 = vmxor %vm795, %vm739
      %vm832 = vmxor %vm796, %vm739
      %vm833 = vmxor %vm797, %vm739
      %vm834 = vmxor %vm798, %vm739
      %vm835 = vmxor %vm799, %vm739
      %vm836 = vmxor %vm800, %vm739
      %vm837 = vmxor %vm801, %vm739
      %vm838 = vmxor %vm802, %vm739
      %vm839 = vmxor %vm803, %vm739
      %vm840 = vmxor %vm804, %vm739
      %vm841 = vmxor %vm805, %vm739
      %vm842 = vmxor %vm806, %vm739
      %vm843 = vmxor %vm807, %vm739
      %vm844 = vmxor %vm808, %vm739
      %vm845 = vmxor %vm809, %vm739
      %vm846 = vmxor %vm810, %vm739
      %vm847 = vmxor %vm811, %vm739
      %v848 = vld [vmem:[%s219] sm:$0xff]
      %v849 = vld [vmem:[%s219 + $0x8] sm:$0xff]
      %v850 = vld [vmem:[%s219 + $0x10] sm:$0xff]
      %v851 = vld [vmem:[%s219 + $0x18] sm:$0xff]
      %v852 = vld [vmem:[%s219 + $0x20] sm:$0xff]
      %v853 = vld [vmem:[%s219 + $0x28] sm:$0xff]
      %v854 = vld [vmem:[%s219 + $0x30] sm:$0xff]
      %v855 = vld [vmem:[%s219 + $0x38] sm:$0xff]
      %v856 = vld [vmem:[%s219 + $0x40] sm:$0xff]
      %v857 = vld [vmem:[%s219 + $0x48] sm:$0xff]
      %v858 = vld [vmem:[%s219 + $0x50] sm:$0xff]
      %v859 = vld [vmem:[%s219 + $0x58] sm:$0xff]
      %v860 = vld [vmem:[%s219 + $0x60] sm:$0xff]
      %v861 = vld [vmem:[%s219 + $0x68] sm:$0xff]
      %v862 = vld [vmem:[%s219 + $0x70] sm:$0xff]
      %v863 = vld [vmem:[%s219 + $0x78] sm:$0xff]
      %v864 = vld [vmem:[%s219 + $0x80] sm:$0xff]
      %v865 = vld [vmem:[%s219 + $0x88] sm:$0xff]
      %v866 = vld [vmem:[%s219 + $0x90] sm:$0xff]
      %v867 = vld [vmem:[%s219 + $0x98] sm:$0xff]
      %v868 = vld [vmem:[%s219 + $0xa0] sm:$0xff]
      %v869 = vld [vmem:[%s219 + $0xa8] sm:$0xff]
      %v870 = vld [vmem:[%s219 + $0xb0] sm:$0xff]
      %v871 = vld [vmem:[%s219 + $0xb8] sm:$0xff]
      %v872 = vld [vmem:[%s219 + $0xc0] sm:$0xff]
      %v873 = vld [vmem:[%s219 + $0xc8] sm:$0xff]
      %v874 = vld [vmem:[%s219 + $0xd0] sm:$0xff]
      %v875 = vld [vmem:[%s219 + $0xd8] sm:$0xff]
      %v876 = vld [vmem:[%s219 + $0xe0] sm:$0xff]
      %v877 = vld [vmem:[%s219 + $0xe8] sm:$0xff]
      %v878 = vld [vmem:[%s219 + $0xf0] sm:$0xff]
      %v879 = vld [vmem:[%s219 + $0xf8] sm:$0xff]
      %v880 = vrot.slane %v850, 7
      %v881 = vrot.slane %v851, 7
      %v882 = vrot.slane %v848, 7
      %v883 = vrot.slane %v849, 7
      %v884 = vrot.slane %v852, 7
      %v885 = vrot.slane %v853, 7
      %v886 = vrot.slane %v854, 7
      %v887 = vrot.slane %v855, 7
      %v888 = vrot.slane %v856, 7
      %v889 = vrot.slane %v857, 7
      %v890 = vrot.slane %v858, 7
      %v891 = vrot.slane %v859, 7
      %v892 = vrot.slane %v860, 7
      %v893 = vrot.slane %v861, 7
      %v894 = vrot.slane %v862, 7
      %v895 = vrot.slane %v863, 7
      %v896 = vrot.slane %v864, 7
      %v897 = vrot.slane %v865, 7
      %v898 = vrot.slane %v866, 7
      %v899 = vrot.slane %v867, 7
      %v900 = vrot.slane %v868, 7
      %v901 = vrot.slane %v869, 7
      %v902 = vrot.slane %v870, 7
      %v903 = vrot.slane %v871, 7
      %v904 = vrot.slane %v872, 7
      %v905 = vrot.slane %v873, 7
      %v906 = vrot.slane %v874, 7
      %v907 = vrot.slane %v875, 7
      %v908 = vrot.slane %v876, 7
      %v909 = vrot.slane %v877, 7
      %v910 = vrot.slane %v878, 7
      %v911 = vrot.slane %v879, 7
      %vm912 = vcmp.lt.s32.totalorder %v227, 1
      %v913 = vsel %vm912, %v908, %v909
      %v914 = vsel %vm912, %v911, %v908
      %v915 = vsel %vm912, %v910, %v911
      %v916 = vsel %vm912, %v909, %v910
      %v917 = vsel %vm912, %v907, %v908
      %v918 = vsel %vm912, %v906, %v907
      %v919 = vsel %vm912, %v905, %v906
      %v920 = vsel %vm912, %v904, %v905
      %v921 = vsel %vm912, %v903, %v904
      %v922 = vsel %vm912, %v902, %v903
      %v923 = vsel %vm912, %v901, %v902
      %v924 = vsel %vm912, %v900, %v901
      %v925 = vsel %vm912, %v899, %v900
      %v926 = vsel %vm912, %v898, %v899
      %v927 = vsel %vm912, %v897, %v898
      %v928 = vsel %vm912, %v896, %v897
      %v929 = vsel %vm912, %v895, %v896
      %v930 = vsel %vm912, %v894, %v895
      %v931 = vsel %vm912, %v893, %v894
      %v932 = vsel %vm912, %v892, %v893
      %v933 = vsel %vm912, %v891, %v892
      %v934 = vsel %vm912, %v890, %v891
      %v935 = vsel %vm912, %v889, %v890
      %v936 = vsel %vm912, %v888, %v889
      %v937 = vsel %vm912, %v887, %v888
      %v938 = vsel %vm912, %v886, %v887
      %v939 = vsel %vm912, %v885, %v886
      %v940 = vsel %vm912, %v884, %v885
      %v941 = vsel %vm912, %v881, %v884
      %v942 = vsel %vm912, %v880, %v881
      %v943 = vsel %vm912, %v883, %v880
      %v944 = vsel %vm912, %v882, %v883
      %v945 = vsel %vm912, %v881, %v882
      %v946 = vsel %vm912, %v909, %v880
      %v947 = vrot.slane %v850, 1
      %v948 = vrot.slane %v851, 1
      %v949 = vrot.slane %v848, 1
      %v950 = vrot.slane %v849, 1
      %v951 = vrot.slane %v852, 1
      %v952 = vrot.slane %v853, 1
      %v953 = vrot.slane %v854, 1
      %v954 = vrot.slane %v855, 1
      %v955 = vrot.slane %v856, 1
      %v956 = vrot.slane %v857, 1
      %v957 = vrot.slane %v858, 1
      %v958 = vrot.slane %v859, 1
      %v959 = vrot.slane %v860, 1
      %v960 = vrot.slane %v861, 1
      %v961 = vrot.slane %v862, 1
      %v962 = vrot.slane %v863, 1
      %v963 = vrot.slane %v864, 1
      %v964 = vrot.slane %v865, 1
      %v965 = vrot.slane %v866, 1
      %v966 = vrot.slane %v867, 1
      %v967 = vrot.slane %v868, 1
      %v968 = vrot.slane %v869, 1
      %v969 = vrot.slane %v870, 1
      %v970 = vrot.slane %v871, 1
      %v971 = vrot.slane %v872, 1
      %v972 = vrot.slane %v873, 1
      %v973 = vrot.slane %v874, 1
      %v974 = vrot.slane %v875, 1
      %v975 = vrot.slane %v876, 1
      %v976 = vrot.slane %v877, 1
      %v977 = vrot.slane %v878, 1
      %v978 = vrot.slane %v879, 1
      %vm979 = vcmp.lt.s32.totalorder %v227, 7
      %v980 = vsel %vm979, %v975, %v976
      %v981 = vsel %vm979, %v978, %v975
      %v982 = vsel %vm979, %v977, %v978
      %v983 = vsel %vm979, %v976, %v977
      %v984 = vsel %vm979, %v974, %v975
      %v985 = vsel %vm979, %v973, %v974
      %v986 = vsel %vm979, %v972, %v973
      %v987 = vsel %vm979, %v971, %v972
      %v988 = vsel %vm979, %v970, %v971
      %v989 = vsel %vm979, %v969, %v970
      %v990 = vsel %vm979, %v968, %v969
      %v991 = vsel %vm979, %v967, %v968
      %v992 = vsel %vm979, %v966, %v967
      %v993 = vsel %vm979, %v965, %v966
      %v994 = vsel %vm979, %v964, %v965
      %v995 = vsel %vm979, %v963, %v964
      %v996 = vsel %vm979, %v962, %v963
      %v997 = vsel %vm979, %v961, %v962
      %v998 = vsel %vm979, %v960, %v961
      %v999 = vsel %vm979, %v959, %v960
      %v1000 = vsel %vm979, %v958, %v959
      %v1001 = vsel %vm979, %v957, %v958
      %v1002 = vsel %vm979, %v956, %v957
      %v1003 = vsel %vm979, %v955, %v956
      %v1004 = vsel %vm979, %v954, %v955
      %v1005 = vsel %vm979, %v953, %v954
      %v1006 = vsel %vm979, %v952, %v953
      %v1007 = vsel %vm979, %v951, %v952
      %v1008 = vsel %vm979, %v948, %v951
      %v1009 = vsel %vm979, %v947, %v948
      %v1010 = vsel %vm979, %v950, %v947
      %v1011 = vsel %vm979, %v949, %v950
      %v1012 = vsel %vm979, %v948, %v949
      %v1013 = vsel %vm979, %v976, %v947
      %v1014 = vsel %vm740, 1, 0
      %v1015 = vsel %vm741, 1, 0
      %v1016 = vsel %vm742, 1, 0
      %v1017 = vsel %vm743, 1, 0
      %v1018 = vsel %vm744, 1, 0
      %v1019 = vsel %vm745, 1, 0
      %v1020 = vsel %vm746, 1, 0
      %v1021 = vsel %vm747, 1, 0
      %v1022 = vsel %vm748, 1, 0
      %v1023 = vsel %vm749, 1, 0
      %v1024 = vsel %vm750, 1, 0
      %v1025 = vsel %vm751, 1, 0
      %v1026 = vsel %vm752, 1, 0
      %v1027 = vsel %vm753, 1, 0
      %v1028 = vsel %vm754, 1, 0
      %v1029 = vsel %vm755, 1, 0
      %v1030 = vsel %vm756, 1, 0
      %v1031 = vsel %vm757, 1, 0
      %v1032 = vsel %vm758, 1, 0
      %v1033 = vsel %vm759, 1, 0
      %v1034 = vsel %vm760, 1, 0
      %v1035 = vsel %vm761, 1, 0
      %v1036 = vsel %vm762, 1, 0
      %v1037 = vsel %vm763, 1, 0
      %v1038 = vsel %vm764, 1, 0
      %v1039 = vsel %vm765, 1, 0
      %v1040 = vsel %vm766, 1, 0
      %v1041 = vsel %vm767, 1, 0
      %v1042 = vsel %vm768, 1, 0
      %v1043 = vsel %vm769, 1, 0
      %v1044 = vsel %vm770, 1, 0
      %v1045 = vsel %vm771, 1, 0
      %v1046 = vsel %vm772, 1, 0
      %v1047 = vsel %vm773, 1, 0
      %v1048 = vsel %vm774, 1, 0
      %v1049 = vsel %vm775, 1, 0
      %1050 = vset.pattern.permute.xlu0 0
      %1051 = vperm.xlu0 %1050, %v1014
      %v1052 = vpop.permute.xlu0 %1051
      %1053 = vset.pattern.permute.xlu0 0
      %1054 = vperm.xlu0 %1053, %v1015
      %v1055 = vpop.permute.xlu0 %1054
      %1056 = vset.pattern.permute.xlu0 0
      %1057 = vperm.xlu0 %1056, %v1016
      %v1058 = vpop.permute.xlu0 %1057
      %1059 = vset.pattern.permute.xlu0 0
      %1060 = vperm.xlu0 %1059, %v1017
      %v1061 = vpop.permute.xlu0 %1060
      %1062 = vset.pattern.permute.xlu0 0
      %1063 = vperm.xlu0 %1062, %v1018
      %v1064 = vpop.permute.xlu0 %1063
      %1065 = vset.pattern.permute.xlu0 0
      %1066 = vperm.xlu0 %1065, %v1019
      %v1067 = vpop.permute.xlu0 %1066
      %1068 = vset.pattern.permute.xlu0 0
      %1069 = vperm.xlu0 %1068, %v1020
      %v1070 = vpop.permute.xlu0 %1069
      %1071 = vset.pattern.permute.xlu0 0
      %1072 = vperm.xlu0 %1071, %v1021
      %v1073 = vpop.permute.xlu0 %1072
      %1074 = vset.pattern.permute.xlu0 0
      %1075 = vperm.xlu0 %1074, %v1022
      %v1076 = vpop.permute.xlu0 %1075
      %1077 = vset.pattern.permute.xlu0 0
      %1078 = vperm.xlu0 %1077, %v1023
      %v1079 = vpop.permute.xlu0 %1078
      %1080 = vset.pattern.permute.xlu0 0
      %1081 = vperm.xlu0 %1080, %v1024
      %v1082 = vpop.permute.xlu0 %1081
      %1083 = vset.pattern.permute.xlu0 0
      %1084 = vperm.xlu0 %1083, %v1025
      %v1085 = vpop.permute.xlu0 %1084
      %1086 = vset.pattern.permute.xlu0 0
      %1087 = vperm.xlu0 %1086, %v1026
      %v1088 = vpop.permute.xlu0 %1087
      %1089 = vset.pattern.permute.xlu0 0
      %1090 = vperm.xlu0 %1089, %v1027
      %v1091 = vpop.permute.xlu0 %1090
      %1092 = vset.pattern.permute.xlu0 0
      %1093 = vperm.xlu0 %1092, %v1028
      %v1094 = vpop.permute.xlu0 %1093
      %1095 = vset.pattern.permute.xlu0 0
      %1096 = vperm.xlu0 %1095, %v1029
      %v1097 = vpop.permute.xlu0 %1096
      %1098 = vset.pattern.permute.xlu0 0
      %1099 = vperm.xlu0 %1098, %v1030
      %v1100 = vpop.permute.xlu0 %1099
      %1101 = vset.pattern.permute.xlu0 0
      %1102 = vperm.xlu0 %1101, %v1031
      %v1103 = vpop.permute.xlu0 %1102
      %1104 = vset.pattern.permute.xlu0 0
      %1105 = vperm.xlu0 %1104, %v1032
      %v1106 = vpop.permute.xlu0 %1105
      %1107 = vset.pattern.permute.xlu0 0
      %1108 = vperm.xlu0 %1107, %v1033
      %v1109 = vpop.permute.xlu0 %1108
      %1110 = vset.pattern.permute.xlu0 0
      %1111 = vperm.xlu0 %1110, %v1034
      %v1112 = vpop.permute.xlu0 %1111
      %1113 = vset.pattern.permute.xlu0 0
      %1114 = vperm.xlu0 %1113, %v1035
      %v1115 = vpop.permute.xlu0 %1114
      %1116 = vset.pattern.permute.xlu0 0
      %1117 = vperm.xlu0 %1116, %v1036
      %v1118 = vpop.permute.xlu0 %1117
      %1119 = vset.pattern.permute.xlu0 0
      %1120 = vperm.xlu0 %1119, %v1037
      %v1121 = vpop.permute.xlu0 %1120
      %1122 = vset.pattern.permute.xlu0 0
      %1123 = vperm.xlu0 %1122, %v1038
      %v1124 = vpop.permute.xlu0 %1123
      %1125 = vset.pattern.permute.xlu0 0
      %1126 = vperm.xlu0 %1125, %v1039
      %v1127 = vpop.permute.xlu0 %1126
      %1128 = vset.pattern.permute.xlu0 0
      %1129 = vperm.xlu0 %1128, %v1040
      %v1130 = vpop.permute.xlu0 %1129
      %1131 = vset.pattern.permute.xlu0 0
      %1132 = vperm.xlu0 %1131, %v1041
      %v1133 = vpop.permute.xlu0 %1132
      %1134 = vset.pattern.permute.xlu0 0
      %1135 = vperm.xlu0 %1134, %v1042
      %v1136 = vpop.permute.xlu0 %1135
      %1137 = vset.pattern.permute.xlu0 0
      %1138 = vperm.xlu0 %1137, %v1043
      %v1139 = vpop.permute.xlu0 %1138
      %1140 = vset.pattern.permute.xlu0 0
      %1141 = vperm.xlu0 %1140, %v1044
      %v1142 = vpop.permute.xlu0 %1141
      %1143 = vset.pattern.permute.xlu0 0
      %1144 = vperm.xlu0 %1143, %v1045
      %v1145 = vpop.permute.xlu0 %1144
      %1146 = vset.pattern.permute.xlu0 0
      %1147 = vperm.xlu0 %1146, %v1046
      %v1148 = vpop.permute.xlu0 %1147
      %1149 = vset.pattern.permute.xlu0 0
      %1150 = vperm.xlu0 %1149, %v1047
      %v1151 = vpop.permute.xlu0 %1150
      %1152 = vset.pattern.permute.xlu0 0
      %1153 = vperm.xlu0 %1152, %v1048
      %v1154 = vpop.permute.xlu0 %1153
      %1155 = vset.pattern.permute.xlu0 0
      %1156 = vperm.xlu0 %1155, %v1049
      %v1157 = vpop.permute.xlu0 %1156
      %vm1158 = vcmp.eq.s32.totalorder %v1052, 1
      %vm1159 = vcmp.eq.s32.totalorder %v1055, 1
      %vm1160 = vcmp.eq.s32.totalorder %v1058, 1
      %vm1161 = vcmp.eq.s32.totalorder %v1061, 1
      %vm1162 = vcmp.eq.s32.totalorder %v1064, 1
      %vm1163 = vcmp.eq.s32.totalorder %v1067, 1
      %vm1164 = vcmp.eq.s32.totalorder %v1070, 1
      %vm1165 = vcmp.eq.s32.totalorder %v1073, 1
      %vm1166 = vcmp.eq.s32.totalorder %v1076, 1
      %vm1167 = vcmp.eq.s32.totalorder %v1079, 1
      %vm1168 = vcmp.eq.s32.totalorder %v1082, 1
      %vm1169 = vcmp.eq.s32.totalorder %v1085, 1
      %vm1170 = vcmp.eq.s32.totalorder %v1088, 1
      %vm1171 = vcmp.eq.s32.totalorder %v1091, 1
      %vm1172 = vcmp.eq.s32.totalorder %v1094, 1
      %vm1173 = vcmp.eq.s32.totalorder %v1097, 1
      %vm1174 = vcmp.eq.s32.totalorder %v1100, 1
      %vm1175 = vcmp.eq.s32.totalorder %v1103, 1
      %vm1176 = vcmp.eq.s32.totalorder %v1106, 1
      %vm1177 = vcmp.eq.s32.totalorder %v1109, 1
      %vm1178 = vcmp.eq.s32.totalorder %v1112, 1
      %vm1179 = vcmp.eq.s32.totalorder %v1115, 1
      %vm1180 = vcmp.eq.s32.totalorder %v1118, 1
      %vm1181 = vcmp.eq.s32.totalorder %v1121, 1
      %vm1182 = vcmp.eq.s32.totalorder %v1124, 1
      %vm1183 = vcmp.eq.s32.totalorder %v1127, 1
      %vm1184 = vcmp.eq.s32.totalorder %v1130, 1
      %vm1185 = vcmp.eq.s32.totalorder %v1133, 1
      %vm1186 = vcmp.eq.s32.totalorder %v1136, 1
      %vm1187 = vcmp.eq.s32.totalorder %v1139, 1
      %vm1188 = vcmp.eq.s32.totalorder %v1142, 1
      %vm1189 = vcmp.eq.s32.totalorder %v1145, 1
      %vm1190 = vcmp.eq.s32.totalorder %v1148, 1
      %vm1191 = vcmp.eq.s32.totalorder %v1151, 1
      %vm1192 = vcmp.eq.s32.totalorder %v1154, 1
      %vm1193 = vcmp.eq.s32.totalorder %v1157, 1
      %v1194 = vsel %vm1158, %v1009, %v946
      %v1195 = vsel %vm1159, %v1012, %v942
      %v1196 = vsel %vm1160, %v1011, %v945
      %v1197 = vsel %vm1161, %v1010, %v944
      %v1198 = vsel %vm1162, %v1009, %v943
      %v1199 = vsel %vm1163, %v1008, %v942
      %v1200 = vsel %vm1164, %v1007, %v941
      %v1201 = vsel %vm1165, %v1006, %v940
      %v1202 = vsel %vm1166, %v1005, %v939
      %v1203 = vsel %vm1167, %v1004, %v938
      %v1204 = vsel %vm1168, %v1003, %v937
      %v1205 = vsel %vm1169, %v1002, %v936
      %v1206 = vsel %vm1170, %v1001, %v935
      %v1207 = vsel %vm1171, %v1000, %v934
      %v1208 = vsel %vm1172, %v999, %v933
      %v1209 = vsel %vm1173, %v998, %v932
      %v1210 = vsel %vm1174, %v997, %v931
      %v1211 = vsel %vm1175, %v996, %v930
      %v1212 = vsel %vm1176, %v995, %v929
      %v1213 = vsel %vm1177, %v994, %v928
      %v1214 = vsel %vm1178, %v993, %v927
      %v1215 = vsel %vm1179, %v992, %v926
      %v1216 = vsel %vm1180, %v991, %v925
      %v1217 = vsel %vm1181, %v990, %v924
      %v1218 = vsel %vm1182, %v989, %v923
      %v1219 = vsel %vm1183, %v988, %v922
      %v1220 = vsel %vm1184, %v987, %v921
      %v1221 = vsel %vm1185, %v986, %v920
      %v1222 = vsel %vm1186, %v985, %v919
      %v1223 = vsel %vm1187, %v984, %v918
      %v1224 = vsel %vm1188, %v980, %v917
      %v1225 = vsel %vm1189, %v983, %v913
      %v1226 = vsel %vm1190, %v982, %v916
      %v1227 = vsel %vm1191, %v981, %v915
      %v1228 = vsel %vm1192, %v980, %v914
      %v1229 = vsel %vm1193, %v1013, %v913
      %v1230 = vpack.c.bf16 %v1195, %v1194
      %v1231 = vpack.c.bf16 %v1197, %v1196
      %v1232 = vpack.c.bf16 %v1199, %v1198
      %v1233 = vpack.c.bf16 %v1201, %v1200
      %v1234 = vpack.c.bf16 %v1203, %v1202
      %v1235 = vpack.c.bf16 %v1205, %v1204
      %v1236 = vpack.c.bf16 %v1207, %v1206
      %v1237 = vpack.c.bf16 %v1209, %v1208
      %v1238 = vpack.c.bf16 %v1211, %v1210
      %v1239 = vpack.c.bf16 %v1213, %v1212
      %v1240 = vpack.c.bf16 %v1215, %v1214
      %v1241 = vpack.c.bf16 %v1217, %v1216
      %v1242 = vpack.c.bf16 %v1219, %v1218
      %v1243 = vpack.c.bf16 %v1221, %v1220
      %v1244 = vpack.c.bf16 %v1223, %v1222
      %v1245 = vpack.c.bf16 %v1225, %v1224
      %v1246 = vpack.c.bf16 %v1227, %v1226
      %v1247 = vpack.c.bf16 %v1229, %v1228
      %v1248 = vsel %vm812, 1, 0
      %v1249 = vsel %vm813, 1, 0
      %v1250 = vsel %vm814, 1, 0
      %v1251 = vsel %vm815, 1, 0
      %v1252 = vsel %vm816, 1, 0
      %v1253 = vsel %vm817, 1, 0
      %v1254 = vsel %vm818, 1, 0
      %v1255 = vsel %vm819, 1, 0
      %v1256 = vsel %vm820, 1, 0
      %v1257 = vsel %vm821, 1, 0
      %v1258 = vsel %vm822, 1, 0
      %v1259 = vsel %vm823, 1, 0
      %v1260 = vsel %vm824, 1, 0
      %v1261 = vsel %vm825, 1, 0
      %v1262 = vsel %vm826, 1, 0
      %v1263 = vsel %vm827, 1, 0
      %v1264 = vsel %vm828, 1, 0
      %v1265 = vsel %vm829, 1, 0
      %v1266 = vsel %vm830, 1, 0
      %v1267 = vsel %vm831, 1, 0
      %v1268 = vsel %vm832, 1, 0
      %v1269 = vsel %vm833, 1, 0
      %v1270 = vsel %vm834, 1, 0
      %v1271 = vsel %vm835, 1, 0
      %v1272 = vsel %vm836, 1, 0
      %v1273 = vsel %vm837, 1, 0
      %v1274 = vsel %vm838, 1, 0
      %v1275 = vsel %vm839, 1, 0
      %v1276 = vsel %vm840, 1, 0
      %v1277 = vsel %vm841, 1, 0
      %v1278 = vsel %vm842, 1, 0
      %v1279 = vsel %vm843, 1, 0
      %v1280 = vsel %vm844, 1, 0
      %v1281 = vsel %vm845, 1, 0
      %v1282 = vsel %vm846, 1, 0
      %v1283 = vsel %vm847, 1, 0
      %1284 = vset.pattern.permute.xlu0 0
      %1285 = vperm.xlu0 %1284, %v1248
      %v1286 = vpop.permute.xlu0 %1285
      %1287 = vset.pattern.permute.xlu0 0
      %1288 = vperm.xlu0 %1287, %v1249
      %v1289 = vpop.permute.xlu0 %1288
      %1290 = vset.pattern.permute.xlu0 0
      %1291 = vperm.xlu0 %1290, %v1250
      %v1292 = vpop.permute.xlu0 %1291
      %1293 = vset.pattern.permute.xlu0 0
      %1294 = vperm.xlu0 %1293, %v1251
      %v1295 = vpop.permute.xlu0 %1294
      %1296 = vset.pattern.permute.xlu0 0
      %1297 = vperm.xlu0 %1296, %v1252
      %v1298 = vpop.permute.xlu0 %1297
      %1299 = vset.pattern.permute.xlu0 0
      %1300 = vperm.xlu0 %1299, %v1253
      %v1301 = vpop.permute.xlu0 %1300
      %1302 = vset.pattern.permute.xlu0 0
      %1303 = vperm.xlu0 %1302, %v1254
      %v1304 = vpop.permute.xlu0 %1303
      %1305 = vset.pattern.permute.xlu0 0
      %1306 = vperm.xlu0 %1305, %v1255
      %v1307 = vpop.permute.xlu0 %1306
      %1308 = vset.pattern.permute.xlu0 0
      %1309 = vperm.xlu0 %1308, %v1256
      %v1310 = vpop.permute.xlu0 %1309
      %1311 = vset.pattern.permute.xlu0 0
      %1312 = vperm.xlu0 %1311, %v1257
      %v1313 = vpop.permute.xlu0 %1312
      %1314 = vset.pattern.permute.xlu0 0
      %1315 = vperm.xlu0 %1314, %v1258
      %v1316 = vpop.permute.xlu0 %1315
      %1317 = vset.pattern.permute.xlu0 0
      %1318 = vperm.xlu0 %1317, %v1259
      %v1319 = vpop.permute.xlu0 %1318
      %1320 = vset.pattern.permute.xlu0 0
      %1321 = vperm.xlu0 %1320, %v1260
      %v1322 = vpop.permute.xlu0 %1321
      %1323 = vset.pattern.permute.xlu0 0
      %1324 = vperm.xlu0 %1323, %v1261
      %v1325 = vpop.permute.xlu0 %1324
      %1326 = vset.pattern.permute.xlu0 0
      %1327 = vperm.xlu0 %1326, %v1262
      %v1328 = vpop.permute.xlu0 %1327
      %1329 = vset.pattern.permute.xlu0 0
      %1330 = vperm.xlu0 %1329, %v1263
      %v1331 = vpop.permute.xlu0 %1330
      %1332 = vset.pattern.permute.xlu0 0
      %1333 = vperm.xlu0 %1332, %v1264
      %v1334 = vpop.permute.xlu0 %1333
      %1335 = vset.pattern.permute.xlu0 0
      %1336 = vperm.xlu0 %1335, %v1265
      %v1337 = vpop.permute.xlu0 %1336
      %1338 = vset.pattern.permute.xlu0 0
      %1339 = vperm.xlu0 %1338, %v1266
      %v1340 = vpop.permute.xlu0 %1339
      %1341 = vset.pattern.permute.xlu0 0
      %1342 = vperm.xlu0 %1341, %v1267
      %v1343 = vpop.permute.xlu0 %1342
      %1344 = vset.pattern.permute.xlu0 0
      %1345 = vperm.xlu0 %1344, %v1268
      %v1346 = vpop.permute.xlu0 %1345
      %1347 = vset.pattern.permute.xlu0 0
      %1348 = vperm.xlu0 %1347, %v1269
      %v1349 = vpop.permute.xlu0 %1348
      %1350 = vset.pattern.permute.xlu0 0
      %1351 = vperm.xlu0 %1350, %v1270
      %v1352 = vpop.permute.xlu0 %1351
      %1353 = vset.pattern.permute.xlu0 0
      %1354 = vperm.xlu0 %1353, %v1271
      %v1355 = vpop.permute.xlu0 %1354
      %1356 = vset.pattern.permute.xlu0 0
      %1357 = vperm.xlu0 %1356, %v1272
      %v1358 = vpop.permute.xlu0 %1357
      %1359 = vset.pattern.permute.xlu0 0
      %1360 = vperm.xlu0 %1359, %v1273
      %v1361 = vpop.permute.xlu0 %1360
      %1362 = vset.pattern.permute.xlu0 0
      %1363 = vperm.xlu0 %1362, %v1274
      %v1364 = vpop.permute.xlu0 %1363
      %1365 = vset.pattern.permute.xlu0 0
      %1366 = vperm.xlu0 %1365, %v1275
      %v1367 = vpop.permute.xlu0 %1366
      %1368 = vset.pattern.permute.xlu0 0
      %1369 = vperm.xlu0 %1368, %v1276
      %v1370 = vpop.permute.xlu0 %1369
      %1371 = vset.pattern.permute.xlu0 0
      %1372 = vperm.xlu0 %1371, %v1277
      %v1373 = vpop.permute.xlu0 %1372
      %1374 = vset.pattern.permute.xlu0 0
      %1375 = vperm.xlu0 %1374, %v1278
      %v1376 = vpop.permute.xlu0 %1375
      %1377 = vset.pattern.permute.xlu0 0
      %1378 = vperm.xlu0 %1377, %v1279
      %v1379 = vpop.permute.xlu0 %1378
      %1380 = vset.pattern.permute.xlu0 0
      %1381 = vperm.xlu0 %1380, %v1280
      %v1382 = vpop.permute.xlu0 %1381
      %1383 = vset.pattern.permute.xlu0 0
      %1384 = vperm.xlu0 %1383, %v1281
      %v1385 = vpop.permute.xlu0 %1384
      %1386 = vset.pattern.permute.xlu0 0
      %1387 = vperm.xlu0 %1386, %v1282
      %v1388 = vpop.permute.xlu0 %1387
      %1389 = vset.pattern.permute.xlu0 0
      %1390 = vperm.xlu0 %1389, %v1283
      %v1391 = vpop.permute.xlu0 %1390
      %vm1392 = vcmp.eq.s32.totalorder %v1286, 1
      %vm1393 = vcmp.eq.s32.totalorder %v1289, 1
      %vm1394 = vcmp.eq.s32.totalorder %v1292, 1
      %vm1395 = vcmp.eq.s32.totalorder %v1295, 1
      %vm1396 = vcmp.eq.s32.totalorder %v1298, 1
      %vm1397 = vcmp.eq.s32.totalorder %v1301, 1
      %vm1398 = vcmp.eq.s32.totalorder %v1304, 1
      %vm1399 = vcmp.eq.s32.totalorder %v1307, 1
      %vm1400 = vcmp.eq.s32.totalorder %v1310, 1
      %vm1401 = vcmp.eq.s32.totalorder %v1313, 1
      %vm1402 = vcmp.eq.s32.totalorder %v1316, 1
      %vm1403 = vcmp.eq.s32.totalorder %v1319, 1
      %vm1404 = vcmp.eq.s32.totalorder %v1322, 1
      %vm1405 = vcmp.eq.s32.totalorder %v1325, 1
      %vm1406 = vcmp.eq.s32.totalorder %v1328, 1
      %vm1407 = vcmp.eq.s32.totalorder %v1331, 1
      %vm1408 = vcmp.eq.s32.totalorder %v1334, 1
      %vm1409 = vcmp.eq.s32.totalorder %v1337, 1
      %vm1410 = vcmp.eq.s32.totalorder %v1340, 1
      %vm1411 = vcmp.eq.s32.totalorder %v1343, 1
      %vm1412 = vcmp.eq.s32.totalorder %v1346, 1
      %vm1413 = vcmp.eq.s32.totalorder %v1349, 1
      %vm1414 = vcmp.eq.s32.totalorder %v1352, 1
      %vm1415 = vcmp.eq.s32.totalorder %v1355, 1
      %vm1416 = vcmp.eq.s32.totalorder %v1358, 1
      %vm1417 = vcmp.eq.s32.totalorder %v1361, 1
      %vm1418 = vcmp.eq.s32.totalorder %v1364, 1
      %vm1419 = vcmp.eq.s32.totalorder %v1367, 1
      %vm1420 = vcmp.eq.s32.totalorder %v1370, 1
      %vm1421 = vcmp.eq.s32.totalorder %v1373, 1
      %vm1422 = vcmp.eq.s32.totalorder %v1376, 1
      %vm1423 = vcmp.eq.s32.totalorder %v1379, 1
      %vm1424 = vcmp.eq.s32.totalorder %v1382, 1
      %vm1425 = vcmp.eq.s32.totalorder %v1385, 1
      %vm1426 = vcmp.eq.s32.totalorder %v1388, 1
      %vm1427 = vcmp.eq.s32.totalorder %v1391, 1
      %v1428 = vsel %vm1392, %v946, %v1009
      %v1429 = vsel %vm1393, %v942, %v1012
      %v1430 = vsel %vm1394, %v945, %v1011
      %v1431 = vsel %vm1395, %v944, %v1010
      %v1432 = vsel %vm1396, %v943, %v1009
      %v1433 = vsel %vm1397, %v942, %v1008
      %v1434 = vsel %vm1398, %v941, %v1007
      %v1435 = vsel %vm1399, %v940, %v1006
      %v1436 = vsel %vm1400, %v939, %v1005
      %v1437 = vsel %vm1401, %v938, %v1004
      %v1438 = vsel %vm1402, %v937, %v1003
      %v1439 = vsel %vm1403, %v936, %v1002
      %v1440 = vsel %vm1404, %v935, %v1001
      %v1441 = vsel %vm1405, %v934, %v1000
      %v1442 = vsel %vm1406, %v933, %v999
      %v1443 = vsel %vm1407, %v932, %v998
      %v1444 = vsel %vm1408, %v931, %v997
      %v1445 = vsel %vm1409, %v930, %v996
      %v1446 = vsel %vm1410, %v929, %v995
      %v1447 = vsel %vm1411, %v928, %v994
      %v1448 = vsel %vm1412, %v927, %v993
      %v1449 = vsel %vm1413, %v926, %v992
      %v1450 = vsel %vm1414, %v925, %v991
      %v1451 = vsel %vm1415, %v924, %v990
      %v1452 = vsel %vm1416, %v923, %v989
      %v1453 = vsel %vm1417, %v922, %v988
      %v1454 = vsel %vm1418, %v921, %v987
      %v1455 = vsel %vm1419, %v920, %v986
      %v1456 = vsel %vm1420, %v919, %v985
      %v1457 = vsel %vm1421, %v918, %v984
      %v1458 = vsel %vm1422, %v917, %v980
      %v1459 = vsel %vm1423, %v913, %v983
      %v1460 = vsel %vm1424, %v916, %v982
      %v1461 = vsel %vm1425, %v915, %v981
      %v1462 = vsel %vm1426, %v914, %v980
      %v1463 = vsel %vm1427, %v913, %v1013
      %v1464 = vpack.c.bf16 %v1429, %v1428
      %v1465 = vpack.c.bf16 %v1431, %v1430
      %v1466 = vpack.c.bf16 %v1433, %v1432
      %v1467 = vpack.c.bf16 %v1435, %v1434
      %v1468 = vpack.c.bf16 %v1437, %v1436
      %v1469 = vpack.c.bf16 %v1439, %v1438
      %v1470 = vpack.c.bf16 %v1441, %v1440
      %v1471 = vpack.c.bf16 %v1443, %v1442
      %v1472 = vpack.c.bf16 %v1445, %v1444
      %v1473 = vpack.c.bf16 %v1447, %v1446
      %v1474 = vpack.c.bf16 %v1449, %v1448
      %v1475 = vpack.c.bf16 %v1451, %v1450
      %v1476 = vpack.c.bf16 %v1453, %v1452
      %v1477 = vpack.c.bf16 %v1455, %v1454
      %v1478 = vpack.c.bf16 %v1457, %v1456
      %v1479 = vpack.c.bf16 %v1459, %v1458
      %v1480 = vpack.c.bf16 %v1461, %v1460
      %v1481 = vpack.c.bf16 %v1463, %v1462
      %v1482 = vpack.c.bf16 %v851, %v850
      %v1483 = vpack.c.bf16 %v849, %v848
      %v1484 = vpack.c.bf16 %v853, %v852
      %v1485 = vpack.c.bf16 %v855, %v854
      %v1486 = vpack.c.bf16 %v857, %v856
      %v1487 = vpack.c.bf16 %v859, %v858
      %v1488 = vpack.c.bf16 %v861, %v860
      %v1489 = vpack.c.bf16 %v863, %v862
      %v1490 = vpack.c.bf16 %v865, %v864
      %v1491 = vpack.c.bf16 %v867, %v866
      %v1492 = vpack.c.bf16 %v869, %v868
      %v1493 = vpack.c.bf16 %v871, %v870
      %v1494 = vpack.c.bf16 %v873, %v872
      %v1495 = vpack.c.bf16 %v875, %v874
      %v1496 = vpack.c.bf16 %v877, %v876
      %v1497 = vpack.c.bf16 %v879, %v878
      %1514 = vrot.lane.b32.xlu0 %v1482, 4
      %v1515 = vpop.permute.xlu0 %1514
      %1516 = vrot.lane.b32.xlu0 %v1483, 4
      %v1517 = vpop.permute.xlu0 %1516
      %1518 = vrot.lane.b32.xlu0 %v1484, 4
      %v1519 = vpop.permute.xlu0 %1518
      %1520 = vrot.lane.b32.xlu0 %v1485, 4
      %v1521 = vpop.permute.xlu0 %1520
      %1522 = vrot.lane.b32.xlu0 %v1486, 4
      %v1523 = vpop.permute.xlu0 %1522
      %1524 = vrot.lane.b32.xlu0 %v1487, 4
      %v1525 = vpop.permute.xlu0 %1524
      %1526 = vrot.lane.b32.xlu0 %v1488, 4
      %v1527 = vpop.permute.xlu0 %1526
      %1528 = vrot.lane.b32.xlu0 %v1489, 4
      %v1529 = vpop.permute.xlu0 %1528
      %1530 = vrot.lane.b32.xlu0 %v1490, 4
      %v1531 = vpop.permute.xlu0 %1530
      %1532 = vrot.lane.b32.xlu0 %v1491, 4
      %v1533 = vpop.permute.xlu0 %1532
      %1534 = vrot.lane.b32.xlu0 %v1492, 4
      %v1535 = vpop.permute.xlu0 %1534
      %1536 = vrot.lane.b32.xlu0 %v1493, 4
      %v1537 = vpop.permute.xlu0 %1536
      %1538 = vrot.lane.b32.xlu0 %v1494, 4
      %v1539 = vpop.permute.xlu0 %1538
      %1540 = vrot.lane.b32.xlu0 %v1495, 4
      %v1541 = vpop.permute.xlu0 %1540
      %1542 = vrot.lane.b32.xlu0 %v1496, 4
      %v1543 = vpop.permute.xlu0 %1542
      %1544 = vrot.lane.b32.xlu0 %v1497, 4
      %v1545 = vpop.permute.xlu0 %1544
      %1564 = vrot.lane.b32.xlu0 %v1464, 8
      %v1565 = vpop.permute.xlu0 %1564
      %1566 = vrot.lane.b32.xlu0 %v1465, 8
      %v1567 = vpop.permute.xlu0 %1566
      %1568 = vrot.lane.b32.xlu0 %v1466, 8
      %v1569 = vpop.permute.xlu0 %1568
      %1570 = vrot.lane.b32.xlu0 %v1467, 8
      %v1571 = vpop.permute.xlu0 %1570
      %1572 = vrot.lane.b32.xlu0 %v1468, 8
      %v1573 = vpop.permute.xlu0 %1572
      %1574 = vrot.lane.b32.xlu0 %v1469, 8
      %v1575 = vpop.permute.xlu0 %1574
      %1576 = vrot.lane.b32.xlu0 %v1470, 8
      %v1577 = vpop.permute.xlu0 %1576
      %1578 = vrot.lane.b32.xlu0 %v1471, 8
      %v1579 = vpop.permute.xlu0 %1578
      %1580 = vrot.lane.b32.xlu0 %v1472, 8
      %v1581 = vpop.permute.xlu0 %1580
      %1582 = vrot.lane.b32.xlu0 %v1473, 8
      %v1583 = vpop.permute.xlu0 %1582
      %1584 = vrot.lane.b32.xlu0 %v1474, 8
      %v1585 = vpop.permute.xlu0 %1584
      %1586 = vrot.lane.b32.xlu0 %v1475, 8
      %v1587 = vpop.permute.xlu0 %1586
      %1588 = vrot.lane.b32.xlu0 %v1476, 8
      %v1589 = vpop.permute.xlu0 %1588
      %1590 = vrot.lane.b32.xlu0 %v1477, 8
      %v1591 = vpop.permute.xlu0 %1590
      %1592 = vrot.lane.b32.xlu0 %v1478, 8
      %v1593 = vpop.permute.xlu0 %1592
      %1594 = vrot.lane.b32.xlu0 %v1479, 8
      %v1595 = vpop.permute.xlu0 %1594
      %1596 = vrot.lane.b32.xlu0 %v1480, 8
      %v1597 = vpop.permute.xlu0 %1596
      %1598 = vrot.lane.b32.xlu0 %v1481, 8
      %v1599 = vpop.permute.xlu0 %1598
      %vm1600 = vcmask 31744
      %v1603 = vsel %vm1600, %v1230, %v1515
      %v1606 = vsel %vm1600, %v1231, %v1517
      %v1608 = vsel %vm1600, %v1232, %v1515
      %v1611 = vsel %vm1600, %v1233, %v1519
      %v1614 = vsel %vm1600, %v1234, %v1521
      %v1617 = vsel %vm1600, %v1235, %v1523
      %v1620 = vsel %vm1600, %v1236, %v1525
      %v1623 = vsel %vm1600, %v1237, %v1527
      %v1626 = vsel %vm1600, %v1238, %v1529
      %v1629 = vsel %vm1600, %v1239, %v1531
      %v1632 = vsel %vm1600, %v1240, %v1533
      %v1635 = vsel %vm1600, %v1241, %v1535
      %v1638 = vsel %vm1600, %v1242, %v1537
      %v1641 = vsel %vm1600, %v1243, %v1539
      %v1644 = vsel %vm1600, %v1244, %v1541
      %v1647 = vsel %vm1600, %v1245, %v1543
      %v1650 = vsel %vm1600, %v1246, %v1545
      %v1652 = vsel %vm1600, %v1247, %v1543
      %vm1653 = vcmask 64512
      %v1655 = vsel %vm1653, %v1603, %v1565
      %v1657 = vsel %vm1653, %v1606, %v1567
      %v1659 = vsel %vm1653, %v1608, %v1569
      %v1661 = vsel %vm1653, %v1611, %v1571
      %v1663 = vsel %vm1653, %v1614, %v1573
      %v1665 = vsel %vm1653, %v1617, %v1575
      %v1667 = vsel %vm1653, %v1620, %v1577
      %v1669 = vsel %vm1653, %v1623, %v1579
      %v1671 = vsel %vm1653, %v1626, %v1581
      %v1673 = vsel %vm1653, %v1629, %v1583
      %v1675 = vsel %vm1653, %v1632, %v1585
      %v1677 = vsel %vm1653, %v1635, %v1587
      %v1679 = vsel %vm1653, %v1638, %v1589
      %v1681 = vsel %vm1653, %v1641, %v1591
      %v1683 = vsel %vm1653, %v1644, %v1593
      %v1685 = vsel %vm1653, %v1647, %v1595
      %v1687 = vsel %vm1653, %v1650, %v1597
      %v1689 = vsel %vm1653, %v1652, %v1599
      %v1690 = vld [vmem:[%s1] sm:$0xf]
      %v1691 = vld [vmem:[%s1 + $0x4] sm:$0x3]
      %s1692 = scalar_lea.vmem %s1, 8
      %v1693 = vld [vmem:[%s1692] sm:$0xf]
      %v1694 = vld [vmem:[%s1692 + $0x4] sm:$0x3]
      %v1697 = vunpack.c.l.b16 %v1693
      %v1698 = vunpack.c.l.b16 %v1694
      %v1699 = vpack.c.b16 %v1698, %v1697
      %vm1700 = vcmask 97280
      %v1701 = vsel %vm1700, %v1657, 0
      %v1703 = vsel %vm1700, %v1659, 0
      %v1705 = vsel %vm1700, %v1661, 0
      %v1707 = vsel %vm1700, %v1663, 0
      %v1709 = vsel %vm1700, %v1665, 0
      %v1711 = vsel %vm1700, %v1667, 0
      %v1713 = vsel %vm1700, %v1669, 0
      %v1715 = vsel %vm1700, %v1671, 0
      %v1717 = vsel %vm1700, %v1673, 0
      %v1719 = vsel %vm1700, %v1675, 0
      %v1721 = vsel %vm1700, %v1677, 0
      %v1723 = vsel %vm1700, %v1679, 0
      %v1725 = vsel %vm1700, %v1681, 0
      %v1727 = vsel %vm1700, %v1683, 0
      %v1729 = vsel %vm1700, %v1685, 0
      %v1731 = vsel %vm1700, %v1687, 0
      %vm1733 = vcmask 1045504
      %v1735 = vsel %vm1733, %v1699, 0
      %1737 = vmatprep.subr.bf16.mxu0 0
      %1738 = vmatpush1.bf16.msra.mxu0 0
      %1739 = vmatprep.subr.bf16.mxu0 0
      %1740 = vmatpush1.bf16.msra.mxu0 0
      %1741 = vmatprep.subr.bf16.mxu0 0
      %1742 = vmatpush1.bf16.msra.mxu0 0
      %1743 = vmatprep.subr.bf16.mxu0 0
      %1744 = vmatpush1.bf16.msra.mxu0 0
      %1745 = vmatprep.subr.bf16.mxu0 0
      %1746 = vmatpush1.bf16.msra.mxu0 0
      %1747 = vmatprep.subr.bf16.mxu0 0
      %1748 = vmatpush1.bf16.msra.mxu0 0
      %1749 = vmatprep.subr.bf16.mxu0 0
      %1750 = vmatpush1.bf16.msra.mxu0 0
      %1751 = vmatprep.subr.bf16.mxu0 0
      %1752 = vmatpush1.bf16.msra.mxu0 %v1735
      %1753 = vmatprep.subr.bf16.mxu0 0
      %1754 = vmatpush2.bf16.msra.mxu0 0
      %1755 = vmatprep.subr.bf16.mxu0 0
      %1756 = vmatpush2.bf16.msra.mxu0 0
      %1757 = vmatprep.subr.bf16.mxu0 0
      %1758 = vmatpush2.bf16.msra.mxu0 0
      %1759 = vmatprep.subr.bf16.mxu0 0
      %1760 = vmatpush2.bf16.msra.mxu0 0
      %1761 = vmatprep.subr.bf16.mxu0 0
      %1762 = vmatpush2.bf16.msra.mxu0 0
      %1763 = vmatprep.subr.bf16.mxu0 0
      %1764 = vmatpush2.bf16.msra.mxu0 0
      %1765 = vmatprep.subr.bf16.mxu0 0
      %1766 = vmatpush2.bf16.msra.mxu0 0
      %1767 = vmatprep.subr.bf16.mxu0 0
      %1768 = vmatpush2.bf16.msra.mxu0 0
      %1769 = vmatprep.mubr.bf16.mxu0 0
      %1770 = vmatmul.mubr.bf16.gmra.mxu0 %v1701
      %v1771 = vpop.f32.mrf.mxu0
      %v1772 = vadd.f32 0.0, %v1771
      %v1773 = vpop.f32.mrf.mxu0
      %v1774 = vpop.f32.mrf.mxu0
      %v1775 = vadd.f32 0.0, %v1774
      %v1776 = vpop.f32.mrf.mxu0
      %1777 = vmatprep.mubr.bf16.mxu0 0
      %1778 = vmatmul.mubr.bf16.gmra.mxu0 %v1703
      %v1779 = vpop.f32.mrf.mxu0
      %v1780 = vadd.f32 0.0, %v1779
      %v1781 = vpop.f32.mrf.mxu0
      %v1782 = vpop.f32.mrf.mxu0
      %v1783 = vadd.f32 0.0, %v1782
      %v1784 = vpop.f32.mrf.mxu0
      %1785 = vmatprep.mubr.bf16.mxu0 0
      %1786 = vmatmul.mubr.bf16.gmra.mxu0 %v1705
      %v1787 = vpop.f32.mrf.mxu0
      %v1788 = vadd.f32 0.0, %v1787
      %v1789 = vpop.f32.mrf.mxu0
      %v1790 = vpop.f32.mrf.mxu0
      %v1791 = vadd.f32 0.0, %v1790
      %v1792 = vpop.f32.mrf.mxu0
      %1793 = vmatprep.mubr.bf16.mxu0 0
      %1794 = vmatmul.mubr.bf16.gmra.mxu0 %v1707
      %v1795 = vpop.f32.mrf.mxu0
      %v1796 = vadd.f32 0.0, %v1795
      %v1797 = vpop.f32.mrf.mxu0
      %v1798 = vpop.f32.mrf.mxu0
      %v1799 = vadd.f32 0.0, %v1798
      %v1800 = vpop.f32.mrf.mxu0
      %1801 = vmatprep.mubr.bf16.mxu0 0
      %1802 = vmatmul.mubr.bf16.gmra.mxu0 %v1709
      %v1803 = vpop.f32.mrf.mxu0
      %v1804 = vadd.f32 0.0, %v1803
      %v1805 = vpop.f32.mrf.mxu0
      %v1806 = vpop.f32.mrf.mxu0
      %v1807 = vadd.f32 0.0, %v1806
      %v1808 = vpop.f32.mrf.mxu0
      %1809 = vmatprep.mubr.bf16.mxu0 0
      %1810 = vmatmul.mubr.bf16.gmra.mxu0 %v1711
      %v1811 = vpop.f32.mrf.mxu0
      %v1812 = vadd.f32 0.0, %v1811
      %v1813 = vpop.f32.mrf.mxu0
      %v1814 = vpop.f32.mrf.mxu0
      %v1815 = vadd.f32 0.0, %v1814
      %v1816 = vpop.f32.mrf.mxu0
      %1817 = vmatprep.mubr.bf16.mxu0 0
      %1818 = vmatmul.mubr.bf16.gmra.mxu0 %v1713
      %v1819 = vpop.f32.mrf.mxu0
      %v1820 = vadd.f32 0.0, %v1819
      %v1821 = vpop.f32.mrf.mxu0
      %v1822 = vpop.f32.mrf.mxu0
      %v1823 = vadd.f32 0.0, %v1822
      %v1824 = vpop.f32.mrf.mxu0
      %1825 = vmatprep.mubr.bf16.mxu0 0
      %1826 = vmatmul.mubr.bf16.gmra.mxu0 %v1715
      %v1827 = vpop.f32.mrf.mxu0
      %v1828 = vadd.f32 0.0, %v1827
      %v1829 = vpop.f32.mrf.mxu0
      %v1830 = vpop.f32.mrf.mxu0
      %v1831 = vadd.f32 0.0, %v1830
      %v1832 = vpop.f32.mrf.mxu0
      %1833 = vmatprep.mubr.bf16.mxu0 0
      %1834 = vmatmul.mubr.bf16.gmra.mxu0 %v1717
      %v1835 = vpop.f32.mrf.mxu0
      %v1836 = vadd.f32 0.0, %v1835
      %v1837 = vpop.f32.mrf.mxu0
      %v1838 = vpop.f32.mrf.mxu0
      %v1839 = vadd.f32 0.0, %v1838
      %v1840 = vpop.f32.mrf.mxu0
      %1841 = vmatprep.mubr.bf16.mxu0 0
      %1842 = vmatmul.mubr.bf16.gmra.mxu0 %v1719
      %v1843 = vpop.f32.mrf.mxu0
      %v1844 = vadd.f32 0.0, %v1843
      %v1845 = vpop.f32.mrf.mxu0
      %v1846 = vpop.f32.mrf.mxu0
      %v1847 = vadd.f32 0.0, %v1846
      %v1848 = vpop.f32.mrf.mxu0
      %1849 = vmatprep.mubr.bf16.mxu0 0
      %1850 = vmatmul.mubr.bf16.gmra.mxu0 %v1721
      %v1851 = vpop.f32.mrf.mxu0
      %v1852 = vadd.f32 0.0, %v1851
      %v1853 = vpop.f32.mrf.mxu0
      %v1854 = vpop.f32.mrf.mxu0
      %v1855 = vadd.f32 0.0, %v1854
      %v1856 = vpop.f32.mrf.mxu0
      %1857 = vmatprep.mubr.bf16.mxu0 0
      %1858 = vmatmul.mubr.bf16.gmra.mxu0 %v1723
      %v1859 = vpop.f32.mrf.mxu0
      %v1860 = vadd.f32 0.0, %v1859
      %v1861 = vpop.f32.mrf.mxu0
      %v1862 = vpop.f32.mrf.mxu0
      %v1863 = vadd.f32 0.0, %v1862
      %v1864 = vpop.f32.mrf.mxu0
      %1865 = vmatprep.mubr.bf16.mxu0 0
      %1866 = vmatmul.mubr.bf16.gmra.mxu0 %v1725
      %v1867 = vpop.f32.mrf.mxu0
      %v1868 = vadd.f32 0.0, %v1867
      %v1869 = vpop.f32.mrf.mxu0
      %v1870 = vpop.f32.mrf.mxu0
      %v1871 = vadd.f32 0.0, %v1870
      %v1872 = vpop.f32.mrf.mxu0
      %1873 = vmatprep.mubr.bf16.mxu0 0
      %1874 = vmatmul.mubr.bf16.gmra.mxu0 %v1727
      %v1875 = vpop.f32.mrf.mxu0
      %v1876 = vadd.f32 0.0, %v1875
      %v1877 = vpop.f32.mrf.mxu0
      %v1878 = vpop.f32.mrf.mxu0
      %v1879 = vadd.f32 0.0, %v1878
      %v1880 = vpop.f32.mrf.mxu0
      %1881 = vmatprep.mubr.bf16.mxu0 0
      %1882 = vmatmul.mubr.bf16.gmra.mxu0 %v1729
      %v1883 = vpop.f32.mrf.mxu0
      %v1884 = vadd.f32 0.0, %v1883
      %v1885 = vpop.f32.mrf.mxu0
      %v1886 = vpop.f32.mrf.mxu0
      %v1887 = vadd.f32 0.0, %v1886
      %v1888 = vpop.f32.mrf.mxu0
      %1889 = vmatprep.mubr.bf16.mxu0 0
      %1890 = vmatmul.mubr.bf16.gmra.mxu0 %v1731
      %v1891 = vpop.f32.mrf.mxu0
      %v1892 = vadd.f32 0.0, %v1891
      %v1893 = vpop.f32.mrf.mxu0
      %v1894 = vpop.f32.mrf.mxu0
      %v1895 = vadd.f32 0.0, %v1894
      %v1896 = vpop.f32.mrf.mxu0
      %1897 = vdwg.mxu0
      %v1900 = vunpack.c.l.b16 %v1690
      %v1901 = vunpack.c.l.b16 %v1691
      %v1902 = vpack.c.b16 %v1901, %v1900
      %v1903 = vsel %vm1700, %v1655, 0
      %v1906 = vsel %vm1733, %v1902, 0
      %1908 = vmatprep.subr.bf16.mxu0 0
      %1909 = vmatpush1.bf16.msra.mxu0 0
      %1910 = vmatprep.subr.bf16.mxu0 0
      %1911 = vmatpush1.bf16.msra.mxu0 0
      %1912 = vmatprep.subr.bf16.mxu0 0
      %1913 = vmatpush1.bf16.msra.mxu0 0
      %1914 = vmatprep.subr.bf16.mxu0 0
      %1915 = vmatpush1.bf16.msra.mxu0 0
      %1916 = vmatprep.subr.bf16.mxu0 0
      %1917 = vmatpush1.bf16.msra.mxu0 0
      %1918 = vmatprep.subr.bf16.mxu0 0
      %1919 = vmatpush1.bf16.msra.mxu0 0
      %1920 = vmatprep.subr.bf16.mxu0 0
      %1921 = vmatpush1.bf16.msra.mxu0 0
      %1922 = vmatprep.subr.bf16.mxu0 0
      %1923 = vmatpush1.bf16.msra.mxu0 %v1906
      %1924 = vmatprep.subr.bf16.mxu0 0
      %1925 = vmatpush2.bf16.msra.mxu0 0
      %1926 = vmatprep.subr.bf16.mxu0 0
      %1927 = vmatpush2.bf16.msra.mxu0 0
      %1928 = vmatprep.subr.bf16.mxu0 0
      %1929 = vmatpush2.bf16.msra.mxu0 0
      %1930 = vmatprep.subr.bf16.mxu0 0
      %1931 = vmatpush2.bf16.msra.mxu0 0
      %1932 = vmatprep.subr.bf16.mxu0 0
      %1933 = vmatpush2.bf16.msra.mxu0 0
      %1934 = vmatprep.subr.bf16.mxu0 0
      %1935 = vmatpush2.bf16.msra.mxu0 0
      %1936 = vmatprep.subr.bf16.mxu0 0
      %1937 = vmatpush2.bf16.msra.mxu0 0
      %1938 = vmatprep.subr.bf16.mxu0 0
      %1939 = vmatpush2.bf16.msra.mxu0 0
      %1940 = vmatprep.mubr.bf16.mxu0 0
      %1941 = vmatmul.mubr.bf16.gmra.mxu0 %v1903
      %v1942 = vpop.f32.mrf.mxu0
      %v1943 = vadd.f32 %v1772, %v1942
      %v1944 = vpop.f32.mrf.mxu0
      %v1945 = vpop.f32.mrf.mxu0
      %v1946 = vadd.f32 %v1775, %v1945
      %v1947 = vpop.f32.mrf.mxu0
      %1948 = vmatprep.mubr.bf16.mxu0 0
      %1949 = vmatmul.mubr.bf16.gmra.mxu0 %v1701
      %v1950 = vpop.f32.mrf.mxu0
      %v1951 = vadd.f32 %v1780, %v1950
      %v1952 = vpop.f32.mrf.mxu0
      %v1953 = vpop.f32.mrf.mxu0
      %v1954 = vadd.f32 %v1783, %v1953
      %v1955 = vpop.f32.mrf.mxu0
      %1956 = vmatprep.mubr.bf16.mxu0 0
      %1957 = vmatmul.mubr.bf16.gmra.mxu0 %v1703
      %v1958 = vpop.f32.mrf.mxu0
      %v1959 = vadd.f32 %v1788, %v1958
      %v1960 = vpop.f32.mrf.mxu0
      %v1961 = vpop.f32.mrf.mxu0
      %v1962 = vadd.f32 %v1791, %v1961
      %v1963 = vpop.f32.mrf.mxu0
      %1964 = vmatprep.mubr.bf16.mxu0 0
      %1965 = vmatmul.mubr.bf16.gmra.mxu0 %v1705
      %v1966 = vpop.f32.mrf.mxu0
      %v1967 = vadd.f32 %v1796, %v1966
      %v1968 = vpop.f32.mrf.mxu0
      %v1969 = vpop.f32.mrf.mxu0
      %v1970 = vadd.f32 %v1799, %v1969
      %v1971 = vpop.f32.mrf.mxu0
      %1972 = vmatprep.mubr.bf16.mxu0 0
      %1973 = vmatmul.mubr.bf16.gmra.mxu0 %v1707
      %v1974 = vpop.f32.mrf.mxu0
      %v1975 = vadd.f32 %v1804, %v1974
      %v1976 = vpop.f32.mrf.mxu0
      %v1977 = vpop.f32.mrf.mxu0
      %v1978 = vadd.f32 %v1807, %v1977
      %v1979 = vpop.f32.mrf.mxu0
      %1980 = vmatprep.mubr.bf16.mxu0 0
      %1981 = vmatmul.mubr.bf16.gmra.mxu0 %v1709
      %v1982 = vpop.f32.mrf.mxu0
      %v1983 = vadd.f32 %v1812, %v1982
      %v1984 = vpop.f32.mrf.mxu0
      %v1985 = vpop.f32.mrf.mxu0
      %v1986 = vadd.f32 %v1815, %v1985
      %v1987 = vpop.f32.mrf.mxu0
      %1988 = vmatprep.mubr.bf16.mxu0 0
      %1989 = vmatmul.mubr.bf16.gmra.mxu0 %v1711
      %v1990 = vpop.f32.mrf.mxu0
      %v1991 = vadd.f32 %v1820, %v1990
      %v1992 = vpop.f32.mrf.mxu0
      %v1993 = vpop.f32.mrf.mxu0
      %v1994 = vadd.f32 %v1823, %v1993
      %v1995 = vpop.f32.mrf.mxu0
      %1996 = vmatprep.mubr.bf16.mxu0 0
      %1997 = vmatmul.mubr.bf16.gmra.mxu0 %v1713
      %v1998 = vpop.f32.mrf.mxu0
      %v1999 = vadd.f32 %v1828, %v1998
      %v2000 = vpop.f32.mrf.mxu0
      %v2001 = vpop.f32.mrf.mxu0
      %v2002 = vadd.f32 %v1831, %v2001
      %v2003 = vpop.f32.mrf.mxu0
      %2004 = vmatprep.mubr.bf16.mxu0 0
      %2005 = vmatmul.mubr.bf16.gmra.mxu0 %v1715
      %v2006 = vpop.f32.mrf.mxu0
      %v2007 = vadd.f32 %v1836, %v2006
      %v2008 = vpop.f32.mrf.mxu0
      %v2009 = vpop.f32.mrf.mxu0
      %v2010 = vadd.f32 %v1839, %v2009
      %v2011 = vpop.f32.mrf.mxu0
      %2012 = vmatprep.mubr.bf16.mxu0 0
      %2013 = vmatmul.mubr.bf16.gmra.mxu0 %v1717
      %v2014 = vpop.f32.mrf.mxu0
      %v2015 = vadd.f32 %v1844, %v2014
      %v2016 = vpop.f32.mrf.mxu0
      %v2017 = vpop.f32.mrf.mxu0
      %v2018 = vadd.f32 %v1847, %v2017
      %v2019 = vpop.f32.mrf.mxu0
      %2020 = vmatprep.mubr.bf16.mxu0 0
      %2021 = vmatmul.mubr.bf16.gmra.mxu0 %v1719
      %v2022 = vpop.f32.mrf.mxu0
      %v2023 = vadd.f32 %v1852, %v2022
      %v2024 = vpop.f32.mrf.mxu0
      %v2025 = vpop.f32.mrf.mxu0
      %v2026 = vadd.f32 %v1855, %v2025
      %v2027 = vpop.f32.mrf.mxu0
      %2028 = vmatprep.mubr.bf16.mxu0 0
      %2029 = vmatmul.mubr.bf16.gmra.mxu0 %v1721
      %v2030 = vpop.f32.mrf.mxu0
      %v2031 = vadd.f32 %v1860, %v2030
      %v2032 = vpop.f32.mrf.mxu0
      %v2033 = vpop.f32.mrf.mxu0
      %v2034 = vadd.f32 %v1863, %v2033
      %v2035 = vpop.f32.mrf.mxu0
      %2036 = vmatprep.mubr.bf16.mxu0 0
      %2037 = vmatmul.mubr.bf16.gmra.mxu0 %v1723
      %v2038 = vpop.f32.mrf.mxu0
      %v2039 = vadd.f32 %v1868, %v2038
      %v2040 = vpop.f32.mrf.mxu0
      %v2041 = vpop.f32.mrf.mxu0
      %v2042 = vadd.f32 %v1871, %v2041
      %v2043 = vpop.f32.mrf.mxu0
      %2044 = vmatprep.mubr.bf16.mxu0 0
      %2045 = vmatmul.mubr.bf16.gmra.mxu0 %v1725
      %v2046 = vpop.f32.mrf.mxu0
      %v2047 = vadd.f32 %v1876, %v2046
      %v2048 = vpop.f32.mrf.mxu0
      %v2049 = vpop.f32.mrf.mxu0
      %v2050 = vadd.f32 %v1879, %v2049
      %v2051 = vpop.f32.mrf.mxu0
      %2052 = vmatprep.mubr.bf16.mxu0 0
      %2053 = vmatmul.mubr.bf16.gmra.mxu0 %v1727
      %v2054 = vpop.f32.mrf.mxu0
      %v2055 = vadd.f32 %v1884, %v2054
      %v2056 = vpop.f32.mrf.mxu0
      %v2057 = vpop.f32.mrf.mxu0
      %v2058 = vadd.f32 %v1887, %v2057
      %v2059 = vpop.f32.mrf.mxu0
      %2060 = vmatprep.mubr.bf16.mxu0 0
      %2061 = vmatmul.mubr.bf16.gmra.mxu0 %v1729
      %v2062 = vpop.f32.mrf.mxu0
      %v2063 = vadd.f32 %v1892, %v2062
      %v2064 = vpop.f32.mrf.mxu0
      %v2065 = vpop.f32.mrf.mxu0
      %v2066 = vadd.f32 %v1895, %v2065
      %v2067 = vpop.f32.mrf.mxu0
      %2068 = vdwg.mxu0
      %s2069 = scalar_lea.vmem %s1, 16
      %v2070 = vld [vmem:[%s2069] sm:$0xf]
      %v2071 = vld [vmem:[%s2069 + $0x4] sm:$0x3]
      %v2074 = vunpack.c.l.b16 %v2070
      %v2075 = vunpack.c.l.b16 %v2071
      %v2076 = vpack.c.b16 %v2075, %v2074
      %v2077 = vsel %vm1700, %v1689, 0
      %v2080 = vsel %vm1733, %v2076, 0
      %2082 = vmatprep.subr.bf16.mxu0 0
      %2083 = vmatpush1.bf16.msra.mxu0 0
      %2084 = vmatprep.subr.bf16.mxu0 0
      %2085 = vmatpush1.bf16.msra.mxu0 0
      %2086 = vmatprep.subr.bf16.mxu0 0
      %2087 = vmatpush1.bf16.msra.mxu0 0
      %2088 = vmatprep.subr.bf16.mxu0 0
      %2089 = vmatpush1.bf16.msra.mxu0 0
      %2090 = vmatprep.subr.bf16.mxu0 0
      %2091 = vmatpush1.bf16.msra.mxu0 0
      %2092 = vmatprep.subr.bf16.mxu0 0
      %2093 = vmatpush1.bf16.msra.mxu0 0
      %2094 = vmatprep.subr.bf16.mxu0 0
      %2095 = vmatpush1.bf16.msra.mxu0 0
      %2096 = vmatprep.subr.bf16.mxu0 0
      %2097 = vmatpush1.bf16.msra.mxu0 %v2080
      %2098 = vmatprep.subr.bf16.mxu0 0
      %2099 = vmatpush2.bf16.msra.mxu0 0
      %2100 = vmatprep.subr.bf16.mxu0 0
      %2101 = vmatpush2.bf16.msra.mxu0 0
      %2102 = vmatprep.subr.bf16.mxu0 0
      %2103 = vmatpush2.bf16.msra.mxu0 0
      %2104 = vmatprep.subr.bf16.mxu0 0
      %2105 = vmatpush2.bf16.msra.mxu0 0
      %2106 = vmatprep.subr.bf16.mxu0 0
      %2107 = vmatpush2.bf16.msra.mxu0 0
      %2108 = vmatprep.subr.bf16.mxu0 0
      %2109 = vmatpush2.bf16.msra.mxu0 0
      %2110 = vmatprep.subr.bf16.mxu0 0
      %2111 = vmatpush2.bf16.msra.mxu0 0
      %2112 = vmatprep.subr.bf16.mxu0 0
      %2113 = vmatpush2.bf16.msra.mxu0 0
      %2114 = vmatprep.mubr.bf16.mxu0 0
      %2115 = vmatmul.mubr.bf16.gmra.mxu0 %v1703
      %v2116 = vpop.f32.mrf.mxu0
      %v2117 = vadd.f32 0.0, %v2116
      %v2118 = vpop.f32.mrf.mxu0
      %v2119 = vpop.f32.mrf.mxu0
      %v2120 = vadd.f32 0.0, %v2119
      %v2121 = vpop.f32.mrf.mxu0
      %2122 = vmatprep.mubr.bf16.mxu0 0
      %2123 = vmatmul.mubr.bf16.gmra.mxu0 %v1705
      %v2124 = vpop.f32.mrf.mxu0
      %v2125 = vadd.f32 0.0, %v2124
      %v2126 = vpop.f32.mrf.mxu0
      %v2127 = vpop.f32.mrf.mxu0
      %v2128 = vadd.f32 0.0, %v2127
      %v2129 = vpop.f32.mrf.mxu0
      %2130 = vmatprep.mubr.bf16.mxu0 0
      %2131 = vmatmul.mubr.bf16.gmra.mxu0 %v1707
      %v2132 = vpop.f32.mrf.mxu0
      %v2133 = vadd.f32 0.0, %v2132
      %v2134 = vpop.f32.mrf.mxu0
      %v2135 = vpop.f32.mrf.mxu0
      %v2136 = vadd.f32 0.0, %v2135
      %v2137 = vpop.f32.mrf.mxu0
      %2138 = vmatprep.mubr.bf16.mxu0 0
      %2139 = vmatmul.mubr.bf16.gmra.mxu0 %v1709
      %v2140 = vpop.f32.mrf.mxu0
      %v2141 = vadd.f32 0.0, %v2140
      %v2142 = vpop.f32.mrf.mxu0
      %v2143 = vpop.f32.mrf.mxu0
      %v2144 = vadd.f32 0.0, %v2143
      %v2145 = vpop.f32.mrf.mxu0
      %2146 = vmatprep.mubr.bf16.mxu0 0
      %2147 = vmatmul.mubr.bf16.gmra.mxu0 %v1711
      %v2148 = vpop.f32.mrf.mxu0
      %v2149 = vadd.f32 0.0, %v2148
      %v2150 = vpop.f32.mrf.mxu0
      %v2151 = vpop.f32.mrf.mxu0
      %v2152 = vadd.f32 0.0, %v2151
      %v2153 = vpop.f32.mrf.mxu0
      %2154 = vmatprep.mubr.bf16.mxu0 0
      %2155 = vmatmul.mubr.bf16.gmra.mxu0 %v1713
      %v2156 = vpop.f32.mrf.mxu0
      %v2157 = vadd.f32 0.0, %v2156
      %v2158 = vpop.f32.mrf.mxu0
      %v2159 = vpop.f32.mrf.mxu0
      %v2160 = vadd.f32 0.0, %v2159
      %v2161 = vpop.f32.mrf.mxu0
      %2162 = vmatprep.mubr.bf16.mxu0 0
      %2163 = vmatmul.mubr.bf16.gmra.mxu0 %v1715
      %v2164 = vpop.f32.mrf.mxu0
      %v2165 = vadd.f32 0.0, %v2164
      %v2166 = vpop.f32.mrf.mxu0
      %v2167 = vpop.f32.mrf.mxu0
      %v2168 = vadd.f32 0.0, %v2167
      %v2169 = vpop.f32.mrf.mxu0
      %2170 = vmatprep.mubr.bf16.mxu0 0
      %2171 = vmatmul.mubr.bf16.gmra.mxu0 %v1717
      %v2172 = vpop.f32.mrf.mxu0
      %v2173 = vadd.f32 0.0, %v2172
      %v2174 = vpop.f32.mrf.mxu0
      %v2175 = vpop.f32.mrf.mxu0
      %v2176 = vadd.f32 0.0, %v2175
      %v2177 = vpop.f32.mrf.mxu0
      %2178 = vmatprep.mubr.bf16.mxu0 0
      %2179 = vmatmul.mubr.bf16.gmra.mxu0 %v1719
      %v2180 = vpop.f32.mrf.mxu0
      %v2181 = vadd.f32 0.0, %v2180
      %v2182 = vpop.f32.mrf.mxu0
      %v2183 = vpop.f32.mrf.mxu0
      %v2184 = vadd.f32 0.0, %v2183
      %v2185 = vpop.f32.mrf.mxu0
      %2186 = vmatprep.mubr.bf16.mxu0 0
      %2187 = vmatmul.mubr.bf16.gmra.mxu0 %v1721
      %v2188 = vpop.f32.mrf.mxu0
      %v2189 = vadd.f32 0.0, %v2188
      %v2190 = vpop.f32.mrf.mxu0
      %v2191 = vpop.f32.mrf.mxu0
      %v2192 = vadd.f32 0.0, %v2191
      %v2193 = vpop.f32.mrf.mxu0
      %2194 = vmatprep.mubr.bf16.mxu0 0
      %2195 = vmatmul.mubr.bf16.gmra.mxu0 %v1723
      %v2196 = vpop.f32.mrf.mxu0
      %v2197 = vadd.f32 0.0, %v2196
      %v2198 = vpop.f32.mrf.mxu0
      %v2199 = vpop.f32.mrf.mxu0
      %v2200 = vadd.f32 0.0, %v2199
      %v2201 = vpop.f32.mrf.mxu0
      %2202 = vmatprep.mubr.bf16.mxu0 0
      %2203 = vmatmul.mubr.bf16.gmra.mxu0 %v1725
      %v2204 = vpop.f32.mrf.mxu0
      %v2205 = vadd.f32 0.0, %v2204
      %v2206 = vpop.f32.mrf.mxu0
      %v2207 = vpop.f32.mrf.mxu0
      %v2208 = vadd.f32 0.0, %v2207
      %v2209 = vpop.f32.mrf.mxu0
      %2210 = vmatprep.mubr.bf16.mxu0 0
      %2211 = vmatmul.mubr.bf16.gmra.mxu0 %v1727
      %v2212 = vpop.f32.mrf.mxu0
      %v2213 = vadd.f32 0.0, %v2212
      %v2214 = vpop.f32.mrf.mxu0
      %v2215 = vpop.f32.mrf.mxu0
      %v2216 = vadd.f32 0.0, %v2215
      %v2217 = vpop.f32.mrf.mxu0
      %2218 = vmatprep.mubr.bf16.mxu0 0
      %2219 = vmatmul.mubr.bf16.gmra.mxu0 %v1729
      %v2220 = vpop.f32.mrf.mxu0
      %v2221 = vadd.f32 0.0, %v2220
      %v2222 = vpop.f32.mrf.mxu0
      %v2223 = vpop.f32.mrf.mxu0
      %v2224 = vadd.f32 0.0, %v2223
      %v2225 = vpop.f32.mrf.mxu0
      %2226 = vmatprep.mubr.bf16.mxu0 0
      %2227 = vmatmul.mubr.bf16.gmra.mxu0 %v1731
      %v2228 = vpop.f32.mrf.mxu0
      %v2229 = vadd.f32 0.0, %v2228
      %v2230 = vpop.f32.mrf.mxu0
      %v2231 = vpop.f32.mrf.mxu0
      %v2232 = vadd.f32 0.0, %v2231
      %v2233 = vpop.f32.mrf.mxu0
      %2234 = vmatprep.mubr.bf16.mxu0 0
      %2235 = vmatmul.mubr.bf16.gmra.mxu0 %v2077
      %v2236 = vpop.f32.mrf.mxu0
      %v2237 = vadd.f32 0.0, %v2236
      %v2238 = vpop.f32.mrf.mxu0
      %v2239 = vpop.f32.mrf.mxu0
      %v2240 = vadd.f32 0.0, %v2239
      %v2241 = vpop.f32.mrf.mxu0
      %2242 = vdwg.mxu0
      %v2243 = vadd.f32 %v1943, %v2117
      %v2244 = vadd.f32 %v1946, %v2120
      %v2245 = vadd.f32 %v1951, %v2125
      %v2246 = vadd.f32 %v1954, %v2128
      %v2247 = vadd.f32 %v1959, %v2133
      %v2248 = vadd.f32 %v1962, %v2136
      %v2249 = vadd.f32 %v1967, %v2141
      %v2250 = vadd.f32 %v1970, %v2144
      %v2251 = vadd.f32 %v1975, %v2149
      %v2252 = vadd.f32 %v1978, %v2152
      %v2253 = vadd.f32 %v1983, %v2157
      %v2254 = vadd.f32 %v1986, %v2160
      %v2255 = vadd.f32 %v1991, %v2165
      %v2256 = vadd.f32 %v1994, %v2168
      %v2257 = vadd.f32 %v1999, %v2173
      %v2258 = vadd.f32 %v2002, %v2176
      %v2259 = vadd.f32 %v2007, %v2181
      %v2260 = vadd.f32 %v2010, %v2184
      %v2261 = vadd.f32 %v2015, %v2189
      %v2262 = vadd.f32 %v2018, %v2192
      %v2263 = vadd.f32 %v2023, %v2197
      %v2264 = vadd.f32 %v2026, %v2200
      %v2265 = vadd.f32 %v2031, %v2205
      %v2266 = vadd.f32 %v2034, %v2208
      %v2267 = vadd.f32 %v2039, %v2213
      %v2268 = vadd.f32 %v2042, %v2216
      %v2269 = vadd.f32 %v2047, %v2221
      %v2270 = vadd.f32 %v2050, %v2224
      %v2271 = vadd.f32 %v2055, %v2229
      %v2272 = vadd.f32 %v2058, %v2232
      %v2273 = vadd.f32 %v2063, %v2237
      %v2274 = vadd.f32 %v2066, %v2240
      %v2275 = vld [vmem:[%s2] sm:$0x1]
      %v2277 = vlaneseq
      %v2278 = vshrl.u32 %v2277, 7
      %v2279 = vsub.s32 0, %v2278
      %v2280 = vrot.slane %v2275, %v2279
      %v2282 = vadd.f32 %v2243, %v2280
      %v2283 = vadd.f32 %v2244, %v2280
      %v2284 = vadd.f32 %v2245, %v2280
      %v2285 = vadd.f32 %v2246, %v2280
      %v2286 = vadd.f32 %v2247, %v2280
      %v2287 = vadd.f32 %v2248, %v2280
      %v2288 = vadd.f32 %v2249, %v2280
      %v2289 = vadd.f32 %v2250, %v2280
      %v2290 = vadd.f32 %v2251, %v2280
      %v2291 = vadd.f32 %v2252, %v2280
      %v2292 = vadd.f32 %v2253, %v2280
      %v2293 = vadd.f32 %v2254, %v2280
      %v2294 = vadd.f32 %v2255, %v2280
      %v2295 = vadd.f32 %v2256, %v2280
      %v2296 = vadd.f32 %v2257, %v2280
      %v2297 = vadd.f32 %v2258, %v2280
      %v2298 = vadd.f32 %v2259, %v2280
      %v2299 = vadd.f32 %v2260, %v2280
      %v2300 = vadd.f32 %v2261, %v2280
      %v2301 = vadd.f32 %v2262, %v2280
      %v2302 = vadd.f32 %v2263, %v2280
      %v2303 = vadd.f32 %v2264, %v2280
      %v2304 = vadd.f32 %v2265, %v2280
      %v2305 = vadd.f32 %v2266, %v2280
      %v2306 = vadd.f32 %v2267, %v2280
      %v2307 = vadd.f32 %v2268, %v2280
      %v2308 = vadd.f32 %v2269, %v2280
      %v2309 = vadd.f32 %v2270, %v2280
      %v2310 = vadd.f32 %v2271, %v2280
      %v2311 = vadd.f32 %v2272, %v2280
      %v2312 = vadd.f32 %v2273, %v2280
      %v2313 = vadd.f32 %v2274, %v2280
      %v2314 = vsel %vm1600, %v2282, 0.0
      %v2315 = vsel %vm1600, %v2283, 0.0
      %v2316 = vadd.f32 %v2314, %v2315
      %v2317 = vsel %vm1600, %v2284, 0.0
      %v2318 = vadd.f32 %v2316, %v2317
      %v2319 = vsel %vm1600, %v2285, 0.0
      %v2320 = vadd.f32 %v2318, %v2319
      %v2321 = vsel %vm1600, %v2286, 0.0
      %v2322 = vadd.f32 %v2320, %v2321
      %v2323 = vsel %vm1600, %v2287, 0.0
      %v2324 = vadd.f32 %v2322, %v2323
      %v2325 = vsel %vm1600, %v2288, 0.0
      %v2326 = vadd.f32 %v2324, %v2325
      %v2327 = vsel %vm1600, %v2289, 0.0
      %v2328 = vadd.f32 %v2326, %v2327
      %v2329 = vsel %vm1600, %v2290, 0.0
      %v2330 = vadd.f32 %v2328, %v2329
      %v2331 = vsel %vm1600, %v2291, 0.0
      %v2332 = vadd.f32 %v2330, %v2331
      %v2333 = vsel %vm1600, %v2292, 0.0
      %v2334 = vadd.f32 %v2332, %v2333
      %v2335 = vsel %vm1600, %v2293, 0.0
      %v2336 = vadd.f32 %v2334, %v2335
      %v2337 = vsel %vm1600, %v2294, 0.0
      %v2338 = vadd.f32 %v2336, %v2337
      %v2339 = vsel %vm1600, %v2295, 0.0
      %v2340 = vadd.f32 %v2338, %v2339
      %v2341 = vsel %vm1600, %v2296, 0.0
      %v2342 = vadd.f32 %v2340, %v2341
      %v2343 = vsel %vm1600, %v2297, 0.0
      %v2344 = vadd.f32 %v2342, %v2343
      %v2345 = vsel %vm1600, %v2298, 0.0
      %v2346 = vadd.f32 %v2344, %v2345
      %v2347 = vsel %vm1600, %v2299, 0.0
      %v2348 = vadd.f32 %v2346, %v2347
      %v2349 = vsel %vm1600, %v2300, 0.0
      %v2350 = vadd.f32 %v2348, %v2349
      %v2351 = vsel %vm1600, %v2301, 0.0
      %v2352 = vadd.f32 %v2350, %v2351
      %v2353 = vsel %vm1600, %v2302, 0.0
      %v2354 = vadd.f32 %v2352, %v2353
      %v2355 = vsel %vm1600, %v2303, 0.0
      %v2356 = vadd.f32 %v2354, %v2355
      %v2357 = vsel %vm1600, %v2304, 0.0
      %v2358 = vadd.f32 %v2356, %v2357
      %v2359 = vsel %vm1600, %v2305, 0.0
      %v2360 = vadd.f32 %v2358, %v2359
      %v2361 = vsel %vm1600, %v2306, 0.0
      %v2362 = vadd.f32 %v2360, %v2361
      %v2363 = vsel %vm1600, %v2307, 0.0
      %v2364 = vadd.f32 %v2362, %v2363
      %v2365 = vsel %vm1600, %v2308, 0.0
      %v2366 = vadd.f32 %v2364, %v2365
      %v2367 = vsel %vm1600, %v2309, 0.0
      %v2368 = vadd.f32 %v2366, %v2367
      %v2369 = vsel %vm1600, %v2310, 0.0
      %v2370 = vadd.f32 %v2368, %v2369
      %v2371 = vsel %vm1600, %v2311, 0.0
      %v2372 = vadd.f32 %v2370, %v2371
      %v2373 = vsel %vm1600, %v2312, 0.0
      %v2374 = vadd.f32 %v2372, %v2373
      %v2375 = vsel %vm1600, %v2313, 0.0
      %v2376 = vadd.f32 %v2374, %v2375
      %v2377 = vrot.slane %v2376, 4
      %v2378 = vadd.f32 %v2376, %v2377
      %v2379 = vrot.slane %v2378, 2
      %v2380 = vadd.f32 %v2378, %v2379
      %v2381 = vrot.slane %v2380, 1
      %v2382 = vadd.f32 %v2380, %v2381
      %v2383 = vmul.f32 %v2382, 0.00390625
      %v2384 = vsub.f32 %v2282, %v2383
      %v2385 = vsub.f32 %v2283, %v2383
      %v2386 = vsub.f32 %v2284, %v2383
      %v2387 = vsub.f32 %v2285, %v2383
      %v2388 = vsub.f32 %v2286, %v2383
      %v2389 = vsub.f32 %v2287, %v2383
      %v2390 = vsub.f32 %v2288, %v2383
      %v2391 = vsub.f32 %v2289, %v2383
      %v2392 = vsub.f32 %v2290, %v2383
      %v2393 = vsub.f32 %v2291, %v2383
      %v2394 = vsub.f32 %v2292, %v2383
      %v2395 = vsub.f32 %v2293, %v2383
      %v2396 = vsub.f32 %v2294, %v2383
      %v2397 = vsub.f32 %v2295, %v2383
      %v2398 = vsub.f32 %v2296, %v2383
      %v2399 = vsub.f32 %v2297, %v2383
      %v2400 = vsub.f32 %v2298, %v2383
      %v2401 = vsub.f32 %v2299, %v2383
      %v2402 = vsub.f32 %v2300, %v2383
      %v2403 = vsub.f32 %v2301, %v2383
      %v2404 = vsub.f32 %v2302, %v2383
      %v2405 = vsub.f32 %v2303, %v2383
      %v2406 = vsub.f32 %v2304, %v2383
      %v2407 = vsub.f32 %v2305, %v2383
      %v2408 = vsub.f32 %v2306, %v2383
      %v2409 = vsub.f32 %v2307, %v2383
      %v2410 = vsub.f32 %v2308, %v2383
      %v2411 = vsub.f32 %v2309, %v2383
      %v2412 = vsub.f32 %v2310, %v2383
      %v2413 = vsub.f32 %v2311, %v2383
      %v2414 = vsub.f32 %v2312, %v2383
      %v2415 = vsub.f32 %v2313, %v2383
      %v2416 = vmul.f32 %v2384, %v2384
      %v2417 = vmul.f32 %v2385, %v2385
      %v2418 = vmul.f32 %v2386, %v2386
      %v2419 = vmul.f32 %v2387, %v2387
      %v2420 = vmul.f32 %v2388, %v2388
      %v2421 = vmul.f32 %v2389, %v2389
      %v2422 = vmul.f32 %v2390, %v2390
      %v2423 = vmul.f32 %v2391, %v2391
      %v2424 = vmul.f32 %v2392, %v2392
      %v2425 = vmul.f32 %v2393, %v2393
      %v2426 = vmul.f32 %v2394, %v2394
      %v2427 = vmul.f32 %v2395, %v2395
      %v2428 = vmul.f32 %v2396, %v2396
      %v2429 = vmul.f32 %v2397, %v2397
      %v2430 = vmul.f32 %v2398, %v2398
      %v2431 = vmul.f32 %v2399, %v2399
      %v2432 = vmul.f32 %v2400, %v2400
      %v2433 = vmul.f32 %v2401, %v2401
      %v2434 = vmul.f32 %v2402, %v2402
      %v2435 = vmul.f32 %v2403, %v2403
      %v2436 = vmul.f32 %v2404, %v2404
      %v2437 = vmul.f32 %v2405, %v2405
      %v2438 = vmul.f32 %v2406, %v2406
      %v2439 = vmul.f32 %v2407, %v2407
      %v2440 = vmul.f32 %v2408, %v2408
      %v2441 = vmul.f32 %v2409, %v2409
      %v2442 = vmul.f32 %v2410, %v2410
      %v2443 = vmul.f32 %v2411, %v2411
      %v2444 = vmul.f32 %v2412, %v2412
      %v2445 = vmul.f32 %v2413, %v2413
      %v2446 = vmul.f32 %v2414, %v2414
      %v2447 = vmul.f32 %v2415, %v2415
      %v2448 = vsel %vm1600, %v2416, 0.0
      %v2449 = vsel %vm1600, %v2417, 0.0
      %v2450 = vadd.f32 %v2448, %v2449
      %v2451 = vsel %vm1600, %v2418, 0.0
      %v2452 = vadd.f32 %v2450, %v2451
      %v2453 = vsel %vm1600, %v2419, 0.0
      %v2454 = vadd.f32 %v2452, %v2453
      %v2455 = vsel %vm1600, %v2420, 0.0
      %v2456 = vadd.f32 %v2454, %v2455
      %v2457 = vsel %vm1600, %v2421, 0.0
      %v2458 = vadd.f32 %v2456, %v2457
      %v2459 = vsel %vm1600, %v2422, 0.0
      %v2460 = vadd.f32 %v2458, %v2459
      %v2461 = vsel %vm1600, %v2423, 0.0
      %v2462 = vadd.f32 %v2460, %v2461
      %v2463 = vsel %vm1600, %v2424, 0.0
      %v2464 = vadd.f32 %v2462, %v2463
      %v2465 = vsel %vm1600, %v2425, 0.0
      %v2466 = vadd.f32 %v2464, %v2465
      %v2467 = vsel %vm1600, %v2426, 0.0
      %v2468 = vadd.f32 %v2466, %v2467
      %v2469 = vsel %vm1600, %v2427, 0.0
      %v2470 = vadd.f32 %v2468, %v2469
      %v2471 = vsel %vm1600, %v2428, 0.0
      %v2472 = vadd.f32 %v2470, %v2471
      %v2473 = vsel %vm1600, %v2429, 0.0
      %v2474 = vadd.f32 %v2472, %v2473
      %v2475 = vsel %vm1600, %v2430, 0.0
      %v2476 = vadd.f32 %v2474, %v2475
      %v2477 = vsel %vm1600, %v2431, 0.0
      %v2478 = vadd.f32 %v2476, %v2477
      %v2479 = vsel %vm1600, %v2432, 0.0
      %v2480 = vadd.f32 %v2478, %v2479
      %v2481 = vsel %vm1600, %v2433, 0.0
      %v2482 = vadd.f32 %v2480, %v2481
      %v2483 = vsel %vm1600, %v2434, 0.0
      %v2484 = vadd.f32 %v2482, %v2483
      %v2485 = vsel %vm1600, %v2435, 0.0
      %v2486 = vadd.f32 %v2484, %v2485
      %v2487 = vsel %vm1600, %v2436, 0.0
      %v2488 = vadd.f32 %v2486, %v2487
      %v2489 = vsel %vm1600, %v2437, 0.0
      %v2490 = vadd.f32 %v2488, %v2489
      %v2491 = vsel %vm1600, %v2438, 0.0
      %v2492 = vadd.f32 %v2490, %v2491
      %v2493 = vsel %vm1600, %v2439, 0.0
      %v2494 = vadd.f32 %v2492, %v2493
      %v2495 = vsel %vm1600, %v2440, 0.0
      %v2496 = vadd.f32 %v2494, %v2495
      %v2497 = vsel %vm1600, %v2441, 0.0
      %v2498 = vadd.f32 %v2496, %v2497
      %v2499 = vsel %vm1600, %v2442, 0.0
      %v2500 = vadd.f32 %v2498, %v2499
      %v2501 = vsel %vm1600, %v2443, 0.0
      %v2502 = vadd.f32 %v2500, %v2501
      %v2503 = vsel %vm1600, %v2444, 0.0
      %v2504 = vadd.f32 %v2502, %v2503
      %v2505 = vsel %vm1600, %v2445, 0.0
      %v2506 = vadd.f32 %v2504, %v2505
      %v2507 = vsel %vm1600, %v2446, 0.0
      %v2508 = vadd.f32 %v2506, %v2507
      %v2509 = vsel %vm1600, %v2447, 0.0
      %v2510 = vadd.f32 %v2508, %v2509
      %v2511 = vrot.slane %v2510, 4
      %v2512 = vadd.f32 %v2510, %v2511
      %v2513 = vrot.slane %v2512, 2
      %v2514 = vadd.f32 %v2512, %v2513
      %v2515 = vrot.slane %v2514, 1
      %v2516 = vadd.f32 %v2514, %v2515
      %v2517 = vmul.f32 %v2516, 0.00390625
      %v2518 = vadd.f32 %v2517, 1e-05
      %v2519 = vrsqrt.pop %v2518
      %v2520 = vmul.f32 %v2384, %v2519
      %v2521 = vmul.f32 %v2385, %v2519
      %v2522 = vmul.f32 %v2386, %v2519
      %v2523 = vmul.f32 %v2387, %v2519
      %v2524 = vmul.f32 %v2388, %v2519
      %v2525 = vmul.f32 %v2389, %v2519
      %v2526 = vmul.f32 %v2390, %v2519
      %v2527 = vmul.f32 %v2391, %v2519
      %v2528 = vmul.f32 %v2392, %v2519
      %v2529 = vmul.f32 %v2393, %v2519
      %v2530 = vmul.f32 %v2394, %v2519
      %v2531 = vmul.f32 %v2395, %v2519
      %v2532 = vmul.f32 %v2396, %v2519
      %v2533 = vmul.f32 %v2397, %v2519
      %v2534 = vmul.f32 %v2398, %v2519
      %v2535 = vmul.f32 %v2399, %v2519
      %v2536 = vmul.f32 %v2400, %v2519
      %v2537 = vmul.f32 %v2401, %v2519
      %v2538 = vmul.f32 %v2402, %v2519
      %v2539 = vmul.f32 %v2403, %v2519
      %v2540 = vmul.f32 %v2404, %v2519
      %v2541 = vmul.f32 %v2405, %v2519
      %v2542 = vmul.f32 %v2406, %v2519
      %v2543 = vmul.f32 %v2407, %v2519
      %v2544 = vmul.f32 %v2408, %v2519
      %v2545 = vmul.f32 %v2409, %v2519
      %v2546 = vmul.f32 %v2410, %v2519
      %v2547 = vmul.f32 %v2411, %v2519
      %v2548 = vmul.f32 %v2412, %v2519
      %v2549 = vmul.f32 %v2413, %v2519
      %v2550 = vmul.f32 %v2414, %v2519
      %v2551 = vmul.f32 %v2415, %v2519
      %vm2552 = vcmp.ge.f32.partialorder %v2520, 0.0
      %vm2553 = vcmp.ge.f32.partialorder %v2521, 0.0
      %vm2554 = vcmp.ge.f32.partialorder %v2522, 0.0
      %vm2555 = vcmp.ge.f32.partialorder %v2523, 0.0
      %vm2556 = vcmp.ge.f32.partialorder %v2524, 0.0
      %vm2557 = vcmp.ge.f32.partialorder %v2525, 0.0
      %vm2558 = vcmp.ge.f32.partialorder %v2526, 0.0
      %vm2559 = vcmp.ge.f32.partialorder %v2527, 0.0
      %vm2560 = vcmp.ge.f32.partialorder %v2528, 0.0
      %vm2561 = vcmp.ge.f32.partialorder %v2529, 0.0
      %vm2562 = vcmp.ge.f32.partialorder %v2530, 0.0
      %vm2563 = vcmp.ge.f32.partialorder %v2531, 0.0
      %vm2564 = vcmp.ge.f32.partialorder %v2532, 0.0
      %vm2565 = vcmp.ge.f32.partialorder %v2533, 0.0
      %vm2566 = vcmp.ge.f32.partialorder %v2534, 0.0
      %vm2567 = vcmp.ge.f32.partialorder %v2535, 0.0
      %vm2568 = vcmp.ge.f32.partialorder %v2536, 0.0
      %vm2569 = vcmp.ge.f32.partialorder %v2537, 0.0
      %vm2570 = vcmp.ge.f32.partialorder %v2538, 0.0
      %vm2571 = vcmp.ge.f32.partialorder %v2539, 0.0
      %vm2572 = vcmp.ge.f32.partialorder %v2540, 0.0
      %vm2573 = vcmp.ge.f32.partialorder %v2541, 0.0
      %vm2574 = vcmp.ge.f32.partialorder %v2542, 0.0
      %vm2575 = vcmp.ge.f32.partialorder %v2543, 0.0
      %vm2576 = vcmp.ge.f32.partialorder %v2544, 0.0
      %vm2577 = vcmp.ge.f32.partialorder %v2545, 0.0
      %vm2578 = vcmp.ge.f32.partialorder %v2546, 0.0
      %vm2579 = vcmp.ge.f32.partialorder %v2547, 0.0
      %vm2580 = vcmp.ge.f32.partialorder %v2548, 0.0
      %vm2581 = vcmp.ge.f32.partialorder %v2549, 0.0
      %vm2582 = vcmp.ge.f32.partialorder %v2550, 0.0
      %vm2583 = vcmp.ge.f32.partialorder %v2551, 0.0
      %v2584 = vmul.f32 %v2520, 0.2
      %v2585 = vmul.f32 %v2521, 0.2
      %v2586 = vmul.f32 %v2522, 0.2
      %v2587 = vmul.f32 %v2523, 0.2
      %v2588 = vmul.f32 %v2524, 0.2
      %v2589 = vmul.f32 %v2525, 0.2
      %v2590 = vmul.f32 %v2526, 0.2
      %v2591 = vmul.f32 %v2527, 0.2
      %v2592 = vmul.f32 %v2528, 0.2
      %v2593 = vmul.f32 %v2529, 0.2
      %v2594 = vmul.f32 %v2530, 0.2
      %v2595 = vmul.f32 %v2531, 0.2
      %v2596 = vmul.f32 %v2532, 0.2
      %v2597 = vmul.f32 %v2533, 0.2
      %v2598 = vmul.f32 %v2534, 0.2
      %v2599 = vmul.f32 %v2535, 0.2
      %v2600 = vmul.f32 %v2536, 0.2
      %v2601 = vmul.f32 %v2537, 0.2
      %v2602 = vmul.f32 %v2538, 0.2
      %v2603 = vmul.f32 %v2539, 0.2
      %v2604 = vmul.f32 %v2540, 0.2
      %v2605 = vmul.f32 %v2541, 0.2
      %v2606 = vmul.f32 %v2542, 0.2
      %v2607 = vmul.f32 %v2543, 0.2
      %v2608 = vmul.f32 %v2544, 0.2
      %v2609 = vmul.f32 %v2545, 0.2
      %v2610 = vmul.f32 %v2546, 0.2
      %v2611 = vmul.f32 %v2547, 0.2
      %v2612 = vmul.f32 %v2548, 0.2
      %v2613 = vmul.f32 %v2549, 0.2
      %v2614 = vmul.f32 %v2550, 0.2
      %v2615 = vmul.f32 %v2551, 0.2
      %v2616 = vsel %vm2552, %v2520, %v2584
      %v2617 = vsel %vm2553, %v2521, %v2585
      %v2618 = vsel %vm2554, %v2522, %v2586
      %v2619 = vsel %vm2555, %v2523, %v2587
      %v2620 = vsel %vm2556, %v2524, %v2588
      %v2621 = vsel %vm2557, %v2525, %v2589
      %v2622 = vsel %vm2558, %v2526, %v2590
      %v2623 = vsel %vm2559, %v2527, %v2591
      %v2624 = vsel %vm2560, %v2528, %v2592
      %v2625 = vsel %vm2561, %v2529, %v2593
      %v2626 = vsel %vm2562, %v2530, %v2594
      %v2627 = vsel %vm2563, %v2531, %v2595
      %v2628 = vsel %vm2564, %v2532, %v2596
      %v2629 = vsel %vm2565, %v2533, %v2597
      %v2630 = vsel %vm2566, %v2534, %v2598
      %v2631 = vsel %vm2567, %v2535, %v2599
      %v2632 = vsel %vm2568, %v2536, %v2600
      %v2633 = vsel %vm2569, %v2537, %v2601
      %v2634 = vsel %vm2570, %v2538, %v2602
      %v2635 = vsel %vm2571, %v2539, %v2603
      %v2636 = vsel %vm2572, %v2540, %v2604
      %v2637 = vsel %vm2573, %v2541, %v2605
      %v2638 = vsel %vm2574, %v2542, %v2606
      %v2639 = vsel %vm2575, %v2543, %v2607
      %v2640 = vsel %vm2576, %v2544, %v2608
      %v2641 = vsel %vm2577, %v2545, %v2609
      %v2642 = vsel %vm2578, %v2546, %v2610
      %v2643 = vsel %vm2579, %v2547, %v2611
      %v2644 = vsel %vm2580, %v2548, %v2612
      %v2645 = vsel %vm2581, %v2549, %v2613
      %v2646 = vsel %vm2582, %v2550, %v2614
      %v2647 = vsel %vm2583, %v2551, %v2615
      %v2648 = vrot.slane %v2618, 7
      %v2649 = vrot.slane %v2619, 7
      %v2650 = vrot.slane %v2616, 7
      %v2651 = vrot.slane %v2617, 7
      %v2652 = vrot.slane %v2620, 7
      %v2653 = vrot.slane %v2621, 7
      %v2654 = vrot.slane %v2622, 7
      %v2655 = vrot.slane %v2623, 7
      %v2656 = vrot.slane %v2624, 7
      %v2657 = vrot.slane %v2625, 7
      %v2658 = vrot.slane %v2626, 7
      %v2659 = vrot.slane %v2627, 7
      %v2660 = vrot.slane %v2628, 7
      %v2661 = vrot.slane %v2629, 7
      %v2662 = vrot.slane %v2630, 7
      %v2663 = vrot.slane %v2631, 7
      %v2664 = vrot.slane %v2632, 7
      %v2665 = vrot.slane %v2633, 7
      %v2666 = vrot.slane %v2634, 7
      %v2667 = vrot.slane %v2635, 7
      %v2668 = vrot.slane %v2636, 7
      %v2669 = vrot.slane %v2637, 7
      %v2670 = vrot.slane %v2638, 7
      %v2671 = vrot.slane %v2639, 7
      %v2672 = vrot.slane %v2640, 7
      %v2673 = vrot.slane %v2641, 7
      %v2674 = vrot.slane %v2642, 7
      %v2675 = vrot.slane %v2643, 7
      %v2676 = vrot.slane %v2644, 7
      %v2677 = vrot.slane %v2645, 7
      %v2678 = vrot.slane %v2646, 7
      %v2679 = vrot.slane %v2647, 7
      %v2680 = vsel %vm912, %v2676, %v2677
      %v2681 = vsel %vm912, %v2679, %v2676
      %v2682 = vsel %vm912, %v2678, %v2679
      %v2683 = vsel %vm912, %v2677, %v2678
      %v2684 = vsel %vm912, %v2675, %v2676
      %v2685 = vsel %vm912, %v2674, %v2675
      %v2686 = vsel %vm912, %v2673, %v2674
      %v2687 = vsel %vm912, %v2672, %v2673
      %v2688 = vsel %vm912, %v2671, %v2672
      %v2689 = vsel %vm912, %v2670, %v2671
      %v2690 = vsel %vm912, %v2669, %v2670
      %v2691 = vsel %vm912, %v2668, %v2669
      %v2692 = vsel %vm912, %v2667, %v2668
      %v2693 = vsel %vm912, %v2666, %v2667
      %v2694 = vsel %vm912, %v2665, %v2666
      %v2695 = vsel %vm912, %v2664, %v2665
      %v2696 = vsel %vm912, %v2663, %v2664
      %v2697 = vsel %vm912, %v2662, %v2663
      %v2698 = vsel %vm912, %v2661, %v2662
      %v2699 = vsel %vm912, %v2660, %v2661
      %v2700 = vsel %vm912, %v2659, %v2660
      %v2701 = vsel %vm912, %v2658, %v2659
      %v2702 = vsel %vm912, %v2657, %v2658
      %v2703 = vsel %vm912, %v2656, %v2657
      %v2704 = vsel %vm912, %v2655, %v2656
      %v2705 = vsel %vm912, %v2654, %v2655
      %v2706 = vsel %vm912, %v2653, %v2654
      %v2707 = vsel %vm912, %v2652, %v2653
      %v2708 = vsel %vm912, %v2649, %v2652
      %v2709 = vsel %vm912, %v2648, %v2649
      %v2710 = vsel %vm912, %v2651, %v2648
      %v2711 = vsel %vm912, %v2650, %v2651
      %v2712 = vsel %vm912, %v2649, %v2650
      %v2713 = vsel %vm912, %v2677, %v2648
      %v2714 = vrot.slane %v2618, 1
      %v2715 = vrot.slane %v2619, 1
      %v2716 = vrot.slane %v2616, 1
      %v2717 = vrot.slane %v2617, 1
      %v2718 = vrot.slane %v2620, 1
      %v2719 = vrot.slane %v2621, 1
      %v2720 = vrot.slane %v2622, 1
      %v2721 = vrot.slane %v2623, 1
      %v2722 = vrot.slane %v2624, 1
      %v2723 = vrot.slane %v2625, 1
      %v2724 = vrot.slane %v2626, 1
      %v2725 = vrot.slane %v2627, 1
      %v2726 = vrot.slane %v2628, 1
      %v2727 = vrot.slane %v2629, 1
      %v2728 = vrot.slane %v2630, 1
      %v2729 = vrot.slane %v2631, 1
      %v2730 = vrot.slane %v2632, 1
      %v2731 = vrot.slane %v2633, 1
      %v2732 = vrot.slane %v2634, 1
      %v2733 = vrot.slane %v2635, 1
      %v2734 = vrot.slane %v2636, 1
      %v2735 = vrot.slane %v2637, 1
      %v2736 = vrot.slane %v2638, 1
      %v2737 = vrot.slane %v2639, 1
      %v2738 = vrot.slane %v2640, 1
      %v2739 = vrot.slane %v2641, 1
      %v2740 = vrot.slane %v2642, 1
      %v2741 = vrot.slane %v2643, 1
      %v2742 = vrot.slane %v2644, 1
      %v2743 = vrot.slane %v2645, 1
      %v2744 = vrot.slane %v2646, 1
      %v2745 = vrot.slane %v2647, 1
      %v2746 = vsel %vm979, %v2742, %v2743
      %v2747 = vsel %vm979, %v2745, %v2742
      %v2748 = vsel %vm979, %v2744, %v2745
      %v2749 = vsel %vm979, %v2743, %v2744
      %v2750 = vsel %vm979, %v2741, %v2742
      %v2751 = vsel %vm979, %v2740, %v2741
      %v2752 = vsel %vm979, %v2739, %v2740
      %v2753 = vsel %vm979, %v2738, %v2739
      %v2754 = vsel %vm979, %v2737, %v2738
      %v2755 = vsel %vm979, %v2736, %v2737
      %v2756 = vsel %vm979, %v2735, %v2736
      %v2757 = vsel %vm979, %v2734, %v2735
      %v2758 = vsel %vm979, %v2733, %v2734
      %v2759 = vsel %vm979, %v2732, %v2733
      %v2760 = vsel %vm979, %v2731, %v2732
      %v2761 = vsel %vm979, %v2730, %v2731
      %v2762 = vsel %vm979, %v2729, %v2730
      %v2763 = vsel %vm979, %v2728, %v2729
      %v2764 = vsel %vm979, %v2727, %v2728
      %v2765 = vsel %vm979, %v2726, %v2727
      %v2766 = vsel %vm979, %v2725, %v2726
      %v2767 = vsel %vm979, %v2724, %v2725
      %v2768 = vsel %vm979, %v2723, %v2724
      %v2769 = vsel %vm979, %v2722, %v2723
      %v2770 = vsel %vm979, %v2721, %v2722
      %v2771 = vsel %vm979, %v2720, %v2721
      %v2772 = vsel %vm979, %v2719, %v2720
      %v2773 = vsel %vm979, %v2718, %v2719
      %v2774 = vsel %vm979, %v2715, %v2718
      %v2775 = vsel %vm979, %v2714, %v2715
      %v2776 = vsel %vm979, %v2717, %v2714
      %v2777 = vsel %vm979, %v2716, %v2717
      %v2778 = vsel %vm979, %v2715, %v2716
      %v2779 = vsel %vm979, %v2743, %v2714
      %v2780 = vsel %vm1158, %v2775, %v2713
      %v2781 = vsel %vm1159, %v2778, %v2709
      %v2782 = vsel %vm1160, %v2777, %v2712
      %v2783 = vsel %vm1161, %v2776, %v2711
      %v2784 = vsel %vm1162, %v2775, %v2710
      %v2785 = vsel %vm1163, %v2774, %v2709
      %v2786 = vsel %vm1164, %v2773, %v2708
      %v2787 = vsel %vm1165, %v2772, %v2707
      %v2788 = vsel %vm1166, %v2771, %v2706
      %v2789 = vsel %vm1167, %v2770, %v2705
      %v2790 = vsel %vm1168, %v2769, %v2704
      %v2791 = vsel %vm1169, %v2768, %v2703
      %v2792 = vsel %vm1170, %v2767, %v2702
      %v2793 = vsel %vm1171, %v2766, %v2701
      %v2794 = vsel %vm1172, %v2765, %v2700
      %v2795 = vsel %vm1173, %v2764, %v2699
      %v2796 = vsel %vm1174, %v2763, %v2698
      %v2797 = vsel %vm1175, %v2762, %v2697
      %v2798 = vsel %vm1176, %v2761, %v2696
      %v2799 = vsel %vm1177, %v2760, %v2695
      %v2800 = vsel %vm1178, %v2759, %v2694
      %v2801 = vsel %vm1179, %v2758, %v2693
      %v2802 = vsel %vm1180, %v2757, %v2692
      %v2803 = vsel %vm1181, %v2756, %v2691
      %v2804 = vsel %vm1182, %v2755, %v2690
      %v2805 = vsel %vm1183, %v2754, %v2689
      %v2806 = vsel %vm1184, %v2753, %v2688
      %v2807 = vsel %vm1185, %v2752, %v2687
      %v2808 = vsel %vm1186, %v2751, %v2686
      %v2809 = vsel %vm1187, %v2750, %v2685
      %v2810 = vsel %vm1188, %v2746, %v2684
      %v2811 = vsel %vm1189, %v2749, %v2680
      %v2812 = vsel %vm1190, %v2748, %v2683
      %v2813 = vsel %vm1191, %v2747, %v2682
      %v2814 = vsel %vm1192, %v2746, %v2681
      %v2815 = vsel %vm1193, %v2779, %v2680
      %v2816 = vpack.c.bf16 %v2781, %v2780
      %v2817 = vpack.c.bf16 %v2783, %v2782
      %v2818 = vpack.c.bf16 %v2785, %v2784
      %v2819 = vpack.c.bf16 %v2787, %v2786
      %v2820 = vpack.c.bf16 %v2789, %v2788
      %v2821 = vpack.c.bf16 %v2791, %v2790
      %v2822 = vpack.c.bf16 %v2793, %v2792
      %v2823 = vpack.c.bf16 %v2795, %v2794
      %v2824 = vpack.c.bf16 %v2797, %v2796
      %v2825 = vpack.c.bf16 %v2799, %v2798
      %v2826 = vpack.c.bf16 %v2801, %v2800
      %v2827 = vpack.c.bf16 %v2803, %v2802
      %v2828 = vpack.c.bf16 %v2805, %v2804
      %v2829 = vpack.c.bf16 %v2807, %v2806
      %v2830 = vpack.c.bf16 %v2809, %v2808
      %v2831 = vpack.c.bf16 %v2811, %v2810
      %v2832 = vpack.c.bf16 %v2813, %v2812
      %v2833 = vpack.c.bf16 %v2815, %v2814
      %v2834 = vsel %vm1392, %v2713, %v2775
      %v2835 = vsel %vm1393, %v2709, %v2778
      %v2836 = vsel %vm1394, %v2712, %v2777
      %v2837 = vsel %vm1395, %v2711, %v2776
      %v2838 = vsel %vm1396, %v2710, %v2775
      %v2839 = vsel %vm1397, %v2709, %v2774
      %v2840 = vsel %vm1398, %v2708, %v2773
      %v2841 = vsel %vm1399, %v2707, %v2772
      %v2842 = vsel %vm1400, %v2706, %v2771
      %v2843 = vsel %vm1401, %v2705, %v2770
      %v2844 = vsel %vm1402, %v2704, %v2769
      %v2845 = vsel %vm1403, %v2703, %v2768
      %v2846 = vsel %vm1404, %v2702, %v2767
      %v2847 = vsel %vm1405, %v2701, %v2766
      %v2848 = vsel %vm1406, %v2700, %v2765
      %v2849 = vsel %vm1407, %v2699, %v2764
      %v2850 = vsel %vm1408, %v2698, %v2763
      %v2851 = vsel %vm1409, %v2697, %v2762
      %v2852 = vsel %vm1410, %v2696, %v2761
      %v2853 = vsel %vm1411, %v2695, %v2760
      %v2854 = vsel %vm1412, %v2694, %v2759
      %v2855 = vsel %vm1413, %v2693, %v2758
      %v2856 = vsel %vm1414, %v2692, %v2757
      %v2857 = vsel %vm1415, %v2691, %v2756
      %v2858 = vsel %vm1416, %v2690, %v2755
      %v2859 = vsel %vm1417, %v2689, %v2754
      %v2860 = vsel %vm1418, %v2688, %v2753
      %v2861 = vsel %vm1419, %v2687, %v2752
      %v2862 = vsel %vm1420, %v2686, %v2751
      %v2863 = vsel %vm1421, %v2685, %v2750
      %v2864 = vsel %vm1422, %v2684, %v2746
      %v2865 = vsel %vm1423, %v2680, %v2749
      %v2866 = vsel %vm1424, %v2683, %v2748
      %v2867 = vsel %vm1425, %v2682, %v2747
      %v2868 = vsel %vm1426, %v2681, %v2746
      %v2869 = vsel %vm1427, %v2680, %v2779
      %v2870 = vpack.c.bf16 %v2835, %v2834
      %v2871 = vpack.c.bf16 %v2837, %v2836
      %v2872 = vpack.c.bf16 %v2839, %v2838
      %v2873 = vpack.c.bf16 %v2841, %v2840
      %v2874 = vpack.c.bf16 %v2843, %v2842
      %v2875 = vpack.c.bf16 %v2845, %v2844
      %v2876 = vpack.c.bf16 %v2847, %v2846
      %v2877 = vpack.c.bf16 %v2849, %v2848
      %v2878 = vpack.c.bf16 %v2851, %v2850
      %v2879 = vpack.c.bf16 %v2853, %v2852
      %v2880 = vpack.c.bf16 %v2855, %v2854
      %v2881 = vpack.c.bf16 %v2857, %v2856
      %v2882 = vpack.c.bf16 %v2859, %v2858
      %v2883 = vpack.c.bf16 %v2861, %v2860
      %v2884 = vpack.c.bf16 %v2863, %v2862
      %v2885 = vpack.c.bf16 %v2865, %v2864
      %v2886 = vpack.c.bf16 %v2867, %v2866
      %v2887 = vpack.c.bf16 %v2869, %v2868
      %v2888 = vpack.c.bf16 %v2619, %v2618
      %v2889 = vpack.c.bf16 %v2617, %v2616
      %v2890 = vpack.c.bf16 %v2621, %v2620
      %v2891 = vpack.c.bf16 %v2623, %v2622
      %v2892 = vpack.c.bf16 %v2625, %v2624
      %v2893 = vpack.c.bf16 %v2627, %v2626
      %v2894 = vpack.c.bf16 %v2629, %v2628
      %v2895 = vpack.c.bf16 %v2631, %v2630
      %v2896 = vpack.c.bf16 %v2633, %v2632
      %v2897 = vpack.c.bf16 %v2635, %v2634
      %v2898 = vpack.c.bf16 %v2637, %v2636
      %v2899 = vpack.c.bf16 %v2639, %v2638
      %v2900 = vpack.c.bf16 %v2641, %v2640
      %v2901 = vpack.c.bf16 %v2643, %v2642
      %v2902 = vpack.c.bf16 %v2645, %v2644
      %v2903 = vpack.c.bf16 %v2647, %v2646
      %2920 = vrot.lane.b32.xlu0 %v2888, 4
      %v2921 = vpop.permute.xlu0 %2920
      %2922 = vrot.lane.b32.xlu0 %v2889, 4
      %v2923 = vpop.permute.xlu0 %2922
      %2924 = vrot.lane.b32.xlu0 %v2890, 4
      %v2925 = vpop.permute.xlu0 %2924
      %2926 = vrot.lane.b32.xlu0 %v2891, 4
      %v2927 = vpop.permute.xlu0 %2926
      %2928 = vrot.lane.b32.xlu0 %v2892, 4
      %v2929 = vpop.permute.xlu0 %2928
      %2930 = vrot.lane.b32.xlu0 %v2893, 4
      %v2931 = vpop.permute.xlu0 %2930
      %2932 = vrot.lane.b32.xlu0 %v2894, 4
      %v2933 = vpop.permute.xlu0 %2932
      %2934 = vrot.lane.b32.xlu0 %v2895, 4
      %v2935 = vpop.permute.xlu0 %2934
      %2936 = vrot.lane.b32.xlu0 %v2896, 4
      %v2937 = vpop.permute.xlu0 %2936
      %2938 = vrot.lane.b32.xlu0 %v2897, 4
      %v2939 = vpop.permute.xlu0 %2938
      %2940 = vrot.lane.b32.xlu0 %v2898, 4
      %v2941 = vpop.permute.xlu0 %2940
      %2942 = vrot.lane.b32.xlu0 %v2899, 4
      %v2943 = vpop.permute.xlu0 %2942
      %2944 = vrot.lane.b32.xlu0 %v2900, 4
      %v2945 = vpop.permute.xlu0 %2944
      %2946 = vrot.lane.b32.xlu0 %v2901, 4
      %v2947 = vpop.permute.xlu0 %2946
      %2948 = vrot.lane.b32.xlu0 %v2902, 4
      %v2949 = vpop.permute.xlu0 %2948
      %2950 = vrot.lane.b32.xlu0 %v2903, 4
      %v2951 = vpop.permute.xlu0 %2950
      %2970 = vrot.lane.b32.xlu0 %v2870, 8
      %v2971 = vpop.permute.xlu0 %2970
      %2972 = vrot.lane.b32.xlu0 %v2871, 8
      %v2973 = vpop.permute.xlu0 %2972
      %2974 = vrot.lane.b32.xlu0 %v2872, 8
      %v2975 = vpop.permute.xlu0 %2974
      %2976 = vrot.lane.b32.xlu0 %v2873, 8
      %v2977 = vpop.permute.xlu0 %2976
      %2978 = vrot.lane.b32.xlu0 %v2874, 8
      %v2979 = vpop.permute.xlu0 %2978
      %2980 = vrot.lane.b32.xlu0 %v2875, 8
      %v2981 = vpop.permute.xlu0 %2980
      %2982 = vrot.lane.b32.xlu0 %v2876, 8
      %v2983 = vpop.permute.xlu0 %2982
      %2984 = vrot.lane.b32.xlu0 %v2877, 8
      %v2985 = vpop.permute.xlu0 %2984
      %2986 = vrot.lane.b32.xlu0 %v2878, 8
      %v2987 = vpop.permute.xlu0 %2986
      %2988 = vrot.lane.b32.xlu0 %v2879, 8
      %v2989 = vpop.permute.xlu0 %2988
      %2990 = vrot.lane.b32.xlu0 %v2880, 8
      %v2991 = vpop.permute.xlu0 %2990
      %2992 = vrot.lane.b32.xlu0 %v2881, 8
      %v2993 = vpop.permute.xlu0 %2992
      %2994 = vrot.lane.b32.xlu0 %v2882, 8
      %v2995 = vpop.permute.xlu0 %2994
      %2996 = vrot.lane.b32.xlu0 %v2883, 8
      %v2997 = vpop.permute.xlu0 %2996
      %2998 = vrot.lane.b32.xlu0 %v2884, 8
      %v2999 = vpop.permute.xlu0 %2998
      %3000 = vrot.lane.b32.xlu0 %v2885, 8
      %v3001 = vpop.permute.xlu0 %3000
      %3002 = vrot.lane.b32.xlu0 %v2886, 8
      %v3003 = vpop.permute.xlu0 %3002
      %3004 = vrot.lane.b32.xlu0 %v2887, 8
      %v3005 = vpop.permute.xlu0 %3004
      %v3008 = vsel %vm1600, %v2816, %v2921
      %v3011 = vsel %vm1600, %v2817, %v2923
      %v3013 = vsel %vm1600, %v2818, %v2921
      %v3016 = vsel %vm1600, %v2819, %v2925
      %v3019 = vsel %vm1600, %v2820, %v2927
      %v3022 = vsel %vm1600, %v2821, %v2929
      %v3025 = vsel %vm1600, %v2822, %v2931
      %v3028 = vsel %vm1600, %v2823, %v2933
      %v3031 = vsel %vm1600, %v2824, %v2935
      %v3034 = vsel %vm1600, %v2825, %v2937
      %v3037 = vsel %vm1600, %v2826, %v2939
      %v3040 = vsel %vm1600, %v2827, %v2941
      %v3043 = vsel %vm1600, %v2828, %v2943
      %v3046 = vsel %vm1600, %v2829, %v2945
      %v3049 = vsel %vm1600, %v2830, %v2947
      %v3052 = vsel %vm1600, %v2831, %v2949
      %v3055 = vsel %vm1600, %v2832, %v2951
      %v3057 = vsel %vm1600, %v2833, %v2949
      %v3059 = vsel %vm1653, %v3008, %v2971
      %v3061 = vsel %vm1653, %v3011, %v2973
      %v3063 = vsel %vm1653, %v3013, %v2975
      %v3065 = vsel %vm1653, %v3016, %v2977
      %v3067 = vsel %vm1653, %v3019, %v2979
      %v3069 = vsel %vm1653, %v3022, %v2981
      %v3071 = vsel %vm1653, %v3025, %v2983
      %v3073 = vsel %vm1653, %v3028, %v2985
      %v3075 = vsel %vm1653, %v3031, %v2987
      %v3077 = vsel %vm1653, %v3034, %v2989
      %v3079 = vsel %vm1653, %v3037, %v2991
      %v3081 = vsel %vm1653, %v3040, %v2993
      %v3083 = vsel %vm1653, %v3043, %v2995
      %v3085 = vsel %vm1653, %v3046, %v2997
      %v3087 = vsel %vm1653, %v3049, %v2999
      %v3089 = vsel %vm1653, %v3052, %v3001
      %v3091 = vsel %vm1653, %v3055, %v3003
      %v3093 = vsel %vm1653, %v3057, %v3005
      %v3094 = vld [vmem:[%s3] sm:$0xf]
      %v3095 = vld [vmem:[%s3 + $0x4] sm:$0x3]
      %s3096 = scalar_lea.vmem %s3, 8
      %v3097 = vld [vmem:[%s3096] sm:$0xf]
      %v3098 = vld [vmem:[%s3096 + $0x4] sm:$0x3]
      %v3101 = vunpack.c.l.b16 %v3097
      %v3102 = vunpack.c.l.b16 %v3098
      %v3103 = vpack.c.b16 %v3102, %v3101
      %v3104 = vsel %vm1700, %v3061, 0
      %v3106 = vsel %vm1700, %v3063, 0
      %v3108 = vsel %vm1700, %v3065, 0
      %v3110 = vsel %vm1700, %v3067, 0
      %v3112 = vsel %vm1700, %v3069, 0
      %v3114 = vsel %vm1700, %v3071, 0
      %v3116 = vsel %vm1700, %v3073, 0
      %v3118 = vsel %vm1700, %v3075, 0
      %v3120 = vsel %vm1700, %v3077, 0
      %v3122 = vsel %vm1700, %v3079, 0
      %v3124 = vsel %vm1700, %v3081, 0
      %v3126 = vsel %vm1700, %v3083, 0
      %v3128 = vsel %vm1700, %v3085, 0
      %v3130 = vsel %vm1700, %v3087, 0
      %v3132 = vsel %vm1700, %v3089, 0
      %v3134 = vsel %vm1700, %v3091, 0
      %v3137 = vsel %vm1733, %v3103, 0
      %3139 = vmatprep.subr.bf16.mxu0 0
      %3140 = vmatpush1.bf16.msra.mxu0 0
      %3141 = vmatprep.subr.bf16.mxu0 0
      %3142 = vmatpush1.bf16.msra.mxu0 0
      %3143 = vmatprep.subr.bf16.mxu0 0
      %3144 = vmatpush1.bf16.msra.mxu0 0
      %3145 = vmatprep.subr.bf16.mxu0 0
      %3146 = vmatpush1.bf16.msra.mxu0 0
      %3147 = vmatprep.subr.bf16.mxu0 0
      %3148 = vmatpush1.bf16.msra.mxu0 0
      %3149 = vmatprep.subr.bf16.mxu0 0
      %3150 = vmatpush1.bf16.msra.mxu0 0
      %3151 = vmatprep.subr.bf16.mxu0 0
      %3152 = vmatpush1.bf16.msra.mxu0 0
      %3153 = vmatprep.subr.bf16.mxu0 0
      %3154 = vmatpush1.bf16.msra.mxu0 %v3137
      %3155 = vmatprep.subr.bf16.mxu0 0
      %3156 = vmatpush2.bf16.msra.mxu0 0
      %3157 = vmatprep.subr.bf16.mxu0 0
      %3158 = vmatpush2.bf16.msra.mxu0 0
      %3159 = vmatprep.subr.bf16.mxu0 0
      %3160 = vmatpush2.bf16.msra.mxu0 0
      %3161 = vmatprep.subr.bf16.mxu0 0
      %3162 = vmatpush2.bf16.msra.mxu0 0
      %3163 = vmatprep.subr.bf16.mxu0 0
      %3164 = vmatpush2.bf16.msra.mxu0 0
      %3165 = vmatprep.subr.bf16.mxu0 0
      %3166 = vmatpush2.bf16.msra.mxu0 0
      %3167 = vmatprep.subr.bf16.mxu0 0
      %3168 = vmatpush2.bf16.msra.mxu0 0
      %3169 = vmatprep.subr.bf16.mxu0 0
      %3170 = vmatpush2.bf16.msra.mxu0 0
      %3171 = vmatprep.mubr.bf16.mxu0 0
      %3172 = vmatmul.mubr.bf16.gmra.mxu0 %v3104
      %v3173 = vpop.f32.mrf.mxu0
      %v3174 = vadd.f32 0.0, %v3173
      %v3175 = vpop.f32.mrf.mxu0
      %v3176 = vpop.f32.mrf.mxu0
      %v3177 = vadd.f32 0.0, %v3176
      %v3178 = vpop.f32.mrf.mxu0
      %3179 = vmatprep.mubr.bf16.mxu0 0
      %3180 = vmatmul.mubr.bf16.gmra.mxu0 %v3106
      %v3181 = vpop.f32.mrf.mxu0
      %v3182 = vadd.f32 0.0, %v3181
      %v3183 = vpop.f32.mrf.mxu0
      %v3184 = vpop.f32.mrf.mxu0
      %v3185 = vadd.f32 0.0, %v3184
      %v3186 = vpop.f32.mrf.mxu0
      %3187 = vmatprep.mubr.bf16.mxu0 0
      %3188 = vmatmul.mubr.bf16.gmra.mxu0 %v3108
      %v3189 = vpop.f32.mrf.mxu0
      %v3190 = vadd.f32 0.0, %v3189
      %v3191 = vpop.f32.mrf.mxu0
      %v3192 = vpop.f32.mrf.mxu0
      %v3193 = vadd.f32 0.0, %v3192
      %v3194 = vpop.f32.mrf.mxu0
      %3195 = vmatprep.mubr.bf16.mxu0 0
      %3196 = vmatmul.mubr.bf16.gmra.mxu0 %v3110
      %v3197 = vpop.f32.mrf.mxu0
      %v3198 = vadd.f32 0.0, %v3197
      %v3199 = vpop.f32.mrf.mxu0
      %v3200 = vpop.f32.mrf.mxu0
      %v3201 = vadd.f32 0.0, %v3200
      %v3202 = vpop.f32.mrf.mxu0
      %3203 = vmatprep.mubr.bf16.mxu0 0
      %3204 = vmatmul.mubr.bf16.gmra.mxu0 %v3112
      %v3205 = vpop.f32.mrf.mxu0
      %v3206 = vadd.f32 0.0, %v3205
      %v3207 = vpop.f32.mrf.mxu0
      %v3208 = vpop.f32.mrf.mxu0
      %v3209 = vadd.f32 0.0, %v3208
      %v3210 = vpop.f32.mrf.mxu0
      %3211 = vmatprep.mubr.bf16.mxu0 0
      %3212 = vmatmul.mubr.bf16.gmra.mxu0 %v3114
      %v3213 = vpop.f32.mrf.mxu0
      %v3214 = vadd.f32 0.0, %v3213
      %v3215 = vpop.f32.mrf.mxu0
      %v3216 = vpop.f32.mrf.mxu0
      %v3217 = vadd.f32 0.0, %v3216
      %v3218 = vpop.f32.mrf.mxu0
      %3219 = vmatprep.mubr.bf16.mxu0 0
      %3220 = vmatmul.mubr.bf16.gmra.mxu0 %v3116
      %v3221 = vpop.f32.mrf.mxu0
      %v3222 = vadd.f32 0.0, %v3221
      %v3223 = vpop.f32.mrf.mxu0
      %v3224 = vpop.f32.mrf.mxu0
      %v3225 = vadd.f32 0.0, %v3224
      %v3226 = vpop.f32.mrf.mxu0
      %3227 = vmatprep.mubr.bf16.mxu0 0
      %3228 = vmatmul.mubr.bf16.gmra.mxu0 %v3118
      %v3229 = vpop.f32.mrf.mxu0
      %v3230 = vadd.f32 0.0, %v3229
      %v3231 = vpop.f32.mrf.mxu0
      %v3232 = vpop.f32.mrf.mxu0
      %v3233 = vadd.f32 0.0, %v3232
      %v3234 = vpop.f32.mrf.mxu0
      %3235 = vmatprep.mubr.bf16.mxu0 0
      %3236 = vmatmul.mubr.bf16.gmra.mxu0 %v3120
      %v3237 = vpop.f32.mrf.mxu0
      %v3238 = vadd.f32 0.0, %v3237
      %v3239 = vpop.f32.mrf.mxu0
      %v3240 = vpop.f32.mrf.mxu0
      %v3241 = vadd.f32 0.0, %v3240
      %v3242 = vpop.f32.mrf.mxu0
      %3243 = vmatprep.mubr.bf16.mxu0 0
      %3244 = vmatmul.mubr.bf16.gmra.mxu0 %v3122
      %v3245 = vpop.f32.mrf.mxu0
      %v3246 = vadd.f32 0.0, %v3245
      %v3247 = vpop.f32.mrf.mxu0
      %v3248 = vpop.f32.mrf.mxu0
      %v3249 = vadd.f32 0.0, %v3248
      %v3250 = vpop.f32.mrf.mxu0
      %3251 = vmatprep.mubr.bf16.mxu0 0
      %3252 = vmatmul.mubr.bf16.gmra.mxu0 %v3124
      %v3253 = vpop.f32.mrf.mxu0
      %v3254 = vadd.f32 0.0, %v3253
      %v3255 = vpop.f32.mrf.mxu0
      %v3256 = vpop.f32.mrf.mxu0
      %v3257 = vadd.f32 0.0, %v3256
      %v3258 = vpop.f32.mrf.mxu0
      %3259 = vmatprep.mubr.bf16.mxu0 0
      %3260 = vmatmul.mubr.bf16.gmra.mxu0 %v3126
      %v3261 = vpop.f32.mrf.mxu0
      %v3262 = vadd.f32 0.0, %v3261
      %v3263 = vpop.f32.mrf.mxu0
      %v3264 = vpop.f32.mrf.mxu0
      %v3265 = vadd.f32 0.0, %v3264
      %v3266 = vpop.f32.mrf.mxu0
      %3267 = vmatprep.mubr.bf16.mxu0 0
      %3268 = vmatmul.mubr.bf16.gmra.mxu0 %v3128
      %v3269 = vpop.f32.mrf.mxu0
      %v3270 = vadd.f32 0.0, %v3269
      %v3271 = vpop.f32.mrf.mxu0
      %v3272 = vpop.f32.mrf.mxu0
      %v3273 = vadd.f32 0.0, %v3272
      %v3274 = vpop.f32.mrf.mxu0
      %3275 = vmatprep.mubr.bf16.mxu0 0
      %3276 = vmatmul.mubr.bf16.gmra.mxu0 %v3130
      %v3277 = vpop.f32.mrf.mxu0
      %v3278 = vadd.f32 0.0, %v3277
      %v3279 = vpop.f32.mrf.mxu0
      %v3280 = vpop.f32.mrf.mxu0
      %v3281 = vadd.f32 0.0, %v3280
      %v3282 = vpop.f32.mrf.mxu0
      %3283 = vmatprep.mubr.bf16.mxu0 0
      %3284 = vmatmul.mubr.bf16.gmra.mxu0 %v3132
      %v3285 = vpop.f32.mrf.mxu0
      %v3286 = vadd.f32 0.0, %v3285
      %v3287 = vpop.f32.mrf.mxu0
      %v3288 = vpop.f32.mrf.mxu0
      %v3289 = vadd.f32 0.0, %v3288
      %v3290 = vpop.f32.mrf.mxu0
      %3291 = vmatprep.mubr.bf16.mxu0 0
      %3292 = vmatmul.mubr.bf16.gmra.mxu0 %v3134
      %v3293 = vpop.f32.mrf.mxu0
      %v3294 = vadd.f32 0.0, %v3293
      %v3295 = vpop.f32.mrf.mxu0
      %v3296 = vpop.f32.mrf.mxu0
      %v3297 = vadd.f32 0.0, %v3296
      %v3298 = vpop.f32.mrf.mxu0
      %3299 = vdwg.mxu0
      %v3302 = vunpack.c.l.b16 %v3094
      %v3303 = vunpack.c.l.b16 %v3095
      %v3304 = vpack.c.b16 %v3303, %v3302
      %v3305 = vsel %vm1700, %v3059, 0
      %v3308 = vsel %vm1733, %v3304, 0
      %3310 = vmatprep.subr.bf16.mxu0 0
      %3311 = vmatpush1.bf16.msra.mxu0 0
      %3312 = vmatprep.subr.bf16.mxu0 0
      %3313 = vmatpush1.bf16.msra.mxu0 0
      %3314 = vmatprep.subr.bf16.mxu0 0
      %3315 = vmatpush1.bf16.msra.mxu0 0
      %3316 = vmatprep.subr.bf16.mxu0 0
      %3317 = vmatpush1.bf16.msra.mxu0 0
      %3318 = vmatprep.subr.bf16.mxu0 0
      %3319 = vmatpush1.bf16.msra.mxu0 0
      %3320 = vmatprep.subr.bf16.mxu0 0
      %3321 = vmatpush1.bf16.msra.mxu0 0
      %3322 = vmatprep.subr.bf16.mxu0 0
      %3323 = vmatpush1.bf16.msra.mxu0 0
      %3324 = vmatprep.subr.bf16.mxu0 0
      %3325 = vmatpush1.bf16.msra.mxu0 %v3308
      %3326 = vmatprep.subr.bf16.mxu0 0
      %3327 = vmatpush2.bf16.msra.mxu0 0
      %3328 = vmatprep.subr.bf16.mxu0 0
      %3329 = vmatpush2.bf16.msra.mxu0 0
      %3330 = vmatprep.subr.bf16.mxu0 0
      %3331 = vmatpush2.bf16.msra.mxu0 0
      %3332 = vmatprep.subr.bf16.mxu0 0
      %3333 = vmatpush2.bf16.msra.mxu0 0
      %3334 = vmatprep.subr.bf16.mxu0 0
      %3335 = vmatpush2.bf16.msra.mxu0 0
      %3336 = vmatprep.subr.bf16.mxu0 0
      %3337 = vmatpush2.bf16.msra.mxu0 0
      %3338 = vmatprep.subr.bf16.mxu0 0
      %3339 = vmatpush2.bf16.msra.mxu0 0
      %3340 = vmatprep.subr.bf16.mxu0 0
      %3341 = vmatpush2.bf16.msra.mxu0 0
      %3342 = vmatprep.mubr.bf16.mxu0 0
      %3343 = vmatmul.mubr.bf16.gmra.mxu0 %v3305
      %v3344 = vpop.f32.mrf.mxu0
      %v3345 = vadd.f32 %v3174, %v3344
      %v3346 = vpop.f32.mrf.mxu0
      %v3347 = vpop.f32.mrf.mxu0
      %v3348 = vadd.f32 %v3177, %v3347
      %v3349 = vpop.f32.mrf.mxu0
      %3350 = vmatprep.mubr.bf16.mxu0 0
      %3351 = vmatmul.mubr.bf16.gmra.mxu0 %v3104
      %v3352 = vpop.f32.mrf.mxu0
      %v3353 = vadd.f32 %v3182, %v3352
      %v3354 = vpop.f32.mrf.mxu0
      %v3355 = vpop.f32.mrf.mxu0
      %v3356 = vadd.f32 %v3185, %v3355
      %v3357 = vpop.f32.mrf.mxu0
      %3358 = vmatprep.mubr.bf16.mxu0 0
      %3359 = vmatmul.mubr.bf16.gmra.mxu0 %v3106
      %v3360 = vpop.f32.mrf.mxu0
      %v3361 = vadd.f32 %v3190, %v3360
      %v3362 = vpop.f32.mrf.mxu0
      %v3363 = vpop.f32.mrf.mxu0
      %v3364 = vadd.f32 %v3193, %v3363
      %v3365 = vpop.f32.mrf.mxu0
      %3366 = vmatprep.mubr.bf16.mxu0 0
      %3367 = vmatmul.mubr.bf16.gmra.mxu0 %v3108
      %v3368 = vpop.f32.mrf.mxu0
      %v3369 = vadd.f32 %v3198, %v3368
      %v3370 = vpop.f32.mrf.mxu0
      %v3371 = vpop.f32.mrf.mxu0
      %v3372 = vadd.f32 %v3201, %v3371
      %v3373 = vpop.f32.mrf.mxu0
      %3374 = vmatprep.mubr.bf16.mxu0 0
      %3375 = vmatmul.mubr.bf16.gmra.mxu0 %v3110
      %v3376 = vpop.f32.mrf.mxu0
      %v3377 = vadd.f32 %v3206, %v3376
      %v3378 = vpop.f32.mrf.mxu0
      %v3379 = vpop.f32.mrf.mxu0
      %v3380 = vadd.f32 %v3209, %v3379
      %v3381 = vpop.f32.mrf.mxu0
      %3382 = vmatprep.mubr.bf16.mxu0 0
      %3383 = vmatmul.mubr.bf16.gmra.mxu0 %v3112
      %v3384 = vpop.f32.mrf.mxu0
      %v3385 = vadd.f32 %v3214, %v3384
      %v3386 = vpop.f32.mrf.mxu0
      %v3387 = vpop.f32.mrf.mxu0
      %v3388 = vadd.f32 %v3217, %v3387
      %v3389 = vpop.f32.mrf.mxu0
      %3390 = vmatprep.mubr.bf16.mxu0 0
      %3391 = vmatmul.mubr.bf16.gmra.mxu0 %v3114
      %v3392 = vpop.f32.mrf.mxu0
      %v3393 = vadd.f32 %v3222, %v3392
      %v3394 = vpop.f32.mrf.mxu0
      %v3395 = vpop.f32.mrf.mxu0
      %v3396 = vadd.f32 %v3225, %v3395
      %v3397 = vpop.f32.mrf.mxu0
      %3398 = vmatprep.mubr.bf16.mxu0 0
      %3399 = vmatmul.mubr.bf16.gmra.mxu0 %v3116
      %v3400 = vpop.f32.mrf.mxu0
      %v3401 = vadd.f32 %v3230, %v3400
      %v3402 = vpop.f32.mrf.mxu0
      %v3403 = vpop.f32.mrf.mxu0
      %v3404 = vadd.f32 %v3233, %v3403
      %v3405 = vpop.f32.mrf.mxu0
      %3406 = vmatprep.mubr.bf16.mxu0 0
      %3407 = vmatmul.mubr.bf16.gmra.mxu0 %v3118
      %v3408 = vpop.f32.mrf.mxu0
      %v3409 = vadd.f32 %v3238, %v3408
      %v3410 = vpop.f32.mrf.mxu0
      %v3411 = vpop.f32.mrf.mxu0
      %v3412 = vadd.f32 %v3241, %v3411
      %v3413 = vpop.f32.mrf.mxu0
      %3414 = vmatprep.mubr.bf16.mxu0 0
      %3415 = vmatmul.mubr.bf16.gmra.mxu0 %v3120
      %v3416 = vpop.f32.mrf.mxu0
      %v3417 = vadd.f32 %v3246, %v3416
      %v3418 = vpop.f32.mrf.mxu0
      %v3419 = vpop.f32.mrf.mxu0
      %v3420 = vadd.f32 %v3249, %v3419
      %v3421 = vpop.f32.mrf.mxu0
      %3422 = vmatprep.mubr.bf16.mxu0 0
      %3423 = vmatmul.mubr.bf16.gmra.mxu0 %v3122
      %v3424 = vpop.f32.mrf.mxu0
      %v3425 = vadd.f32 %v3254, %v3424
      %v3426 = vpop.f32.mrf.mxu0
      %v3427 = vpop.f32.mrf.mxu0
      %v3428 = vadd.f32 %v3257, %v3427
      %v3429 = vpop.f32.mrf.mxu0
      %3430 = vmatprep.mubr.bf16.mxu0 0
      %3431 = vmatmul.mubr.bf16.gmra.mxu0 %v3124
      %v3432 = vpop.f32.mrf.mxu0
      %v3433 = vadd.f32 %v3262, %v3432
      %v3434 = vpop.f32.mrf.mxu0
      %v3435 = vpop.f32.mrf.mxu0
      %v3436 = vadd.f32 %v3265, %v3435
      %v3437 = vpop.f32.mrf.mxu0
      %3438 = vmatprep.mubr.bf16.mxu0 0
      %3439 = vmatmul.mubr.bf16.gmra.mxu0 %v3126
      %v3440 = vpop.f32.mrf.mxu0
      %v3441 = vadd.f32 %v3270, %v3440
      %v3442 = vpop.f32.mrf.mxu0
      %v3443 = vpop.f32.mrf.mxu0
      %v3444 = vadd.f32 %v3273, %v3443
      %v3445 = vpop.f32.mrf.mxu0
      %3446 = vmatprep.mubr.bf16.mxu0 0
      %3447 = vmatmul.mubr.bf16.gmra.mxu0 %v3128
      %v3448 = vpop.f32.mrf.mxu0
      %v3449 = vadd.f32 %v3278, %v3448
      %v3450 = vpop.f32.mrf.mxu0
      %v3451 = vpop.f32.mrf.mxu0
      %v3452 = vadd.f32 %v3281, %v3451
      %v3453 = vpop.f32.mrf.mxu0
      %3454 = vmatprep.mubr.bf16.mxu0 0
      %3455 = vmatmul.mubr.bf16.gmra.mxu0 %v3130
      %v3456 = vpop.f32.mrf.mxu0
      %v3457 = vadd.f32 %v3286, %v3456
      %v3458 = vpop.f32.mrf.mxu0
      %v3459 = vpop.f32.mrf.mxu0
      %v3460 = vadd.f32 %v3289, %v3459
      %v3461 = vpop.f32.mrf.mxu0
      %3462 = vmatprep.mubr.bf16.mxu0 0
      %3463 = vmatmul.mubr.bf16.gmra.mxu0 %v3132
      %v3464 = vpop.f32.mrf.mxu0
      %v3465 = vadd.f32 %v3294, %v3464
      %v3466 = vpop.f32.mrf.mxu0
      %v3467 = vpop.f32.mrf.mxu0
      %v3468 = vadd.f32 %v3297, %v3467
      %v3469 = vpop.f32.mrf.mxu0
      %3470 = vdwg.mxu0
      %s3471 = scalar_lea.vmem %s3, 16
      %v3472 = vld [vmem:[%s3471] sm:$0xf]
      %v3473 = vld [vmem:[%s3471 + $0x4] sm:$0x3]
      %v3476 = vunpack.c.l.b16 %v3472
      %v3477 = vunpack.c.l.b16 %v3473
      %v3478 = vpack.c.b16 %v3477, %v3476
      %v3479 = vsel %vm1700, %v3093, 0
      %v3482 = vsel %vm1733, %v3478, 0
      %3484 = vmatprep.subr.bf16.mxu0 0
      %3485 = vmatpush1.bf16.msra.mxu0 0
      %3486 = vmatprep.subr.bf16.mxu0 0
      %3487 = vmatpush1.bf16.msra.mxu0 0
      %3488 = vmatprep.subr.bf16.mxu0 0
      %3489 = vmatpush1.bf16.msra.mxu0 0
      %3490 = vmatprep.subr.bf16.mxu0 0
      %3491 = vmatpush1.bf16.msra.mxu0 0
      %3492 = vmatprep.subr.bf16.mxu0 0
      %3493 = vmatpush1.bf16.msra.mxu0 0
      %3494 = vmatprep.subr.bf16.mxu0 0
      %3495 = vmatpush1.bf16.msra.mxu0 0
      %3496 = vmatprep.subr.bf16.mxu0 0
      %3497 = vmatpush1.bf16.msra.mxu0 0
      %3498 = vmatprep.subr.bf16.mxu0 0
      %3499 = vmatpush1.bf16.msra.mxu0 %v3482
      %3500 = vmatprep.subr.bf16.mxu0 0
      %3501 = vmatpush2.bf16.msra.mxu0 0
      %3502 = vmatprep.subr.bf16.mxu0 0
      %3503 = vmatpush2.bf16.msra.mxu0 0
      %3504 = vmatprep.subr.bf16.mxu0 0
      %3505 = vmatpush2.bf16.msra.mxu0 0
      %3506 = vmatprep.subr.bf16.mxu0 0
      %3507 = vmatpush2.bf16.msra.mxu0 0
      %3508 = vmatprep.subr.bf16.mxu0 0
      %3509 = vmatpush2.bf16.msra.mxu0 0
      %3510 = vmatprep.subr.bf16.mxu0 0
      %3511 = vmatpush2.bf16.msra.mxu0 0
      %3512 = vmatprep.subr.bf16.mxu0 0
      %3513 = vmatpush2.bf16.msra.mxu0 0
      %3514 = vmatprep.subr.bf16.mxu0 0
      %3515 = vmatpush2.bf16.msra.mxu0 0
      %3516 = vmatprep.mubr.bf16.mxu0 0
      %3517 = vmatmul.mubr.bf16.gmra.mxu0 %v3106
      %v3518 = vpop.f32.mrf.mxu0
      %v3519 = vadd.f32 0.0, %v3518
      %v3520 = vpop.f32.mrf.mxu0
      %v3521 = vpop.f32.mrf.mxu0
      %v3522 = vadd.f32 0.0, %v3521
      %v3523 = vpop.f32.mrf.mxu0
      %3524 = vmatprep.mubr.bf16.mxu0 0
      %3525 = vmatmul.mubr.bf16.gmra.mxu0 %v3108
      %v3526 = vpop.f32.mrf.mxu0
      %v3527 = vadd.f32 0.0, %v3526
      %v3528 = vpop.f32.mrf.mxu0
      %v3529 = vpop.f32.mrf.mxu0
      %v3530 = vadd.f32 0.0, %v3529
      %v3531 = vpop.f32.mrf.mxu0
      %3532 = vmatprep.mubr.bf16.mxu0 0
      %3533 = vmatmul.mubr.bf16.gmra.mxu0 %v3110
      %v3534 = vpop.f32.mrf.mxu0
      %v3535 = vadd.f32 0.0, %v3534
      %v3536 = vpop.f32.mrf.mxu0
      %v3537 = vpop.f32.mrf.mxu0
      %v3538 = vadd.f32 0.0, %v3537
      %v3539 = vpop.f32.mrf.mxu0
      %3540 = vmatprep.mubr.bf16.mxu0 0
      %3541 = vmatmul.mubr.bf16.gmra.mxu0 %v3112
      %v3542 = vpop.f32.mrf.mxu0
      %v3543 = vadd.f32 0.0, %v3542
      %v3544 = vpop.f32.mrf.mxu0
      %v3545 = vpop.f32.mrf.mxu0
      %v3546 = vadd.f32 0.0, %v3545
      %v3547 = vpop.f32.mrf.mxu0
      %3548 = vmatprep.mubr.bf16.mxu0 0
      %3549 = vmatmul.mubr.bf16.gmra.mxu0 %v3114
      %v3550 = vpop.f32.mrf.mxu0
      %v3551 = vadd.f32 0.0, %v3550
      %v3552 = vpop.f32.mrf.mxu0
      %v3553 = vpop.f32.mrf.mxu0
      %v3554 = vadd.f32 0.0, %v3553
      %v3555 = vpop.f32.mrf.mxu0
      %3556 = vmatprep.mubr.bf16.mxu0 0
      %3557 = vmatmul.mubr.bf16.gmra.mxu0 %v3116
      %v3558 = vpop.f32.mrf.mxu0
      %v3559 = vadd.f32 0.0, %v3558
      %v3560 = vpop.f32.mrf.mxu0
      %v3561 = vpop.f32.mrf.mxu0
      %v3562 = vadd.f32 0.0, %v3561
      %v3563 = vpop.f32.mrf.mxu0
      %3564 = vmatprep.mubr.bf16.mxu0 0
      %3565 = vmatmul.mubr.bf16.gmra.mxu0 %v3118
      %v3566 = vpop.f32.mrf.mxu0
      %v3567 = vadd.f32 0.0, %v3566
      %v3568 = vpop.f32.mrf.mxu0
      %v3569 = vpop.f32.mrf.mxu0
      %v3570 = vadd.f32 0.0, %v3569
      %v3571 = vpop.f32.mrf.mxu0
      %3572 = vmatprep.mubr.bf16.mxu0 0
      %3573 = vmatmul.mubr.bf16.gmra.mxu0 %v3120
      %v3574 = vpop.f32.mrf.mxu0
      %v3575 = vadd.f32 0.0, %v3574
      %v3576 = vpop.f32.mrf.mxu0
      %v3577 = vpop.f32.mrf.mxu0
      %v3578 = vadd.f32 0.0, %v3577
      %v3579 = vpop.f32.mrf.mxu0
      %3580 = vmatprep.mubr.bf16.mxu0 0
      %3581 = vmatmul.mubr.bf16.gmra.mxu0 %v3122
      %v3582 = vpop.f32.mrf.mxu0
      %v3583 = vadd.f32 0.0, %v3582
      %v3584 = vpop.f32.mrf.mxu0
      %v3585 = vpop.f32.mrf.mxu0
      %v3586 = vadd.f32 0.0, %v3585
      %v3587 = vpop.f32.mrf.mxu0
      %3588 = vmatprep.mubr.bf16.mxu0 0
      %3589 = vmatmul.mubr.bf16.gmra.mxu0 %v3124
      %v3590 = vpop.f32.mrf.mxu0
      %v3591 = vadd.f32 0.0, %v3590
      %v3592 = vpop.f32.mrf.mxu0
      %v3593 = vpop.f32.mrf.mxu0
      %v3594 = vadd.f32 0.0, %v3593
      %v3595 = vpop.f32.mrf.mxu0
      %3596 = vmatprep.mubr.bf16.mxu0 0
      %3597 = vmatmul.mubr.bf16.gmra.mxu0 %v3126
      %v3598 = vpop.f32.mrf.mxu0
      %v3599 = vadd.f32 0.0, %v3598
      %v3600 = vpop.f32.mrf.mxu0
      %v3601 = vpop.f32.mrf.mxu0
      %v3602 = vadd.f32 0.0, %v3601
      %v3603 = vpop.f32.mrf.mxu0
      %3604 = vmatprep.mubr.bf16.mxu0 0
      %3605 = vmatmul.mubr.bf16.gmra.mxu0 %v3128
      %v3606 = vpop.f32.mrf.mxu0
      %v3607 = vadd.f32 0.0, %v3606
      %v3608 = vpop.f32.mrf.mxu0
      %v3609 = vpop.f32.mrf.mxu0
      %v3610 = vadd.f32 0.0, %v3609
      %v3611 = vpop.f32.mrf.mxu0
      %3612 = vmatprep.mubr.bf16.mxu0 0
      %3613 = vmatmul.mubr.bf16.gmra.mxu0 %v3130
      %v3614 = vpop.f32.mrf.mxu0
      %v3615 = vadd.f32 0.0, %v3614
      %v3616 = vpop.f32.mrf.mxu0
      %v3617 = vpop.f32.mrf.mxu0
      %v3618 = vadd.f32 0.0, %v3617
      %v3619 = vpop.f32.mrf.mxu0
      %3620 = vmatprep.mubr.bf16.mxu0 0
      %3621 = vmatmul.mubr.bf16.gmra.mxu0 %v3132
      %v3622 = vpop.f32.mrf.mxu0
      %v3623 = vadd.f32 0.0, %v3622
      %v3624 = vpop.f32.mrf.mxu0
      %v3625 = vpop.f32.mrf.mxu0
      %v3626 = vadd.f32 0.0, %v3625
      %v3627 = vpop.f32.mrf.mxu0
      %3628 = vmatprep.mubr.bf16.mxu0 0
      %3629 = vmatmul.mubr.bf16.gmra.mxu0 %v3134
      %v3630 = vpop.f32.mrf.mxu0
      %v3631 = vadd.f32 0.0, %v3630
      %v3632 = vpop.f32.mrf.mxu0
      %v3633 = vpop.f32.mrf.mxu0
      %v3634 = vadd.f32 0.0, %v3633
      %v3635 = vpop.f32.mrf.mxu0
      %3636 = vmatprep.mubr.bf16.mxu0 0
      %3637 = vmatmul.mubr.bf16.gmra.mxu0 %v3479
      %v3638 = vpop.f32.mrf.mxu0
      %v3639 = vadd.f32 0.0, %v3638
      %v3640 = vpop.f32.mrf.mxu0
      %v3641 = vpop.f32.mrf.mxu0
      %v3642 = vadd.f32 0.0, %v3641
      %v3643 = vpop.f32.mrf.mxu0
      %3644 = vdwg.mxu0
      %v3645 = vadd.f32 %v3345, %v3519
      %v3646 = vadd.f32 %v3348, %v3522
      %v3647 = vadd.f32 %v3353, %v3527
      %v3648 = vadd.f32 %v3356, %v3530
      %v3649 = vadd.f32 %v3361, %v3535
      %v3650 = vadd.f32 %v3364, %v3538
      %v3651 = vadd.f32 %v3369, %v3543
      %v3652 = vadd.f32 %v3372, %v3546
      %v3653 = vadd.f32 %v3377, %v3551
      %v3654 = vadd.f32 %v3380, %v3554
      %v3655 = vadd.f32 %v3385, %v3559
      %v3656 = vadd.f32 %v3388, %v3562
      %v3657 = vadd.f32 %v3393, %v3567
      %v3658 = vadd.f32 %v3396, %v3570
      %v3659 = vadd.f32 %v3401, %v3575
      %v3660 = vadd.f32 %v3404, %v3578
      %v3661 = vadd.f32 %v3409, %v3583
      %v3662 = vadd.f32 %v3412, %v3586
      %v3663 = vadd.f32 %v3417, %v3591
      %v3664 = vadd.f32 %v3420, %v3594
      %v3665 = vadd.f32 %v3425, %v3599
      %v3666 = vadd.f32 %v3428, %v3602
      %v3667 = vadd.f32 %v3433, %v3607
      %v3668 = vadd.f32 %v3436, %v3610
      %v3669 = vadd.f32 %v3441, %v3615
      %v3670 = vadd.f32 %v3444, %v3618
      %v3671 = vadd.f32 %v3449, %v3623
      %v3672 = vadd.f32 %v3452, %v3626
      %v3673 = vadd.f32 %v3457, %v3631
      %v3674 = vadd.f32 %v3460, %v3634
      %v3675 = vadd.f32 %v3465, %v3639
      %v3676 = vadd.f32 %v3468, %v3642
      %v3677 = vld [vmem:[%s4] sm:$0x1]
      %v3679 = vlaneseq
      %v3680 = vshrl.u32 %v3679, 7
      %v3681 = vsub.s32 0, %v3680
      %v3682 = vrot.slane %v3677, %v3681
      %v3684 = vadd.f32 %v3645, %v3682
      %v3685 = vadd.f32 %v3646, %v3682
      %v3686 = vadd.f32 %v3647, %v3682
      %v3687 = vadd.f32 %v3648, %v3682
      %v3688 = vadd.f32 %v3649, %v3682
      %v3689 = vadd.f32 %v3650, %v3682
      %v3690 = vadd.f32 %v3651, %v3682
      %v3691 = vadd.f32 %v3652, %v3682
      %v3692 = vadd.f32 %v3653, %v3682
      %v3693 = vadd.f32 %v3654, %v3682
      %v3694 = vadd.f32 %v3655, %v3682
      %v3695 = vadd.f32 %v3656, %v3682
      %v3696 = vadd.f32 %v3657, %v3682
      %v3697 = vadd.f32 %v3658, %v3682
      %v3698 = vadd.f32 %v3659, %v3682
      %v3699 = vadd.f32 %v3660, %v3682
      %v3700 = vadd.f32 %v3661, %v3682
      %v3701 = vadd.f32 %v3662, %v3682
      %v3702 = vadd.f32 %v3663, %v3682
      %v3703 = vadd.f32 %v3664, %v3682
      %v3704 = vadd.f32 %v3665, %v3682
      %v3705 = vadd.f32 %v3666, %v3682
      %v3706 = vadd.f32 %v3667, %v3682
      %v3707 = vadd.f32 %v3668, %v3682
      %v3708 = vadd.f32 %v3669, %v3682
      %v3709 = vadd.f32 %v3670, %v3682
      %v3710 = vadd.f32 %v3671, %v3682
      %v3711 = vadd.f32 %v3672, %v3682
      %v3712 = vadd.f32 %v3673, %v3682
      %v3713 = vadd.f32 %v3674, %v3682
      %v3714 = vadd.f32 %v3675, %v3682
      %v3715 = vadd.f32 %v3676, %v3682
      %v3716 = vsel %vm1600, %v3684, 0.0
      %v3717 = vsel %vm1600, %v3685, 0.0
      %v3718 = vadd.f32 %v3716, %v3717
      %v3719 = vsel %vm1600, %v3686, 0.0
      %v3720 = vadd.f32 %v3718, %v3719
      %v3721 = vsel %vm1600, %v3687, 0.0
      %v3722 = vadd.f32 %v3720, %v3721
      %v3723 = vsel %vm1600, %v3688, 0.0
      %v3724 = vadd.f32 %v3722, %v3723
      %v3725 = vsel %vm1600, %v3689, 0.0
      %v3726 = vadd.f32 %v3724, %v3725
      %v3727 = vsel %vm1600, %v3690, 0.0
      %v3728 = vadd.f32 %v3726, %v3727
      %v3729 = vsel %vm1600, %v3691, 0.0
      %v3730 = vadd.f32 %v3728, %v3729
      %v3731 = vsel %vm1600, %v3692, 0.0
      %v3732 = vadd.f32 %v3730, %v3731
      %v3733 = vsel %vm1600, %v3693, 0.0
      %v3734 = vadd.f32 %v3732, %v3733
      %v3735 = vsel %vm1600, %v3694, 0.0
      %v3736 = vadd.f32 %v3734, %v3735
      %v3737 = vsel %vm1600, %v3695, 0.0
      %v3738 = vadd.f32 %v3736, %v3737
      %v3739 = vsel %vm1600, %v3696, 0.0
      %v3740 = vadd.f32 %v3738, %v3739
      %v3741 = vsel %vm1600, %v3697, 0.0
      %v3742 = vadd.f32 %v3740, %v3741
      %v3743 = vsel %vm1600, %v3698, 0.0
      %v3744 = vadd.f32 %v3742, %v3743
      %v3745 = vsel %vm1600, %v3699, 0.0
      %v3746 = vadd.f32 %v3744, %v3745
      %v3747 = vsel %vm1600, %v3700, 0.0
      %v3748 = vadd.f32 %v3746, %v3747
      %v3749 = vsel %vm1600, %v3701, 0.0
      %v3750 = vadd.f32 %v3748, %v3749
      %v3751 = vsel %vm1600, %v3702, 0.0
      %v3752 = vadd.f32 %v3750, %v3751
      %v3753 = vsel %vm1600, %v3703, 0.0
      %v3754 = vadd.f32 %v3752, %v3753
      %v3755 = vsel %vm1600, %v3704, 0.0
      %v3756 = vadd.f32 %v3754, %v3755
      %v3757 = vsel %vm1600, %v3705, 0.0
      %v3758 = vadd.f32 %v3756, %v3757
      %v3759 = vsel %vm1600, %v3706, 0.0
      %v3760 = vadd.f32 %v3758, %v3759
      %v3761 = vsel %vm1600, %v3707, 0.0
      %v3762 = vadd.f32 %v3760, %v3761
      %v3763 = vsel %vm1600, %v3708, 0.0
      %v3764 = vadd.f32 %v3762, %v3763
      %v3765 = vsel %vm1600, %v3709, 0.0
      %v3766 = vadd.f32 %v3764, %v3765
      %v3767 = vsel %vm1600, %v3710, 0.0
      %v3768 = vadd.f32 %v3766, %v3767
      %v3769 = vsel %vm1600, %v3711, 0.0
      %v3770 = vadd.f32 %v3768, %v3769
      %v3771 = vsel %vm1600, %v3712, 0.0
      %v3772 = vadd.f32 %v3770, %v3771
      %v3773 = vsel %vm1600, %v3713, 0.0
      %v3774 = vadd.f32 %v3772, %v3773
      %v3775 = vsel %vm1600, %v3714, 0.0
      %v3776 = vadd.f32 %v3774, %v3775
      %v3777 = vsel %vm1600, %v3715, 0.0
      %v3778 = vadd.f32 %v3776, %v3777
      %v3779 = vrot.slane %v3778, 4
      %v3780 = vadd.f32 %v3778, %v3779
      %v3781 = vrot.slane %v3780, 2
      %v3782 = vadd.f32 %v3780, %v3781
      %v3783 = vrot.slane %v3782, 1
      %v3784 = vadd.f32 %v3782, %v3783
      %v3785 = vmul.f32 %v3784, 0.00390625
      %v3786 = vsub.f32 %v3684, %v3785
      %v3787 = vsub.f32 %v3685, %v3785
      %v3788 = vsub.f32 %v3686, %v3785
      %v3789 = vsub.f32 %v3687, %v3785
      %v3790 = vsub.f32 %v3688, %v3785
      %v3791 = vsub.f32 %v3689, %v3785
      %v3792 = vsub.f32 %v3690, %v3785
      %v3793 = vsub.f32 %v3691, %v3785
      %v3794 = vsub.f32 %v3692, %v3785
      %v3795 = vsub.f32 %v3693, %v3785
      %v3796 = vsub.f32 %v3694, %v3785
      %v3797 = vsub.f32 %v3695, %v3785
      %v3798 = vsub.f32 %v3696, %v3785
      %v3799 = vsub.f32 %v3697, %v3785
      %v3800 = vsub.f32 %v3698, %v3785
      %v3801 = vsub.f32 %v3699, %v3785
      %v3802 = vsub.f32 %v3700, %v3785
      %v3803 = vsub.f32 %v3701, %v3785
      %v3804 = vsub.f32 %v3702, %v3785
      %v3805 = vsub.f32 %v3703, %v3785
      %v3806 = vsub.f32 %v3704, %v3785
      %v3807 = vsub.f32 %v3705, %v3785
      %v3808 = vsub.f32 %v3706, %v3785
      %v3809 = vsub.f32 %v3707, %v3785
      %v3810 = vsub.f32 %v3708, %v3785
      %v3811 = vsub.f32 %v3709, %v3785
      %v3812 = vsub.f32 %v3710, %v3785
      %v3813 = vsub.f32 %v3711, %v3785
      %v3814 = vsub.f32 %v3712, %v3785
      %v3815 = vsub.f32 %v3713, %v3785
      %v3816 = vsub.f32 %v3714, %v3785
      %v3817 = vsub.f32 %v3715, %v3785
      %v3818 = vmul.f32 %v3786, %v3786
      %v3819 = vmul.f32 %v3787, %v3787
      %v3820 = vmul.f32 %v3788, %v3788
      %v3821 = vmul.f32 %v3789, %v3789
      %v3822 = vmul.f32 %v3790, %v3790
      %v3823 = vmul.f32 %v3791, %v3791
      %v3824 = vmul.f32 %v3792, %v3792
      %v3825 = vmul.f32 %v3793, %v3793
      %v3826 = vmul.f32 %v3794, %v3794
      %v3827 = vmul.f32 %v3795, %v3795
      %v3828 = vmul.f32 %v3796, %v3796
      %v3829 = vmul.f32 %v3797, %v3797
      %v3830 = vmul.f32 %v3798, %v3798
      %v3831 = vmul.f32 %v3799, %v3799
      %v3832 = vmul.f32 %v3800, %v3800
      %v3833 = vmul.f32 %v3801, %v3801
      %v3834 = vmul.f32 %v3802, %v3802
      %v3835 = vmul.f32 %v3803, %v3803
      %v3836 = vmul.f32 %v3804, %v3804
      %v3837 = vmul.f32 %v3805, %v3805
      %v3838 = vmul.f32 %v3806, %v3806
      %v3839 = vmul.f32 %v3807, %v3807
      %v3840 = vmul.f32 %v3808, %v3808
      %v3841 = vmul.f32 %v3809, %v3809
      %v3842 = vmul.f32 %v3810, %v3810
      %v3843 = vmul.f32 %v3811, %v3811
      %v3844 = vmul.f32 %v3812, %v3812
      %v3845 = vmul.f32 %v3813, %v3813
      %v3846 = vmul.f32 %v3814, %v3814
      %v3847 = vmul.f32 %v3815, %v3815
      %v3848 = vmul.f32 %v3816, %v3816
      %v3849 = vmul.f32 %v3817, %v3817
      %v3850 = vsel %vm1600, %v3818, 0.0
      %v3851 = vsel %vm1600, %v3819, 0.0
      %v3852 = vadd.f32 %v3850, %v3851
      %v3853 = vsel %vm1600, %v3820, 0.0
      %v3854 = vadd.f32 %v3852, %v3853
      %v3855 = vsel %vm1600, %v3821, 0.0
      %v3856 = vadd.f32 %v3854, %v3855
      %v3857 = vsel %vm1600, %v3822, 0.0
      %v3858 = vadd.f32 %v3856, %v3857
      %v3859 = vsel %vm1600, %v3823, 0.0
      %v3860 = vadd.f32 %v3858, %v3859
      %v3861 = vsel %vm1600, %v3824, 0.0
      %v3862 = vadd.f32 %v3860, %v3861
      %v3863 = vsel %vm1600, %v3825, 0.0
      %v3864 = vadd.f32 %v3862, %v3863
      %v3865 = vsel %vm1600, %v3826, 0.0
      %v3866 = vadd.f32 %v3864, %v3865
      %v3867 = vsel %vm1600, %v3827, 0.0
      %v3868 = vadd.f32 %v3866, %v3867
      %v3869 = vsel %vm1600, %v3828, 0.0
      %v3870 = vadd.f32 %v3868, %v3869
      %v3871 = vsel %vm1600, %v3829, 0.0
      %v3872 = vadd.f32 %v3870, %v3871
      %v3873 = vsel %vm1600, %v3830, 0.0
      %v3874 = vadd.f32 %v3872, %v3873
      %v3875 = vsel %vm1600, %v3831, 0.0
      %v3876 = vadd.f32 %v3874, %v3875
      %v3877 = vsel %vm1600, %v3832, 0.0
      %v3878 = vadd.f32 %v3876, %v3877
      %v3879 = vsel %vm1600, %v3833, 0.0
      %v3880 = vadd.f32 %v3878, %v3879
      %v3881 = vsel %vm1600, %v3834, 0.0
      %v3882 = vadd.f32 %v3880, %v3881
      %v3883 = vsel %vm1600, %v3835, 0.0
      %v3884 = vadd.f32 %v3882, %v3883
      %v3885 = vsel %vm1600, %v3836, 0.0
      %v3886 = vadd.f32 %v3884, %v3885
      %v3887 = vsel %vm1600, %v3837, 0.0
      %v3888 = vadd.f32 %v3886, %v3887
      %v3889 = vsel %vm1600, %v3838, 0.0
      %v3890 = vadd.f32 %v3888, %v3889
      %v3891 = vsel %vm1600, %v3839, 0.0
      %v3892 = vadd.f32 %v3890, %v3891
      %v3893 = vsel %vm1600, %v3840, 0.0
      %v3894 = vadd.f32 %v3892, %v3893
      %v3895 = vsel %vm1600, %v3841, 0.0
      %v3896 = vadd.f32 %v3894, %v3895
      %v3897 = vsel %vm1600, %v3842, 0.0
      %v3898 = vadd.f32 %v3896, %v3897
      %v3899 = vsel %vm1600, %v3843, 0.0
      %v3900 = vadd.f32 %v3898, %v3899
      %v3901 = vsel %vm1600, %v3844, 0.0
      %v3902 = vadd.f32 %v3900, %v3901
      %v3903 = vsel %vm1600, %v3845, 0.0
      %v3904 = vadd.f32 %v3902, %v3903
      %v3905 = vsel %vm1600, %v3846, 0.0
      %v3906 = vadd.f32 %v3904, %v3905
      %v3907 = vsel %vm1600, %v3847, 0.0
      %v3908 = vadd.f32 %v3906, %v3907
      %v3909 = vsel %vm1600, %v3848, 0.0
      %v3910 = vadd.f32 %v3908, %v3909
      %v3911 = vsel %vm1600, %v3849, 0.0
      %v3912 = vadd.f32 %v3910, %v3911
      %v3913 = vrot.slane %v3912, 4
      %v3914 = vadd.f32 %v3912, %v3913
      %v3915 = vrot.slane %v3914, 2
      %v3916 = vadd.f32 %v3914, %v3915
      %v3917 = vrot.slane %v3916, 1
      %v3918 = vadd.f32 %v3916, %v3917
      %v3919 = vmul.f32 %v3918, 0.00390625
      %v3920 = vadd.f32 %v3919, 1e-05
      %v3921 = vrsqrt.pop %v3920
      %v3922 = vmul.f32 %v3786, %v3921
      %v3923 = vmul.f32 %v3787, %v3921
      %v3924 = vmul.f32 %v3788, %v3921
      %v3925 = vmul.f32 %v3789, %v3921
      %v3926 = vmul.f32 %v3790, %v3921
      %v3927 = vmul.f32 %v3791, %v3921
      %v3928 = vmul.f32 %v3792, %v3921
      %v3929 = vmul.f32 %v3793, %v3921
      %v3930 = vmul.f32 %v3794, %v3921
      %v3931 = vmul.f32 %v3795, %v3921
      %v3932 = vmul.f32 %v3796, %v3921
      %v3933 = vmul.f32 %v3797, %v3921
      %v3934 = vmul.f32 %v3798, %v3921
      %v3935 = vmul.f32 %v3799, %v3921
      %v3936 = vmul.f32 %v3800, %v3921
      %v3937 = vmul.f32 %v3801, %v3921
      %v3938 = vmul.f32 %v3802, %v3921
      %v3939 = vmul.f32 %v3803, %v3921
      %v3940 = vmul.f32 %v3804, %v3921
      %v3941 = vmul.f32 %v3805, %v3921
      %v3942 = vmul.f32 %v3806, %v3921
      %v3943 = vmul.f32 %v3807, %v3921
      %v3944 = vmul.f32 %v3808, %v3921
      %v3945 = vmul.f32 %v3809, %v3921
      %v3946 = vmul.f32 %v3810, %v3921
      %v3947 = vmul.f32 %v3811, %v3921
      %v3948 = vmul.f32 %v3812, %v3921
      %v3949 = vmul.f32 %v3813, %v3921
      %v3950 = vmul.f32 %v3814, %v3921
      %v3951 = vmul.f32 %v3815, %v3921
      %v3952 = vmul.f32 %v3816, %v3921
      %v3953 = vmul.f32 %v3817, %v3921
      %v3954 = vxor.u32 %v3922, 2147483648
      %v3955 = vxor.u32 %v3923, 2147483648
      %v3956 = vxor.u32 %v3924, 2147483648
      %v3957 = vxor.u32 %v3925, 2147483648
      %v3958 = vxor.u32 %v3926, 2147483648
      %v3959 = vxor.u32 %v3927, 2147483648
      %v3960 = vxor.u32 %v3928, 2147483648
      %v3961 = vxor.u32 %v3929, 2147483648
      %v3962 = vxor.u32 %v3930, 2147483648
      %v3963 = vxor.u32 %v3931, 2147483648
      %v3964 = vxor.u32 %v3932, 2147483648
      %v3965 = vxor.u32 %v3933, 2147483648
      %v3966 = vxor.u32 %v3934, 2147483648
      %v3967 = vxor.u32 %v3935, 2147483648
      %v3968 = vxor.u32 %v3936, 2147483648
      %v3969 = vxor.u32 %v3937, 2147483648
      %v3970 = vxor.u32 %v3938, 2147483648
      %v3971 = vxor.u32 %v3939, 2147483648
      %v3972 = vxor.u32 %v3940, 2147483648
      %v3973 = vxor.u32 %v3941, 2147483648
      %v3974 = vxor.u32 %v3942, 2147483648
      %v3975 = vxor.u32 %v3943, 2147483648
      %v3976 = vxor.u32 %v3944, 2147483648
      %v3977 = vxor.u32 %v3945, 2147483648
      %v3978 = vxor.u32 %v3946, 2147483648
      %v3979 = vxor.u32 %v3947, 2147483648
      %v3980 = vxor.u32 %v3948, 2147483648
      %v3981 = vxor.u32 %v3949, 2147483648
      %v3982 = vxor.u32 %v3950, 2147483648
      %v3983 = vxor.u32 %v3951, 2147483648
      %v3984 = vxor.u32 %v3952, 2147483648
      %v3985 = vxor.u32 %v3953, 2147483648
      %v3986 = vmul.f32 %v3954, 1.442695
      %v3987 = vpow.pop %v3986
      %v3988 = vmul.f32 %v3955, 1.442695
      %v3989 = vpow.pop %v3988
      %v3990 = vmul.f32 %v3956, 1.442695
      %v3991 = vpow.pop %v3990
      %v3992 = vmul.f32 %v3957, 1.442695
      %v3993 = vpow.pop %v3992
      %v3994 = vmul.f32 %v3958, 1.442695
      %v3995 = vpow.pop %v3994
      %v3996 = vmul.f32 %v3959, 1.442695
      %v3997 = vpow.pop %v3996
      %v3998 = vmul.f32 %v3960, 1.442695
      %v3999 = vpow.pop %v3998
      %v4000 = vmul.f32 %v3961, 1.442695
      %v4001 = vpow.pop %v4000
      %v4002 = vmul.f32 %v3962, 1.442695
      %v4003 = vpow.pop %v4002
      %v4004 = vmul.f32 %v3963, 1.442695
      %v4005 = vpow.pop %v4004
      %v4006 = vmul.f32 %v3964, 1.442695
      %v4007 = vpow.pop %v4006
      %v4008 = vmul.f32 %v3965, 1.442695
      %v4009 = vpow.pop %v4008
      %v4010 = vmul.f32 %v3966, 1.442695
      %v4011 = vpow.pop %v4010
      %v4012 = vmul.f32 %v3967, 1.442695
      %v4013 = vpow.pop %v4012
      %v4014 = vmul.f32 %v3968, 1.442695
      %v4015 = vpow.pop %v4014
      %v4016 = vmul.f32 %v3969, 1.442695
      %v4017 = vpow.pop %v4016
      %v4018 = vmul.f32 %v3970, 1.442695
      %v4019 = vpow.pop %v4018
      %v4020 = vmul.f32 %v3971, 1.442695
      %v4021 = vpow.pop %v4020
      %v4022 = vmul.f32 %v3972, 1.442695
      %v4023 = vpow.pop %v4022
      %v4024 = vmul.f32 %v3973, 1.442695
      %v4025 = vpow.pop %v4024
      %v4026 = vmul.f32 %v3974, 1.442695
      %v4027 = vpow.pop %v4026
      %v4028 = vmul.f32 %v3975, 1.442695
      %v4029 = vpow.pop %v4028
      %v4030 = vmul.f32 %v3976, 1.442695
      %v4031 = vpow.pop %v4030
      %v4032 = vmul.f32 %v3977, 1.442695
      %v4033 = vpow.pop %v4032
      %v4034 = vmul.f32 %v3978, 1.442695
      %v4035 = vpow.pop %v4034
      %v4036 = vmul.f32 %v3979, 1.442695
      %v4037 = vpow.pop %v4036
      %v4038 = vmul.f32 %v3980, 1.442695
      %v4039 = vpow.pop %v4038
      %v4040 = vmul.f32 %v3981, 1.442695
      %v4041 = vpow.pop %v4040
      %v4042 = vmul.f32 %v3982, 1.442695
      %v4043 = vpow.pop %v4042
      %v4044 = vmul.f32 %v3983, 1.442695
      %v4045 = vpow.pop %v4044
      %v4046 = vmul.f32 %v3984, 1.442695
      %v4047 = vpow.pop %v4046
      %v4048 = vmul.f32 %v3985, 1.442695
      %v4049 = vpow.pop %v4048
      %v4050 = vadd.f32 %v3987, 1.0
      %v4051 = vadd.f32 %v3989, 1.0
      %v4052 = vadd.f32 %v3991, 1.0
      %v4053 = vadd.f32 %v3993, 1.0
      %v4054 = vadd.f32 %v3995, 1.0
      %v4055 = vadd.f32 %v3997, 1.0
      %v4056 = vadd.f32 %v3999, 1.0
      %v4057 = vadd.f32 %v4001, 1.0
      %v4058 = vadd.f32 %v4003, 1.0
      %v4059 = vadd.f32 %v4005, 1.0
      %v4060 = vadd.f32 %v4007, 1.0
      %v4061 = vadd.f32 %v4009, 1.0
      %v4062 = vadd.f32 %v4011, 1.0
      %v4063 = vadd.f32 %v4013, 1.0
      %v4064 = vadd.f32 %v4015, 1.0
      %v4065 = vadd.f32 %v4017, 1.0
      %v4066 = vadd.f32 %v4019, 1.0
      %v4067 = vadd.f32 %v4021, 1.0
      %v4068 = vadd.f32 %v4023, 1.0
      %v4069 = vadd.f32 %v4025, 1.0
      %v4070 = vadd.f32 %v4027, 1.0
      %v4071 = vadd.f32 %v4029, 1.0
      %v4072 = vadd.f32 %v4031, 1.0
      %v4073 = vadd.f32 %v4033, 1.0
      %v4074 = vadd.f32 %v4035, 1.0
      %v4075 = vadd.f32 %v4037, 1.0
      %v4076 = vadd.f32 %v4039, 1.0
      %v4077 = vadd.f32 %v4041, 1.0
      %v4078 = vadd.f32 %v4043, 1.0
      %v4079 = vadd.f32 %v4045, 1.0
      %v4080 = vadd.f32 %v4047, 1.0
      %v4081 = vadd.f32 %v4049, 1.0
      %v4082 = vrcp.pop %v4050
      %v4083 = vmul.f32 1.0, %v4082
      %v4084 = vrcp.pop %v4051
      %v4085 = vmul.f32 1.0, %v4084
      %v4086 = vrcp.pop %v4052
      %v4087 = vmul.f32 1.0, %v4086
      %v4088 = vrcp.pop %v4053
      %v4089 = vmul.f32 1.0, %v4088
      %v4090 = vrcp.pop %v4054
      %v4091 = vmul.f32 1.0, %v4090
      %v4092 = vrcp.pop %v4055
      %v4093 = vmul.f32 1.0, %v4092
      %v4094 = vrcp.pop %v4056
      %v4095 = vmul.f32 1.0, %v4094
      %v4096 = vrcp.pop %v4057
      %v4097 = vmul.f32 1.0, %v4096
      %v4098 = vrcp.pop %v4058
      %v4099 = vmul.f32 1.0, %v4098
      %v4100 = vrcp.pop %v4059
      %v4101 = vmul.f32 1.0, %v4100
      %v4102 = vrcp.pop %v4060
      %v4103 = vmul.f32 1.0, %v4102
      %v4104 = vrcp.pop %v4061
      %v4105 = vmul.f32 1.0, %v4104
      %v4106 = vrcp.pop %v4062
      %v4107 = vmul.f32 1.0, %v4106
      %v4108 = vrcp.pop %v4063
      %v4109 = vmul.f32 1.0, %v4108
      %v4110 = vrcp.pop %v4064
      %v4111 = vmul.f32 1.0, %v4110
      %v4112 = vrcp.pop %v4065
      %v4113 = vmul.f32 1.0, %v4112
      %v4114 = vrcp.pop %v4066
      %v4115 = vmul.f32 1.0, %v4114
      %v4116 = vrcp.pop %v4067
      %v4117 = vmul.f32 1.0, %v4116
      %v4118 = vrcp.pop %v4068
      %v4119 = vmul.f32 1.0, %v4118
      %v4120 = vrcp.pop %v4069
      %v4121 = vmul.f32 1.0, %v4120
      %v4122 = vrcp.pop %v4070
      %v4123 = vmul.f32 1.0, %v4122
      %v4124 = vrcp.pop %v4071
      %v4125 = vmul.f32 1.0, %v4124
      %v4126 = vrcp.pop %v4072
      %v4127 = vmul.f32 1.0, %v4126
      %v4128 = vrcp.pop %v4073
      %v4129 = vmul.f32 1.0, %v4128
      %v4130 = vrcp.pop %v4074
      %v4131 = vmul.f32 1.0, %v4130
      %v4132 = vrcp.pop %v4075
      %v4133 = vmul.f32 1.0, %v4132
      %v4134 = vrcp.pop %v4076
      %v4135 = vmul.f32 1.0, %v4134
      %v4136 = vrcp.pop %v4077
      %v4137 = vmul.f32 1.0, %v4136
      %v4138 = vrcp.pop %v4078
      %v4139 = vmul.f32 1.0, %v4138
      %v4140 = vrcp.pop %v4079
      %v4141 = vmul.f32 1.0, %v4140
      %v4142 = vrcp.pop %v4080
      %v4143 = vmul.f32 1.0, %v4142
      %v4144 = vrcp.pop %v4081
      %v4145 = vmul.f32 1.0, %v4144
      %v4146 = vmul.f32 %v3922, %v4083
      %v4147 = vmul.f32 %v3923, %v4085
      %v4148 = vmul.f32 %v3924, %v4087
      %v4149 = vmul.f32 %v3925, %v4089
      %v4150 = vmul.f32 %v3926, %v4091
      %v4151 = vmul.f32 %v3927, %v4093
      %v4152 = vmul.f32 %v3928, %v4095
      %v4153 = vmul.f32 %v3929, %v4097
      %v4154 = vmul.f32 %v3930, %v4099
      %v4155 = vmul.f32 %v3931, %v4101
      %v4156 = vmul.f32 %v3932, %v4103
      %v4157 = vmul.f32 %v3933, %v4105
      %v4158 = vmul.f32 %v3934, %v4107
      %v4159 = vmul.f32 %v3935, %v4109
      %v4160 = vmul.f32 %v3936, %v4111
      %v4161 = vmul.f32 %v3937, %v4113
      %v4162 = vmul.f32 %v3938, %v4115
      %v4163 = vmul.f32 %v3939, %v4117
      %v4164 = vmul.f32 %v3940, %v4119
      %v4165 = vmul.f32 %v3941, %v4121
      %v4166 = vmul.f32 %v3942, %v4123
      %v4167 = vmul.f32 %v3943, %v4125
      %v4168 = vmul.f32 %v3944, %v4127
      %v4169 = vmul.f32 %v3945, %v4129
      %v4170 = vmul.f32 %v3946, %v4131
      %v4171 = vmul.f32 %v3947, %v4133
      %v4172 = vmul.f32 %v3948, %v4135
      %v4173 = vmul.f32 %v3949, %v4137
      %v4174 = vmul.f32 %v3950, %v4139
      %v4175 = vmul.f32 %v3951, %v4141
      %v4176 = vmul.f32 %v3952, %v4143
      %v4177 = vmul.f32 %v3953, %v4145
      %v4178 = vadd.f32 %v848, %v4146
      %v4179 = vadd.f32 %v849, %v4147
      %v4180 = vadd.f32 %v850, %v4148
      %v4181 = vadd.f32 %v851, %v4149
      %v4182 = vadd.f32 %v852, %v4150
      %v4183 = vadd.f32 %v853, %v4151
      %v4184 = vadd.f32 %v854, %v4152
      %v4185 = vadd.f32 %v855, %v4153
      %v4186 = vadd.f32 %v856, %v4154
      %v4187 = vadd.f32 %v857, %v4155
      %v4188 = vadd.f32 %v858, %v4156
      %v4189 = vadd.f32 %v859, %v4157
      %v4190 = vadd.f32 %v860, %v4158
      %v4191 = vadd.f32 %v861, %v4159
      %v4192 = vadd.f32 %v862, %v4160
      %v4193 = vadd.f32 %v863, %v4161
      %v4194 = vadd.f32 %v864, %v4162
      %v4195 = vadd.f32 %v865, %v4163
      %v4196 = vadd.f32 %v866, %v4164
      %v4197 = vadd.f32 %v867, %v4165
      %v4198 = vadd.f32 %v868, %v4166
      %v4199 = vadd.f32 %v869, %v4167
      %v4200 = vadd.f32 %v870, %v4168
      %v4201 = vadd.f32 %v871, %v4169
      %v4202 = vadd.f32 %v872, %v4170
      %v4203 = vadd.f32 %v873, %v4171
      %v4204 = vadd.f32 %v874, %v4172
      %v4205 = vadd.f32 %v875, %v4173
      %v4206 = vadd.f32 %v876, %v4174
      %v4207 = vadd.f32 %v877, %v4175
      %v4208 = vadd.f32 %v878, %v4176
      %v4209 = vadd.f32 %v879, %v4177
      %4210 = vst.msk [vmem:[%s224] sm:$0xff] %vm1600, %v4178
      %4211 = vst.msk [vmem:[%s224 + $0x8] sm:$0xff] %vm1600, %v4179
      %4212 = vst.msk [vmem:[%s224 + $0x10] sm:$0xff] %vm1600, %v4180
      %4213 = vst.msk [vmem:[%s224 + $0x18] sm:$0xff] %vm1600, %v4181
      %4214 = vst.msk [vmem:[%s224 + $0x20] sm:$0xff] %vm1600, %v4182
      %4215 = vst.msk [vmem:[%s224 + $0x28] sm:$0xff] %vm1600, %v4183
      %4216 = vst.msk [vmem:[%s224 + $0x30] sm:$0xff] %vm1600, %v4184
      %4217 = vst.msk [vmem:[%s224 + $0x38] sm:$0xff] %vm1600, %v4185
      %4218 = vst.msk [vmem:[%s224 + $0x40] sm:$0xff] %vm1600, %v4186
      %4219 = vst.msk [vmem:[%s224 + $0x48] sm:$0xff] %vm1600, %v4187
      %4220 = vst.msk [vmem:[%s224 + $0x50] sm:$0xff] %vm1600, %v4188
      %4221 = vst.msk [vmem:[%s224 + $0x58] sm:$0xff] %vm1600, %v4189
      %4222 = vst.msk [vmem:[%s224 + $0x60] sm:$0xff] %vm1600, %v4190
      %4223 = vst.msk [vmem:[%s224 + $0x68] sm:$0xff] %vm1600, %v4191
      %4224 = vst.msk [vmem:[%s224 + $0x70] sm:$0xff] %vm1600, %v4192
      %4225 = vst.msk [vmem:[%s224 + $0x78] sm:$0xff] %vm1600, %v4193
      %4226 = vst.msk [vmem:[%s224 + $0x80] sm:$0xff] %vm1600, %v4194
      %4227 = vst.msk [vmem:[%s224 + $0x88] sm:$0xff] %vm1600, %v4195
      %4228 = vst.msk [vmem:[%s224 + $0x90] sm:$0xff] %vm1600, %v4196
      %4229 = vst.msk [vmem:[%s224 + $0x98] sm:$0xff] %vm1600, %v4197
      %4230 = vst.msk [vmem:[%s224 + $0xa0] sm:$0xff] %vm1600, %v4198
      %4231 = vst.msk [vmem:[%s224 + $0xa8] sm:$0xff] %vm1600, %v4199
      %4232 = vst.msk [vmem:[%s224 + $0xb0] sm:$0xff] %vm1600, %v4200
      %4233 = vst.msk [vmem:[%s224 + $0xb8] sm:$0xff] %vm1600, %v4201
      %4234 = vst.msk [vmem:[%s224 + $0xc0] sm:$0xff] %vm1600, %v4202
      %4235 = vst.msk [vmem:[%s224 + $0xc8] sm:$0xff] %vm1600, %v4203
      %4236 = vst.msk [vmem:[%s224 + $0xd0] sm:$0xff] %vm1600, %v4204
      %4237 = vst.msk [vmem:[%s224 + $0xd8] sm:$0xff] %vm1600, %v4205
      %4238 = vst.msk [vmem:[%s224 + $0xe0] sm:$0xff] %vm1600, %v4206
      %4239 = vst.msk [vmem:[%s224 + $0xe8] sm:$0xff] %vm1600, %v4207
      %4240 = vst.msk [vmem:[%s224 + $0xf0] sm:$0xff] %vm1600, %v4208
      %4241 = vst.msk [vmem:[%s224 + $0xf8] sm:$0xff] %vm1600, %v4209
      %p4242 = scmp.lt.s32.totalorder %s16, 1
      %s4243 = scalar_select %p4242, %s16, 1
      %s4244 = smul.addr %s4243, 32
      %s4245 = smul.addr %s4244, 8
      %s4246 = scalar_lea.vmem %s5, %s4245
      // Predicated region
      $region41: #{tpu_custom_call.1} parent=39 // pred_check
        %p4247 = pneg %p144
      $region42: #{tpu_custom_call.1} parent=39 // pred_check_branch
        %4249 = sbr.rel (%p4247) target = $region44
      $region43: #{tpu_custom_call.1} parent=39 // pred_region
        _
      $region44: #{tpu_custom_call.1} parent=39 // pred_fallthru
        _
    $region40: #{tpu_custom_call.1} parent=5 // pred_fallthru
      _
    %p4250 = scmp.le.s32.totalorder 2, %s11
    // Predicated region
    $region45: #{tpu_custom_call.1} parent=5 // pred_check
      %p4251 = pneg %p4250
    $region46: #{tpu_custom_call.1} parent=5 // pred_check_branch
      %4253 = sbr.rel (%p4251) target = $region48
    $region47: #{tpu_custom_call.1} parent=5 // pred_region
      %s4254 = ssub.s32 %s11, 2
      // Predicated region
      $region49: #{tpu_custom_call.1} parent=47 // pred_check
        %p4255 = pneg %p150
      $region50: #{tpu_custom_call.1} parent=47 // pred_check_branch
        %4257 = sbr.rel (%p4255) target = $region52
      $region51: #{tpu_custom_call.1} parent=47 // pred_region
        %p4258 = scmp.lt.s32.totalorder %s17, 1
        %s4259 = scalar_select %p4258, %s17, 1
        %s4260 = smul.addr %s4259, 32
        %s4261 = smul.addr %s4260, 8
        %s4262 = scalar_lea.vmem %s5, %s4261
      $region52: #{tpu_custom_call.1} parent=47 // pred_fallthru
        _
    $region48: #{tpu_custom_call.1} parent=5 // pred_fallthru
      _
  $region6: #{tpu_custom_call.1} parent=0 // loop_footer
    %s15 = sadd.s32 1, %s11
  $region7: #{tpu_custom_call.1} parent=0 // loop_footer_branch
    %10 = sbr.rel target = $region3
  $region8: #{tpu_custom_call.1} parent=0 // loop_exit
    _

// kernel: tpu_custom_call.1
$region0: #{tpu_custom_call.1}
  #allocation0 [shape = 'u32[]', space=smem, size = 0x4, offset = 0x4, fixed_abs, tag = 'smem constant byte address 0x4 - core index']
  #allocation1 [shape = 'u32[144,128]{1,0:T(1,128)}', space=vmem, size = 0x12000, scoped, tag = 'internal scratch']
  %s0 = inlined_call_operand.vmem [shape: f32[2,16,16,4], index: 0, kind: input, shape index: {}]
  %s1 = inlined_call_operand.vmem [shape: bf16[3,12,4], index: 1, kind: input, shape index: {}]
  %s2 = inlined_call_operand.vmem [shape: f32[1,4], index: 2, kind: input, shape index: {}]
  %s3 = inlined_call_operand.vmem [shape: bf16[3,12,4], index: 3, kind: input, shape index: {}]
  %s4 = inlined_call_operand.vmem [shape: f32[1,4], index: 4, kind: input, shape index: {}]
  %s5 = inlined_call_operand.vmem [shape: f32[2,16,16,4], index: 5, kind: output, shape index: {}]
  %s6 = sld [smem:[#allocation0]]
  $region53: #{tpu_custom_call.1} parent=0
    _
  %s8 = ssub.s32 1, %s6
  %s9 = scalar_select 0, %s8, %s6
  loop: start=0, step=1, limit=4
  $region2: #{tpu_custom_call.1} parent=0 // loop_pre_header
    _
  $region3: #{tpu_custom_call.1} parent=0 // loop_header
    %s11 = sphi 0, %s15
    %p12 = scmp.ge.s32.totalorder %s11, 4
    %s21 = sphi 0, %s23
    %s24 = sphi 0, %s21
    %s25 = sphi 0, %s24
    %s41 = sphi 0, %s25
    %s45 = sphi 0, %s45
    %s47 = sphi 0, %s45
    %s48 = sphi 0, %s47
    %s62 = sphi 0, %s48
    %s66 = sphi 0, %s66
    %s68 = sphi 0, %s66
    %s69 = sphi 0, %s68
    %s83 = sphi 0, %s69
    %s87 = sphi 0, %s87
    %s89 = sphi 0, %s87
    %s90 = sphi 0, %s89
    %s104 = sphi 0, %s90
    %s108 = sphi 0, %s108
    %s110 = sphi 0, %s108
    %s111 = sphi 0, %s110
    %s125 = sphi 0, %s111
    %s131 = sphi 0, %s133
    %s134 = sphi 0, %s131
    %s135 = sphi 0, %s134
    %s151 = sphi 0, %s135
  $region4: #{tpu_custom_call.1} parent=0 // loop_header_branch
    %14 = sbr.rel (%p12) target = $region8
  $region5: #{tpu_custom_call.1} parent=0 // loop_body
    %s16 = ssub.s32 %s11, 1
    %s17 = ssub.s32 %s11, 2
    %s18 = sadd.s32 %s11, 1
    %s19 = ssub.s32 %s11, %s18
    %p20 = scmp.eq.s32.totalorder %s19, 0
    %s22 = sadd.s32 %s21, 1
    %s23 = scalar_select %p20, %s21, %s22
    %p26 = pneg %p20
    %p27 = scmp.eq.s32.totalorder %s11, 1
    %p28 = por %p26, %p27
    %p29 = scmp.ne.s32.totalorder %s21, %s24
    %p30 = scmp.eq.s32.totalorder %s11, 0
    %p31 = por %p29, %p30
    %p32 = scmp.ne.s32.totalorder %s21, %s24
    %p33 = scmp.eq.s32.totalorder %s16, 1
    %p34 = por %p32, %p33
    %p35 = scmp.ne.s32.totalorder %s24, %s25
    %p36 = scmp.eq.s32.totalorder %s16, 0
    %p37 = por %p35, %p36
    %p38 = scmp.ne.s32.totalorder %s24, %s25
    %p39 = scmp.eq.s32.totalorder %s17, 1
    %p40 = por %p38, %p39
    %p42 = scmp.ne.s32.totalorder %s25, %s41
    %p43 = scmp.eq.s32.totalorder %s17, 0
    %p44 = por %p42, %p43
    %s46 = sadd.s32 %s45, 1
    %p49 = scmp.eq.s32.totalorder %s11, 1
    %p50 = scmp.ne.s32.totalorder %s45, %s47
    %p51 = scmp.eq.s32.totalorder %s11, 0
    %p52 = por %p50, %p51
    %p53 = scmp.ne.s32.totalorder %s45, %s47
    %p54 = scmp.eq.s32.totalorder %s16, 1
    %p55 = por %p53, %p54
    %p56 = scmp.ne.s32.totalorder %s47, %s48
    %p57 = scmp.eq.s32.totalorder %s16, 0
    %p58 = por %p56, %p57
    %p59 = scmp.ne.s32.totalorder %s47, %s48
    %p60 = scmp.eq.s32.totalorder %s17, 1
    %p61 = por %p59, %p60
    %p63 = scmp.ne.s32.totalorder %s48, %s62
    %p64 = scmp.eq.s32.totalorder %s17, 0
    %p65 = por %p63, %p64
    %s67 = sadd.s32 %s66, 1
    %p70 = scmp.eq.s32.totalorder %s11, 1
    %p71 = scmp.ne.s32.totalorder %s66, %s68
    %p72 = scmp.eq.s32.totalorder %s11, 0
    %p73 = por %p71, %p72
    %p74 = scmp.ne.s32.totalorder %s66, %s68
    %p75 = scmp.eq.s32.totalorder %s16, 1
    %p76 = por %p74, %p75
    %p77 = scmp.ne.s32.totalorder %s68, %s69
    %p78 = scmp.eq.s32.totalorder %s16, 0
    %p79 = por %p77, %p78
    %p80 = scmp.ne.s32.totalorder %s68, %s69
    %p81 = scmp.eq.s32.totalorder %s17, 1
    %p82 = por %p80, %p81
    %p84 = scmp.ne.s32.totalorder %s69, %s83
    %p85 = scmp.eq.s32.totalorder %s17, 0
    %p86 = por %p84, %p85
    %s88 = sadd.s32 %s87, 1
    %p91 = scmp.eq.s32.totalorder %s11, 1
    %p92 = scmp.ne.s32.totalorder %s87, %s89
    %p93 = scmp.eq.s32.totalorder %s11, 0
    %p94 = por %p92, %p93
    %p95 = scmp.ne.s32.totalorder %s87, %s89
    %p96 = scmp.eq.s32.totalorder %s16, 1
    %p97 = por %p95, %p96
    %p98 = scmp.ne.s32.totalorder %s89, %s90
    %p99 = scmp.eq.s32.totalorder %s16, 0
    %p100 = por %p98, %p99
    %p101 = scmp.ne.s32.totalorder %s89, %s90
    %p102 = scmp.eq.s32.totalorder %s17, 1
    %p103 = por %p101, %p102
    %p105 = scmp.ne.s32.totalorder %s90, %s104
    %p106 = scmp.eq.s32.totalorder %s17, 0
    %p107 = por %p105, %p106
    %s109 = sadd.s32 %s108, 1
    %p112 = scmp.eq.s32.totalorder %s11, 1
    %p113 = scmp.ne.s32.totalorder %s108, %s110
    %p114 = scmp.eq.s32.totalorder %s11, 0
    %p115 = por %p113, %p114
    %p116 = scmp.ne.s32.totalorder %s108, %s110
    %p117 = scmp.eq.s32.totalorder %s16, 1
    %p118 = por %p116, %p117
    %p119 = scmp.ne.s32.totalorder %s110, %s111
    %p120 = scmp.eq.s32.totalorder %s16, 0
    %p121 = por %p119, %p120
    %p122 = scmp.ne.s32.totalorder %s110, %s111
    %p123 = scmp.eq.s32.totalorder %s17, 1
    %p124 = por %p122, %p123
    %p126 = scmp.ne.s32.totalorder %s111, %s125
    %p127 = scmp.eq.s32.totalorder %s17, 0
    %p128 = por %p126, %p127
    %s129 = ssub.s32 %s11, %s18
    %p130 = scmp.eq.s32.totalorder %s129, 0
    %s132 = sadd.s32 %s131, 1
    %s133 = scalar_select %p130, %s131, %s132
    %p136 = pneg %p130
    %p137 = scmp.eq.s32.totalorder %s11, 1
    %p138 = por %p136, %p137
    %p139 = scmp.ne.s32.totalorder %s131, %s134
    %p140 = scmp.eq.s32.totalorder %s11, 0
    %p141 = por %p139, %p140
    %p142 = scmp.ne.s32.totalorder %s131, %s134
    %p143 = scmp.eq.s32.totalorder %s16, 1
    %p144 = por %p142, %p143
    %p145 = scmp.ne.s32.totalorder %s134, %s135
    %p146 = scmp.eq.s32.totalorder %s16, 0
    %p147 = por %p145, %p146
    %p148 = scmp.ne.s32.totalorder %s134, %s135
    %p149 = scmp.eq.s32.totalorder %s17, 1
    %p150 = por %p148, %p149
    %p152 = scmp.ne.s32.totalorder %s135, %s151
    %p153 = scmp.eq.s32.totalorder %s17, 0
    %p154 = por %p152, %p153
    %p155 = scmp.le.s32.totalorder 1, %s11
    %p156 = scmp.lt.s32.totalorder %s11, 3
    %p157 = pnand %p155, %p156
    %p158 = pneg %p157
    // Predicated region
    $region9: #{tpu_custom_call.1} parent=5 // pred_check
      _
    $region10: #{tpu_custom_call.1} parent=5 // pred_check_branch
      %160 = sbr.rel (%p157) target = $region12
    $region11: #{tpu_custom_call.1} parent=5 // pred_region
      %s161 = ssub.s32 %s11, 1
      // Predicated region
      $region13: #{tpu_custom_call.1} parent=11 // pred_check
        %p162 = pneg %p58
      $region14: #{tpu_custom_call.1} parent=11 // pred_check_branch
        %164 = sbr.rel (%p162) target = $region16
      $region15: #{tpu_custom_call.1} parent=11 // pred_region
        _
      $region16: #{tpu_custom_call.1} parent=11 // pred_fallthru
        _
      // Predicated region
      $region17: #{tpu_custom_call.1} parent=11 // pred_check
        %p165 = pneg %p79
      $region18: #{tpu_custom_call.1} parent=11 // pred_check_branch
        %167 = sbr.rel (%p165) target = $region20
      $region19: #{tpu_custom_call.1} parent=11 // pred_region
        _
      $region20: #{tpu_custom_call.1} parent=11 // pred_fallthru
        _
      // Predicated region
      $region21: #{tpu_custom_call.1} parent=11 // pred_check
        %p168 = pneg %p100
      $region22: #{tpu_custom_call.1} parent=11 // pred_check_branch
        %170 = sbr.rel (%p168) target = $region24
      $region23: #{tpu_custom_call.1} parent=11 // pred_region
        _
      $region24: #{tpu_custom_call.1} parent=11 // pred_fallthru
        _
      // Predicated region
      $region25: #{tpu_custom_call.1} parent=11 // pred_check
        %p171 = pneg %p121
      $region26: #{tpu_custom_call.1} parent=11 // pred_check_branch
        %173 = sbr.rel (%p171) target = $region28
      $region27: #{tpu_custom_call.1} parent=11 // pred_region
        _
      $region28: #{tpu_custom_call.1} parent=11 // pred_fallthru
        _
    $region12: #{tpu_custom_call.1} parent=5 // pred_fallthru
      _
    %p174 = scmp.lt.s32.totalorder %s11, 2
    // Predicated region
    $region29: #{tpu_custom_call.1} parent=5 // pred_check
      %p175 = pneg %p174
    $region30: #{tpu_custom_call.1} parent=5 // pred_check_branch
      %177 = sbr.rel (%p175) target = $region32
    $region31: #{tpu_custom_call.1} parent=5 // pred_region
      // Predicated region
      $region33: #{tpu_custom_call.1} parent=31 // pred_check
        %p178 = pneg %p31
      $region34: #{tpu_custom_call.1} parent=31 // pred_check_branch
        %180 = sbr.rel (%p178) target = $region36
      $region35: #{tpu_custom_call.1} parent=31 // pred_region
        %p181 = scmp.lt.s32.totalorder %s11, 1
        %s182 = scalar_select %p181, %s11, 1
        %s183 = smul.addr %s182, 32
        %s184 = smul.addr %s183, 8
        %s185 = scalar_lea.vmem %s0, %s184
      $region36: #{tpu_custom_call.1} parent=31 // pred_fallthru
        _
    $region32: #{tpu_custom_call.1} parent=5 // pred_fallthru
      _
    %p186 = scmp.le.s32.totalorder 1, %s11
    %p187 = scmp.lt.s32.totalorder %s11, 3
    %p188 = pnand %p186, %p187
    %p189 = pneg %p188
    // Predicated region
    $region37: #{tpu_custom_call.1} parent=5 // pred_check
      _
    $region38: #{tpu_custom_call.1} parent=5 // pred_check_branch
      %191 = sbr.rel (%p188) target = $region40
    $region39: #{tpu_custom_call.1} parent=5 // pred_region
      %s192 = ssub.s32 %s11, 1
      %p193 = scmp.lt.s32.totalorder %s16, 1
      %s194 = scalar_select %p193, %s16, 1
      %s195 = smul.addr %s194, 32
      %s196 = smul.addr %s195, 8
      %s197 = scalar_lea.vmem %s0, %s196
      %p198 = pneg %p37
      %p199 = pneg %p34
      %p200 = pneg %p58
      %p201 = pneg %p55
      %p202 = pneg %p79
      %p203 = pneg %p76
      %p204 = pneg %p100
      %p205 = pneg %p97
      %p206 = pneg %p121
      %p207 = pneg %p118
      %p208 = pneg %p147
      %p209 = pneg %p144
      %p210 = scmp.lt.s32.totalorder %s16, 1
      %s211 = scalar_select %p210, %s16, 1
      %s212 = smul.addr %s211, 32
      %s213 = smul.addr %s212, 8
      %s214 = scalar_lea.vmem %s5, %s213
      %p215 = scmp.lt.s32.totalorder %s16, 1
      %s216 = scalar_select %p215, %s16, 1
      %s217 = smul.addr %s216, 32
      %s218 = smul.addr %s217, 8
      %s219 = scalar_lea.vmem %s0, %s218
      %p220 = scmp.lt.s32.totalorder %s16, 1
      %s221 = scalar_select %p220, %s16, 1
      %s222 = smul.addr %s221, 32
      %s223 = smul.addr %s222, 8
      %s224 = scalar_lea.vmem %s5, %s223
      %v226 = vlaneseq
      %v227 = vshrl.u32 %v226, 7
      %v228 = vrot.slane %v227, 7
      %vm229 = vcmp.eq.s32.totalorder %v228, 7
      %vm230 = vmxor %vm229, 1
      %v231 = vadd.s32 %v227, 8
      %v232 = vadd.s32 %v227, 16
      %v233 = vadd.s32 %v227, 24
      %v234 = vadd.s32 %v227, 32
      %v235 = vadd.s32 %v227, 40
      %v236 = vadd.s32 %v227, 48
      %v237 = vadd.s32 %v227, 56
      %v238 = vadd.s32 %v227, 64
      %v239 = vadd.s32 %v227, 72
      %v240 = vadd.s32 %v227, 80
      %v241 = vadd.s32 %v227, 88
      %v242 = vadd.s32 %v227, 96
      %v243 = vadd.s32 %v227, 104
      %v244 = vadd.s32 %v227, 112
      %v245 = vadd.s32 %v227, 120
      %v246 = vadd.s32 %v227, 128
      %v247 = vadd.s32 %v227, 136
      %v248 = vadd.s32 %v227, 144
      %v249 = vadd.s32 %v227, 152
      %v250 = vadd.s32 %v227, 160
      %v251 = vadd.s32 %v227, 168
      %v252 = vadd.s32 %v227, 176
      %v253 = vadd.s32 %v227, 184
      %v254 = vadd.s32 %v227, 192
      %v255 = vadd.s32 %v227, 200
      %v256 = vadd.s32 %v227, 208
      %v257 = vadd.s32 %v227, 216
      %v258 = vadd.s32 %v227, 224
      %v259 = vadd.s32 %v227, 232
      %v260 = vadd.s32 %v227, 240
      %v261 = vadd.s32 %v227, 248
      %v262 = vadd.s32 %v227, 256
      %v263 = vadd.s32 %v227, 264
      %v264 = vadd.s32 %v227, 272
      %v265 = vadd.s32 %v227, 280
      %vm266 = vcmp.lt.s32.totalorder %v227, 0
      %v267 = vsub.s32 0, %v227
      %v268 = vsel %vm266, %v267, %v227
      %v269 = vshrl.u32 %v268, 4
      %v270 = vand.u32 %v268, 15
      %v271 = vsub.s32 0, %v270
      %v272 = vsel %vm266, %v271, %v270
      %vm273 = vcmp.lt.s32.totalorder %v231, 0
      %v274 = vsub.s32 0, %v231
      %v275 = vsel %vm273, %v274, %v231
      %v276 = vshrl.u32 %v275, 4
      %v277 = vand.u32 %v275, 15
      %v278 = vsub.s32 0, %v277
      %v279 = vsel %vm273, %v278, %v277
      %vm280 = vcmp.lt.s32.totalorder %v232, 0
      %v281 = vsub.s32 0, %v232
      %v282 = vsel %vm280, %v281, %v232
      %v283 = vshrl.u32 %v282, 4
      %v284 = vand.u32 %v282, 15
      %v285 = vsub.s32 0, %v284
      %v286 = vsel %vm280, %v285, %v284
      %vm287 = vcmp.lt.s32.totalorder %v233, 0
      %v288 = vsub.s32 0, %v233
      %v289 = vsel %vm287, %v288, %v233
      %v290 = vshrl.u32 %v289, 4
      %v291 = vand.u32 %v289, 15
      %v292 = vsub.s32 0, %v291
      %v293 = vsel %vm287, %v292, %v291
      %vm294 = vcmp.lt.s32.totalorder %v234, 0
      %v295 = vsub.s32 0, %v234
      %v296 = vsel %vm294, %v295, %v234
      %v297 = vshrl.u32 %v296, 4
      %v298 = vand.u32 %v296, 15
      %v299 = vsub.s32 0, %v298
      %v300 = vsel %vm294, %v299, %v298
      %vm301 = vcmp.lt.s32.totalorder %v235, 0
      %v302 = vsub.s32 0, %v235
      %v303 = vsel %vm301, %v302, %v235
      %v304 = vshrl.u32 %v303, 4
      %v305 = vand.u32 %v303, 15
      %v306 = vsub.s32 0, %v305
      %v307 = vsel %vm301, %v306, %v305
      %vm308 = vcmp.lt.s32.totalorder %v236, 0
      %v309 = vsub.s32 0, %v236
      %v310 = vsel %vm308, %v309, %v236
      %v311 = vshrl.u32 %v310, 4
      %v312 = vand.u32 %v310, 15
      %v313 = vsub.s32 0, %v312
      %v314 = vsel %vm308, %v313, %v312
      %vm315 = vcmp.lt.s32.totalorder %v237, 0
      %v316 = vsub.s32 0, %v237
      %v317 = vsel %vm315, %v316, %v237
      %v318 = vshrl.u32 %v317, 4
      %v319 = vand.u32 %v317, 15
      %v320 = vsub.s32 0, %v319
      %v321 = vsel %vm315, %v320, %v319
      %vm322 = vcmp.lt.s32.totalorder %v238, 0
      %v323 = vsub.s32 0, %v238
      %v324 = vsel %vm322, %v323, %v238
      %v325 = vshrl.u32 %v324, 4
      %v326 = vand.u32 %v324, 15
      %v327 = vsub.s32 0, %v326
      %v328 = vsel %vm322, %v327, %v326
      %vm329 = vcmp.lt.s32.totalorder %v239, 0
      %v330 = vsub.s32 0, %v239
      %v331 = vsel %vm329, %v330, %v239
      %v332 = vshrl.u32 %v331, 4
      %v333 = vand.u32 %v331, 15
      %v334 = vsub.s32 0, %v333
      %v335 = vsel %vm329, %v334, %v333
      %vm336 = vcmp.lt.s32.totalorder %v240, 0
      %v337 = vsub.s32 0, %v240
      %v338 = vsel %vm336, %v337, %v240
      %v339 = vshrl.u32 %v338, 4
      %v340 = vand.u32 %v338, 15
      %v341 = vsub.s32 0, %v340
      %v342 = vsel %vm336, %v341, %v340
      %vm343 = vcmp.lt.s32.totalorder %v241, 0
      %v344 = vsub.s32 0, %v241
      %v345 = vsel %vm343, %v344, %v241
      %v346 = vshrl.u32 %v345, 4
      %v347 = vand.u32 %v345, 15
      %v348 = vsub.s32 0, %v347
      %v349 = vsel %vm343, %v348, %v347
      %vm350 = vcmp.lt.s32.totalorder %v242, 0
      %v351 = vsub.s32 0, %v242
      %v352 = vsel %vm350, %v351, %v242
      %v353 = vshrl.u32 %v352, 4
      %v354 = vand.u32 %v352, 15
      %v355 = vsub.s32 0, %v354
      %v356 = vsel %vm350, %v355, %v354
      %vm357 = vcmp.lt.s32.totalorder %v243, 0
      %v358 = vsub.s32 0, %v243
      %v359 = vsel %vm357, %v358, %v243
      %v360 = vshrl.u32 %v359, 4
      %v361 = vand.u32 %v359, 15
      %v362 = vsub.s32 0, %v361
      %v363 = vsel %vm357, %v362, %v361
      %vm364 = vcmp.lt.s32.totalorder %v244, 0
      %v365 = vsub.s32 0, %v244
      %v366 = vsel %vm364, %v365, %v244
      %v367 = vshrl.u32 %v366, 4
      %v368 = vand.u32 %v366, 15
      %v369 = vsub.s32 0, %v368
      %v370 = vsel %vm364, %v369, %v368
      %vm371 = vcmp.lt.s32.totalorder %v245, 0
      %v372 = vsub.s32 0, %v245
      %v373 = vsel %vm371, %v372, %v245
      %v374 = vshrl.u32 %v373, 4
      %v375 = vand.u32 %v373, 15
      %v376 = vsub.s32 0, %v375
      %v377 = vsel %vm371, %v376, %v375
      %vm378 = vcmp.lt.s32.totalorder %v246, 0
      %v379 = vsub.s32 0, %v246
      %v380 = vsel %vm378, %v379, %v246
      %v381 = vshrl.u32 %v380, 4
      %v382 = vand.u32 %v380, 15
      %v383 = vsub.s32 0, %v382
      %v384 = vsel %vm378, %v383, %v382
      %vm385 = vcmp.lt.s32.totalorder %v247, 0
      %v386 = vsub.s32 0, %v247
      %v387 = vsel %vm385, %v386, %v247
      %v388 = vshrl.u32 %v387, 4
      %v389 = vand.u32 %v387, 15
      %v390 = vsub.s32 0, %v389
      %v391 = vsel %vm385, %v390, %v389
      %vm392 = vcmp.lt.s32.totalorder %v248, 0
      %v393 = vsub.s32 0, %v248
      %v394 = vsel %vm392, %v393, %v248
      %v395 = vshrl.u32 %v394, 4
      %v396 = vand.u32 %v394, 15
      %v397 = vsub.s32 0, %v396
      %v398 = vsel %vm392, %v397, %v396
      %vm399 = vcmp.lt.s32.totalorder %v249, 0
      %v400 = vsub.s32 0, %v249
      %v401 = vsel %vm399, %v400, %v249
      %v402 = vshrl.u32 %v401, 4
      %v403 = vand.u32 %v401, 15
      %v404 = vsub.s32 0, %v403
      %v405 = vsel %vm399, %v404, %v403
      %vm406 = vcmp.lt.s32.totalorder %v250, 0
      %v407 = vsub.s32 0, %v250
      %v408 = vsel %vm406, %v407, %v250
      %v409 = vshrl.u32 %v408, 4
      %v410 = vand.u32 %v408, 15
      %v411 = vsub.s32 0, %v410
      %v412 = vsel %vm406, %v411, %v410
      %vm413 = vcmp.lt.s32.totalorder %v251, 0
      %v414 = vsub.s32 0, %v251
      %v415 = vsel %vm413, %v414, %v251
      %v416 = vshrl.u32 %v415, 4
      %v417 = vand.u32 %v415, 15
      %v418 = vsub.s32 0, %v417
      %v419 = vsel %vm413, %v418, %v417
      %vm420 = vcmp.lt.s32.totalorder %v252, 0
      %v421 = vsub.s32 0, %v252
      %v422 = vsel %vm420, %v421, %v252
      %v423 = vshrl.u32 %v422, 4
      %v424 = vand.u32 %v422, 15
      %v425 = vsub.s32 0, %v424
      %v426 = vsel %vm420, %v425, %v424
      %vm427 = vcmp.lt.s32.totalorder %v253, 0
      %v428 = vsub.s32 0, %v253
      %v429 = vsel %vm427, %v428, %v253
      %v430 = vshrl.u32 %v429, 4
      %v431 = vand.u32 %v429, 15
      %v432 = vsub.s32 0, %v431
      %v433 = vsel %vm427, %v432, %v431
      %vm434 = vcmp.lt.s32.totalorder %v254, 0
      %v435 = vsub.s32 0, %v254
      %v436 = vsel %vm434, %v435, %v254
      %v437 = vshrl.u32 %v436, 4
      %v438 = vand.u32 %v436, 15
      %v439 = vsub.s32 0, %v438
      %v440 = vsel %vm434, %v439, %v438
      %vm441 = vcmp.lt.s32.totalorder %v255, 0
      %v442 = vsub.s32 0, %v255
      %v443 = vsel %vm441, %v442, %v255
      %v444 = vshrl.u32 %v443, 4
      %v445 = vand.u32 %v443, 15
      %v446 = vsub.s32 0, %v445
      %v447 = vsel %vm441, %v446, %v445
      %vm448 = vcmp.lt.s32.totalorder %v256, 0
      %v449 = vsub.s32 0, %v256
      %v450 = vsel %vm448, %v449, %v256
      %v451 = vshrl.u32 %v450, 4
      %v452 = vand.u32 %v450, 15
      %v453 = vsub.s32 0, %v452
      %v454 = vsel %vm448, %v453, %v452
      %vm455 = vcmp.lt.s32.totalorder %v257, 0
      %v456 = vsub.s32 0, %v257
      %v457 = vsel %vm455, %v456, %v257
      %v458 = vshrl.u32 %v457, 4
      %v459 = vand.u32 %v457, 15
      %v460 = vsub.s32 0, %v459
      %v461 = vsel %vm455, %v460, %v459
      %vm462 = vcmp.lt.s32.totalorder %v258, 0
      %v463 = vsub.s32 0, %v258
      %v464 = vsel %vm462, %v463, %v258
      %v465 = vshrl.u32 %v464, 4
      %v466 = vand.u32 %v464, 15
      %v467 = vsub.s32 0, %v466
      %v468 = vsel %vm462, %v467, %v466
      %vm469 = vcmp.lt.s32.totalorder %v259, 0
      %v470 = vsub.s32 0, %v259
      %v471 = vsel %vm469, %v470, %v259
      %v472 = vshrl.u32 %v471, 4
      %v473 = vand.u32 %v471, 15
      %v474 = vsub.s32 0, %v473
      %v475 = vsel %vm469, %v474, %v473
      %vm476 = vcmp.lt.s32.totalorder %v260, 0
      %v477 = vsub.s32 0, %v260
      %v478 = vsel %vm476, %v477, %v260
      %v479 = vshrl.u32 %v478, 4
      %v480 = vand.u32 %v478, 15
      %v481 = vsub.s32 0, %v480
      %v482 = vsel %vm476, %v481, %v480
      %vm483 = vcmp.lt.s32.totalorder %v261, 0
      %v484 = vsub.s32 0, %v261
      %v485 = vsel %vm483, %v484, %v261
      %v486 = vshrl.u32 %v485, 4
      %v487 = vand.u32 %v485, 15
      %v488 = vsub.s32 0, %v487
      %v489 = vsel %vm483, %v488, %v487
      %vm490 = vcmp.lt.s32.totalorder %v262, 0
      %v491 = vsub.s32 0, %v262
      %v492 = vsel %vm490, %v491, %v262
      %v493 = vshrl.u32 %v492, 4
      %v494 = vand.u32 %v492, 15
      %v495 = vsub.s32 0, %v494
      %v496 = vsel %vm490, %v495, %v494
      %vm497 = vcmp.lt.s32.totalorder %v263, 0
      %v498 = vsub.s32 0, %v263
      %v499 = vsel %vm497, %v498, %v263
      %v500 = vshrl.u32 %v499, 4
      %v501 = vand.u32 %v499, 15
      %v502 = vsub.s32 0, %v501
      %v503 = vsel %vm497, %v502, %v501
      %vm504 = vcmp.lt.s32.totalorder %v264, 0
      %v505 = vsub.s32 0, %v264
      %v506 = vsel %vm504, %v505, %v264
      %v507 = vshrl.u32 %v506, 4
      %v508 = vand.u32 %v506, 15
      %v509 = vsub.s32 0, %v508
      %v510 = vsel %vm504, %v509, %v508
      %vm511 = vcmp.lt.s32.totalorder %v265, 0
      %v512 = vsub.s32 0, %v265
      %v513 = vsel %vm511, %v512, %v265
      %v514 = vshrl.u32 %v513, 4
      %v515 = vand.u32 %v513, 15
      %v516 = vsub.s32 0, %v515
      %v517 = vsel %vm511, %v516, %v515
      %vm518 = vcmp.ne.s32.totalorder %v272, 0
      %vm519 = vcmp.ne.s32.totalorder %v279, 0
      %vm520 = vcmp.ne.s32.totalorder %v286, 0
      %vm521 = vcmp.ne.s32.totalorder %v293, 0
      %vm522 = vcmp.ne.s32.totalorder %v300, 0
      %vm523 = vcmp.ne.s32.totalorder %v307, 0
      %vm524 = vcmp.ne.s32.totalorder %v314, 0
      %vm525 = vcmp.ne.s32.totalorder %v321, 0
      %vm526 = vcmp.ne.s32.totalorder %v328, 0
      %vm527 = vcmp.ne.s32.totalorder %v335, 0
      %vm528 = vcmp.ne.s32.totalorder %v342, 0
      %vm529 = vcmp.ne.s32.totalorder %v349, 0
      %vm530 = vcmp.ne.s32.totalorder %v356, 0
      %vm531 = vcmp.ne.s32.totalorder %v363, 0
      %vm532 = vcmp.ne.s32.totalorder %v370, 0
      %vm533 = vcmp.ne.s32.totalorder %v377, 0
      %vm534 = vcmp.ne.s32.totalorder %v384, 0
      %vm535 = vcmp.ne.s32.totalorder %v391, 0
      %vm536 = vcmp.ne.s32.totalorder %v398, 0
      %vm537 = vcmp.ne.s32.totalorder %v405, 0
      %vm538 = vcmp.ne.s32.totalorder %v412, 0
      %vm539 = vcmp.ne.s32.totalorder %v419, 0
      %vm540 = vcmp.ne.s32.totalorder %v426, 0
      %vm541 = vcmp.ne.s32.totalorder %v433, 0
      %vm542 = vcmp.ne.s32.totalorder %v440, 0
      %vm543 = vcmp.ne.s32.totalorder %v447, 0
      %vm544 = vcmp.ne.s32.totalorder %v454, 0
      %vm545 = vcmp.ne.s32.totalorder %v461, 0
      %vm546 = vcmp.ne.s32.totalorder %v468, 0
      %vm547 = vcmp.ne.s32.totalorder %v475, 0
      %vm548 = vcmp.ne.s32.totalorder %v482, 0
      %vm549 = vcmp.ne.s32.totalorder %v489, 0
      %vm550 = vcmp.ne.s32.totalorder %v496, 0
      %vm551 = vcmp.ne.s32.totalorder %v503, 0
      %vm552 = vcmp.ne.s32.totalorder %v510, 0
      %vm553 = vcmp.ne.s32.totalorder %v517, 0
      %vm554 = vcmp.lt.s32.totalorder %v272, 0
      %vm555 = vcmp.lt.s32.totalorder %v279, 0
      %vm556 = vcmp.lt.s32.totalorder %v286, 0
      %vm557 = vcmp.lt.s32.totalorder %v293, 0
      %vm558 = vcmp.lt.s32.totalorder %v300, 0
      %vm559 = vcmp.lt.s32.totalorder %v307, 0
      %vm560 = vcmp.lt.s32.totalorder %v314, 0
      %vm561 = vcmp.lt.s32.totalorder %v321, 0
      %vm562 = vcmp.lt.s32.totalorder %v328, 0
      %vm563 = vcmp.lt.s32.totalorder %v335, 0
      %vm564 = vcmp.lt.s32.totalorder %v342, 0
      %vm565 = vcmp.lt.s32.totalorder %v349, 0
      %vm566 = vcmp.lt.s32.totalorder %v356, 0
      %vm567 = vcmp.lt.s32.totalorder %v363, 0
      %vm568 = vcmp.lt.s32.totalorder %v370, 0
      %vm569 = vcmp.lt.s32.totalorder %v377, 0
      %vm570 = vcmp.lt.s32.totalorder %v384, 0
      %vm571 = vcmp.lt.s32.totalorder %v391, 0
      %vm572 = vcmp.lt.s32.totalorder %v398, 0
      %vm573 = vcmp.lt.s32.totalorder %v405, 0
      %vm574 = vcmp.lt.s32.totalorder %v412, 0
      %vm575 = vcmp.lt.s32.totalorder %v419, 0
      %vm576 = vcmp.lt.s32.totalorder %v426, 0
      %vm577 = vcmp.lt.s32.totalorder %v433, 0
      %vm578 = vcmp.lt.s32.totalorder %v440, 0
      %vm579 = vcmp.lt.s32.totalorder %v447, 0
      %vm580 = vcmp.lt.s32.totalorder %v454, 0
      %vm581 = vcmp.lt.s32.totalorder %v461, 0
      %vm582 = vcmp.lt.s32.totalorder %v468, 0
      %vm583 = vcmp.lt.s32.totalorder %v475, 0
      %vm584 = vcmp.lt.s32.totalorder %v482, 0
      %vm585 = vcmp.lt.s32.totalorder %v489, 0
      %vm586 = vcmp.lt.s32.totalorder %v496, 0
      %vm587 = vcmp.lt.s32.totalorder %v503, 0
      %vm588 = vcmp.lt.s32.totalorder %v510, 0
      %vm589 = vcmp.lt.s32.totalorder %v517, 0
      %vm590 = vmand %vm554, %vm518
      %vm591 = vmand %vm555, %vm519
      %vm592 = vmand %vm556, %vm520
      %vm593 = vmand %vm557, %vm521
      %vm594 = vmand %vm558, %vm522
      %vm595 = vmand %vm559, %vm523
      %vm596 = vmand %vm560, %vm524
      %vm597 = vmand %vm561, %vm525
      %vm598 = vmand %vm562, %vm526
      %vm599 = vmand %vm563, %vm527
      %vm600 = vmand %vm564, %vm528
      %vm601 = vmand %vm565, %vm529
      %vm602 = vmand %vm566, %vm530
      %vm603 = vmand %vm567, %vm531
      %vm604 = vmand %vm568, %vm532
      %vm605 = vmand %vm569, %vm533
      %vm606 = vmand %vm570, %vm534
      %vm607 = vmand %vm571, %vm535
      %vm608 = vmand %vm572, %vm536
      %vm609 = vmand %vm573, %vm537
      %vm610 = vmand %vm574, %vm538
      %vm611 = vmand %vm575, %vm539
      %vm612 = vmand %vm576, %vm540
      %vm613 = vmand %vm577, %vm541
      %vm614 = vmand %vm578, %vm542
      %vm615 = vmand %vm579, %vm543
      %vm616 = vmand %vm580, %vm544
      %vm617 = vmand %vm581, %vm545
      %vm618 = vmand %vm582, %vm546
      %vm619 = vmand %vm583, %vm547
      %vm620 = vmand %vm584, %vm548
      %vm621 = vmand %vm585, %vm549
      %vm622 = vmand %vm586, %vm550
      %vm623 = vmand %vm587, %vm551
      %vm624 = vmand %vm588, %vm552
      %vm625 = vmand %vm589, %vm553
      %v626 = vadd.s32 %v272, 16
      %v627 = vadd.s32 %v279, 16
      %v628 = vadd.s32 %v286, 16
      %v629 = vadd.s32 %v293, 16
      %v630 = vadd.s32 %v300, 16
      %v631 = vadd.s32 %v307, 16
      %v632 = vadd.s32 %v314, 16
      %v633 = vadd.s32 %v321, 16
      %v634 = vadd.s32 %v328, 16
      %v635 = vadd.s32 %v335, 16
      %v636 = vadd.s32 %v342, 16
      %v637 = vadd.s32 %v349, 16
      %v638 = vadd.s32 %v356, 16
      %v639 = vadd.s32 %v363, 16
      %v640 = vadd.s32 %v370, 16
      %v641 = vadd.s32 %v377, 16
      %v642 = vadd.s32 %v384, 16
      %v643 = vadd.s32 %v391, 16
      %v644 = vadd.s32 %v398, 16
      %v645 = vadd.s32 %v405, 16
      %v646 = vadd.s32 %v412, 16
      %v647 = vadd.s32 %v419, 16
      %v648 = vadd.s32 %v426, 16
      %v649 = vadd.s32 %v433, 16
      %v650 = vadd.s32 %v440, 16
      %v651 = vadd.s32 %v447, 16
      %v652 = vadd.s32 %v454, 16
      %v653 = vadd.s32 %v461, 16
      %v654 = vadd.s32 %v468, 16
      %v655 = vadd.s32 %v475, 16
      %v656 = vadd.s32 %v482, 16
      %v657 = vadd.s32 %v489, 16
      %v658 = vadd.s32 %v496, 16
      %v659 = vadd.s32 %v503, 16
      %v660 = vadd.s32 %v510, 16
      %v661 = vadd.s32 %v517, 16
      %v662 = vsel %vm590, %v626, %v272
      %v663 = vsel %vm591, %v627, %v279
      %v664 = vsel %vm592, %v628, %v286
      %v665 = vsel %vm593, %v629, %v293
      %v666 = vsel %vm594, %v630, %v300
      %v667 = vsel %vm595, %v631, %v307
      %v668 = vsel %vm596, %v632, %v314
      %v669 = vsel %vm597, %v633, %v321
      %v670 = vsel %vm598, %v634, %v328
      %v671 = vsel %vm599, %v635, %v335
      %v672 = vsel %vm600, %v636, %v342
      %v673 = vsel %vm601, %v637, %v349
      %v674 = vsel %vm602, %v638, %v356
      %v675 = vsel %vm603, %v639, %v363
      %v676 = vsel %vm604, %v640, %v370
      %v677 = vsel %vm605, %v641, %v377
      %v678 = vsel %vm606, %v642, %v384
      %v679 = vsel %vm607, %v643, %v391
      %v680 = vsel %vm608, %v644, %v398
      %v681 = vsel %vm609, %v645, %v405
      %v682 = vsel %vm610, %v646, %v412
      %v683 = vsel %vm611, %v647, %v419
      %v684 = vsel %vm612, %v648, %v426
      %v685 = vsel %vm613, %v649, %v433
      %v686 = vsel %vm614, %v650, %v440
      %v687 = vsel %vm615, %v651, %v447
      %v688 = vsel %vm616, %v652, %v454
      %v689 = vsel %vm617, %v653, %v461
      %v690 = vsel %vm618, %v654, %v468
      %v691 = vsel %vm619, %v655, %v475
      %v692 = vsel %vm620, %v656, %v482
      %v693 = vsel %vm621, %v657, %v489
      %v694 = vsel %vm622, %v658, %v496
      %v695 = vsel %vm623, %v659, %v503
      %v696 = vsel %vm624, %v660, %v510
      %v697 = vsel %vm625, %v661, %v517
      %vm698 = vcmp.eq.s32.totalorder %v662, 0
      %vm699 = vcmp.eq.s32.totalorder %v663, 0
      %vm700 = vcmp.eq.s32.totalorder %v664, 0
      %vm701 = vcmp.eq.s32.totalorder %v665, 0
      %vm702 = vcmp.eq.s32.totalorder %v666, 0
      %vm703 = vcmp.eq.s32.totalorder %v667, 0
      %vm704 = vcmp.eq.s32.totalorder %v668, 0
      %vm705 = vcmp.eq.s32.totalorder %v669, 0
      %vm706 = vcmp.eq.s32.totalorder %v670, 0
      %vm707 = vcmp.eq.s32.totalorder %v671, 0
      %vm708 = vcmp.eq.s32.totalorder %v672, 0
      %vm709 = vcmp.eq.s32.totalorder %v673, 0
      %vm710 = vcmp.eq.s32.totalorder %v674, 0
      %vm711 = vcmp.eq.s32.totalorder %v675, 0
      %vm712 = vcmp.eq.s32.totalorder %v676, 0
      %vm713 = vcmp.eq.s32.totalorder %v677, 0
      %vm714 = vcmp.eq.s32.totalorder %v678, 0
      %vm715 = vcmp.eq.s32.totalorder %v679, 0
      %vm716 = vcmp.eq.s32.totalorder %v680, 0
      %vm717 = vcmp.eq.s32.totalorder %v681, 0
      %vm718 = vcmp.eq.s32.totalorder %v682, 0
      %vm719 = vcmp.eq.s32.totalorder %v683, 0
      %vm720 = vcmp.eq.s32.totalorder %v684, 0
      %vm721 = vcmp.eq.s32.totalorder %v685, 0
      %vm722 = vcmp.eq.s32.totalorder %v686, 0
      %vm723 = vcmp.eq.s32.totalorder %v687, 0
      %vm724 = vcmp.eq.s32.totalorder %v688, 0
      %vm725 = vcmp.eq.s32.totalorder %v689, 0
      %vm726 = vcmp.eq.s32.totalorder %v690, 0
      %vm727 = vcmp.eq.s32.totalorder %v691, 0
      %vm728 = vcmp.eq.s32.totalorder %v692, 0
      %vm729 = vcmp.eq.s32.totalorder %v693, 0
      %vm730 = vcmp.eq.s32.totalorder %v694, 0
      %vm731 = vcmp.eq.s32.totalorder %v695, 0
      %vm732 = vcmp.eq.s32.totalorder %v696, 0
      %vm733 = vcmp.eq.s32.totalorder %v697, 0
      %v734 = vsel %vm230, 1, 0
      %v735 = vlaneseq
      %v736 = vshrl.u32 %v735, 7
      %v737 = vsub.s32 0, %v736
      %v738 = vrot.slane %v734, %v737
      %vm739 = vcmp.eq.s32.totalorder %v738, 1
      %vm740 = vmxor %vm698, %vm739
      %vm741 = vmxor %vm699, %vm739
      %vm742 = vmxor %vm700, %vm739
      %vm743 = vmxor %vm701, %vm739
      %vm744 = vmxor %vm702, %vm739
      %vm745 = vmxor %vm703, %vm739
      %vm746 = vmxor %vm704, %vm739
      %vm747 = vmxor %vm705, %vm739
      %vm748 = vmxor %vm706, %vm739
      %vm749 = vmxor %vm707, %vm739
      %vm750 = vmxor %vm708, %vm739
      %vm751 = vmxor %vm709, %vm739
      %vm752 = vmxor %vm710, %vm739
      %vm753 = vmxor %vm711, %vm739
      %vm754 = vmxor %vm712, %vm739
      %vm755 = vmxor %vm713, %vm739
      %vm756 = vmxor %vm714, %vm739
      %vm757 = vmxor %vm715, %vm739
      %vm758 = vmxor %vm716, %vm739
      %vm759 = vmxor %vm717, %vm739
      %vm760 = vmxor %vm718, %vm739
      %vm761 = vmxor %vm719, %vm739
      %vm762 = vmxor %vm720, %vm739
      %vm763 = vmxor %vm721, %vm739
      %vm764 = vmxor %vm722, %vm739
      %vm765 = vmxor %vm723, %vm739
      %vm766 = vmxor %vm724, %vm739
      %vm767 = vmxor %vm725, %vm739
      %vm768 = vmxor %vm726, %vm739
      %vm769 = vmxor %vm727, %vm739
      %vm770 = vmxor %vm728, %vm739
      %vm771 = vmxor %vm729, %vm739
      %vm772 = vmxor %vm730, %vm739
      %vm773 = vmxor %vm731, %vm739
      %vm774 = vmxor %vm732, %vm739
      %vm775 = vmxor %vm733, %vm739
      %vm776 = vcmp.eq.s32.totalorder %v662, 15
      %vm777 = vcmp.eq.s32.totalorder %v663, 15
      %vm778 = vcmp.eq.s32.totalorder %v664, 15
      %vm779 = vcmp.eq.s32.totalorder %v665, 15
      %vm780 = vcmp.eq.s32.totalorder %v666, 15
      %vm781 = vcmp.eq.s32.totalorder %v667, 15
      %vm782 = vcmp.eq.s32.totalorder %v668, 15
      %vm783 = vcmp.eq.s32.totalorder %v669, 15
      %vm784 = vcmp.eq.s32.totalorder %v670, 15
      %vm785 = vcmp.eq.s32.totalorder %v671, 15
      %vm786 = vcmp.eq.s32.totalorder %v672, 15
      %vm787 = vcmp.eq.s32.totalorder %v673, 15
      %vm788 = vcmp.eq.s32.totalorder %v674, 15
      %vm789 = vcmp.eq.s32.totalorder %v675, 15
      %vm790 = vcmp.eq.s32.totalorder %v676, 15
      %vm791 = vcmp.eq.s32.totalorder %v677, 15
      %vm792 = vcmp.eq.s32.totalorder %v678, 15
      %vm793 = vcmp.eq.s32.totalorder %v679, 15
      %vm794 = vcmp.eq.s32.totalorder %v680, 15
      %vm795 = vcmp.eq.s32.totalorder %v681, 15
      %vm796 = vcmp.eq.s32.totalorder %v682, 15
      %vm797 = vcmp.eq.s32.totalorder %v683, 15
      %vm798 = vcmp.eq.s32.totalorder %v684, 15
      %vm799 = vcmp.eq.s32.totalorder %v685, 15
      %vm800 = vcmp.eq.s32.totalorder %v686, 15
      %vm801 = vcmp.eq.s32.totalorder %v687, 15
      %vm802 = vcmp.eq.s32.totalorder %v688, 15
      %vm803 = vcmp.eq.s32.totalorder %v689, 15
      %vm804 = vcmp.eq.s32.totalorder %v690, 15
      %vm805 = vcmp.eq.s32.totalorder %v691, 15
      %vm806 = vcmp.eq.s32.totalorder %v692, 15
      %vm807 = vcmp.eq.s32.totalorder %v693, 15
      %vm808 = vcmp.eq.s32.totalorder %v694, 15
      %vm809 = vcmp.eq.s32.totalorder %v695, 15
      %vm810 = vcmp.eq.s32.totalorder %v696, 15
      %vm811 = vcmp.eq.s32.totalorder %v697, 15
      %vm812 = vmxor %vm776, %vm739
      %vm813 = vmxor %vm777, %vm739
      %vm814 = vmxor %vm778, %vm739
      %vm815 = vmxor %vm779, %vm739
      %vm816 = vmxor %vm780, %vm739
      %vm817 = vmxor %vm781, %vm739
      %vm818 = vmxor %vm782, %vm739
      %vm819 = vmxor %vm783, %vm739
      %vm820 = vmxor %vm784, %vm739
      %vm821 = vmxor %vm785, %vm739
      %vm822 = vmxor %vm786, %vm739
      %vm823 = vmxor %vm787, %vm739
      %vm824 = vmxor %vm788, %vm739
      %vm825 = vmxor %vm789, %vm739
      %vm826 = vmxor %vm790, %vm739
      %vm827 = vmxor %vm791, %vm739
      %vm828 = vmxor %vm792, %vm739
      %vm829 = vmxor %vm793, %vm739
      %vm830 = vmxor %vm794, %vm739
      %vm831 = vmxor %vm795, %vm739
      %vm832 = vmxor %vm796, %vm739
      %vm833 = vmxor %vm797, %vm739
      %vm834 = vmxor %vm798, %vm739
      %vm835 = vmxor %vm799, %vm739
      %vm836 = vmxor %vm800, %vm739
      %vm837 = vmxor %vm801, %vm739
      %vm838 = vmxor %vm802, %vm739
      %vm839 = vmxor %vm803, %vm739
      %vm840 = vmxor %vm804, %vm739
      %vm841 = vmxor %vm805, %vm739
      %vm842 = vmxor %vm806, %vm739
      %vm843 = vmxor %vm807, %vm739
      %vm844 = vmxor %vm808, %vm739
      %vm845 = vmxor %vm809, %vm739
      %vm846 = vmxor %vm810, %vm739
      %vm847 = vmxor %vm811, %vm739
      %v848 = vld [vmem:[%s219] sm:$0xff]
      %v849 = vld [vmem:[%s219 + $0x8] sm:$0xff]
      %v850 = vld [vmem:[%s219 + $0x10] sm:$0xff]
      %v851 = vld [vmem:[%s219 + $0x18] sm:$0xff]
      %v852 = vld [vmem:[%s219 + $0x20] sm:$0xff]
      %v853 = vld [vmem:[%s219 + $0x28] sm:$0xff]
      %v854 = vld [vmem:[%s219 + $0x30] sm:$0xff]
      %v855 = vld [vmem:[%s219 + $0x38] sm:$0xff]
      %v856 = vld [vmem:[%s219 + $0x40] sm:$0xff]
      %v857 = vld [vmem:[%s219 + $0x48] sm:$0xff]
      %v858 = vld [vmem:[%s219 + $0x50] sm:$0xff]
      %v859 = vld [vmem:[%s219 + $0x58] sm:$0xff]
      %v860 = vld [vmem:[%s219 + $0x60] sm:$0xff]
      %v861 = vld [vmem:[%s219 + $0x68] sm:$0xff]
      %v862 = vld [vmem:[%s219 + $0x70] sm:$0xff]
      %v863 = vld [vmem:[%s219 + $0x78] sm:$0xff]
      %v864 = vld [vmem:[%s219 + $0x80] sm:$0xff]
      %v865 = vld [vmem:[%s219 + $0x88] sm:$0xff]
      %v866 = vld [vmem:[%s219 + $0x90] sm:$0xff]
      %v867 = vld [vmem:[%s219 + $0x98] sm:$0xff]
      %v868 = vld [vmem:[%s219 + $0xa0] sm:$0xff]
      %v869 = vld [vmem:[%s219 + $0xa8] sm:$0xff]
      %v870 = vld [vmem:[%s219 + $0xb0] sm:$0xff]
      %v871 = vld [vmem:[%s219 + $0xb8] sm:$0xff]
      %v872 = vld [vmem:[%s219 + $0xc0] sm:$0xff]
      %v873 = vld [vmem:[%s219 + $0xc8] sm:$0xff]
      %v874 = vld [vmem:[%s219 + $0xd0] sm:$0xff]
      %v875 = vld [vmem:[%s219 + $0xd8] sm:$0xff]
      %v876 = vld [vmem:[%s219 + $0xe0] sm:$0xff]
      %v877 = vld [vmem:[%s219 + $0xe8] sm:$0xff]
      %v878 = vld [vmem:[%s219 + $0xf0] sm:$0xff]
      %v879 = vld [vmem:[%s219 + $0xf8] sm:$0xff]
      %v880 = vrot.slane %v850, 7
      %v881 = vrot.slane %v851, 7
      %v882 = vrot.slane %v848, 7
      %v883 = vrot.slane %v849, 7
      %v884 = vrot.slane %v852, 7
      %v885 = vrot.slane %v853, 7
      %v886 = vrot.slane %v854, 7
      %v887 = vrot.slane %v855, 7
      %v888 = vrot.slane %v856, 7
      %v889 = vrot.slane %v857, 7
      %v890 = vrot.slane %v858, 7
      %v891 = vrot.slane %v859, 7
      %v892 = vrot.slane %v860, 7
      %v893 = vrot.slane %v861, 7
      %v894 = vrot.slane %v862, 7
      %v895 = vrot.slane %v863, 7
      %v896 = vrot.slane %v864, 7
      %v897 = vrot.slane %v865, 7
      %v898 = vrot.slane %v866, 7
      %v899 = vrot.slane %v867, 7
      %v900 = vrot.slane %v868, 7
      %v901 = vrot.slane %v869, 7
      %v902 = vrot.slane %v870, 7
      %v903 = vrot.slane %v871, 7
      %v904 = vrot.slane %v872, 7
      %v905 = vrot.slane %v873, 7
      %v906 = vrot.slane %v874, 7
      %v907 = vrot.slane %v875, 7
      %v908 = vrot.slane %v876, 7
      %v909 = vrot.slane %v877, 7
      %v910 = vrot.slane %v878, 7
      %v911 = vrot.slane %v879, 7
      %vm912 = vcmp.lt.s32.totalorder %v227, 1
      %v913 = vsel %vm912, %v908, %v909
      %v914 = vsel %vm912, %v911, %v908
      %v915 = vsel %vm912, %v910, %v911
      %v916 = vsel %vm912, %v909, %v910
      %v917 = vsel %vm912, %v907, %v908
      %v918 = vsel %vm912, %v906, %v907
      %v919 = vsel %vm912, %v905, %v906
      %v920 = vsel %vm912, %v904, %v905
      %v921 = vsel %vm912, %v903, %v904
      %v922 = vsel %vm912, %v902, %v903
      %v923 = vsel %vm912, %v901, %v902
      %v924 = vsel %vm912, %v900, %v901
      %v925 = vsel %vm912, %v899, %v900
      %v926 = vsel %vm912, %v898, %v899
      %v927 = vsel %vm912, %v897, %v898
      %v928 = vsel %vm912, %v896, %v897
      %v929 = vsel %vm912, %v895, %v896
      %v930 = vsel %vm912, %v894, %v895
      %v931 = vsel %vm912, %v893, %v894
      %v932 = vsel %vm912, %v892, %v893
      %v933 = vsel %vm912, %v891, %v892
      %v934 = vsel %vm912, %v890, %v891
      %v935 = vsel %vm912, %v889, %v890
      %v936 = vsel %vm912, %v888, %v889
      %v937 = vsel %vm912, %v887, %v888
      %v938 = vsel %vm912, %v886, %v887
      %v939 = vsel %vm912, %v885, %v886
      %v940 = vsel %vm912, %v884, %v885
      %v941 = vsel %vm912, %v881, %v884
      %v942 = vsel %vm912, %v880, %v881
      %v943 = vsel %vm912, %v883, %v880
      %v944 = vsel %vm912, %v882, %v883
      %v945 = vsel %vm912, %v881, %v882
      %v946 = vsel %vm912, %v909, %v880
      %v947 = vrot.slane %v850, 1
      %v948 = vrot.slane %v851, 1
      %v949 = vrot.slane %v848, 1
      %v950 = vrot.slane %v849, 1
      %v951 = vrot.slane %v852, 1
      %v952 = vrot.slane %v853, 1
      %v953 = vrot.slane %v854, 1
      %v954 = vrot.slane %v855, 1
      %v955 = vrot.slane %v856, 1
      %v956 = vrot.slane %v857, 1
      %v957 = vrot.slane %v858, 1
      %v958 = vrot.slane %v859, 1
      %v959 = vrot.slane %v860, 1
      %v960 = vrot.slane %v861, 1
      %v961 = vrot.slane %v862, 1
      %v962 = vrot.slane %v863, 1
      %v963 = vrot.slane %v864, 1
      %v964 = vrot.slane %v865, 1
      %v965 = vrot.slane %v866, 1
      %v966 = vrot.slane %v867, 1
      %v967 = vrot.slane %v868, 1
      %v968 = vrot.slane %v869, 1
      %v969 = vrot.slane %v870, 1
      %v970 = vrot.slane %v871, 1
      %v971 = vrot.slane %v872, 1
      %v972 = vrot.slane %v873, 1
      %v973 = vrot.slane %v874, 1
      %v974 = vrot.slane %v875, 1
      %v975 = vrot.slane %v876, 1
      %v976 = vrot.slane %v877, 1
      %v977 = vrot.slane %v878, 1
      %v978 = vrot.slane %v879, 1
      %vm979 = vcmp.lt.s32.totalorder %v227, 7
      %v980 = vsel %vm979, %v975, %v976
      %v981 = vsel %vm979, %v978, %v975
      %v982 = vsel %vm979, %v977, %v978
      %v983 = vsel %vm979, %v976, %v977
      %v984 = vsel %vm979, %v974, %v975
      %v985 = vsel %vm979, %v973, %v974
      %v986 = vsel %vm979, %v972, %v973
      %v987 = vsel %vm979, %v971, %v972
      %v988 = vsel %vm979, %v970, %v971
      %v989 = vsel %vm979, %v969, %v970
      %v990 = vsel %vm979, %v968, %v969
      %v991 = vsel %vm979, %v967, %v968
      %v992 = vsel %vm979, %v966, %v967
      %v993 = vsel %vm979, %v965, %v966
      %v994 = vsel %vm979, %v964, %v965
      %v995 = vsel %vm979, %v963, %v964
      %v996 = vsel %vm979, %v962, %v963
      %v997 = vsel %vm979, %v961, %v962
      %v998 = vsel %vm979, %v960, %v961
      %v999 = vsel %vm979, %v959, %v960
      %v1000 = vsel %vm979, %v958, %v959
      %v1001 = vsel %vm979, %v957, %v958
      %v1002 = vsel %vm979, %v956, %v957
      %v1003 = vsel %vm979, %v955, %v956
      %v1004 = vsel %vm979, %v954, %v955
      %v1005 = vsel %vm979, %v953, %v954
      %v1006 = vsel %vm979, %v952, %v953
      %v1007 = vsel %vm979, %v951, %v952
      %v1008 = vsel %vm979, %v948, %v951
      %v1009 = vsel %vm979, %v947, %v948
      %v1010 = vsel %vm979, %v950, %v947
      %v1011 = vsel %vm979, %v949, %v950
      %v1012 = vsel %vm979, %v948, %v949
      %v1013 = vsel %vm979, %v976, %v947
      %v1014 = vsel %vm740, 1, 0
      %v1015 = vsel %vm741, 1, 0
      %v1016 = vsel %vm742, 1, 0
      %v1017 = vsel %vm743, 1, 0
      %v1018 = vsel %vm744, 1, 0
      %v1019 = vsel %vm745, 1, 0
      %v1020 = vsel %vm746, 1, 0
      %v1021 = vsel %vm747, 1, 0
      %v1022 = vsel %vm748, 1, 0
      %v1023 = vsel %vm749, 1, 0
      %v1024 = vsel %vm750, 1, 0
      %v1025 = vsel %vm751, 1, 0
      %v1026 = vsel %vm752, 1, 0
      %v1027 = vsel %vm753, 1, 0
      %v1028 = vsel %vm754, 1, 0
      %v1029 = vsel %vm755, 1, 0
      %v1030 = vsel %vm756, 1, 0
      %v1031 = vsel %vm757, 1, 0
      %v1032 = vsel %vm758, 1, 0
      %v1033 = vsel %vm759, 1, 0
      %v1034 = vsel %vm760, 1, 0
      %v1035 = vsel %vm761, 1, 0
      %v1036 = vsel %vm762, 1, 0
      %v1037 = vsel %vm763, 1, 0
      %v1038 = vsel %vm764, 1, 0
      %v1039 = vsel %vm765, 1, 0
      %v1040 = vsel %vm766, 1, 0
      %v1041 = vsel %vm767, 1, 0
      %v1042 = vsel %vm768, 1, 0
      %v1043 = vsel %vm769, 1, 0
      %v1044 = vsel %vm770, 1, 0
      %v1045 = vsel %vm771, 1, 0
      %v1046 = vsel %vm772, 1, 0
      %v1047 = vsel %vm773, 1, 0
      %v1048 = vsel %vm774, 1, 0
      %v1049 = vsel %vm775, 1, 0
      %1050 = vset.pattern.permute.xlu0 0
      %1051 = vperm.xlu0 %1050, %v1014
      %v1052 = vpop.permute.xlu0 %1051
      %1053 = vset.pattern.permute.xlu0 0
      %1054 = vperm.xlu0 %1053, %v1015
      %v1055 = vpop.permute.xlu0 %1054
      %1056 = vset.pattern.permute.xlu0 0
      %1057 = vperm.xlu0 %1056, %v1016
      %v1058 = vpop.permute.xlu0 %1057
      %1059 = vset.pattern.permute.xlu0 0
      %1060 = vperm.xlu0 %1059, %v1017
      %v1061 = vpop.permute.xlu0 %1060
      %1062 = vset.pattern.permute.xlu0 0
      %1063 = vperm.xlu0 %1062, %v1018
      %v1064 = vpop.permute.xlu0 %1063
      %1065 = vset.pattern.permute.xlu0 0
      %1066 = vperm.xlu0 %1065, %v1019
      %v1067 = vpop.permute.xlu0 %1066
      %1068 = vset.pattern.permute.xlu0 0
      %1069 = vperm.xlu0 %1068, %v1020
      %v1070 = vpop.permute.xlu0 %1069
      %1071 = vset.pattern.permute.xlu0 0
      %1072 = vperm.xlu0 %1071, %v1021
      %v1073 = vpop.permute.xlu0 %1072
      %1074 = vset.pattern.permute.xlu0 0
      %1075 = vperm.xlu0 %1074, %v1022
      %v1076 = vpop.permute.xlu0 %1075
      %1077 = vset.pattern.permute.xlu0 0
      %1078 = vperm.xlu0 %1077, %v1023
      %v1079 = vpop.permute.xlu0 %1078
      %1080 = vset.pattern.permute.xlu0 0
      %1081 = vperm.xlu0 %1080, %v1024
      %v1082 = vpop.permute.xlu0 %1081
      %1083 = vset.pattern.permute.xlu0 0
      %1084 = vperm.xlu0 %1083, %v1025
      %v1085 = vpop.permute.xlu0 %1084
      %1086 = vset.pattern.permute.xlu0 0
      %1087 = vperm.xlu0 %1086, %v1026
      %v1088 = vpop.permute.xlu0 %1087
      %1089 = vset.pattern.permute.xlu0 0
      %1090 = vperm.xlu0 %1089, %v1027
      %v1091 = vpop.permute.xlu0 %1090
      %1092 = vset.pattern.permute.xlu0 0
      %1093 = vperm.xlu0 %1092, %v1028
      %v1094 = vpop.permute.xlu0 %1093
      %1095 = vset.pattern.permute.xlu0 0
      %1096 = vperm.xlu0 %1095, %v1029
      %v1097 = vpop.permute.xlu0 %1096
      %1098 = vset.pattern.permute.xlu0 0
      %1099 = vperm.xlu0 %1098, %v1030
      %v1100 = vpop.permute.xlu0 %1099
      %1101 = vset.pattern.permute.xlu0 0
      %1102 = vperm.xlu0 %1101, %v1031
      %v1103 = vpop.permute.xlu0 %1102
      %1104 = vset.pattern.permute.xlu0 0
      %1105 = vperm.xlu0 %1104, %v1032
      %v1106 = vpop.permute.xlu0 %1105
      %1107 = vset.pattern.permute.xlu0 0
      %1108 = vperm.xlu0 %1107, %v1033
      %v1109 = vpop.permute.xlu0 %1108
      %1110 = vset.pattern.permute.xlu0 0
      %1111 = vperm.xlu0 %1110, %v1034
      %v1112 = vpop.permute.xlu0 %1111
      %1113 = vset.pattern.permute.xlu0 0
      %1114 = vperm.xlu0 %1113, %v1035
      %v1115 = vpop.permute.xlu0 %1114
      %1116 = vset.pattern.permute.xlu0 0
      %1117 = vperm.xlu0 %1116, %v1036
      %v1118 = vpop.permute.xlu0 %1117
      %1119 = vset.pattern.permute.xlu0 0
      %1120 = vperm.xlu0 %1119, %v1037
      %v1121 = vpop.permute.xlu0 %1120
      %1122 = vset.pattern.permute.xlu0 0
      %1123 = vperm.xlu0 %1122, %v1038
      %v1124 = vpop.permute.xlu0 %1123
      %1125 = vset.pattern.permute.xlu0 0
      %1126 = vperm.xlu0 %1125, %v1039
      %v1127 = vpop.permute.xlu0 %1126
      %1128 = vset.pattern.permute.xlu0 0
      %1129 = vperm.xlu0 %1128, %v1040
      %v1130 = vpop.permute.xlu0 %1129
      %1131 = vset.pattern.permute.xlu0 0
      %1132 = vperm.xlu0 %1131, %v1041
      %v1133 = vpop.permute.xlu0 %1132
      %1134 = vset.pattern.permute.xlu0 0
      %1135 = vperm.xlu0 %1134, %v1042
      %v1136 = vpop.permute.xlu0 %1135
      %1137 = vset.pattern.permute.xlu0 0
      %1138 = vperm.xlu0 %1137, %v1043
      %v1139 = vpop.permute.xlu0 %1138
      %1140 = vset.pattern.permute.xlu0 0
      %1141 = vperm.xlu0 %1140, %v1044
      %v1142 = vpop.permute.xlu0 %1141
      %1143 = vset.pattern.permute.xlu0 0
      %1144 = vperm.xlu0 %1143, %v1045
      %v1145 = vpop.permute.xlu0 %1144
      %1146 = vset.pattern.permute.xlu0 0
      %1147 = vperm.xlu0 %1146, %v1046
      %v1148 = vpop.permute.xlu0 %1147
      %1149 = vset.pattern.permute.xlu0 0
      %1150 = vperm.xlu0 %1149, %v1047
      %v1151 = vpop.permute.xlu0 %1150
      %1152 = vset.pattern.permute.xlu0 0
      %1153 = vperm.xlu0 %1152, %v1048
      %v1154 = vpop.permute.xlu0 %1153
      %1155 = vset.pattern.permute.xlu0 0
      %1156 = vperm.xlu0 %1155, %v1049
      %v1157 = vpop.permute.xlu0 %1156
      %vm1158 = vcmp.eq.s32.totalorder %v1052, 1
      %vm1159 = vcmp.eq.s32.totalorder %v1055, 1
      %vm1160 = vcmp.eq.s32.totalorder %v1058, 1
      %vm1161 = vcmp.eq.s32.totalorder %v1061, 1
      %vm1162 = vcmp.eq.s32.totalorder %v1064, 1
      %vm1163 = vcmp.eq.s32.totalorder %v1067, 1
      %vm1164 = vcmp.eq.s32.totalorder %v1070, 1
      %vm1165 = vcmp.eq.s32.totalorder %v1073, 1
      %vm1166 = vcmp.eq.s32.totalorder %v1076, 1
      %vm1167 = vcmp.eq.s32.totalorder %v1079, 1
      %vm1168 = vcmp.eq.s32.totalorder %v1082, 1
      %vm1169 = vcmp.eq.s32.totalorder %v1085, 1
      %vm1170 = vcmp.eq.s32.totalorder %v1088, 1
      %vm1171 = vcmp.eq.s32.totalorder %v1091, 1
      %vm1172 = vcmp.eq.s32.totalorder %v1094, 1
      %vm1173 = vcmp.eq.s32.totalorder %v1097, 1
      %vm1174 = vcmp.eq.s32.totalorder %v1100, 1
      %vm1175 = vcmp.eq.s32.totalorder %v1103, 1
      %vm1176 = vcmp.eq.s32.totalorder %v1106, 1
      %vm1177 = vcmp.eq.s32.totalorder %v1109, 1
      %vm1178 = vcmp.eq.s32.totalorder %v1112, 1
      %vm1179 = vcmp.eq.s32.totalorder %v1115, 1
      %vm1180 = vcmp.eq.s32.totalorder %v1118, 1
      %vm1181 = vcmp.eq.s32.totalorder %v1121, 1
      %vm1182 = vcmp.eq.s32.totalorder %v1124, 1
      %vm1183 = vcmp.eq.s32.totalorder %v1127, 1
      %vm1184 = vcmp.eq.s32.totalorder %v1130, 1
      %vm1185 = vcmp.eq.s32.totalorder %v1133, 1
      %vm1186 = vcmp.eq.s32.totalorder %v1136, 1
      %vm1187 = vcmp.eq.s32.totalorder %v1139, 1
      %vm1188 = vcmp.eq.s32.totalorder %v1142, 1
      %vm1189 = vcmp.eq.s32.totalorder %v1145, 1
      %vm1190 = vcmp.eq.s32.totalorder %v1148, 1
      %vm1191 = vcmp.eq.s32.totalorder %v1151, 1
      %vm1192 = vcmp.eq.s32.totalorder %v1154, 1
      %vm1193 = vcmp.eq.s32.totalorder %v1157, 1
      %v1194 = vsel %vm1158, %v1009, %v946
      %v1195 = vsel %vm1159, %v1012, %v942
      %v1196 = vsel %vm1160, %v1011, %v945
      %v1197 = vsel %vm1161, %v1010, %v944
      %v1198 = vsel %vm1162, %v1009, %v943
      %v1199 = vsel %vm1163, %v1008, %v942
      %v1200 = vsel %vm1164, %v1007, %v941
      %v1201 = vsel %vm1165, %v1006, %v940
      %v1202 = vsel %vm1166, %v1005, %v939
      %v1203 = vsel %vm1167, %v1004, %v938
      %v1204 = vsel %vm1168, %v1003, %v937
      %v1205 = vsel %vm1169, %v1002, %v936
      %v1206 = vsel %vm1170, %v1001, %v935
      %v1207 = vsel %vm1171, %v1000, %v934
      %v1208 = vsel %vm1172, %v999, %v933
      %v1209 = vsel %vm1173, %v998, %v932
      %v1210 = vsel %vm1174, %v997, %v931
      %v1211 = vsel %vm1175, %v996, %v930
      %v1212 = vsel %vm1176, %v995, %v929
      %v1213 = vsel %vm1177, %v994, %v928
      %v1214 = vsel %vm1178, %v993, %v927
      %v1215 = vsel %vm1179, %v992, %v926
      %v1216 = vsel %vm1180, %v991, %v925
      %v1217 = vsel %vm1181, %v990, %v924
      %v1218 = vsel %vm1182, %v989, %v923
      %v1219 = vsel %vm1183, %v988, %v922
      %v1220 = vsel %vm1184, %v987, %v921
      %v1221 = vsel %vm1185, %v986, %v920
      %v1222 = vsel %vm1186, %v985, %v919
      %v1223 = vsel %vm1187, %v984, %v918
      %v1224 = vsel %vm1188, %v980, %v917
      %v1225 = vsel %vm1189, %v983, %v913
      %v1226 = vsel %vm1190, %v982, %v916
      %v1227 = vsel %vm1191, %v981, %v915
      %v1228 = vsel %vm1192, %v980, %v914
      %v1229 = vsel %vm1193, %v1013, %v913
      %v1230 = vpack.c.bf16 %v1195, %v1194
      %v1231 = vpack.c.bf16 %v1197, %v1196
      %v1232 = vpack.c.bf16 %v1199, %v1198
      %v1233 = vpack.c.bf16 %v1201, %v1200
      %v1234 = vpack.c.bf16 %v1203, %v1202
      %v1235 = vpack.c.bf16 %v1205, %v1204
      %v1236 = vpack.c.bf16 %v1207, %v1206
      %v1237 = vpack.c.bf16 %v1209, %v1208
      %v1238 = vpack.c.bf16 %v1211, %v1210
      %v1239 = vpack.c.bf16 %v1213, %v1212
      %v1240 = vpack.c.bf16 %v1215, %v1214
      %v1241 = vpack.c.bf16 %v1217, %v1216
      %v1242 = vpack.c.bf16 %v1219, %v1218
      %v1243 = vpack.c.bf16 %v1221, %v1220
      %v1244 = vpack.c.bf16 %v1223, %v1222
      %v1245 = vpack.c.bf16 %v1225, %v1224
      %v1246 = vpack.c.bf16 %v1227, %v1226
      %v1247 = vpack.c.bf16 %v1229, %v1228
      %v1248 = vsel %vm812, 1, 0
      %v1249 = vsel %vm813, 1, 0
      %v1250 = vsel %vm814, 1, 0
      %v1251 = vsel %vm815, 1, 0
      %v1252 = vsel %vm816, 1, 0
      %v1253 = vsel %vm817, 1, 0
      %v1254 = vsel %vm818, 1, 0
      %v1255 = vsel %vm819, 1, 0
      %v1256 = vsel %vm820, 1, 0
      %v1257 = vsel %vm821, 1, 0
      %v1258 = vsel %vm822, 1, 0
      %v1259 = vsel %vm823, 1, 0
      %v1260 = vsel %vm824, 1, 0
      %v1261 = vsel %vm825, 1, 0
      %v1262 = vsel %vm826, 1, 0
      %v1263 = vsel %vm827, 1, 0
      %v1264 = vsel %vm828, 1, 0
      %v1265 = vsel %vm829, 1, 0
      %v1266 = vsel %vm830, 1, 0
      %v1267 = vsel %vm831, 1, 0
      %v1268 = vsel %vm832, 1, 0
      %v1269 = vsel %vm833, 1, 0
      %v1270 = vsel %vm834, 1, 0
      %v1271 = vsel %vm835, 1, 0
      %v1272 = vsel %vm836, 1, 0
      %v1273 = vsel %vm837, 1, 0
      %v1274 = vsel %vm838, 1, 0
      %v1275 = vsel %vm839, 1, 0
      %v1276 = vsel %vm840, 1, 0
      %v1277 = vsel %vm841, 1, 0
      %v1278 = vsel %vm842, 1, 0
      %v1279 = vsel %vm843, 1, 0
      %v1280 = vsel %vm844, 1, 0
      %v1281 = vsel %vm845, 1, 0
      %v1282 = vsel %vm846, 1, 0
      %v1283 = vsel %vm847, 1, 0
      %1284 = vset.pattern.permute.xlu0 0
      %1285 = vperm.xlu0 %1284, %v1248
      %v1286 = vpop.permute.xlu0 %1285
      %1287 = vset.pattern.permute.xlu0 0
      %1288 = vperm.xlu0 %1287, %v1249
      %v1289 = vpop.permute.xlu0 %1288
      %1290 = vset.pattern.permute.xlu0 0
      %1291 = vperm.xlu0 %1290, %v1250
      %v1292 = vpop.permute.xlu0 %1291
      %1293 = vset.pattern.permute.xlu0 0
      %1294 = vperm.xlu0 %1293, %v1251
      %v1295 = vpop.permute.xlu0 %1294
      %1296 = vset.pattern.permute.xlu0 0
      %1297 = vperm.xlu0 %1296, %v1252
      %v1298 = vpop.permute.xlu0 %1297
      %1299 = vset.pattern.permute.xlu0 0
      %1300 = vperm.xlu0 %1299, %v1253
      %v1301 = vpop.permute.xlu0 %1300
      %1302 = vset.pattern.permute.xlu0 0
      %1303 = vperm.xlu0 %1302, %v1254
      %v1304 = vpop.permute.xlu0 %1303
      %1305 = vset.pattern.permute.xlu0 0
      %1306 = vperm.xlu0 %1305, %v1255
      %v1307 = vpop.permute.xlu0 %1306
      %1308 = vset.pattern.permute.xlu0 0
      %1309 = vperm.xlu0 %1308, %v1256
      %v1310 = vpop.permute.xlu0 %1309
      %1311 = vset.pattern.permute.xlu0 0
      %1312 = vperm.xlu0 %1311, %v1257
      %v1313 = vpop.permute.xlu0 %1312
      %1314 = vset.pattern.permute.xlu0 0
      %1315 = vperm.xlu0 %1314, %v1258
      %v1316 = vpop.permute.xlu0 %1315
      %1317 = vset.pattern.permute.xlu0 0
      %1318 = vperm.xlu0 %1317, %v1259
      %v1319 = vpop.permute.xlu0 %1318
      %1320 = vset.pattern.permute.xlu0 0
      %1321 = vperm.xlu0 %1320, %v1260
      %v1322 = vpop.permute.xlu0 %1321
      %1323 = vset.pattern.permute.xlu0 0
      %1324 = vperm.xlu0 %1323, %v1261
      %v1325 = vpop.permute.xlu0 %1324
      %1326 = vset.pattern.permute.xlu0 0
      %1327 = vperm.xlu0 %1326, %v1262
      %v1328 = vpop.permute.xlu0 %1327
      %1329 = vset.pattern.permute.xlu0 0
      %1330 = vperm.xlu0 %1329, %v1263
      %v1331 = vpop.permute.xlu0 %1330
      %1332 = vset.pattern.permute.xlu0 0
      %1333 = vperm.xlu0 %1332, %v1264
      %v1334 = vpop.permute.xlu0 %1333
      %1335 = vset.pattern.permute.xlu0 0
      %1336 = vperm.xlu0 %1335, %v1265
      %v1337 = vpop.permute.xlu0 %1336
      %1338 = vset.pattern.permute.xlu0 0
      %1339 = vperm.xlu0 %1338, %v1266
      %v1340 = vpop.permute.xlu0 %1339
      %1341 = vset.pattern.permute.xlu0 0
      %1342 = vperm.xlu0 %1341, %v1267
      %v1343 = vpop.permute.xlu0 %1342
      %1344 = vset.pattern.permute.xlu0 0
      %1345 = vperm.xlu0 %1344, %v1268
      %v1346 = vpop.permute.xlu0 %1345
      %1347 = vset.pattern.permute.xlu0 0
      %1348 = vperm.xlu0 %1347, %v1269
      %v1349 = vpop.permute.xlu0 %1348
      %1350 = vset.pattern.permute.xlu0 0
      %1351 = vperm.xlu0 %1350, %v1270
      %v1352 = vpop.permute.xlu0 %1351
      %1353 = vset.pattern.permute.xlu0 0
      %1354 = vperm.xlu0 %1353, %v1271
      %v1355 = vpop.permute.xlu0 %1354
      %1356 = vset.pattern.permute.xlu0 0
      %1357 = vperm.xlu0 %1356, %v1272
      %v1358 = vpop.permute.xlu0 %1357
      %1359 = vset.pattern.permute.xlu0 0
      %1360 = vperm.xlu0 %1359, %v1273
      %v1361 = vpop.permute.xlu0 %1360
      %1362 = vset.pattern.permute.xlu0 0
      %1363 = vperm.xlu0 %1362, %v1274
      %v1364 = vpop.permute.xlu0 %1363
      %1365 = vset.pattern.permute.xlu0 0
      %1366 = vperm.xlu0 %1365, %v1275
      %v1367 = vpop.permute.xlu0 %1366
      %1368 = vset.pattern.permute.xlu0 0
      %1369 = vperm.xlu0 %1368, %v1276
      %v1370 = vpop.permute.xlu0 %1369
      %1371 = vset.pattern.permute.xlu0 0
      %1372 = vperm.xlu0 %1371, %v1277
      %v1373 = vpop.permute.xlu0 %1372
      %1374 = vset.pattern.permute.xlu0 0
      %1375 = vperm.xlu0 %1374, %v1278
      %v1376 = vpop.permute.xlu0 %1375
      %1377 = vset.pattern.permute.xlu0 0
      %1378 = vperm.xlu0 %1377, %v1279
      %v1379 = vpop.permute.xlu0 %1378
      %1380 = vset.pattern.permute.xlu0 0
      %1381 = vperm.xlu0 %1380, %v1280
      %v1382 = vpop.permute.xlu0 %1381
      %1383 = vset.pattern.permute.xlu0 0
      %1384 = vperm.xlu0 %1383, %v1281
      %v1385 = vpop.permute.xlu0 %1384
      %1386 = vset.pattern.permute.xlu0 0
      %1387 = vperm.xlu0 %1386, %v1282
      %v1388 = vpop.permute.xlu0 %1387
      %1389 = vset.pattern.permute.xlu0 0
      %1390 = vperm.xlu0 %1389, %v1283
      %v1391 = vpop.permute.xlu0 %1390
      %vm1392 = vcmp.eq.s32.totalorder %v1286, 1
      %vm1393 = vcmp.eq.s32.totalorder %v1289, 1
      %vm1394 = vcmp.eq.s32.totalorder %v1292, 1
      %vm1395 = vcmp.eq.s32.totalorder %v1295, 1
      %vm1396 = vcmp.eq.s32.totalorder %v1298, 1
      %vm1397 = vcmp.eq.s32.totalorder %v1301, 1
      %vm1398 = vcmp.eq.s32.totalorder %v1304, 1
      %vm1399 = vcmp.eq.s32.totalorder %v1307, 1
      %vm1400 = vcmp.eq.s32.totalorder %v1310, 1
      %vm1401 = vcmp.eq.s32.totalorder %v1313, 1
      %vm1402 = vcmp.eq.s32.totalorder %v1316, 1
      %vm1403 = vcmp.eq.s32.totalorder %v1319, 1
      %vm1404 = vcmp.eq.s32.totalorder %v1322, 1
      %vm1405 = vcmp.eq.s32.totalorder %v1325, 1
      %vm1406 = vcmp.eq.s32.totalorder %v1328, 1
      %vm1407 = vcmp.eq.s32.totalorder %v1331, 1
      %vm1408 = vcmp.eq.s32.totalorder %v1334, 1
      %vm1409 = vcmp.eq.s32.totalorder %v1337, 1
      %vm1410 = vcmp.eq.s32.totalorder %v1340, 1
      %vm1411 = vcmp.eq.s32.totalorder %v1343, 1
      %vm1412 = vcmp.eq.s32.totalorder %v1346, 1
      %vm1413 = vcmp.eq.s32.totalorder %v1349, 1
      %vm1414 = vcmp.eq.s32.totalorder %v1352, 1
      %vm1415 = vcmp.eq.s32.totalorder %v1355, 1
      %vm1416 = vcmp.eq.s32.totalorder %v1358, 1
      %vm1417 = vcmp.eq.s32.totalorder %v1361, 1
      %vm1418 = vcmp.eq.s32.totalorder %v1364, 1
      %vm1419 = vcmp.eq.s32.totalorder %v1367, 1
      %vm1420 = vcmp.eq.s32.totalorder %v1370, 1
      %vm1421 = vcmp.eq.s32.totalorder %v1373, 1
      %vm1422 = vcmp.eq.s32.totalorder %v1376, 1
      %vm1423 = vcmp.eq.s32.totalorder %v1379, 1
      %vm1424 = vcmp.eq.s32.totalorder %v1382, 1
      %vm1425 = vcmp.eq.s32.totalorder %v1385, 1
      %vm1426 = vcmp.eq.s32.totalorder %v1388, 1
      %vm1427 = vcmp.eq.s32.totalorder %v1391, 1
      %v1428 = vsel %vm1392, %v946, %v1009
      %v1429 = vsel %vm1393, %v942, %v1012
      %v1430 = vsel %vm1394, %v945, %v1011
      %v1431 = vsel %vm1395, %v944, %v1010
      %v1432 = vsel %vm1396, %v943, %v1009
      %v1433 = vsel %vm1397, %v942, %v1008
      %v1434 = vsel %vm1398, %v941, %v1007
      %v1435 = vsel %vm1399, %v940, %v1006
      %v1436 = vsel %vm1400, %v939, %v1005
      %v1437 = vsel %vm1401, %v938, %v1004
      %v1438 = vsel %vm1402, %v937, %v1003
      %v1439 = vsel %vm1403, %v936, %v1002
      %v1440 = vsel %vm1404, %v935, %v1001
      %v1441 = vsel %vm1405, %v934, %v1000
      %v1442 = vsel %vm1406, %v933, %v999
      %v1443 = vsel %vm1407, %v932, %v998
      %v1444 = vsel %vm1408, %v931, %v997
      %v1445 = vsel %vm1409, %v930, %v996
      %v1446 = vsel %vm1410, %v929, %v995
      %v1447 = vsel %vm1411, %v928, %v994
      %v1448 = vsel %vm1412, %v927, %v993
      %v1449 = vsel %vm1413, %v926, %v992
      %v1450 = vsel %vm1414, %v925, %v991
      %v1451 = vsel %vm1415, %v924, %v990
      %v1452 = vsel %vm1416, %v923, %v989
      %v1453 = vsel %vm1417, %v922, %v988
      %v1454 = vsel %vm1418, %v921, %v987
      %v1455 = vsel %vm1419, %v920, %v986
      %v1456 = vsel %vm1420, %v919, %v985
      %v1457 = vsel %vm1421, %v918, %v984
      %v1458 = vsel %vm1422, %v917, %v980
      %v1459 = vsel %vm1423, %v913, %v983
      %v1460 = vsel %vm1424, %v916, %v982
      %v1461 = vsel %vm1425, %v915, %v981
      %v1462 = vsel %vm1426, %v914, %v980
      %v1463 = vsel %vm1427, %v913, %v1013
      %v1464 = vpack.c.bf16 %v1429, %v1428
      %v1465 = vpack.c.bf16 %v1431, %v1430
      %v1466 = vpack.c.bf16 %v1433, %v1432
      %v1467 = vpack.c.bf16 %v1435, %v1434
      %v1468 = vpack.c.bf16 %v1437, %v1436
      %v1469 = vpack.c.bf16 %v1439, %v1438
      %v1470 = vpack.c.bf16 %v1441, %v1440
      %v1471 = vpack.c.bf16 %v1443, %v1442
      %v1472 = vpack.c.bf16 %v1445, %v1444
      %v1473 = vpack.c.bf16 %v1447, %v1446
      %v1474 = vpack.c.bf16 %v1449, %v1448
      %v1475 = vpack.c.bf16 %v1451, %v1450
      %v1476 = vpack.c.bf16 %v1453, %v1452
      %v1477 = vpack.c.bf16 %v1455, %v1454
      %v1478 = vpack.c.bf16 %v1457, %v1456
      %v1479 = vpack.c.bf16 %v1459, %v1458
      %v1480 = vpack.c.bf16 %v1461, %v1460
      %v1481 = vpack.c.bf16 %v1463, %v1462
      %v1482 = vpack.c.bf16 %v851, %v850
      %v1483 = vpack.c.bf16 %v849, %v848
      %v1484 = vpack.c.bf16 %v853, %v852
      %v1485 = vpack.c.bf16 %v855, %v854
      %v1486 = vpack.c.bf16 %v857, %v856
      %v1487 = vpack.c.bf16 %v859, %v858
      %v1488 = vpack.c.bf16 %v861, %v860
      %v1489 = vpack.c.bf16 %v863, %v862
      %v1490 = vpack.c.bf16 %v865, %v864
      %v1491 = vpack.c.bf16 %v867, %v866
      %v1492 = vpack.c.bf16 %v869, %v868
      %v1493 = vpack.c.bf16 %v871, %v870
      %v1494 = vpack.c.bf16 %v873, %v872
      %v1495 = vpack.c.bf16 %v875, %v874
      %v1496 = vpack.c.bf16 %v877, %v876
      %v1497 = vpack.c.bf16 %v879, %v878
      %1514 = vrot.lane.b32.xlu0 %v1482, 4
      %v1515 = vpop.permute.xlu0 %1514
      %1516 = vrot.lane.b32.xlu0 %v1483, 4
      %v1517 = vpop.permute.xlu0 %1516
      %1518 = vrot.lane.b32.xlu0 %v1484, 4
      %v1519 = vpop.permute.xlu0 %1518
      %1520 = vrot.lane.b32.xlu0 %v1485, 4
      %v1521 = vpop.permute.xlu0 %1520
      %1522 = vrot.lane.b32.xlu0 %v1486, 4
      %v1523 = vpop.permute.xlu0 %1522
      %1524 = vrot.lane.b32.xlu0 %v1487, 4
      %v1525 = vpop.permute.xlu0 %1524
      %1526 = vrot.lane.b32.xlu0 %v1488, 4
      %v1527 = vpop.permute.xlu0 %1526
      %1528 = vrot.lane.b32.xlu0 %v1489, 4
      %v1529 = vpop.permute.xlu0 %1528
      %1530 = vrot.lane.b32.xlu0 %v1490, 4
      %v1531 = vpop.permute.xlu0 %1530
      %1532 = vrot.lane.b32.xlu0 %v1491, 4
      %v1533 = vpop.permute.xlu0 %1532
      %1534 = vrot.lane.b32.xlu0 %v1492, 4
      %v1535 = vpop.permute.xlu0 %1534
      %1536 = vrot.lane.b32.xlu0 %v1493, 4
      %v1537 = vpop.permute.xlu0 %1536
      %1538 = vrot.lane.b32.xlu0 %v1494, 4
      %v1539 = vpop.permute.xlu0 %1538
      %1540 = vrot.lane.b32.xlu0 %v1495, 4
      %v1541 = vpop.permute.xlu0 %1540
      %1542 = vrot.lane.b32.xlu0 %v1496, 4
      %v1543 = vpop.permute.xlu0 %1542
      %1544 = vrot.lane.b32.xlu0 %v1497, 4
      %v1545 = vpop.permute.xlu0 %1544
      %1564 = vrot.lane.b32.xlu0 %v1464, 8
      %v1565 = vpop.permute.xlu0 %1564
      %1566 = vrot.lane.b32.xlu0 %v1465, 8
      %v1567 = vpop.permute.xlu0 %1566
      %1568 = vrot.lane.b32.xlu0 %v1466, 8
      %v1569 = vpop.permute.xlu0 %1568
      %1570 = vrot.lane.b32.xlu0 %v1467, 8
      %v1571 = vpop.permute.xlu0 %1570
      %1572 = vrot.lane.b32.xlu0 %v1468, 8
      %v1573 = vpop.permute.xlu0 %1572
      %1574 = vrot.lane.b32.xlu0 %v1469, 8
      %v1575 = vpop.permute.xlu0 %1574
      %1576 = vrot.lane.b32.xlu0 %v1470, 8
      %v1577 = vpop.permute.xlu0 %1576
      %1578 = vrot.lane.b32.xlu0 %v1471, 8
      %v1579 = vpop.permute.xlu0 %1578
      %1580 = vrot.lane.b32.xlu0 %v1472, 8
      %v1581 = vpop.permute.xlu0 %1580
      %1582 = vrot.lane.b32.xlu0 %v1473, 8
      %v1583 = vpop.permute.xlu0 %1582
      %1584 = vrot.lane.b32.xlu0 %v1474, 8
      %v1585 = vpop.permute.xlu0 %1584
      %1586 = vrot.lane.b32.xlu0 %v1475, 8
      %v1587 = vpop.permute.xlu0 %1586
      %1588 = vrot.lane.b32.xlu0 %v1476, 8
      %v1589 = vpop.permute.xlu0 %1588
      %1590 = vrot.lane.b32.xlu0 %v1477, 8
      %v1591 = vpop.permute.xlu0 %1590
      %1592 = vrot.lane.b32.xlu0 %v1478, 8
      %v1593 = vpop.permute.xlu0 %1592
      %1594 = vrot.lane.b32.xlu0 %v1479, 8
      %v1595 = vpop.permute.xlu0 %1594
      %1596 = vrot.lane.b32.xlu0 %v1480, 8
      %v1597 = vpop.permute.xlu0 %1596
      %1598 = vrot.lane.b32.xlu0 %v1481, 8
      %v1599 = vpop.permute.xlu0 %1598
      %vm1600 = vcmask 31744
      %v1603 = vsel %vm1600, %v1230, %v1515
      %v1606 = vsel %vm1600, %v1231, %v1517
      %v1608 = vsel %vm1600, %v1232, %v1515
      %v1611 = vsel %vm1600, %v1233, %v1519
      %v1614 = vsel %vm1600, %v1234, %v1521
      %v1617 = vsel %vm1600, %v1235, %v1523
      %v1620 = vsel %vm1600, %v1236, %v1525
      %v1623 = vsel %vm1600, %v1237, %v1527
      %v1626 = vsel %vm1600, %v1238, %v1529
      %v1629 = vsel %vm1600, %v1239, %v1531
      %v1632 = vsel %vm1600, %v1240, %v1533
      %v1635 = vsel %vm1600, %v1241, %v1535
      %v1638 = vsel %vm1600, %v1242, %v1537
      %v1641 = vsel %vm1600, %v1243, %v1539
      %v1644 = vsel %vm1600, %v1244, %v1541
      %v1647 = vsel %vm1600, %v1245, %v1543
      %v1650 = vsel %vm1600, %v1246, %v1545
      %v1652 = vsel %vm1600, %v1247, %v1543
      %vm1653 = vcmask 64512
      %v1655 = vsel %vm1653, %v1603, %v1565
      %v1657 = vsel %vm1653, %v1606, %v1567
      %v1659 = vsel %vm1653, %v1608, %v1569
      %v1661 = vsel %vm1653, %v1611, %v1571
      %v1663 = vsel %vm1653, %v1614, %v1573
      %v1665 = vsel %vm1653, %v1617, %v1575
      %v1667 = vsel %vm1653, %v1620, %v1577
      %v1669 = vsel %vm1653, %v1623, %v1579
      %v1671 = vsel %vm1653, %v1626, %v1581
      %v1673 = vsel %vm1653, %v1629, %v1583
      %v1675 = vsel %vm1653, %v1632, %v1585
      %v1677 = vsel %vm1653, %v1635, %v1587
      %v1679 = vsel %vm1653, %v1638, %v1589
      %v1681 = vsel %vm1653, %v1641, %v1591
      %v1683 = vsel %vm1653, %v1644, %v1593
      %v1685 = vsel %vm1653, %v1647, %v1595
      %v1687 = vsel %vm1653, %v1650, %v1597
      %v1689 = vsel %vm1653, %v1652, %v1599
      %v1690 = vld [vmem:[%s1] sm:$0xf]
      %v1691 = vld [vmem:[%s1 + $0x4] sm:$0x3]
      %s1692 = scalar_lea.vmem %s1, 8
      %v1693 = vld [vmem:[%s1692] sm:$0xf]
      %v1694 = vld [vmem:[%s1692 + $0x4] sm:$0x3]
      %v1697 = vunpack.c.l.b16 %v1693
      %v1698 = vunpack.c.l.b16 %v1694
      %v1699 = vpack.c.b16 %v1698, %v1697
      %vm1700 = vcmask 97280
      %v1701 = vsel %vm1700, %v1657, 0
      %v1703 = vsel %vm1700, %v1659, 0
      %v1705 = vsel %vm1700, %v1661, 0
      %v1707 = vsel %vm1700, %v1663, 0
      %v1709 = vsel %vm1700, %v1665, 0
      %v1711 = vsel %vm1700, %v1667, 0
      %v1713 = vsel %vm1700, %v1669, 0
      %v1715 = vsel %vm1700, %v1671, 0
      %v1717 = vsel %vm1700, %v1673, 0
      %v1719 = vsel %vm1700, %v1675, 0
      %v1721 = vsel %vm1700, %v1677, 0
      %v1723 = vsel %vm1700, %v1679, 0
      %v1725 = vsel %vm1700, %v1681, 0
      %v1727 = vsel %vm1700, %v1683, 0
      %v1729 = vsel %vm1700, %v1685, 0
      %v1731 = vsel %vm1700, %v1687, 0
      %vm1733 = vcmask 1045504
      %v1735 = vsel %vm1733, %v1699, 0
      %1737 = vmatprep.subr.bf16.mxu0 0
      %1738 = vmatpush1.bf16.msra.mxu0 0
      %1739 = vmatprep.subr.bf16.mxu0 0
      %1740 = vmatpush1.bf16.msra.mxu0 0
      %1741 = vmatprep.subr.bf16.mxu0 0
      %1742 = vmatpush1.bf16.msra.mxu0 0
      %1743 = vmatprep.subr.bf16.mxu0 0
      %1744 = vmatpush1.bf16.msra.mxu0 0
      %1745 = vmatprep.subr.bf16.mxu0 0
      %1746 = vmatpush1.bf16.msra.mxu0 0
      %1747 = vmatprep.subr.bf16.mxu0 0
      %1748 = vmatpush1.bf16.msra.mxu0 0
      %1749 = vmatprep.subr.bf16.mxu0 0
      %1750 = vmatpush1.bf16.msra.mxu0 0
      %1751 = vmatprep.subr.bf16.mxu0 0
      %1752 = vmatpush1.bf16.msra.mxu0 %v1735
      %1753 = vmatprep.subr.bf16.mxu0 0
      %1754 = vmatpush2.bf16.msra.mxu0 0
      %1755 = vmatprep.subr.bf16.mxu0 0
      %1756 = vmatpush2.bf16.msra.mxu0 0
      %1757 = vmatprep.subr.bf16.mxu0 0
      %1758 = vmatpush2.bf16.msra.mxu0 0
      %1759 = vmatprep.subr.bf16.mxu0 0
      %1760 = vmatpush2.bf16.msra.mxu0 0
      %1761 = vmatprep.subr.bf16.mxu0 0
      %1762 = vmatpush2.bf16.msra.mxu0 0
      %1763 = vmatprep.subr.bf16.mxu0 0
      %1764 = vmatpush2.bf16.msra.mxu0 0
      %1765 = vmatprep.subr.bf16.mxu0 0
      %1766 = vmatpush2.bf16.msra.mxu0 0
      %1767 = vmatprep.subr.bf16.mxu0 0
      %1768 = vmatpush2.bf16.msra.mxu0 0
      %1769 = vmatprep.mubr.bf16.mxu0 0
      %1770 = vmatmul.mubr.bf16.gmra.mxu0 %v1701
      %v1771 = vpop.f32.mrf.mxu0
      %v1772 = vadd.f32 0.0, %v1771
      %v1773 = vpop.f32.mrf.mxu0
      %v1774 = vpop.f32.mrf.mxu0
      %v1775 = vadd.f32 0.0, %v1774
      %v1776 = vpop.f32.mrf.mxu0
      %1777 = vmatprep.mubr.bf16.mxu0 0
      %1778 = vmatmul.mubr.bf16.gmra.mxu0 %v1703
      %v1779 = vpop.f32.mrf.mxu0
      %v1780 = vadd.f32 0.0, %v1779
      %v1781 = vpop.f32.mrf.mxu0
      %v1782 = vpop.f32.mrf.mxu0
      %v1783 = vadd.f32 0.0, %v1782
      %v1784 = vpop.f32.mrf.mxu0
      %1785 = vmatprep.mubr.bf16.mxu0 0
      %1786 = vmatmul.mubr.bf16.gmra.mxu0 %v1705
      %v1787 = vpop.f32.mrf.mxu0
      %v1788 = vadd.f32 0.0, %v1787
      %v1789 = vpop.f32.mrf.mxu0
      %v1790 = vpop.f32.mrf.mxu0
      %v1791 = vadd.f32 0.0, %v1790
      %v1792 = vpop.f32.mrf.mxu0
      %1793 = vmatprep.mubr.bf16.mxu0 0
      %1794 = vmatmul.mubr.bf16.gmra.mxu0 %v1707
      %v1795 = vpop.f32.mrf.mxu0
      %v1796 = vadd.f32 0.0, %v1795
      %v1797 = vpop.f32.mrf.mxu0
      %v1798 = vpop.f32.mrf.mxu0
      %v1799 = vadd.f32 0.0, %v1798
      %v1800 = vpop.f32.mrf.mxu0
      %1801 = vmatprep.mubr.bf16.mxu0 0
      %1802 = vmatmul.mubr.bf16.gmra.mxu0 %v1709
      %v1803 = vpop.f32.mrf.mxu0
      %v1804 = vadd.f32 0.0, %v1803
      %v1805 = vpop.f32.mrf.mxu0
      %v1806 = vpop.f32.mrf.mxu0
      %v1807 = vadd.f32 0.0, %v1806
      %v1808 = vpop.f32.mrf.mxu0
      %1809 = vmatprep.mubr.bf16.mxu0 0
      %1810 = vmatmul.mubr.bf16.gmra.mxu0 %v1711
      %v1811 = vpop.f32.mrf.mxu0
      %v1812 = vadd.f32 0.0, %v1811
      %v1813 = vpop.f32.mrf.mxu0
      %v1814 = vpop.f32.mrf.mxu0
      %v1815 = vadd.f32 0.0, %v1814
      %v1816 = vpop.f32.mrf.mxu0
      %1817 = vmatprep.mubr.bf16.mxu0 0
      %1818 = vmatmul.mubr.bf16.gmra.mxu0 %v1713
      %v1819 = vpop.f32.mrf.mxu0
      %v1820 = vadd.f32 0.0, %v1819
      %v1821 = vpop.f32.mrf.mxu0
      %v1822 = vpop.f32.mrf.mxu0
      %v1823 = vadd.f32 0.0, %v1822
      %v1824 = vpop.f32.mrf.mxu0
      %1825 = vmatprep.mubr.bf16.mxu0 0
      %1826 = vmatmul.mubr.bf16.gmra.mxu0 %v1715
      %v1827 = vpop.f32.mrf.mxu0
      %v1828 = vadd.f32 0.0, %v1827
      %v1829 = vpop.f32.mrf.mxu0
      %v1830 = vpop.f32.mrf.mxu0
      %v1831 = vadd.f32 0.0, %v1830
      %v1832 = vpop.f32.mrf.mxu0
      %1833 = vmatprep.mubr.bf16.mxu0 0
      %1834 = vmatmul.mubr.bf16.gmra.mxu0 %v1717
      %v1835 = vpop.f32.mrf.mxu0
      %v1836 = vadd.f32 0.0, %v1835
      %v1837 = vpop.f32.mrf.mxu0
      %v1838 = vpop.f32.mrf.mxu0
      %v1839 = vadd.f32 0.0, %v1838
      %v1840 = vpop.f32.mrf.mxu0
      %1841 = vmatprep.mubr.bf16.mxu0 0
      %1842 = vmatmul.mubr.bf16.gmra.mxu0 %v1719
      %v1843 = vpop.f32.mrf.mxu0
      %v1844 = vadd.f32 0.0, %v1843
      %v1845 = vpop.f32.mrf.mxu0
      %v1846 = vpop.f32.mrf.mxu0
      %v1847 = vadd.f32 0.0, %v1846
      %v1848 = vpop.f32.mrf.mxu0
      %1849 = vmatprep.mubr.bf16.mxu0 0
      %1850 = vmatmul.mubr.bf16.gmra.mxu0 %v1721
      %v1851 = vpop.f32.mrf.mxu0
      %v1852 = vadd.f32 0.0, %v1851
      %v1853 = vpop.f32.mrf.mxu0
      %v1854 = vpop.f32.mrf.mxu0
      %v1855 = vadd.f32 0.0, %v1854
      %v1856 = vpop.f32.mrf.mxu0
      %1857 = vmatprep.mubr.bf16.mxu0 0
      %1858 = vmatmul.mubr.bf16.gmra.mxu0 %v1723
      %v1859 = vpop.f32.mrf.mxu0
      %v1860 = vadd.f32 0.0, %v1859
      %v1861 = vpop.f32.mrf.mxu0
      %v1862 = vpop.f32.mrf.mxu0
      %v1863 = vadd.f32 0.0, %v1862
      %v1864 = vpop.f32.mrf.mxu0
      %1865 = vmatprep.mubr.bf16.mxu0 0
      %1866 = vmatmul.mubr.bf16.gmra.mxu0 %v1725
      %v1867 = vpop.f32.mrf.mxu0
      %v1868 = vadd.f32 0.0, %v1867
      %v1869 = vpop.f32.mrf.mxu0
      %v1870 = vpop.f32.mrf.mxu0
      %v1871 = vadd.f32 0.0, %v1870
      %v1872 = vpop.f32.mrf.mxu0
      %1873 = vmatprep.mubr.bf16.mxu0 0
      %1874 = vmatmul.mubr.bf16.gmra.mxu0 %v1727
      %v1875 = vpop.f32.mrf.mxu0
      %v1876 = vadd.f32 0.0, %v1875
      %v1877 = vpop.f32.mrf.mxu0
      %v1878 = vpop.f32.mrf.mxu0
      %v1879 = vadd.f32 0.0, %v1878
      %v1880 = vpop.f32.mrf.mxu0
      %1881 = vmatprep.mubr.bf16.mxu0 0
      %1882 = vmatmul.mubr.bf16.gmra.mxu0 %v1729
      %v1883 = vpop.f32.mrf.mxu0
      %v1884 = vadd.f32 0.0, %v1883
      %v1885 = vpop.f32.mrf.mxu0
      %v1886 = vpop.f32.mrf.mxu0
      %v1887 = vadd.f32 0.0, %v1886
      %v1888 = vpop.f32.mrf.mxu0
      %1889 = vmatprep.mubr.bf16.mxu0 0
      %1890 = vmatmul.mubr.bf16.gmra.mxu0 %v1731
      %v1891 = vpop.f32.mrf.mxu0
      %v1892 = vadd.f32 0.0, %v1891
      %v1893 = vpop.f32.mrf.mxu0
      %v1894 = vpop.f32.mrf.mxu0
      %v1895 = vadd.f32 0.0, %v1894
      %v1896 = vpop.f32.mrf.mxu0
      %1897 = vdwg.mxu0
      %v1900 = vunpack.c.l.b16 %v1690
      %v1901 = vunpack.c.l.b16 %v1691
      %v1902 = vpack.c.b16 %v1901, %v1900
      %v1903 = vsel %vm1700, %v1655, 0
      %v1906 = vsel %vm1733, %v1902, 0
      %1908 = vmatprep.subr.bf16.mxu0 0
      %1909 = vmatpush1.bf16.msra.mxu0 0
      %1910 = vmatprep.subr.bf16.mxu0 0
      %1911 = vmatpush1.bf16.msra.mxu0 0
      %1912 = vmatprep.subr.bf16.mxu0 0
      %1913 = vmatpush1.bf16.msra.mxu0 0
      %1914 = vmatprep.subr.bf16.mxu0 0
      %1915 = vmatpush1.bf16.msra.mxu0 0
      %1916 = vmatprep.subr.bf16.mxu0 0
      %1917 = vmatpush1.bf16.msra.mxu0 0
      %1918 = vmatprep.subr.bf16.mxu0 0
      %1919 = vmatpush1.bf16.msra.mxu0 0
      %1920 = vmatprep.subr.bf16.mxu0 0
      %1921 = vmatpush1.bf16.msra.mxu0 0
      %1922 = vmatprep.subr.bf16.mxu0 0
      %1923 = vmatpush1.bf16.msra.mxu0 %v1906
      %1924 = vmatprep.subr.bf16.mxu0 0
      %1925 = vmatpush2.bf16.msra.mxu0 0
      %1926 = vmatprep.subr.bf16.mxu0 0
      %1927 = vmatpush2.bf16.msra.mxu0 0
      %1928 = vmatprep.subr.bf16.mxu0 0
      %1929 = vmatpush2.bf16.msra.mxu0 0
      %1930 = vmatprep.subr.bf16.mxu0 0
      %1931 = vmatpush2.bf16.msra.mxu0 0
      %1932 = vmatprep.subr.bf16.mxu0 0
      %1933 = vmatpush2.bf16.msra.mxu0 0
      %1934 = vmatprep.subr.bf16.mxu0 0
      %1935 = vmatpush2.bf16.msra.mxu0 0
      %1936 = vmatprep.subr.bf16.mxu0 0
      %1937 = vmatpush2.bf16.msra.mxu0 0
      %1938 = vmatprep.subr.bf16.mxu0 0
      %1939 = vmatpush2.bf16.msra.mxu0 0
      %1940 = vmatprep.mubr.bf16.mxu0 0
      %1941 = vmatmul.mubr.bf16.gmra.mxu0 %v1903
      %v1942 = vpop.f32.mrf.mxu0
      %v1943 = vadd.f32 %v1772, %v1942
      %v1944 = vpop.f32.mrf.mxu0
      %v1945 = vpop.f32.mrf.mxu0
      %v1946 = vadd.f32 %v1775, %v1945
      %v1947 = vpop.f32.mrf.mxu0
      %1948 = vmatprep.mubr.bf16.mxu0 0
      %1949 = vmatmul.mubr.bf16.gmra.mxu0 %v1701
      %v1950 = vpop.f32.mrf.mxu0
      %v1951 = vadd.f32 %v1780, %v1950
      %v1952 = vpop.f32.mrf.mxu0
      %v1953 = vpop.f32.mrf.mxu0
      %v1954 = vadd.f32 %v1783, %v1953
      %v1955 = vpop.f32.mrf.mxu0
      %1956 = vmatprep.mubr.bf16.mxu0 0
      %1957 = vmatmul.mubr.bf16.gmra.mxu0 %v1703
      %v1958 = vpop.f32.mrf.mxu0
      %v1959 = vadd.f32 %v1788, %v1958
      %v1960 = vpop.f32.mrf.mxu0
      %v1961 = vpop.f32.mrf.mxu0
      %v1962 = vadd.f32 %v1791, %v1961
      %v1963 = vpop.f32.mrf.mxu0
      %1964 = vmatprep.mubr.bf16.mxu0 0
      %1965 = vmatmul.mubr.bf16.gmra.mxu0 %v1705
      %v1966 = vpop.f32.mrf.mxu0
      %v1967 = vadd.f32 %v1796, %v1966
      %v1968 = vpop.f32.mrf.mxu0
      %v1969 = vpop.f32.mrf.mxu0
      %v1970 = vadd.f32 %v1799, %v1969
      %v1971 = vpop.f32.mrf.mxu0
      %1972 = vmatprep.mubr.bf16.mxu0 0
      %1973 = vmatmul.mubr.bf16.gmra.mxu0 %v1707
      %v1974 = vpop.f32.mrf.mxu0
      %v1975 = vadd.f32 %v1804, %v1974
      %v1976 = vpop.f32.mrf.mxu0
      %v1977 = vpop.f32.mrf.mxu0
      %v1978 = vadd.f32 %v1807, %v1977
      %v1979 = vpop.f32.mrf.mxu0
      %1980 = vmatprep.mubr.bf16.mxu0 0
      %1981 = vmatmul.mubr.bf16.gmra.mxu0 %v1709
      %v1982 = vpop.f32.mrf.mxu0
      %v1983 = vadd.f32 %v1812, %v1982
      %v1984 = vpop.f32.mrf.mxu0
      %v1985 = vpop.f32.mrf.mxu0
      %v1986 = vadd.f32 %v1815, %v1985
      %v1987 = vpop.f32.mrf.mxu0
      %1988 = vmatprep.mubr.bf16.mxu0 0
      %1989 = vmatmul.mubr.bf16.gmra.mxu0 %v1711
      %v1990 = vpop.f32.mrf.mxu0
      %v1991 = vadd.f32 %v1820, %v1990
      %v1992 = vpop.f32.mrf.mxu0
      %v1993 = vpop.f32.mrf.mxu0
      %v1994 = vadd.f32 %v1823, %v1993
      %v1995 = vpop.f32.mrf.mxu0
      %1996 = vmatprep.mubr.bf16.mxu0 0
      %1997 = vmatmul.mubr.bf16.gmra.mxu0 %v1713
      %v1998 = vpop.f32.mrf.mxu0
      %v1999 = vadd.f32 %v1828, %v1998
      %v2000 = vpop.f32.mrf.mxu0
      %v2001 = vpop.f32.mrf.mxu0
      %v2002 = vadd.f32 %v1831, %v2001
      %v2003 = vpop.f32.mrf.mxu0
      %2004 = vmatprep.mubr.bf16.mxu0 0
      %2005 = vmatmul.mubr.bf16.gmra.mxu0 %v1715
      %v2006 = vpop.f32.mrf.mxu0
      %v2007 = vadd.f32 %v1836, %v2006
      %v2008 = vpop.f32.mrf.mxu0
      %v2009 = vpop.f32.mrf.mxu0
      %v2010 = vadd.f32 %v1839, %v2009
      %v2011 = vpop.f32.mrf.mxu0
      %2012 = vmatprep.mubr.bf16.mxu0 0
      %2013 = vmatmul.mubr.bf16.gmra.mxu0 %v1717
      %v2014 = vpop.f32.mrf.mxu0
      %v2015 = vadd.f32 %v1844, %v2014
      %v2016 = vpop.f32.mrf.mxu0
      %v2017 = vpop.f32.mrf.mxu0
      %v2018 = vadd.f32 %v1847, %v2017
      %v2019 = vpop.f32.mrf.mxu0
      %2020 = vmatprep.mubr.bf16.mxu0 0
      %2021 = vmatmul.mubr.bf16.gmra.mxu0 %v1719
      %v2022 = vpop.f32.mrf.mxu0
      %v2023 = vadd.f32 %v1852, %v2022
      %v2024 = vpop.f32.mrf.mxu0
      %v2025 = vpop.f32.mrf.mxu0
      %v2026 = vadd.f32 %v1855, %v2025
      %v2027 = vpop.f32.mrf.mxu0
      %2028 = vmatprep.mubr.bf16.mxu0 0
      %2029 = vmatmul.mubr.bf16.gmra.mxu0 %v1721
      %v2030 = vpop.f32.mrf.mxu0
      %v2031 = vadd.f32 %v1860, %v2030
      %v2032 = vpop.f32.mrf.mxu0
      %v2033 = vpop.f32.mrf.mxu0
      %v2034 = vadd.f32 %v1863, %v2033
      %v2035 = vpop.f32.mrf.mxu0
      %2036 = vmatprep.mubr.bf16.mxu0 0
      %2037 = vmatmul.mubr.bf16.gmra.mxu0 %v1723
      %v2038 = vpop.f32.mrf.mxu0
      %v2039 = vadd.f32 %v1868, %v2038
      %v2040 = vpop.f32.mrf.mxu0
      %v2041 = vpop.f32.mrf.mxu0
      %v2042 = vadd.f32 %v1871, %v2041
      %v2043 = vpop.f32.mrf.mxu0
      %2044 = vmatprep.mubr.bf16.mxu0 0
      %2045 = vmatmul.mubr.bf16.gmra.mxu0 %v1725
      %v2046 = vpop.f32.mrf.mxu0
      %v2047 = vadd.f32 %v1876, %v2046
      %v2048 = vpop.f32.mrf.mxu0
      %v2049 = vpop.f32.mrf.mxu0
      %v2050 = vadd.f32 %v1879, %v2049
      %v2051 = vpop.f32.mrf.mxu0
      %2052 = vmatprep.mubr.bf16.mxu0 0
      %2053 = vmatmul.mubr.bf16.gmra.mxu0 %v1727
      %v2054 = vpop.f32.mrf.mxu0
      %v2055 = vadd.f32 %v1884, %v2054
      %v2056 = vpop.f32.mrf.mxu0
      %v2057 = vpop.f32.mrf.mxu0
      %v2058 = vadd.f32 %v1887, %v2057
      %v2059 = vpop.f32.mrf.mxu0
      %2060 = vmatprep.mubr.bf16.mxu0 0
      %2061 = vmatmul.mubr.bf16.gmra.mxu0 %v1729
      %v2062 = vpop.f32.mrf.mxu0
      %v2063 = vadd.f32 %v1892, %v2062
      %v2064 = vpop.f32.mrf.mxu0
      %v2065 = vpop.f32.mrf.mxu0
      %v2066 = vadd.f32 %v1895, %v2065
      %v2067 = vpop.f32.mrf.mxu0
      %2068 = vdwg.mxu0
      %s2069 = scalar_lea.vmem %s1, 16
      %v2070 = vld [vmem:[%s2069] sm:$0xf]
      %v2071 = vld [vmem:[%s2069 + $0x4] sm:$0x3]
      %v2074 = vunpack.c.l.b16 %v2070
      %v2075 = vunpack.c.l.b16 %v2071
      %v2076 = vpack.c.b16 %v2075, %v2074
      %v2077 = vsel %vm1700, %v1689, 0
      %v2080 = vsel %vm1733, %v2076, 0
      %2082 = vmatprep.subr.bf16.mxu0 0
      %2083 = vmatpush1.bf16.msra.mxu0 0
      %2084 = vmatprep.subr.bf16.mxu0 0
      %2085 = vmatpush1.bf16.msra.mxu0 0
      %2086 = vmatprep.subr.bf16.mxu0 0
      %2087 = vmatpush1.bf16.msra.mxu0 0
      %2088 = vmatprep.subr.bf16.mxu0 0
      %2089 = vmatpush1.bf16.msra.mxu0 0
      %2090 = vmatprep.subr.bf16.mxu0 0
      %2091 = vmatpush1.bf16.msra.mxu0 0
      %2092 = vmatprep.subr.bf16.mxu0 0
      %2093 = vmatpush1.bf16.msra.mxu0 0
      %2094 = vmatprep.subr.bf16.mxu0 0
      %2095 = vmatpush1.bf16.msra.mxu0 0
      %2096 = vmatprep.subr.bf16.mxu0 0
      %2097 = vmatpush1.bf16.msra.mxu0 %v2080
      %2098 = vmatprep.subr.bf16.mxu0 0
      %2099 = vmatpush2.bf16.msra.mxu0 0
      %2100 = vmatprep.subr.bf16.mxu0 0
      %2101 = vmatpush2.bf16.msra.mxu0 0
      %2102 = vmatprep.subr.bf16.mxu0 0
      %2103 = vmatpush2.bf16.msra.mxu0 0
      %2104 = vmatprep.subr.bf16.mxu0 0
      %2105 = vmatpush2.bf16.msra.mxu0 0
      %2106 = vmatprep.subr.bf16.mxu0 0
      %2107 = vmatpush2.bf16.msra.mxu0 0
      %2108 = vmatprep.subr.bf16.mxu0 0
      %2109 = vmatpush2.bf16.msra.mxu0 0
      %2110 = vmatprep.subr.bf16.mxu0 0
      %2111 = vmatpush2.bf16.msra.mxu0 0
      %2112 = vmatprep.subr.bf16.mxu0 0
      %2113 = vmatpush2.bf16.msra.mxu0 0
      %2114 = vmatprep.mubr.bf16.mxu0 0
      %2115 = vmatmul.mubr.bf16.gmra.mxu0 %v1703
      %v2116 = vpop.f32.mrf.mxu0
      %v2117 = vadd.f32 0.0, %v2116
      %v2118 = vpop.f32.mrf.mxu0
      %v2119 = vpop.f32.mrf.mxu0
      %v2120 = vadd.f32 0.0, %v2119
      %v2121 = vpop.f32.mrf.mxu0
      %2122 = vmatprep.mubr.bf16.mxu0 0
      %2123 = vmatmul.mubr.bf16.gmra.mxu0 %v1705
      %v2124 = vpop.f32.mrf.mxu0
      %v2125 = vadd.f32 0.0, %v2124
      %v2126 = vpop.f32.mrf.mxu0
      %v2127 = vpop.f32.mrf.mxu0
      %v2128 = vadd.f32 0.0, %v2127
      %v2129 = vpop.f32.mrf.mxu0
      %2130 = vmatprep.mubr.bf16.mxu0 0
      %2131 = vmatmul.mubr.bf16.gmra.mxu0 %v1707
      %v2132 = vpop.f32.mrf.mxu0
      %v2133 = vadd.f32 0.0, %v2132
      %v2134 = vpop.f32.mrf.mxu0
      %v2135 = vpop.f32.mrf.mxu0
      %v2136 = vadd.f32 0.0, %v2135
      %v2137 = vpop.f32.mrf.mxu0
      %2138 = vmatprep.mubr.bf16.mxu0 0
      %2139 = vmatmul.mubr.bf16.gmra.mxu0 %v1709
      %v2140 = vpop.f32.mrf.mxu0
      %v2141 = vadd.f32 0.0, %v2140
      %v2142 = vpop.f32.mrf.mxu0
      %v2143 = vpop.f32.mrf.mxu0
      %v2144 = vadd.f32 0.0, %v2143
      %v2145 = vpop.f32.mrf.mxu0
      %2146 = vmatprep.mubr.bf16.mxu0 0
      %2147 = vmatmul.mubr.bf16.gmra.mxu0 %v1711
      %v2148 = vpop.f32.mrf.mxu0
      %v2149 = vadd.f32 0.0, %v2148
      %v2150 = vpop.f32.mrf.mxu0
      %v2151 = vpop.f32.mrf.mxu0
      %v2152 = vadd.f32 0.0, %v2151
      %v2153 = vpop.f32.mrf.mxu0
      %2154 = vmatprep.mubr.bf16.mxu0 0
      %2155 = vmatmul.mubr.bf16.gmra.mxu0 %v1713
      %v2156 = vpop.f32.mrf.mxu0
      %v2157 = vadd.f32 0.0, %v2156
      %v2158 = vpop.f32.mrf.mxu0
      %v2159 = vpop.f32.mrf.mxu0
      %v2160 = vadd.f32 0.0, %v2159
      %v2161 = vpop.f32.mrf.mxu0
      %2162 = vmatprep.mubr.bf16.mxu0 0
      %2163 = vmatmul.mubr.bf16.gmra.mxu0 %v1715
      %v2164 = vpop.f32.mrf.mxu0
      %v2165 = vadd.f32 0.0, %v2164
      %v2166 = vpop.f32.mrf.mxu0
      %v2167 = vpop.f32.mrf.mxu0
      %v2168 = vadd.f32 0.0, %v2167
      %v2169 = vpop.f32.mrf.mxu0
      %2170 = vmatprep.mubr.bf16.mxu0 0
      %2171 = vmatmul.mubr.bf16.gmra.mxu0 %v1717
      %v2172 = vpop.f32.mrf.mxu0
      %v2173 = vadd.f32 0.0, %v2172
      %v2174 = vpop.f32.mrf.mxu0
      %v2175 = vpop.f32.mrf.mxu0
      %v2176 = vadd.f32 0.0, %v2175
      %v2177 = vpop.f32.mrf.mxu0
      %2178 = vmatprep.mubr.bf16.mxu0 0
      %2179 = vmatmul.mubr.bf16.gmra.mxu0 %v1719
      %v2180 = vpop.f32.mrf.mxu0
      %v2181 = vadd.f32 0.0, %v2180
      %v2182 = vpop.f32.mrf.mxu0
      %v2183 = vpop.f32.mrf.mxu0
      %v2184 = vadd.f32 0.0, %v2183
      %v2185 = vpop.f32.mrf.mxu0
      %2186 = vmatprep.mubr.bf16.mxu0 0
      %2187 = vmatmul.mubr.bf16.gmra.mxu0 %v1721
      %v2188 = vpop.f32.mrf.mxu0
      %v2189 = vadd.f32 0.0, %v2188
      %v2190 = vpop.f32.mrf.mxu0
      %v2191 = vpop.f32.mrf.mxu0
      %v2192 = vadd.f32 0.0, %v2191
      %v2193 = vpop.f32.mrf.mxu0
      %2194 = vmatprep.mubr.bf16.mxu0 0
      %2195 = vmatmul.mubr.bf16.gmra.mxu0 %v1723
      %v2196 = vpop.f32.mrf.mxu0
      %v2197 = vadd.f32 0.0, %v2196
      %v2198 = vpop.f32.mrf.mxu0
      %v2199 = vpop.f32.mrf.mxu0
      %v2200 = vadd.f32 0.0, %v2199
      %v2201 = vpop.f32.mrf.mxu0
      %2202 = vmatprep.mubr.bf16.mxu0 0
      %2203 = vmatmul.mubr.bf16.gmra.mxu0 %v1725
      %v2204 = vpop.f32.mrf.mxu0
      %v2205 = vadd.f32 0.0, %v2204
      %v2206 = vpop.f32.mrf.mxu0
      %v2207 = vpop.f32.mrf.mxu0
      %v2208 = vadd.f32 0.0, %v2207
      %v2209 = vpop.f32.mrf.mxu0
      %2210 = vmatprep.mubr.bf16.mxu0 0
      %2211 = vmatmul.mubr.bf16.gmra.mxu0 %v1727
      %v2212 = vpop.f32.mrf.mxu0
      %v2213 = vadd.f32 0.0, %v2212
      %v2214 = vpop.f32.mrf.mxu0
      %v2215 = vpop.f32.mrf.mxu0
      %v2216 = vadd.f32 0.0, %v2215
      %v2217 = vpop.f32.mrf.mxu0
      %2218 = vmatprep.mubr.bf16.mxu0 0
      %2219 = vmatmul.mubr.bf16.gmra.mxu0 %v1729
      %v2220 = vpop.f32.mrf.mxu0
      %v2221 = vadd.f32 0.0, %v2220
      %v2222 = vpop.f32.mrf.mxu0
      %v2223 = vpop.f32.mrf.mxu0
      %v2224 = vadd.f32 0.0, %v2223
      %v2225 = vpop.f32.mrf.mxu0
      %2226 = vmatprep.mubr.bf16.mxu0 0
      %2227 = vmatmul.mubr.bf16.gmra.mxu0 %v1731
      %v2228 = vpop.f32.mrf.mxu0
      %v2229 = vadd.f32 0.0, %v2228
      %v2230 = vpop.f32.mrf.mxu0
      %v2231 = vpop.f32.mrf.mxu0
      %v2232 = vadd.f32 0.0, %v2231
      %v2233 = vpop.f32.mrf.mxu0
      %2234 = vmatprep.mubr.bf16.mxu0 0
      %2235 = vmatmul.mubr.bf16.gmra.mxu0 %v2077
      %v2236 = vpop.f32.mrf.mxu0
      %v2237 = vadd.f32 0.0, %v2236
      %v2238 = vpop.f32.mrf.mxu0
      %v2239 = vpop.f32.mrf.mxu0
      %v2240 = vadd.f32 0.0, %v2239
      %v2241 = vpop.f32.mrf.mxu0
      %2242 = vdwg.mxu0
      %v2243 = vadd.f32 %v1943, %v2117
      %v2244 = vadd.f32 %v1946, %v2120
      %v2245 = vadd.f32 %v1951, %v2125
      %v2246 = vadd.f32 %v1954, %v2128
      %v2247 = vadd.f32 %v1959, %v2133
      %v2248 = vadd.f32 %v1962, %v2136
      %v2249 = vadd.f32 %v1967, %v2141
      %v2250 = vadd.f32 %v1970, %v2144
      %v2251 = vadd.f32 %v1975, %v2149
      %v2252 = vadd.f32 %v1978, %v2152
      %v2253 = vadd.f32 %v1983, %v2157
      %v2254 = vadd.f32 %v1986, %v2160
      %v2255 = vadd.f32 %v1991, %v2165
      %v2256 = vadd.f32 %v1994, %v2168
      %v2257 = vadd.f32 %v1999, %v2173
      %v2258 = vadd.f32 %v2002, %v2176
      %v2259 = vadd.f32 %v2007, %v2181
      %v2260 = vadd.f32 %v2010, %v2184
      %v2261 = vadd.f32 %v2015, %v2189
      %v2262 = vadd.f32 %v2018, %v2192
      %v2263 = vadd.f32 %v2023, %v2197
      %v2264 = vadd.f32 %v2026, %v2200
      %v2265 = vadd.f32 %v2031, %v2205
      %v2266 = vadd.f32 %v2034, %v2208
      %v2267 = vadd.f32 %v2039, %v2213
      %v2268 = vadd.f32 %v2042, %v2216
      %v2269 = vadd.f32 %v2047, %v2221
      %v2270 = vadd.f32 %v2050, %v2224
      %v2271 = vadd.f32 %v2055, %v2229
      %v2272 = vadd.f32 %v2058, %v2232
      %v2273 = vadd.f32 %v2063, %v2237
      %v2274 = vadd.f32 %v2066, %v2240
      %v2275 = vld [vmem:[%s2] sm:$0x1]
      %v2277 = vlaneseq
      %v2278 = vshrl.u32 %v2277, 7
      %v2279 = vsub.s32 0, %v2278
      %v2280 = vrot.slane %v2275, %v2279
      %v2282 = vadd.f32 %v2243, %v2280
      %v2283 = vadd.f32 %v2244, %v2280
      %v2284 = vadd.f32 %v2245, %v2280
      %v2285 = vadd.f32 %v2246, %v2280
      %v2286 = vadd.f32 %v2247, %v2280
      %v2287 = vadd.f32 %v2248, %v2280
      %v2288 = vadd.f32 %v2249, %v2280
      %v2289 = vadd.f32 %v2250, %v2280
      %v2290 = vadd.f32 %v2251, %v2280
      %v2291 = vadd.f32 %v2252, %v2280
      %v2292 = vadd.f32 %v2253, %v2280
      %v2293 = vadd.f32 %v2254, %v2280
      %v2294 = vadd.f32 %v2255, %v2280
      %v2295 = vadd.f32 %v2256, %v2280
      %v2296 = vadd.f32 %v2257, %v2280
      %v2297 = vadd.f32 %v2258, %v2280
      %v2298 = vadd.f32 %v2259, %v2280
      %v2299 = vadd.f32 %v2260, %v2280
      %v2300 = vadd.f32 %v2261, %v2280
      %v2301 = vadd.f32 %v2262, %v2280
      %v2302 = vadd.f32 %v2263, %v2280
      %v2303 = vadd.f32 %v2264, %v2280
      %v2304 = vadd.f32 %v2265, %v2280
      %v2305 = vadd.f32 %v2266, %v2280
      %v2306 = vadd.f32 %v2267, %v2280
      %v2307 = vadd.f32 %v2268, %v2280
      %v2308 = vadd.f32 %v2269, %v2280
      %v2309 = vadd.f32 %v2270, %v2280
      %v2310 = vadd.f32 %v2271, %v2280
      %v2311 = vadd.f32 %v2272, %v2280
      %v2312 = vadd.f32 %v2273, %v2280
      %v2313 = vadd.f32 %v2274, %v2280
      %v2314 = vsel %vm1600, %v2282, 0.0
      %v2315 = vsel %vm1600, %v2283, 0.0
      %v2316 = vadd.f32 %v2314, %v2315
      %v2317 = vsel %vm1600, %v2284, 0.0
      %v2318 = vadd.f32 %v2316, %v2317
      %v2319 = vsel %vm1600, %v2285, 0.0
      %v2320 = vadd.f32 %v2318, %v2319
      %v2321 = vsel %vm1600, %v2286, 0.0
      %v2322 = vadd.f32 %v2320, %v2321
      %v2323 = vsel %vm1600, %v2287, 0.0
      %v2324 = vadd.f32 %v2322, %v2323
      %v2325 = vsel %vm1600, %v2288, 0.0
      %v2326 = vadd.f32 %v2324, %v2325
      %v2327 = vsel %vm1600, %v2289, 0.0
      %v2328 = vadd.f32 %v2326, %v2327
      %v2329 = vsel %vm1600, %v2290, 0.0
      %v2330 = vadd.f32 %v2328, %v2329
      %v2331 = vsel %vm1600, %v2291, 0.0
      %v2332 = vadd.f32 %v2330, %v2331
      %v2333 = vsel %vm1600, %v2292, 0.0
      %v2334 = vadd.f32 %v2332, %v2333
      %v2335 = vsel %vm1600, %v2293, 0.0
      %v2336 = vadd.f32 %v2334, %v2335
      %v2337 = vsel %vm1600, %v2294, 0.0
      %v2338 = vadd.f32 %v2336, %v2337
      %v2339 = vsel %vm1600, %v2295, 0.0
      %v2340 = vadd.f32 %v2338, %v2339
      %v2341 = vsel %vm1600, %v2296, 0.0
      %v2342 = vadd.f32 %v2340, %v2341
      %v2343 = vsel %vm1600, %v2297, 0.0
      %v2344 = vadd.f32 %v2342, %v2343
      %v2345 = vsel %vm1600, %v2298, 0.0
      %v2346 = vadd.f32 %v2344, %v2345
      %v2347 = vsel %vm1600, %v2299, 0.0
      %v2348 = vadd.f32 %v2346, %v2347
      %v2349 = vsel %vm1600, %v2300, 0.0
      %v2350 = vadd.f32 %v2348, %v2349
      %v2351 = vsel %vm1600, %v2301, 0.0
      %v2352 = vadd.f32 %v2350, %v2351
      %v2353 = vsel %vm1600, %v2302, 0.0
      %v2354 = vadd.f32 %v2352, %v2353
      %v2355 = vsel %vm1600, %v2303, 0.0
      %v2356 = vadd.f32 %v2354, %v2355
      %v2357 = vsel %vm1600, %v2304, 0.0
      %v2358 = vadd.f32 %v2356, %v2357
      %v2359 = vsel %vm1600, %v2305, 0.0
      %v2360 = vadd.f32 %v2358, %v2359
      %v2361 = vsel %vm1600, %v2306, 0.0
      %v2362 = vadd.f32 %v2360, %v2361
      %v2363 = vsel %vm1600, %v2307, 0.0
      %v2364 = vadd.f32 %v2362, %v2363
      %v2365 = vsel %vm1600, %v2308, 0.0
      %v2366 = vadd.f32 %v2364, %v2365
      %v2367 = vsel %vm1600, %v2309, 0.0
      %v2368 = vadd.f32 %v2366, %v2367
      %v2369 = vsel %vm1600, %v2310, 0.0
      %v2370 = vadd.f32 %v2368, %v2369
      %v2371 = vsel %vm1600, %v2311, 0.0
      %v2372 = vadd.f32 %v2370, %v2371
      %v2373 = vsel %vm1600, %v2312, 0.0
      %v2374 = vadd.f32 %v2372, %v2373
      %v2375 = vsel %vm1600, %v2313, 0.0
      %v2376 = vadd.f32 %v2374, %v2375
      %v2377 = vrot.slane %v2376, 4
      %v2378 = vadd.f32 %v2376, %v2377
      %v2379 = vrot.slane %v2378, 2
      %v2380 = vadd.f32 %v2378, %v2379
      %v2381 = vrot.slane %v2380, 1
      %v2382 = vadd.f32 %v2380, %v2381
      %v2383 = vmul.f32 %v2382, 0.00390625
      %v2384 = vsub.f32 %v2282, %v2383
      %v2385 = vsub.f32 %v2283, %v2383
      %v2386 = vsub.f32 %v2284, %v2383
      %v2387 = vsub.f32 %v2285, %v2383
      %v2388 = vsub.f32 %v2286, %v2383
      %v2389 = vsub.f32 %v2287, %v2383
      %v2390 = vsub.f32 %v2288, %v2383
      %v2391 = vsub.f32 %v2289, %v2383
      %v2392 = vsub.f32 %v2290, %v2383
      %v2393 = vsub.f32 %v2291, %v2383
      %v2394 = vsub.f32 %v2292, %v2383
      %v2395 = vsub.f32 %v2293, %v2383
      %v2396 = vsub.f32 %v2294, %v2383
      %v2397 = vsub.f32 %v2295, %v2383
      %v2398 = vsub.f32 %v2296, %v2383
      %v2399 = vsub.f32 %v2297, %v2383
      %v2400 = vsub.f32 %v2298, %v2383
      %v2401 = vsub.f32 %v2299, %v2383
      %v2402 = vsub.f32 %v2300, %v2383
      %v2403 = vsub.f32 %v2301, %v2383
      %v2404 = vsub.f32 %v2302, %v2383
      %v2405 = vsub.f32 %v2303, %v2383
      %v2406 = vsub.f32 %v2304, %v2383
      %v2407 = vsub.f32 %v2305, %v2383
      %v2408 = vsub.f32 %v2306, %v2383
      %v2409 = vsub.f32 %v2307, %v2383
      %v2410 = vsub.f32 %v2308, %v2383
      %v2411 = vsub.f32 %v2309, %v2383
      %v2412 = vsub.f32 %v2310, %v2383
      %v2413 = vsub.f32 %v2311, %v2383
      %v2414 = vsub.f32 %v2312, %v2383
      %v2415 = vsub.f32 %v2313, %v2383
      %v2416 = vmul.f32 %v2384, %v2384
      %v2417 = vmul.f32 %v2385, %v2385
      %v2418 = vmul.f32 %v2386, %v2386
      %v2419 = vmul.f32 %v2387, %v2387
      %v2420 = vmul.f32 %v2388, %v2388
      %v2421 = vmul.f32 %v2389, %v2389
      %v2422 = vmul.f32 %v2390, %v2390
      %v2423 = vmul.f32 %v2391, %v2391
      %v2424 = vmul.f32 %v2392, %v2392
      %v2425 = vmul.f32 %v2393, %v2393
      %v2426 = vmul.f32 %v2394, %v2394
      %v2427 = vmul.f32 %v2395, %v2395
      %v2428 = vmul.f32 %v2396, %v2396
      %v2429 = vmul.f32 %v2397, %v2397
      %v2430 = vmul.f32 %v2398, %v2398
      %v2431 = vmul.f32 %v2399, %v2399
      %v2432 = vmul.f32 %v2400, %v2400
      %v2433 = vmul.f32 %v2401, %v2401
      %v2434 = vmul.f32 %v2402, %v2402
      %v2435 = vmul.f32 %v2403, %v2403
      %v2436 = vmul.f32 %v2404, %v2404
      %v2437 = vmul.f32 %v2405, %v2405
      %v2438 = vmul.f32 %v2406, %v2406
      %v2439 = vmul.f32 %v2407, %v2407
      %v2440 = vmul.f32 %v2408, %v2408
      %v2441 = vmul.f32 %v2409, %v2409
      %v2442 = vmul.f32 %v2410, %v2410
      %v2443 = vmul.f32 %v2411, %v2411
      %v2444 = vmul.f32 %v2412, %v2412
      %v2445 = vmul.f32 %v2413, %v2413
      %v2446 = vmul.f32 %v2414, %v2414
      %v2447 = vmul.f32 %v2415, %v2415
      %v2448 = vsel %vm1600, %v2416, 0.0
      %v2449 = vsel %vm1600, %v2417, 0.0
      %v2450 = vadd.f32 %v2448, %v2449
      %v2451 = vsel %vm1600, %v2418, 0.0
      %v2452 = vadd.f32 %v2450, %v2451
      %v2453 = vsel %vm1600, %v2419, 0.0
      %v2454 = vadd.f32 %v2452, %v2453
      %v2455 = vsel %vm1600, %v2420, 0.0
      %v2456 = vadd.f32 %v2454, %v2455
      %v2457 = vsel %vm1600, %v2421, 0.0
      %v2458 = vadd.f32 %v2456, %v2457
      %v2459 = vsel %vm1600, %v2422, 0.0
      %v2460 = vadd.f32 %v2458, %v2459
      %v2461 = vsel %vm1600, %v2423, 0.0
      %v2462 = vadd.f32 %v2460, %v2461
      %v2463 = vsel %vm1600, %v2424, 0.0
      %v2464 = vadd.f32 %v2462, %v2463
      %v2465 = vsel %vm1600, %v2425, 0.0
      %v2466 = vadd.f32 %v2464, %v2465
      %v2467 = vsel %vm1600, %v2426, 0.0
      %v2468 = vadd.f32 %v2466, %v2467
      %v2469 = vsel %vm1600, %v2427, 0.0
      %v2470 = vadd.f32 %v2468, %v2469
      %v2471 = vsel %vm1600, %v2428, 0.0
      %v2472 = vadd.f32 %v2470, %v2471
      %v2473 = vsel %vm1600, %v2429, 0.0
      %v2474 = vadd.f32 %v2472, %v2473
      %v2475 = vsel %vm1600, %v2430, 0.0
      %v2476 = vadd.f32 %v2474, %v2475
      %v2477 = vsel %vm1600, %v2431, 0.0
      %v2478 = vadd.f32 %v2476, %v2477
      %v2479 = vsel %vm1600, %v2432, 0.0
      %v2480 = vadd.f32 %v2478, %v2479
      %v2481 = vsel %vm1600, %v2433, 0.0
      %v2482 = vadd.f32 %v2480, %v2481
      %v2483 = vsel %vm1600, %v2434, 0.0
      %v2484 = vadd.f32 %v2482, %v2483
      %v2485 = vsel %vm1600, %v2435, 0.0
      %v2486 = vadd.f32 %v2484, %v2485
      %v2487 = vsel %vm1600, %v2436, 0.0
      %v2488 = vadd.f32 %v2486, %v2487
      %v2489 = vsel %vm1600, %v2437, 0.0
      %v2490 = vadd.f32 %v2488, %v2489
      %v2491 = vsel %vm1600, %v2438, 0.0
      %v2492 = vadd.f32 %v2490, %v2491
      %v2493 = vsel %vm1600, %v2439, 0.0
      %v2494 = vadd.f32 %v2492, %v2493
      %v2495 = vsel %vm1600, %v2440, 0.0
      %v2496 = vadd.f32 %v2494, %v2495
      %v2497 = vsel %vm1600, %v2441, 0.0
      %v2498 = vadd.f32 %v2496, %v2497
      %v2499 = vsel %vm1600, %v2442, 0.0
      %v2500 = vadd.f32 %v2498, %v2499
      %v2501 = vsel %vm1600, %v2443, 0.0
      %v2502 = vadd.f32 %v2500, %v2501
      %v2503 = vsel %vm1600, %v2444, 0.0
      %v2504 = vadd.f32 %v2502, %v2503
      %v2505 = vsel %vm1600, %v2445, 0.0
      %v2506 = vadd.f32 %v2504, %v2505
      %v2507 = vsel %vm1600, %v2446, 0.0
      %v2508 = vadd.f32 %v2506, %v2507
      %v2509 = vsel %vm1600, %v2447, 0.0
      %v2510 = vadd.f32 %v2508, %v2509
      %v2511 = vrot.slane %v2510, 4
      %v2512 = vadd.f32 %v2510, %v2511
      %v2513 = vrot.slane %v2512, 2
      %v2514 = vadd.f32 %v2512, %v2513
      %v2515 = vrot.slane %v2514, 1
      %v2516 = vadd.f32 %v2514, %v2515
      %v2517 = vmul.f32 %v2516, 0.00390625
      %v2518 = vadd.f32 %v2517, 1e-05
      %v2519 = vrsqrt.pop %v2518
      %v2520 = vmul.f32 %v2384, %v2519
      %v2521 = vmul.f32 %v2385, %v2519
      %v2522 = vmul.f32 %v2386, %v2519
      %v2523 = vmul.f32 %v2387, %v2519
      %v2524 = vmul.f32 %v2388, %v2519
      %v2525 = vmul.f32 %v2389, %v2519
      %v2526 = vmul.f32 %v2390, %v2519
      %v2527 = vmul.f32 %v2391, %v2519
      %v2528 = vmul.f32 %v2392, %v2519
      %v2529 = vmul.f32 %v2393, %v2519
      %v2530 = vmul.f32 %v2394, %v2519
      %v2531 = vmul.f32 %v2395, %v2519
      %v2532 = vmul.f32 %v2396, %v2519
      %v2533 = vmul.f32 %v2397, %v2519
      %v2534 = vmul.f32 %v2398, %v2519
      %v2535 = vmul.f32 %v2399, %v2519
      %v2536 = vmul.f32 %v2400, %v2519
      %v2537 = vmul.f32 %v2401, %v2519
      %v2538 = vmul.f32 %v2402, %v2519
      %v2539 = vmul.f32 %v2403, %v2519
      %v2540 = vmul.f32 %v2404, %v2519
      %v2541 = vmul.f32 %v2405, %v2519
      %v2542 = vmul.f32 %v2406, %v2519
      %v2543 = vmul.f32 %v2407, %v2519
      %v2544 = vmul.f32 %v2408, %v2519
      %v2545 = vmul.f32 %v2409, %v2519
      %v2546 = vmul.f32 %v2410, %v2519
      %v2547 = vmul.f32 %v2411, %v2519
      %v2548 = vmul.f32 %v2412, %v2519
      %v2549 = vmul.f32 %v2413, %v2519
      %v2550 = vmul.f32 %v2414, %v2519
      %v2551 = vmul.f32 %v2415, %v2519
      %vm2552 = vcmp.ge.f32.partialorder %v2520, 0.0
      %vm2553 = vcmp.ge.f32.partialorder %v2521, 0.0
      %vm2554 = vcmp.ge.f32.partialorder %v2522, 0.0
      %vm2555 = vcmp.ge.f32.partialorder %v2523, 0.0
      %vm2556 = vcmp.ge.f32.partialorder %v2524, 0.0
      %vm2557 = vcmp.ge.f32.partialorder %v2525, 0.0
      %vm2558 = vcmp.ge.f32.partialorder %v2526, 0.0
      %vm2559 = vcmp.ge.f32.partialorder %v2527, 0.0
      %vm2560 = vcmp.ge.f32.partialorder %v2528, 0.0
      %vm2561 = vcmp.ge.f32.partialorder %v2529, 0.0
      %vm2562 = vcmp.ge.f32.partialorder %v2530, 0.0
      %vm2563 = vcmp.ge.f32.partialorder %v2531, 0.0
      %vm2564 = vcmp.ge.f32.partialorder %v2532, 0.0
      %vm2565 = vcmp.ge.f32.partialorder %v2533, 0.0
      %vm2566 = vcmp.ge.f32.partialorder %v2534, 0.0
      %vm2567 = vcmp.ge.f32.partialorder %v2535, 0.0
      %vm2568 = vcmp.ge.f32.partialorder %v2536, 0.0
      %vm2569 = vcmp.ge.f32.partialorder %v2537, 0.0
      %vm2570 = vcmp.ge.f32.partialorder %v2538, 0.0
      %vm2571 = vcmp.ge.f32.partialorder %v2539, 0.0
      %vm2572 = vcmp.ge.f32.partialorder %v2540, 0.0
      %vm2573 = vcmp.ge.f32.partialorder %v2541, 0.0
      %vm2574 = vcmp.ge.f32.partialorder %v2542, 0.0
      %vm2575 = vcmp.ge.f32.partialorder %v2543, 0.0
      %vm2576 = vcmp.ge.f32.partialorder %v2544, 0.0
      %vm2577 = vcmp.ge.f32.partialorder %v2545, 0.0
      %vm2578 = vcmp.ge.f32.partialorder %v2546, 0.0
      %vm2579 = vcmp.ge.f32.partialorder %v2547, 0.0
      %vm2580 = vcmp.ge.f32.partialorder %v2548, 0.0
      %vm2581 = vcmp.ge.f32.partialorder %v2549, 0.0
      %vm2582 = vcmp.ge.f32.partialorder %v2550, 0.0
      %vm2583 = vcmp.ge.f32.partialorder %v2551, 0.0
      %v2584 = vmul.f32 %v2520, 0.2
      %v2585 = vmul.f32 %v2521, 0.2
      %v2586 = vmul.f32 %v2522, 0.2
      %v2587 = vmul.f32 %v2523, 0.2
      %v2588 = vmul.f32 %v2524, 0.2
      %v2589 = vmul.f32 %v2525, 0.2
      %v2590 = vmul.f32 %v2526, 0.2
      %v2591 = vmul.f32 %v2527, 0.2
      %v2592 = vmul.f32 %v2528, 0.2
      %v2593 = vmul.f32 %v2529, 0.2
      %v2594 = vmul.f32 %v2530, 0.2
      %v2595 = vmul.f32 %v2531, 0.2
      %v2596 = vmul.f32 %v2532, 0.2
      %v2597 = vmul.f32 %v2533, 0.2
      %v2598 = vmul.f32 %v2534, 0.2
      %v2599 = vmul.f32 %v2535, 0.2
      %v2600 = vmul.f32 %v2536, 0.2
      %v2601 = vmul.f32 %v2537, 0.2
      %v2602 = vmul.f32 %v2538, 0.2
      %v2603 = vmul.f32 %v2539, 0.2
      %v2604 = vmul.f32 %v2540, 0.2
      %v2605 = vmul.f32 %v2541, 0.2
      %v2606 = vmul.f32 %v2542, 0.2
      %v2607 = vmul.f32 %v2543, 0.2
      %v2608 = vmul.f32 %v2544, 0.2
      %v2609 = vmul.f32 %v2545, 0.2
      %v2610 = vmul.f32 %v2546, 0.2
      %v2611 = vmul.f32 %v2547, 0.2
      %v2612 = vmul.f32 %v2548, 0.2
      %v2613 = vmul.f32 %v2549, 0.2
      %v2614 = vmul.f32 %v2550, 0.2
      %v2615 = vmul.f32 %v2551, 0.2
      %v2616 = vsel %vm2552, %v2520, %v2584
      %v2617 = vsel %vm2553, %v2521, %v2585
      %v2618 = vsel %vm2554, %v2522, %v2586
      %v2619 = vsel %vm2555, %v2523, %v2587
      %v2620 = vsel %vm2556, %v2524, %v2588
      %v2621 = vsel %vm2557, %v2525, %v2589
      %v2622 = vsel %vm2558, %v2526, %v2590
      %v2623 = vsel %vm2559, %v2527, %v2591
      %v2624 = vsel %vm2560, %v2528, %v2592
      %v2625 = vsel %vm2561, %v2529, %v2593
      %v2626 = vsel %vm2562, %v2530, %v2594
      %v2627 = vsel %vm2563, %v2531, %v2595
      %v2628 = vsel %vm2564, %v2532, %v2596
      %v2629 = vsel %vm2565, %v2533, %v2597
      %v2630 = vsel %vm2566, %v2534, %v2598
      %v2631 = vsel %vm2567, %v2535, %v2599
      %v2632 = vsel %vm2568, %v2536, %v2600
      %v2633 = vsel %vm2569, %v2537, %v2601
      %v2634 = vsel %vm2570, %v2538, %v2602
      %v2635 = vsel %vm2571, %v2539, %v2603
      %v2636 = vsel %vm2572, %v2540, %v2604
      %v2637 = vsel %vm2573, %v2541, %v2605
      %v2638 = vsel %vm2574, %v2542, %v2606
      %v2639 = vsel %vm2575, %v2543, %v2607
      %v2640 = vsel %vm2576, %v2544, %v2608
      %v2641 = vsel %vm2577, %v2545, %v2609
      %v2642 = vsel %vm2578, %v2546, %v2610
      %v2643 = vsel %vm2579, %v2547, %v2611
      %v2644 = vsel %vm2580, %v2548, %v2612
      %v2645 = vsel %vm2581, %v2549, %v2613
      %v2646 = vsel %vm2582, %v2550, %v2614
      %v2647 = vsel %vm2583, %v2551, %v2615
      %v2648 = vrot.slane %v2618, 7
      %v2649 = vrot.slane %v2619, 7
      %v2650 = vrot.slane %v2616, 7
      %v2651 = vrot.slane %v2617, 7
      %v2652 = vrot.slane %v2620, 7
      %v2653 = vrot.slane %v2621, 7
      %v2654 = vrot.slane %v2622, 7
      %v2655 = vrot.slane %v2623, 7
      %v2656 = vrot.slane %v2624, 7
      %v2657 = vrot.slane %v2625, 7
      %v2658 = vrot.slane %v2626, 7
      %v2659 = vrot.slane %v2627, 7
      %v2660 = vrot.slane %v2628, 7
      %v2661 = vrot.slane %v2629, 7
      %v2662 = vrot.slane %v2630, 7
      %v2663 = vrot.slane %v2631, 7
      %v2664 = vrot.slane %v2632, 7
      %v2665 = vrot.slane %v2633, 7
      %v2666 = vrot.slane %v2634, 7
      %v2667 = vrot.slane %v2635, 7
      %v2668 = vrot.slane %v2636, 7
      %v2669 = vrot.slane %v2637, 7
      %v2670 = vrot.slane %v2638, 7
      %v2671 = vrot.slane %v2639, 7
      %v2672 = vrot.slane %v2640, 7
      %v2673 = vrot.slane %v2641, 7
      %v2674 = vrot.slane %v2642, 7
      %v2675 = vrot.slane %v2643, 7
      %v2676 = vrot.slane %v2644, 7
      %v2677 = vrot.slane %v2645, 7
      %v2678 = vrot.slane %v2646, 7
      %v2679 = vrot.slane %v2647, 7
      %v2680 = vsel %vm912, %v2676, %v2677
      %v2681 = vsel %vm912, %v2679, %v2676
      %v2682 = vsel %vm912, %v2678, %v2679
      %v2683 = vsel %vm912, %v2677, %v2678
      %v2684 = vsel %vm912, %v2675, %v2676
      %v2685 = vsel %vm912, %v2674, %v2675
      %v2686 = vsel %vm912, %v2673, %v2674
      %v2687 = vsel %vm912, %v2672, %v2673
      %v2688 = vsel %vm912, %v2671, %v2672
      %v2689 = vsel %vm912, %v2670, %v2671
      %v2690 = vsel %vm912, %v2669, %v2670
      %v2691 = vsel %vm912, %v2668, %v2669
      %v2692 = vsel %vm912, %v2667, %v2668
      %v2693 = vsel %vm912, %v2666, %v2667
      %v2694 = vsel %vm912, %v2665, %v2666
      %v2695 = vsel %vm912, %v2664, %v2665
      %v2696 = vsel %vm912, %v2663, %v2664
      %v2697 = vsel %vm912, %v2662, %v2663
      %v2698 = vsel %vm912, %v2661, %v2662
      %v2699 = vsel %vm912, %v2660, %v2661
      %v2700 = vsel %vm912, %v2659, %v2660
      %v2701 = vsel %vm912, %v2658, %v2659
      %v2702 = vsel %vm912, %v2657, %v2658
      %v2703 = vsel %vm912, %v2656, %v2657
      %v2704 = vsel %vm912, %v2655, %v2656
      %v2705 = vsel %vm912, %v2654, %v2655
      %v2706 = vsel %vm912, %v2653, %v2654
      %v2707 = vsel %vm912, %v2652, %v2653
      %v2708 = vsel %vm912, %v2649, %v2652
      %v2709 = vsel %vm912, %v2648, %v2649
      %v2710 = vsel %vm912, %v2651, %v2648
      %v2711 = vsel %vm912, %v2650, %v2651
      %v2712 = vsel %vm912, %v2649, %v2650
      %v2713 = vsel %vm912, %v2677, %v2648
      %v2714 = vrot.slane %v2618, 1
      %v2715 = vrot.slane %v2619, 1
      %v2716 = vrot.slane %v2616, 1
      %v2717 = vrot.slane %v2617, 1
      %v2718 = vrot.slane %v2620, 1
      %v2719 = vrot.slane %v2621, 1
      %v2720 = vrot.slane %v2622, 1
      %v2721 = vrot.slane %v2623, 1
      %v2722 = vrot.slane %v2624, 1
      %v2723 = vrot.slane %v2625, 1
      %v2724 = vrot.slane %v2626, 1
      %v2725 = vrot.slane %v2627, 1
      %v2726 = vrot.slane %v2628, 1
      %v2727 = vrot.slane %v2629, 1
      %v2728 = vrot.slane %v2630, 1
      %v2729 = vrot.slane %v2631, 1
      %v2730 = vrot.slane %v2632, 1
      %v2731 = vrot.slane %v2633, 1
      %v2732 = vrot.slane %v2634, 1
      %v2733 = vrot.slane %v2635, 1
      %v2734 = vrot.slane %v2636, 1
      %v2735 = vrot.slane %v2637, 1
      %v2736 = vrot.slane %v2638, 1
      %v2737 = vrot.slane %v2639, 1
      %v2738 = vrot.slane %v2640, 1
      %v2739 = vrot.slane %v2641, 1
      %v2740 = vrot.slane %v2642, 1
      %v2741 = vrot.slane %v2643, 1
      %v2742 = vrot.slane %v2644, 1
      %v2743 = vrot.slane %v2645, 1
      %v2744 = vrot.slane %v2646, 1
      %v2745 = vrot.slane %v2647, 1
      %v2746 = vsel %vm979, %v2742, %v2743
      %v2747 = vsel %vm979, %v2745, %v2742
      %v2748 = vsel %vm979, %v2744, %v2745
      %v2749 = vsel %vm979, %v2743, %v2744
      %v2750 = vsel %vm979, %v2741, %v2742
      %v2751 = vsel %vm979, %v2740, %v2741
      %v2752 = vsel %vm979, %v2739, %v2740
      %v2753 = vsel %vm979, %v2738, %v2739
      %v2754 = vsel %vm979, %v2737, %v2738
      %v2755 = vsel %vm979, %v2736, %v2737
      %v2756 = vsel %vm979, %v2735, %v2736
      %v2757 = vsel %vm979, %v2734, %v2735
      %v2758 = vsel %vm979, %v2733, %v2734
      %v2759 = vsel %vm979, %v2732, %v2733
      %v2760 = vsel %vm979, %v2731, %v2732
      %v2761 = vsel %vm979, %v2730, %v2731
      %v2762 = vsel %vm979, %v2729, %v2730
      %v2763 = vsel %vm979, %v2728, %v2729
      %v2764 = vsel %vm979, %v2727, %v2728
      %v2765 = vsel %vm979, %v2726, %v2727
      %v2766 = vsel %vm979, %v2725, %v2726
      %v2767 = vsel %vm979, %v2724, %v2725
      %v2768 = vsel %vm979, %v2723, %v2724
      %v2769 = vsel %vm979, %v2722, %v2723
      %v2770 = vsel %vm979, %v2721, %v2722
      %v2771 = vsel %vm979, %v2720, %v2721
      %v2772 = vsel %vm979, %v2719, %v2720
      %v2773 = vsel %vm979, %v2718, %v2719
      %v2774 = vsel %vm979, %v2715, %v2718
      %v2775 = vsel %vm979, %v2714, %v2715
      %v2776 = vsel %vm979, %v2717, %v2714
      %v2777 = vsel %vm979, %v2716, %v2717
      %v2778 = vsel %vm979, %v2715, %v2716
      %v2779 = vsel %vm979, %v2743, %v2714
      %v2780 = vsel %vm1158, %v2775, %v2713
      %v2781 = vsel %vm1159, %v2778, %v2709
      %v2782 = vsel %vm1160, %v2777, %v2712
      %v2783 = vsel %vm1161, %v2776, %v2711
      %v2784 = vsel %vm1162, %v2775, %v2710
      %v2785 = vsel %vm1163, %v2774, %v2709
      %v2786 = vsel %vm1164, %v2773, %v2708
      %v2787 = vsel %vm1165, %v2772, %v2707
      %v2788 = vsel %vm1166, %v2771, %v2706
      %v2789 = vsel %vm1167, %v2770, %v2705
      %v2790 = vsel %vm1168, %v2769, %v2704
      %v2791 = vsel %vm1169, %v2768, %v2703
      %v2792 = vsel %vm1170, %v2767, %v2702
      %v2793 = vsel %vm1171, %v2766, %v2701
      %v2794 = vsel %vm1172, %v2765, %v2700
      %v2795 = vsel %vm1173, %v2764, %v2699
      %v2796 = vsel %vm1174, %v2763, %v2698
      %v2797 = vsel %vm1175, %v2762, %v2697
      %v2798 = vsel %vm1176, %v2761, %v2696
      %v2799 = vsel %vm1177, %v2760, %v2695
      %v2800 = vsel %vm1178, %v2759, %v2694
      %v2801 = vsel %vm1179, %v2758, %v2693
      %v2802 = vsel %vm1180, %v2757, %v2692
      %v2803 = vsel %vm1181, %v2756, %v2691
      %v2804 = vsel %vm1182, %v2755, %v2690
      %v2805 = vsel %vm1183, %v2754, %v2689
      %v2806 = vsel %vm1184, %v2753, %v2688
      %v2807 = vsel %vm1185, %v2752, %v2687
      %v2808 = vsel %vm1186, %v2751, %v2686
      %v2809 = vsel %vm1187, %v2750, %v2685
      %v2810 = vsel %vm1188, %v2746, %v2684
      %v2811 = vsel %vm1189, %v2749, %v2680
      %v2812 = vsel %vm1190, %v2748, %v2683
      %v2813 = vsel %vm1191, %v2747, %v2682
      %v2814 = vsel %vm1192, %v2746, %v2681
      %v2815 = vsel %vm1193, %v2779, %v2680
      %v2816 = vpack.c.bf16 %v2781, %v2780
      %v2817 = vpack.c.bf16 %v2783, %v2782
      %v2818 = vpack.c.bf16 %v2785, %v2784
      %v2819 = vpack.c.bf16 %v2787, %v2786
      %v2820 = vpack.c.bf16 %v2789, %v2788
      %v2821 = vpack.c.bf16 %v2791, %v2790
      %v2822 = vpack.c.bf16 %v2793, %v2792
      %v2823 = vpack.c.bf16 %v2795, %v2794
      %v2824 = vpack.c.bf16 %v2797, %v2796
      %v2825 = vpack.c.bf16 %v2799, %v2798
      %v2826 = vpack.c.bf16 %v2801, %v2800
      %v2827 = vpack.c.bf16 %v2803, %v2802
      %v2828 = vpack.c.bf16 %v2805, %v2804
      %v2829 = vpack.c.bf16 %v2807, %v2806
      %v2830 = vpack.c.bf16 %v2809, %v2808
      %v2831 = vpack.c.bf16 %v2811, %v2810
      %v2832 = vpack.c.bf16 %v2813, %v2812
      %v2833 = vpack.c.bf16 %v2815, %v2814
      %v2834 = vsel %vm1392, %v2713, %v2775
      %v2835 = vsel %vm1393, %v2709, %v2778
      %v2836 = vsel %vm1394, %v2712, %v2777
      %v2837 = vsel %vm1395, %v2711, %v2776
      %v2838 = vsel %vm1396, %v2710, %v2775
      %v2839 = vsel %vm1397, %v2709, %v2774
      %v2840 = vsel %vm1398, %v2708, %v2773
      %v2841 = vsel %vm1399, %v2707, %v2772
      %v2842 = vsel %vm1400, %v2706, %v2771
      %v2843 = vsel %vm1401, %v2705, %v2770
      %v2844 = vsel %vm1402, %v2704, %v2769
      %v2845 = vsel %vm1403, %v2703, %v2768
      %v2846 = vsel %vm1404, %v2702, %v2767
      %v2847 = vsel %vm1405, %v2701, %v2766
      %v2848 = vsel %vm1406, %v2700, %v2765
      %v2849 = vsel %vm1407, %v2699, %v2764
      %v2850 = vsel %vm1408, %v2698, %v2763
      %v2851 = vsel %vm1409, %v2697, %v2762
      %v2852 = vsel %vm1410, %v2696, %v2761
      %v2853 = vsel %vm1411, %v2695, %v2760
      %v2854 = vsel %vm1412, %v2694, %v2759
      %v2855 = vsel %vm1413, %v2693, %v2758
      %v2856 = vsel %vm1414, %v2692, %v2757
      %v2857 = vsel %vm1415, %v2691, %v2756
      %v2858 = vsel %vm1416, %v2690, %v2755
      %v2859 = vsel %vm1417, %v2689, %v2754
      %v2860 = vsel %vm1418, %v2688, %v2753
      %v2861 = vsel %vm1419, %v2687, %v2752
      %v2862 = vsel %vm1420, %v2686, %v2751
      %v2863 = vsel %vm1421, %v2685, %v2750
      %v2864 = vsel %vm1422, %v2684, %v2746
      %v2865 = vsel %vm1423, %v2680, %v2749
      %v2866 = vsel %vm1424, %v2683, %v2748
      %v2867 = vsel %vm1425, %v2682, %v2747
      %v2868 = vsel %vm1426, %v2681, %v2746
      %v2869 = vsel %vm1427, %v2680, %v2779
      %v2870 = vpack.c.bf16 %v2835, %v2834
      %v2871 = vpack.c.bf16 %v2837, %v2836
      %v2872 = vpack.c.bf16 %v2839, %v2838
      %v2873 = vpack.c.bf16 %v2841, %v2840
      %v2874 = vpack.c.bf16 %v2843, %v2842
      %v2875 = vpack.c.bf16 %v2845, %v2844
      %v2876 = vpack.c.bf16 %v2847, %v2846
      %v2877 = vpack.c.bf16 %v2849, %v2848
      %v2878 = vpack.c.bf16 %v2851, %v2850
      %v2879 = vpack.c.bf16 %v2853, %v2852
      %v2880 = vpack.c.bf16 %v2855, %v2854
      %v2881 = vpack.c.bf16 %v2857, %v2856
      %v2882 = vpack.c.bf16 %v2859, %v2858
      %v2883 = vpack.c.bf16 %v2861, %v2860
      %v2884 = vpack.c.bf16 %v2863, %v2862
      %v2885 = vpack.c.bf16 %v2865, %v2864
      %v2886 = vpack.c.bf16 %v2867, %v2866
      %v2887 = vpack.c.bf16 %v2869, %v2868
      %v2888 = vpack.c.bf16 %v2619, %v2618
      %v2889 = vpack.c.bf16 %v2617, %v2616
      %v2890 = vpack.c.bf16 %v2621, %v2620
      %v2891 = vpack.c.bf16 %v2623, %v2622
      %v2892 = vpack.c.bf16 %v2625, %v2624
      %v2893 = vpack.c.bf16 %v2627, %v2626
      %v2894 = vpack.c.bf16 %v2629, %v2628
      %v2895 = vpack.c.bf16 %v2631, %v2630
      %v2896 = vpack.c.bf16 %v2633, %v2632
      %v2897 = vpack.c.bf16 %v2635, %v2634
      %v2898 = vpack.c.bf16 %v2637, %v2636
      %v2899 = vpack.c.bf16 %v2639, %v2638
      %v2900 = vpack.c.bf16 %v2641, %v2640
      %v2901 = vpack.c.bf16 %v2643, %v2642
      %v2902 = vpack.c.bf16 %v2645, %v2644
      %v2903 = vpack.c.bf16 %v2647, %v2646
      %2920 = vrot.lane.b32.xlu0 %v2888, 4
      %v2921 = vpop.permute.xlu0 %2920
      %2922 = vrot.lane.b32.xlu0 %v2889, 4
      %v2923 = vpop.permute.xlu0 %2922
      %2924 = vrot.lane.b32.xlu0 %v2890, 4
      %v2925 = vpop.permute.xlu0 %2924
      %2926 = vrot.lane.b32.xlu0 %v2891, 4
      %v2927 = vpop.permute.xlu0 %2926
      %2928 = vrot.lane.b32.xlu0 %v2892, 4
      %v2929 = vpop.permute.xlu0 %2928
      %2930 = vrot.lane.b32.xlu0 %v2893, 4
      %v2931 = vpop.permute.xlu0 %2930
      %2932 = vrot.lane.b32.xlu0 %v2894, 4
      %v2933 = vpop.permute.xlu0 %2932
      %2934 = vrot.lane.b32.xlu0 %v2895, 4
      %v2935 = vpop.permute.xlu0 %2934
      %2936 = vrot.lane.b32.xlu0 %v2896, 4
      %v2937 = vpop.permute.xlu0 %2936
      %2938 = vrot.lane.b32.xlu0 %v2897, 4
      %v2939 = vpop.permute.xlu0 %2938
      %2940 = vrot.lane.b32.xlu0 %v2898, 4
      %v2941 = vpop.permute.xlu0 %2940
      %2942 = vrot.lane.b32.xlu0 %v2899, 4
      %v2943 = vpop.permute.xlu0 %2942
      %2944 = vrot.lane.b32.xlu0 %v2900, 4
      %v2945 = vpop.permute.xlu0 %2944
      %2946 = vrot.lane.b32.xlu0 %v2901, 4
      %v2947 = vpop.permute.xlu0 %2946
      %2948 = vrot.lane.b32.xlu0 %v2902, 4
      %v2949 = vpop.permute.xlu0 %2948
      %2950 = vrot.lane.b32.xlu0 %v2903, 4
      %v2951 = vpop.permute.xlu0 %2950
      %2970 = vrot.lane.b32.xlu0 %v2870, 8
      %v2971 = vpop.permute.xlu0 %2970
      %2972 = vrot.lane.b32.xlu0 %v2871, 8
      %v2973 = vpop.permute.xlu0 %2972
      %2974 = vrot.lane.b32.xlu0 %v2872, 8
      %v2975 = vpop.permute.xlu0 %2974
      %2976 = vrot.lane.b32.xlu0 %v2873, 8
      %v2977 = vpop.permute.xlu0 %2976
      %2978 = vrot.lane.b32.xlu0 %v2874, 8
      %v2979 = vpop.permute.xlu0 %2978
      %2980 = vrot.lane.b32.xlu0 %v2875, 8
      %v2981 = vpop.permute.xlu0 %2980
      %2982 = vrot.lane.b32.xlu0 %v2876, 8
      %v2983 = vpop.permute.xlu0 %2982
      %2984 = vrot.lane.b32.xlu0 %v2877, 8
      %v2985 = vpop.permute.xlu0 %2984
      %2986 = vrot.lane.b32.xlu0 %v2878, 8
      %v2987 = vpop.permute.xlu0 %2986
      %2988 = vrot.lane.b32.xlu0 %v2879, 8
      %v2989 = vpop.permute.xlu0 %2988
      %2990 = vrot.lane.b32.xlu0 %v2880, 8
      %v2991 = vpop.permute.xlu0 %2990
      %2992 = vrot.lane.b32.xlu0 %v2881, 8
      %v2993 = vpop.permute.xlu0 %2992
      %2994 = vrot.lane.b32.xlu0 %v2882, 8
      %v2995 = vpop.permute.xlu0 %2994
      %2996 = vrot.lane.b32.xlu0 %v2883, 8
      %v2997 = vpop.permute.xlu0 %2996
      %2998 = vrot.lane.b32.xlu0 %v2884, 8
      %v2999 = vpop.permute.xlu0 %2998
      %3000 = vrot.lane.b32.xlu0 %v2885, 8
      %v3001 = vpop.permute.xlu0 %3000
      %3002 = vrot.lane.b32.xlu0 %v2886, 8
      %v3003 = vpop.permute.xlu0 %3002
      %3004 = vrot.lane.b32.xlu0 %v2887, 8
      %v3005 = vpop.permute.xlu0 %3004
      %v3008 = vsel %vm1600, %v2816, %v2921
      %v3011 = vsel %vm1600, %v2817, %v2923
      %v3013 = vsel %vm1600, %v2818, %v2921
      %v3016 = vsel %vm1600, %v2819, %v2925
      %v3019 = vsel %vm1600, %v2820, %v2927
      %v3022 = vsel %vm1600, %v2821, %v2929
      %v3025 = vsel %vm1600, %v2822, %v2931
      %v3028 = vsel %vm1600, %v2823, %v2933
      %v3031 = vsel %vm1600, %v2824, %v2935
      %v3034 = vsel %vm1600, %v2825, %v2937
      %v3037 = vsel %vm1600, %v2826, %v2939
      %v3040 = vsel %vm1600, %v2827, %v2941
      %v3043 = vsel %vm1600, %v2828, %v2943
      %v3046 = vsel %vm1600, %v2829, %v2945
      %v3049 = vsel %vm1600, %v2830, %v2947
      %v3052 = vsel %vm1600, %v2831, %v2949
      %v3055 = vsel %vm1600, %v2832, %v2951
      %v3057 = vsel %vm1600, %v2833, %v2949
      %v3059 = vsel %vm1653, %v3008, %v2971
      %v3061 = vsel %vm1653, %v3011, %v2973
      %v3063 = vsel %vm1653, %v3013, %v2975
      %v3065 = vsel %vm1653, %v3016, %v2977
      %v3067 = vsel %vm1653, %v3019, %v2979
      %v3069 = vsel %vm1653, %v3022, %v2981
      %v3071 = vsel %vm1653, %v3025, %v2983
      %v3073 = vsel %vm1653, %v3028, %v2985
      %v3075 = vsel %vm1653, %v3031, %v2987
      %v3077 = vsel %vm1653, %v3034, %v2989
      %v3079 = vsel %vm1653, %v3037, %v2991
      %v3081 = vsel %vm1653, %v3040, %v2993
      %v3083 = vsel %vm1653, %v3043, %v2995
      %v3085 = vsel %vm1653, %v3046, %v2997
      %v3087 = vsel %vm1653, %v3049, %v2999
      %v3089 = vsel %vm1653, %v3052, %v3001
      %v3091 = vsel %vm1653, %v3055, %v3003
      %v3093 = vsel %vm1653, %v3057, %v3005
      %v3094 = vld [vmem:[%s3] sm:$0xf]
      %v3095 = vld [vmem:[%s3 + $0x4] sm:$0x3]
      %s3096 = scalar_lea.vmem %s3, 8
      %v3097 = vld [vmem:[%s3096] sm:$0xf]
      %v3098 = vld [vmem:[%s3096 + $0x4] sm:$0x3]
      %v3101 = vunpack.c.l.b16 %v3097
      %v3102 = vunpack.c.l.b16 %v3098
      %v3103 = vpack.c.b16 %v3102, %v3101
      %v3104 = vsel %vm1700, %v3061, 0
      %v3106 = vsel %vm1700, %v3063, 0
      %v3108 = vsel %vm1700, %v3065, 0
      %v3110 = vsel %vm1700, %v3067, 0
      %v3112 = vsel %vm1700, %v3069, 0
      %v3114 = vsel %vm1700, %v3071, 0
      %v3116 = vsel %vm1700, %v3073, 0
      %v3118 = vsel %vm1700, %v3075, 0
      %v3120 = vsel %vm1700, %v3077, 0
      %v3122 = vsel %vm1700, %v3079, 0
      %v3124 = vsel %vm1700, %v3081, 0
      %v3126 = vsel %vm1700, %v3083, 0
      %v3128 = vsel %vm1700, %v3085, 0
      %v3130 = vsel %vm1700, %v3087, 0
      %v3132 = vsel %vm1700, %v3089, 0
      %v3134 = vsel %vm1700, %v3091, 0
      %v3137 = vsel %vm1733, %v3103, 0
      %3139 = vmatprep.subr.bf16.mxu0 0
      %3140 = vmatpush1.bf16.msra.mxu0 0
      %3141 = vmatprep.subr.bf16.mxu0 0
      %3142 = vmatpush1.bf16.msra.mxu0 0
      %3143 = vmatprep.subr.bf16.mxu0 0
      %3144 = vmatpush1.bf16.msra.mxu0 0
      %3145 = vmatprep.subr.bf16.mxu0 0
      %3146 = vmatpush1.bf16.msra.mxu0 0
      %3147 = vmatprep.subr.bf16.mxu0 0
      %3148 = vmatpush1.bf16.msra.mxu0 0
      %3149 = vmatprep.subr.bf16.mxu0 0
      %3150 = vmatpush1.bf16.msra.mxu0 0
      %3151 = vmatprep.subr.bf16.mxu0 0
      %3152 = vmatpush1.bf16.msra.mxu0 0
      %3153 = vmatprep.subr.bf16.mxu0 0
      %3154 = vmatpush1.bf16.msra.mxu0 %v3137
      %3155 = vmatprep.subr.bf16.mxu0 0
      %3156 = vmatpush2.bf16.msra.mxu0 0
      %3157 = vmatprep.subr.bf16.mxu0 0
      %3158 = vmatpush2.bf16.msra.mxu0 0
      %3159 = vmatprep.subr.bf16.mxu0 0
      %3160 = vmatpush2.bf16.msra.mxu0 0
      %3161 = vmatprep.subr.bf16.mxu0 0
      %3162 = vmatpush2.bf16.msra.mxu0 0
      %3163 = vmatprep.subr.bf16.mxu0 0
      %3164 = vmatpush2.bf16.msra.mxu0 0
      %3165 = vmatprep.subr.bf16.mxu0 0
      %3166 = vmatpush2.bf16.msra.mxu0 0
      %3167 = vmatprep.subr.bf16.mxu0 0
      %3168 = vmatpush2.bf16.msra.mxu0 0
      %3169 = vmatprep.subr.bf16.mxu0 0
      %3170 = vmatpush2.bf16.msra.mxu0 0
      %3171 = vmatprep.mubr.bf16.mxu0 0
      %3172 = vmatmul.mubr.bf16.gmra.mxu0 %v3104
      %v3173 = vpop.f32.mrf.mxu0
      %v3174 = vadd.f32 0.0, %v3173
      %v3175 = vpop.f32.mrf.mxu0
      %v3176 = vpop.f32.mrf.mxu0
      %v3177 = vadd.f32 0.0, %v3176
      %v3178 = vpop.f32.mrf.mxu0
      %3179 = vmatprep.mubr.bf16.mxu0 0
      %3180 = vmatmul.mubr.bf16.gmra.mxu0 %v3106
      %v3181 = vpop.f32.mrf.mxu0
      %v3182 = vadd.f32 0.0, %v3181
      %v3183 = vpop.f32.mrf.mxu0
      %v3184 = vpop.f32.mrf.mxu0
      %v3185 = vadd.f32 0.0, %v3184
      %v3186 = vpop.f32.mrf.mxu0
      %3187 = vmatprep.mubr.bf16.mxu0 0
      %3188 = vmatmul.mubr.bf16.gmra.mxu0 %v3108
      %v3189 = vpop.f32.mrf.mxu0
      %v3190 = vadd.f32 0.0, %v3189
      %v3191 = vpop.f32.mrf.mxu0
      %v3192 = vpop.f32.mrf.mxu0
      %v3193 = vadd.f32 0.0, %v3192
      %v3194 = vpop.f32.mrf.mxu0
      %3195 = vmatprep.mubr.bf16.mxu0 0
      %3196 = vmatmul.mubr.bf16.gmra.mxu0 %v3110
      %v3197 = vpop.f32.mrf.mxu0
      %v3198 = vadd.f32 0.0, %v3197
      %v3199 = vpop.f32.mrf.mxu0
      %v3200 = vpop.f32.mrf.mxu0
      %v3201 = vadd.f32 0.0, %v3200
      %v3202 = vpop.f32.mrf.mxu0
      %3203 = vmatprep.mubr.bf16.mxu0 0
      %3204 = vmatmul.mubr.bf16.gmra.mxu0 %v3112
      %v3205 = vpop.f32.mrf.mxu0
      %v3206 = vadd.f32 0.0, %v3205
      %v3207 = vpop.f32.mrf.mxu0
      %v3208 = vpop.f32.mrf.mxu0
      %v3209 = vadd.f32 0.0, %v3208
      %v3210 = vpop.f32.mrf.mxu0
      %3211 = vmatprep.mubr.bf16.mxu0 0
      %3212 = vmatmul.mubr.bf16.gmra.mxu0 %v3114
      %v3213 = vpop.f32.mrf.mxu0
      %v3214 = vadd.f32 0.0, %v3213
      %v3215 = vpop.f32.mrf.mxu0
      %v3216 = vpop.f32.mrf.mxu0
      %v3217 = vadd.f32 0.0, %v3216
      %v3218 = vpop.f32.mrf.mxu0
      %3219 = vmatprep.mubr.bf16.mxu0 0
      %3220 = vmatmul.mubr.bf16.gmra.mxu0 %v3116
      %v3221 = vpop.f32.mrf.mxu0
      %v3222 = vadd.f32 0.0, %v3221
      %v3223 = vpop.f32.mrf.mxu0
      %v3224 = vpop.f32.mrf.mxu0
      %v3225 = vadd.f32 0.0, %v3224
      %v3226 = vpop.f32.mrf.mxu0
      %3227 = vmatprep.mubr.bf16.mxu0 0
      %3228 = vmatmul.mubr.bf16.gmra.mxu0 %v3118
      %v3229 = vpop.f32.mrf.mxu0
      %v3230 = vadd.f32 0.0, %v3229
      %v3231 = vpop.f32.mrf.mxu0
      %v3232 = vpop.f32.mrf.mxu0
      %v3233 = vadd.f32 0.0, %v3232
      %v3234 = vpop.f32.mrf.mxu0
      %3235 = vmatprep.mubr.bf16.mxu0 0
      %3236 = vmatmul.mubr.bf16.gmra.mxu0 %v3120
      %v3237 = vpop.f32.mrf.mxu0
      %v3238 = vadd.f32 0.0, %v3237
      %v3239 = vpop.f32.mrf.mxu0
      %v3240 = vpop.f32.mrf.mxu0
      %v3241 = vadd.f32 0.0, %v3240
      %v3242 = vpop.f32.mrf.mxu0
      %3243 = vmatprep.mubr.bf16.mxu0 0
      %3244 = vmatmul.mubr.bf16.gmra.mxu0 %v3122
      %v3245 = vpop.f32.mrf.mxu0
      %v3246 = vadd.f32 0.0, %v3245
      %v3247 = vpop.f32.mrf.mxu0
      %v3248 = vpop.f32.mrf.mxu0
      %v3249 = vadd.f32 0.0, %v3248
      %v3250 = vpop.f32.mrf.mxu0
      %3251 = vmatprep.mubr.bf16.mxu0 0
      %3252 = vmatmul.mubr.bf16.gmra.mxu0 %v3124
      %v3253 = vpop.f32.mrf.mxu0
      %v3254 = vadd.f32 0.0, %v3253
      %v3255 = vpop.f32.mrf.mxu0
      %v3256 = vpop.f32.mrf.mxu0
      %v3257 = vadd.f32 0.0, %v3256
      %v3258 = vpop.f32.mrf.mxu0
      %3259 = vmatprep.mubr.bf16.mxu0 0
      %3260 = vmatmul.mubr.bf16.gmra.mxu0 %v3126
      %v3261 = vpop.f32.mrf.mxu0
      %v3262 = vadd.f32 0.0, %v3261
      %v3263 = vpop.f32.mrf.mxu0
      %v3264 = vpop.f32.mrf.mxu0
      %v3265 = vadd.f32 0.0, %v3264
      %v3266 = vpop.f32.mrf.mxu0
      %3267 = vmatprep.mubr.bf16.mxu0 0
      %3268 = vmatmul.mubr.bf16.gmra.mxu0 %v3128
      %v3269 = vpop.f32.mrf.mxu0
      %v3270 = vadd.f32 0.0, %v3269
      %v3271 = vpop.f32.mrf.mxu0
      %v3272 = vpop.f32.mrf.mxu0
      %v3273 = vadd.f32 0.0, %v3272
      %v3274 = vpop.f32.mrf.mxu0
      %3275 = vmatprep.mubr.bf16.mxu0 0
      %3276 = vmatmul.mubr.bf16.gmra.mxu0 %v3130
      %v3277 = vpop.f32.mrf.mxu0
      %v3278 = vadd.f32 0.0, %v3277
      %v3279 = vpop.f32.mrf.mxu0
      %v3280 = vpop.f32.mrf.mxu0
      %v3281 = vadd.f32 0.0, %v3280
      %v3282 = vpop.f32.mrf.mxu0
      %3283 = vmatprep.mubr.bf16.mxu0 0
      %3284 = vmatmul.mubr.bf16.gmra.mxu0 %v3132
      %v3285 = vpop.f32.mrf.mxu0
      %v3286 = vadd.f32 0.0, %v3285
      %v3287 = vpop.f32.mrf.mxu0
      %v3288 = vpop.f32.mrf.mxu0
      %v3289 = vadd.f32 0.0, %v3288
      %v3290 = vpop.f32.mrf.mxu0
      %3291 = vmatprep.mubr.bf16.mxu0 0
      %3292 = vmatmul.mubr.bf16.gmra.mxu0 %v3134
      %v3293 = vpop.f32.mrf.mxu0
      %v3294 = vadd.f32 0.0, %v3293
      %v3295 = vpop.f32.mrf.mxu0
      %v3296 = vpop.f32.mrf.mxu0
      %v3297 = vadd.f32 0.0, %v3296
      %v3298 = vpop.f32.mrf.mxu0
      %3299 = vdwg.mxu0
      %v3302 = vunpack.c.l.b16 %v3094
      %v3303 = vunpack.c.l.b16 %v3095
      %v3304 = vpack.c.b16 %v3303, %v3302
      %v3305 = vsel %vm1700, %v3059, 0
      %v3308 = vsel %vm1733, %v3304, 0
      %3310 = vmatprep.subr.bf16.mxu0 0
      %3311 = vmatpush1.bf16.msra.mxu0 0
      %3312 = vmatprep.subr.bf16.mxu0 0
      %3313 = vmatpush1.bf16.msra.mxu0 0
      %3314 = vmatprep.subr.bf16.mxu0 0
      %3315 = vmatpush1.bf16.msra.mxu0 0
      %3316 = vmatprep.subr.bf16.mxu0 0
      %3317 = vmatpush1.bf16.msra.mxu0 0
      %3318 = vmatprep.subr.bf16.mxu0 0
      %3319 = vmatpush1.bf16.msra.mxu0 0
      %3320 = vmatprep.subr.bf16.mxu0 0
      %3321 = vmatpush1.bf16.msra.mxu0 0
      %3322 = vmatprep.subr.bf16.mxu0 0
      %3323 = vmatpush1.bf16.msra.mxu0 0
      %3324 = vmatprep.subr.bf16.mxu0 0
      %3325 = vmatpush1.bf16.msra.mxu0 %v3308
      %3326 = vmatprep.subr.bf16.mxu0 0
      %3327 = vmatpush2.bf16.msra.mxu0 0
      %3328 = vmatprep.subr.bf16.mxu0 0
      %3329 = vmatpush2.bf16.msra.mxu0 0
      %3330 = vmatprep.subr.bf16.mxu0 0
      %3331 = vmatpush2.bf16.msra.mxu0 0
      %3332 = vmatprep.subr.bf16.mxu0 0
      %3333 = vmatpush2.bf16.msra.mxu0 0
      %3334 = vmatprep.subr.bf16.mxu0 0
      %3335 = vmatpush2.bf16.msra.mxu0 0
      %3336 = vmatprep.subr.bf16.mxu0 0
      %3337 = vmatpush2.bf16.msra.mxu0 0
      %3338 = vmatprep.subr.bf16.mxu0 0
      %3339 = vmatpush2.bf16.msra.mxu0 0
      %3340 = vmatprep.subr.bf16.mxu0 0
      %3341 = vmatpush2.bf16.msra.mxu0 0
      %3342 = vmatprep.mubr.bf16.mxu0 0
      %3343 = vmatmul.mubr.bf16.gmra.mxu0 %v3305
      %v3344 = vpop.f32.mrf.mxu0
      %v3345 = vadd.f32 %v3174, %v3344
      %v3346 = vpop.f32.mrf.mxu0
      %v3347 = vpop.f32.mrf.mxu0
      %v3348 = vadd.f32 %v3177, %v3347
      %v3349 = vpop.f32.mrf.mxu0
      %3350 = vmatprep.mubr.bf16.mxu0 0
      %3351 = vmatmul.mubr.bf16.gmra.mxu0 %v3104
      %v3352 = vpop.f32.mrf.mxu0
      %v3353 = vadd.f32 %v3182, %v3352
      %v3354 = vpop.f32.mrf.mxu0
      %v3355 = vpop.f32.mrf.mxu0
      %v3356 = vadd.f32 %v3185, %v3355
      %v3357 = vpop.f32.mrf.mxu0
      %3358 = vmatprep.mubr.bf16.mxu0 0
      %3359 = vmatmul.mubr.bf16.gmra.mxu0 %v3106
      %v3360 = vpop.f32.mrf.mxu0
      %v3361 = vadd.f32 %v3190, %v3360
      %v3362 = vpop.f32.mrf.mxu0
      %v3363 = vpop.f32.mrf.mxu0
      %v3364 = vadd.f32 %v3193, %v3363
      %v3365 = vpop.f32.mrf.mxu0
      %3366 = vmatprep.mubr.bf16.mxu0 0
      %3367 = vmatmul.mubr.bf16.gmra.mxu0 %v3108
      %v3368 = vpop.f32.mrf.mxu0
      %v3369 = vadd.f32 %v3198, %v3368
      %v3370 = vpop.f32.mrf.mxu0
      %v3371 = vpop.f32.mrf.mxu0
      %v3372 = vadd.f32 %v3201, %v3371
      %v3373 = vpop.f32.mrf.mxu0
      %3374 = vmatprep.mubr.bf16.mxu0 0
      %3375 = vmatmul.mubr.bf16.gmra.mxu0 %v3110
      %v3376 = vpop.f32.mrf.mxu0
      %v3377 = vadd.f32 %v3206, %v3376
      %v3378 = vpop.f32.mrf.mxu0
      %v3379 = vpop.f32.mrf.mxu0
      %v3380 = vadd.f32 %v3209, %v3379
      %v3381 = vpop.f32.mrf.mxu0
      %3382 = vmatprep.mubr.bf16.mxu0 0
      %3383 = vmatmul.mubr.bf16.gmra.mxu0 %v3112
      %v3384 = vpop.f32.mrf.mxu0
      %v3385 = vadd.f32 %v3214, %v3384
      %v3386 = vpop.f32.mrf.mxu0
      %v3387 = vpop.f32.mrf.mxu0
      %v3388 = vadd.f32 %v3217, %v3387
      %v3389 = vpop.f32.mrf.mxu0
      %3390 = vmatprep.mubr.bf16.mxu0 0
      %3391 = vmatmul.mubr.bf16.gmra.mxu0 %v3114
      %v3392 = vpop.f32.mrf.mxu0
      %v3393 = vadd.f32 %v3222, %v3392
      %v3394 = vpop.f32.mrf.mxu0
      %v3395 = vpop.f32.mrf.mxu0
      %v3396 = vadd.f32 %v3225, %v3395
      %v3397 = vpop.f32.mrf.mxu0
      %3398 = vmatprep.mubr.bf16.mxu0 0
      %3399 = vmatmul.mubr.bf16.gmra.mxu0 %v3116
      %v3400 = vpop.f32.mrf.mxu0
      %v3401 = vadd.f32 %v3230, %v3400
      %v3402 = vpop.f32.mrf.mxu0
      %v3403 = vpop.f32.mrf.mxu0
      %v3404 = vadd.f32 %v3233, %v3403
      %v3405 = vpop.f32.mrf.mxu0
      %3406 = vmatprep.mubr.bf16.mxu0 0
      %3407 = vmatmul.mubr.bf16.gmra.mxu0 %v3118
      %v3408 = vpop.f32.mrf.mxu0
      %v3409 = vadd.f32 %v3238, %v3408
      %v3410 = vpop.f32.mrf.mxu0
      %v3411 = vpop.f32.mrf.mxu0
      %v3412 = vadd.f32 %v3241, %v3411
      %v3413 = vpop.f32.mrf.mxu0
      %3414 = vmatprep.mubr.bf16.mxu0 0
      %3415 = vmatmul.mubr.bf16.gmra.mxu0 %v3120
      %v3416 = vpop.f32.mrf.mxu0
      %v3417 = vadd.f32 %v3246, %v3416
      %v3418 = vpop.f32.mrf.mxu0
      %v3419 = vpop.f32.mrf.mxu0
      %v3420 = vadd.f32 %v3249, %v3419
      %v3421 = vpop.f32.mrf.mxu0
      %3422 = vmatprep.mubr.bf16.mxu0 0
      %3423 = vmatmul.mubr.bf16.gmra.mxu0 %v3122
      %v3424 = vpop.f32.mrf.mxu0
      %v3425 = vadd.f32 %v3254, %v3424
      %v3426 = vpop.f32.mrf.mxu0
      %v3427 = vpop.f32.mrf.mxu0
      %v3428 = vadd.f32 %v3257, %v3427
      %v3429 = vpop.f32.mrf.mxu0
      %3430 = vmatprep.mubr.bf16.mxu0 0
      %3431 = vmatmul.mubr.bf16.gmra.mxu0 %v3124
      %v3432 = vpop.f32.mrf.mxu0
      %v3433 = vadd.f32 %v3262, %v3432
      %v3434 = vpop.f32.mrf.mxu0
      %v3435 = vpop.f32.mrf.mxu0
      %v3436 = vadd.f32 %v3265, %v3435
      %v3437 = vpop.f32.mrf.mxu0
      %3438 = vmatprep.mubr.bf16.mxu0 0
      %3439 = vmatmul.mubr.bf16.gmra.mxu0 %v3126
      %v3440 = vpop.f32.mrf.mxu0
      %v3441 = vadd.f32 %v3270, %v3440
      %v3442 = vpop.f32.mrf.mxu0
      %v3443 = vpop.f32.mrf.mxu0
      %v3444 = vadd.f32 %v3273, %v3443
      %v3445 = vpop.f32.mrf.mxu0
      %3446 = vmatprep.mubr.bf16.mxu0 0
      %3447 = vmatmul.mubr.bf16.gmra.mxu0 %v3128
      %v3448 = vpop.f32.mrf.mxu0
      %v3449 = vadd.f32 %v3278, %v3448
      %v3450 = vpop.f32.mrf.mxu0
      %v3451 = vpop.f32.mrf.mxu0
      %v3452 = vadd.f32 %v3281, %v3451
      %v3453 = vpop.f32.mrf.mxu0
      %3454 = vmatprep.mubr.bf16.mxu0 0
      %3455 = vmatmul.mubr.bf16.gmra.mxu0 %v3130
      %v3456 = vpop.f32.mrf.mxu0
      %v3457 = vadd.f32 %v3286, %v3456
      %v3458 = vpop.f32.mrf.mxu0
      %v3459 = vpop.f32.mrf.mxu0
      %v3460 = vadd.f32 %v3289, %v3459
      %v3461 = vpop.f32.mrf.mxu0
      %3462 = vmatprep.mubr.bf16.mxu0 0
      %3463 = vmatmul.mubr.bf16.gmra.mxu0 %v3132
      %v3464 = vpop.f32.mrf.mxu0
      %v3465 = vadd.f32 %v3294, %v3464
      %v3466 = vpop.f32.mrf.mxu0
      %v3467 = vpop.f32.mrf.mxu0
      %v3468 = vadd.f32 %v3297, %v3467
      %v3469 = vpop.f32.mrf.mxu0
      %3470 = vdwg.mxu0
      %s3471 = scalar_lea.vmem %s3, 16
      %v3472 = vld [vmem:[%s3471] sm:$0xf]
      %v3473 = vld [vmem:[%s3471 + $0x4] sm:$0x3]
      %v3476 = vunpack.c.l.b16 %v3472
      %v3477 = vunpack.c.l.b16 %v3473
      %v3478 = vpack.c.b16 %v3477, %v3476
      %v3479 = vsel %vm1700, %v3093, 0
      %v3482 = vsel %vm1733, %v3478, 0
      %3484 = vmatprep.subr.bf16.mxu0 0
      %3485 = vmatpush1.bf16.msra.mxu0 0
      %3486 = vmatprep.subr.bf16.mxu0 0
      %3487 = vmatpush1.bf16.msra.mxu0 0
      %3488 = vmatprep.subr.bf16.mxu0 0
      %3489 = vmatpush1.bf16.msra.mxu0 0
      %3490 = vmatprep.subr.bf16.mxu0 0
      %3491 = vmatpush1.bf16.msra.mxu0 0
      %3492 = vmatprep.subr.bf16.mxu0 0
      %3493 = vmatpush1.bf16.msra.mxu0 0
      %3494 = vmatprep.subr.bf16.mxu0 0
      %3495 = vmatpush1.bf16.msra.mxu0 0
      %3496 = vmatprep.subr.bf16.mxu0 0
      %3497 = vmatpush1.bf16.msra.mxu0 0
      %3498 = vmatprep.subr.bf16.mxu0 0
      %3499 = vmatpush1.bf16.msra.mxu0 %v3482
      %3500 = vmatprep.subr.bf16.mxu0 0
      %3501 = vmatpush2.bf16.msra.mxu0 0
      %3502 = vmatprep.subr.bf16.mxu0 0
      %3503 = vmatpush2.bf16.msra.mxu0 0
      %3504 = vmatprep.subr.bf16.mxu0 0
      %3505 = vmatpush2.bf16.msra.mxu0 0
      %3506 = vmatprep.subr.bf16.mxu0 0
      %3507 = vmatpush2.bf16.msra.mxu0 0
      %3508 = vmatprep.subr.bf16.mxu0 0
      %3509 = vmatpush2.bf16.msra.mxu0 0
      %3510 = vmatprep.subr.bf16.mxu0 0
      %3511 = vmatpush2.bf16.msra.mxu0 0
      %3512 = vmatprep.subr.bf16.mxu0 0
      %3513 = vmatpush2.bf16.msra.mxu0 0
      %3514 = vmatprep.subr.bf16.mxu0 0
      %3515 = vmatpush2.bf16.msra.mxu0 0
      %3516 = vmatprep.mubr.bf16.mxu0 0
      %3517 = vmatmul.mubr.bf16.gmra.mxu0 %v3106
      %v3518 = vpop.f32.mrf.mxu0
      %v3519 = vadd.f32 0.0, %v3518
      %v3520 = vpop.f32.mrf.mxu0
      %v3521 = vpop.f32.mrf.mxu0
      %v3522 = vadd.f32 0.0, %v3521
      %v3523 = vpop.f32.mrf.mxu0
      %3524 = vmatprep.mubr.bf16.mxu0 0
      %3525 = vmatmul.mubr.bf16.gmra.mxu0 %v3108
      %v3526 = vpop.f32.mrf.mxu0
      %v3527 = vadd.f32 0.0, %v3526
      %v3528 = vpop.f32.mrf.mxu0
      %v3529 = vpop.f32.mrf.mxu0
      %v3530 = vadd.f32 0.0, %v3529
      %v3531 = vpop.f32.mrf.mxu0
      %3532 = vmatprep.mubr.bf16.mxu0 0
      %3533 = vmatmul.mubr.bf16.gmra.mxu0 %v3110
      %v3534 = vpop.f32.mrf.mxu0
      %v3535 = vadd.f32 0.0, %v3534
      %v3536 = vpop.f32.mrf.mxu0
      %v3537 = vpop.f32.mrf.mxu0
      %v3538 = vadd.f32 0.0, %v3537
      %v3539 = vpop.f32.mrf.mxu0
      %3540 = vmatprep.mubr.bf16.mxu0 0
      %3541 = vmatmul.mubr.bf16.gmra.mxu0 %v3112
      %v3542 = vpop.f32.mrf.mxu0
      %v3543 = vadd.f32 0.0, %v3542
      %v3544 = vpop.f32.mrf.mxu0
      %v3545 = vpop.f32.mrf.mxu0
      %v3546 = vadd.f32 0.0, %v3545
      %v3547 = vpop.f32.mrf.mxu0
      %3548 = vmatprep.mubr.bf16.mxu0 0
      %3549 = vmatmul.mubr.bf16.gmra.mxu0 %v3114
      %v3550 = vpop.f32.mrf.mxu0
      %v3551 = vadd.f32 0.0, %v3550
      %v3552 = vpop.f32.mrf.mxu0
      %v3553 = vpop.f32.mrf.mxu0
      %v3554 = vadd.f32 0.0, %v3553
      %v3555 = vpop.f32.mrf.mxu0
      %3556 = vmatprep.mubr.bf16.mxu0 0
      %3557 = vmatmul.mubr.bf16.gmra.mxu0 %v3116
      %v3558 = vpop.f32.mrf.mxu0
      %v3559 = vadd.f32 0.0, %v3558
      %v3560 = vpop.f32.mrf.mxu0
      %v3561 = vpop.f32.mrf.mxu0
      %v3562 = vadd.f32 0.0, %v3561
      %v3563 = vpop.f32.mrf.mxu0
      %3564 = vmatprep.mubr.bf16.mxu0 0
      %3565 = vmatmul.mubr.bf16.gmra.mxu0 %v3118
      %v3566 = vpop.f32.mrf.mxu0
      %v3567 = vadd.f32 0.0, %v3566
      %v3568 = vpop.f32.mrf.mxu0
      %v3569 = vpop.f32.mrf.mxu0
      %v3570 = vadd.f32 0.0, %v3569
      %v3571 = vpop.f32.mrf.mxu0
      %3572 = vmatprep.mubr.bf16.mxu0 0
      %3573 = vmatmul.mubr.bf16.gmra.mxu0 %v3120
      %v3574 = vpop.f32.mrf.mxu0
      %v3575 = vadd.f32 0.0, %v3574
      %v3576 = vpop.f32.mrf.mxu0
      %v3577 = vpop.f32.mrf.mxu0
      %v3578 = vadd.f32 0.0, %v3577
      %v3579 = vpop.f32.mrf.mxu0
      %3580 = vmatprep.mubr.bf16.mxu0 0
      %3581 = vmatmul.mubr.bf16.gmra.mxu0 %v3122
      %v3582 = vpop.f32.mrf.mxu0
      %v3583 = vadd.f32 0.0, %v3582
      %v3584 = vpop.f32.mrf.mxu0
      %v3585 = vpop.f32.mrf.mxu0
      %v3586 = vadd.f32 0.0, %v3585
      %v3587 = vpop.f32.mrf.mxu0
      %3588 = vmatprep.mubr.bf16.mxu0 0
      %3589 = vmatmul.mubr.bf16.gmra.mxu0 %v3124
      %v3590 = vpop.f32.mrf.mxu0
      %v3591 = vadd.f32 0.0, %v3590
      %v3592 = vpop.f32.mrf.mxu0
      %v3593 = vpop.f32.mrf.mxu0
      %v3594 = vadd.f32 0.0, %v3593
      %v3595 = vpop.f32.mrf.mxu0
      %3596 = vmatprep.mubr.bf16.mxu0 0
      %3597 = vmatmul.mubr.bf16.gmra.mxu0 %v3126
      %v3598 = vpop.f32.mrf.mxu0
      %v3599 = vadd.f32 0.0, %v3598
      %v3600 = vpop.f32.mrf.mxu0
      %v3601 = vpop.f32.mrf.mxu0
      %v3602 = vadd.f32 0.0, %v3601
      %v3603 = vpop.f32.mrf.mxu0
      %3604 = vmatprep.mubr.bf16.mxu0 0
      %3605 = vmatmul.mubr.bf16.gmra.mxu0 %v3128
      %v3606 = vpop.f32.mrf.mxu0
      %v3607 = vadd.f32 0.0, %v3606
      %v3608 = vpop.f32.mrf.mxu0
      %v3609 = vpop.f32.mrf.mxu0
      %v3610 = vadd.f32 0.0, %v3609
      %v3611 = vpop.f32.mrf.mxu0
      %3612 = vmatprep.mubr.bf16.mxu0 0
      %3613 = vmatmul.mubr.bf16.gmra.mxu0 %v3130
      %v3614 = vpop.f32.mrf.mxu0
      %v3615 = vadd.f32 0.0, %v3614
      %v3616 = vpop.f32.mrf.mxu0
      %v3617 = vpop.f32.mrf.mxu0
      %v3618 = vadd.f32 0.0, %v3617
      %v3619 = vpop.f32.mrf.mxu0
      %3620 = vmatprep.mubr.bf16.mxu0 0
      %3621 = vmatmul.mubr.bf16.gmra.mxu0 %v3132
      %v3622 = vpop.f32.mrf.mxu0
      %v3623 = vadd.f32 0.0, %v3622
      %v3624 = vpop.f32.mrf.mxu0
      %v3625 = vpop.f32.mrf.mxu0
      %v3626 = vadd.f32 0.0, %v3625
      %v3627 = vpop.f32.mrf.mxu0
      %3628 = vmatprep.mubr.bf16.mxu0 0
      %3629 = vmatmul.mubr.bf16.gmra.mxu0 %v3134
      %v3630 = vpop.f32.mrf.mxu0
      %v3631 = vadd.f32 0.0, %v3630
      %v3632 = vpop.f32.mrf.mxu0
      %v3633 = vpop.f32.mrf.mxu0
      %v3634 = vadd.f32 0.0, %v3633
      %v3635 = vpop.f32.mrf.mxu0
      %3636 = vmatprep.mubr.bf16.mxu0 0
      %3637 = vmatmul.mubr.bf16.gmra.mxu0 %v3479
      %v3638 = vpop.f32.mrf.mxu0
      %v3639 = vadd.f32 0.0, %v3638
      %v3640 = vpop.f32.mrf.mxu0
      %v3641 = vpop.f32.mrf.mxu0
      %v3642 = vadd.f32 0.0, %v3641
      %v3643 = vpop.f32.mrf.mxu0
      %3644 = vdwg.mxu0
      %v3645 = vadd.f32 %v3345, %v3519
      %v3646 = vadd.f32 %v3348, %v3522
      %v3647 = vadd.f32 %v3353, %v3527
      %v3648 = vadd.f32 %v3356, %v3530
      %v3649 = vadd.f32 %v3361, %v3535
      %v3650 = vadd.f32 %v3364, %v3538
      %v3651 = vadd.f32 %v3369, %v3543
      %v3652 = vadd.f32 %v3372, %v3546
      %v3653 = vadd.f32 %v3377, %v3551
      %v3654 = vadd.f32 %v3380, %v3554
      %v3655 = vadd.f32 %v3385, %v3559
      %v3656 = vadd.f32 %v3388, %v3562
      %v3657 = vadd.f32 %v3393, %v3567
      %v3658 = vadd.f32 %v3396, %v3570
      %v3659 = vadd.f32 %v3401, %v3575
      %v3660 = vadd.f32 %v3404, %v3578
      %v3661 = vadd.f32 %v3409, %v3583
      %v3662 = vadd.f32 %v3412, %v3586
      %v3663 = vadd.f32 %v3417, %v3591
      %v3664 = vadd.f32 %v3420, %v3594
      %v3665 = vadd.f32 %v3425, %v3599
      %v3666 = vadd.f32 %v3428, %v3602
      %v3667 = vadd.f32 %v3433, %v3607
      %v3668 = vadd.f32 %v3436, %v3610
      %v3669 = vadd.f32 %v3441, %v3615
      %v3670 = vadd.f32 %v3444, %v3618
      %v3671 = vadd.f32 %v3449, %v3623
      %v3672 = vadd.f32 %v3452, %v3626
      %v3673 = vadd.f32 %v3457, %v3631
      %v3674 = vadd.f32 %v3460, %v3634
      %v3675 = vadd.f32 %v3465, %v3639
      %v3676 = vadd.f32 %v3468, %v3642
      %v3677 = vld [vmem:[%s4] sm:$0x1]
      %v3679 = vlaneseq
      %v3680 = vshrl.u32 %v3679, 7
      %v3681 = vsub.s32 0, %v3680
      %v3682 = vrot.slane %v3677, %v3681
      %v3684 = vadd.f32 %v3645, %v3682
      %v3685 = vadd.f32 %v3646, %v3682
      %v3686 = vadd.f32 %v3647, %v3682
      %v3687 = vadd.f32 %v3648, %v3682
      %v3688 = vadd.f32 %v3649, %v3682
      %v3689 = vadd.f32 %v3650, %v3682
      %v3690 = vadd.f32 %v3651, %v3682
      %v3691 = vadd.f32 %v3652, %v3682
      %v3692 = vadd.f32 %v3653, %v3682
      %v3693 = vadd.f32 %v3654, %v3682
      %v3694 = vadd.f32 %v3655, %v3682
      %v3695 = vadd.f32 %v3656, %v3682
      %v3696 = vadd.f32 %v3657, %v3682
      %v3697 = vadd.f32 %v3658, %v3682
      %v3698 = vadd.f32 %v3659, %v3682
      %v3699 = vadd.f32 %v3660, %v3682
      %v3700 = vadd.f32 %v3661, %v3682
      %v3701 = vadd.f32 %v3662, %v3682
      %v3702 = vadd.f32 %v3663, %v3682
      %v3703 = vadd.f32 %v3664, %v3682
      %v3704 = vadd.f32 %v3665, %v3682
      %v3705 = vadd.f32 %v3666, %v3682
      %v3706 = vadd.f32 %v3667, %v3682
      %v3707 = vadd.f32 %v3668, %v3682
      %v3708 = vadd.f32 %v3669, %v3682
      %v3709 = vadd.f32 %v3670, %v3682
      %v3710 = vadd.f32 %v3671, %v3682
      %v3711 = vadd.f32 %v3672, %v3682
      %v3712 = vadd.f32 %v3673, %v3682
      %v3713 = vadd.f32 %v3674, %v3682
      %v3714 = vadd.f32 %v3675, %v3682
      %v3715 = vadd.f32 %v3676, %v3682
      %v3716 = vsel %vm1600, %v3684, 0.0
      %v3717 = vsel %vm1600, %v3685, 0.0
      %v3718 = vadd.f32 %v3716, %v3717
      %v3719 = vsel %vm1600, %v3686, 0.0
      %v3720 = vadd.f32 %v3718, %v3719
      %v3721 = vsel %vm1600, %v3687, 0.0
      %v3722 = vadd.f32 %v3720, %v3721
      %v3723 = vsel %vm1600, %v3688, 0.0
      %v3724 = vadd.f32 %v3722, %v3723
      %v3725 = vsel %vm1600, %v3689, 0.0
      %v3726 = vadd.f32 %v3724, %v3725
      %v3727 = vsel %vm1600, %v3690, 0.0
      %v3728 = vadd.f32 %v3726, %v3727
      %v3729 = vsel %vm1600, %v3691, 0.0
      %v3730 = vadd.f32 %v3728, %v3729
      %v3731 = vsel %vm1600, %v3692, 0.0
      %v3732 = vadd.f32 %v3730, %v3731
      %v3733 = vsel %vm1600, %v3693, 0.0
      %v3734 = vadd.f32 %v3732, %v3733
      %v3735 = vsel %vm1600, %v3694, 0.0
      %v3736 = vadd.f32 %v3734, %v3735
      %v3737 = vsel %vm1600, %v3695, 0.0
      %v3738 = vadd.f32 %v3736, %v3737
      %v3739 = vsel %vm1600, %v3696, 0.0
      %v3740 = vadd.f32 %v3738, %v3739
      %v3741 = vsel %vm1600, %v3697, 0.0
      %v3742 = vadd.f32 %v3740, %v3741
      %v3743 = vsel %vm1600, %v3698, 0.0
      %v3744 = vadd.f32 %v3742, %v3743
      %v3745 = vsel %vm1600, %v3699, 0.0
      %v3746 = vadd.f32 %v3744, %v3745
      %v3747 = vsel %vm1600, %v3700, 0.0
      %v3748 = vadd.f32 %v3746, %v3747
      %v3749 = vsel %vm1600, %v3701, 0.0
      %v3750 = vadd.f32 %v3748, %v3749
      %v3751 = vsel %vm1600, %v3702, 0.0
      %v3752 = vadd.f32 %v3750, %v3751
      %v3753 = vsel %vm1600, %v3703, 0.0
      %v3754 = vadd.f32 %v3752, %v3753
      %v3755 = vsel %vm1600, %v3704, 0.0
      %v3756 = vadd.f32 %v3754, %v3755
      %v3757 = vsel %vm1600, %v3705, 0.0
      %v3758 = vadd.f32 %v3756, %v3757
      %v3759 = vsel %vm1600, %v3706, 0.0
      %v3760 = vadd.f32 %v3758, %v3759
      %v3761 = vsel %vm1600, %v3707, 0.0
      %v3762 = vadd.f32 %v3760, %v3761
      %v3763 = vsel %vm1600, %v3708, 0.0
      %v3764 = vadd.f32 %v3762, %v3763
      %v3765 = vsel %vm1600, %v3709, 0.0
      %v3766 = vadd.f32 %v3764, %v3765
      %v3767 = vsel %vm1600, %v3710, 0.0
      %v3768 = vadd.f32 %v3766, %v3767
      %v3769 = vsel %vm1600, %v3711, 0.0
      %v3770 = vadd.f32 %v3768, %v3769
      %v3771 = vsel %vm1600, %v3712, 0.0
      %v3772 = vadd.f32 %v3770, %v3771
      %v3773 = vsel %vm1600, %v3713, 0.0
      %v3774 = vadd.f32 %v3772, %v3773
      %v3775 = vsel %vm1600, %v3714, 0.0
      %v3776 = vadd.f32 %v3774, %v3775
      %v3777 = vsel %vm1600, %v3715, 0.0
      %v3778 = vadd.f32 %v3776, %v3777
      %v3779 = vrot.slane %v3778, 4
      %v3780 = vadd.f32 %v3778, %v3779
      %v3781 = vrot.slane %v3780, 2
      %v3782 = vadd.f32 %v3780, %v3781
      %v3783 = vrot.slane %v3782, 1
      %v3784 = vadd.f32 %v3782, %v3783
      %v3785 = vmul.f32 %v3784, 0.00390625
      %v3786 = vsub.f32 %v3684, %v3785
      %v3787 = vsub.f32 %v3685, %v3785
      %v3788 = vsub.f32 %v3686, %v3785
      %v3789 = vsub.f32 %v3687, %v3785
      %v3790 = vsub.f32 %v3688, %v3785
      %v3791 = vsub.f32 %v3689, %v3785
      %v3792 = vsub.f32 %v3690, %v3785
      %v3793 = vsub.f32 %v3691, %v3785
      %v3794 = vsub.f32 %v3692, %v3785
      %v3795 = vsub.f32 %v3693, %v3785
      %v3796 = vsub.f32 %v3694, %v3785
      %v3797 = vsub.f32 %v3695, %v3785
      %v3798 = vsub.f32 %v3696, %v3785
      %v3799 = vsub.f32 %v3697, %v3785
      %v3800 = vsub.f32 %v3698, %v3785
      %v3801 = vsub.f32 %v3699, %v3785
      %v3802 = vsub.f32 %v3700, %v3785
      %v3803 = vsub.f32 %v3701, %v3785
      %v3804 = vsub.f32 %v3702, %v3785
      %v3805 = vsub.f32 %v3703, %v3785
      %v3806 = vsub.f32 %v3704, %v3785
      %v3807 = vsub.f32 %v3705, %v3785
      %v3808 = vsub.f32 %v3706, %v3785
      %v3809 = vsub.f32 %v3707, %v3785
      %v3810 = vsub.f32 %v3708, %v3785
      %v3811 = vsub.f32 %v3709, %v3785
      %v3812 = vsub.f32 %v3710, %v3785
      %v3813 = vsub.f32 %v3711, %v3785
      %v3814 = vsub.f32 %v3712, %v3785
      %v3815 = vsub.f32 %v3713, %v3785
      %v3816 = vsub.f32 %v3714, %v3785
      %v3817 = vsub.f32 %v3715, %v3785
      %v3818 = vmul.f32 %v3786, %v3786
      %v3819 = vmul.f32 %v3787, %v3787
      %v3820 = vmul.f32 %v3788, %v3788
      %v3821 = vmul.f32 %v3789, %v3789
      %v3822 = vmul.f32 %v3790, %v3790
      %v3823 = vmul.f32 %v3791, %v3791
      %v3824 = vmul.f32 %v3792, %v3792
      %v3825 = vmul.f32 %v3793, %v3793
      %v3826 = vmul.f32 %v3794, %v3794
      %v3827 = vmul.f32 %v3795, %v3795
      %v3828 = vmul.f32 %v3796, %v3796
      %v3829 = vmul.f32 %v3797, %v3797
      %v3830 = vmul.f32 %v3798, %v3798
      %v3831 = vmul.f32 %v3799, %v3799
      %v3832 = vmul.f32 %v3800, %v3800
      %v3833 = vmul.f32 %v3801, %v3801
      %v3834 = vmul.f32 %v3802, %v3802
      %v3835 = vmul.f32 %v3803, %v3803
      %v3836 = vmul.f32 %v3804, %v3804
      %v3837 = vmul.f32 %v3805, %v3805
      %v3838 = vmul.f32 %v3806, %v3806
      %v3839 = vmul.f32 %v3807, %v3807
      %v3840 = vmul.f32 %v3808, %v3808
      %v3841 = vmul.f32 %v3809, %v3809
      %v3842 = vmul.f32 %v3810, %v3810
      %v3843 = vmul.f32 %v3811, %v3811
      %v3844 = vmul.f32 %v3812, %v3812
      %v3845 = vmul.f32 %v3813, %v3813
      %v3846 = vmul.f32 %v3814, %v3814
      %v3847 = vmul.f32 %v3815, %v3815
      %v3848 = vmul.f32 %v3816, %v3816
      %v3849 = vmul.f32 %v3817, %v3817
      %v3850 = vsel %vm1600, %v3818, 0.0
      %v3851 = vsel %vm1600, %v3819, 0.0
      %v3852 = vadd.f32 %v3850, %v3851
      %v3853 = vsel %vm1600, %v3820, 0.0
      %v3854 = vadd.f32 %v3852, %v3853
      %v3855 = vsel %vm1600, %v3821, 0.0
      %v3856 = vadd.f32 %v3854, %v3855
      %v3857 = vsel %vm1600, %v3822, 0.0
      %v3858 = vadd.f32 %v3856, %v3857
      %v3859 = vsel %vm1600, %v3823, 0.0
      %v3860 = vadd.f32 %v3858, %v3859
      %v3861 = vsel %vm1600, %v3824, 0.0
      %v3862 = vadd.f32 %v3860, %v3861
      %v3863 = vsel %vm1600, %v3825, 0.0
      %v3864 = vadd.f32 %v3862, %v3863
      %v3865 = vsel %vm1600, %v3826, 0.0
      %v3866 = vadd.f32 %v3864, %v3865
      %v3867 = vsel %vm1600, %v3827, 0.0
      %v3868 = vadd.f32 %v3866, %v3867
      %v3869 = vsel %vm1600, %v3828, 0.0
      %v3870 = vadd.f32 %v3868, %v3869
      %v3871 = vsel %vm1600, %v3829, 0.0
      %v3872 = vadd.f32 %v3870, %v3871
      %v3873 = vsel %vm1600, %v3830, 0.0
      %v3874 = vadd.f32 %v3872, %v3873
      %v3875 = vsel %vm1600, %v3831, 0.0
      %v3876 = vadd.f32 %v3874, %v3875
      %v3877 = vsel %vm1600, %v3832, 0.0
      %v3878 = vadd.f32 %v3876, %v3877
      %v3879 = vsel %vm1600, %v3833, 0.0
      %v3880 = vadd.f32 %v3878, %v3879
      %v3881 = vsel %vm1600, %v3834, 0.0
      %v3882 = vadd.f32 %v3880, %v3881
      %v3883 = vsel %vm1600, %v3835, 0.0
      %v3884 = vadd.f32 %v3882, %v3883
      %v3885 = vsel %vm1600, %v3836, 0.0
      %v3886 = vadd.f32 %v3884, %v3885
      %v3887 = vsel %vm1600, %v3837, 0.0
      %v3888 = vadd.f32 %v3886, %v3887
      %v3889 = vsel %vm1600, %v3838, 0.0
      %v3890 = vadd.f32 %v3888, %v3889
      %v3891 = vsel %vm1600, %v3839, 0.0
      %v3892 = vadd.f32 %v3890, %v3891
      %v3893 = vsel %vm1600, %v3840, 0.0
      %v3894 = vadd.f32 %v3892, %v3893
      %v3895 = vsel %vm1600, %v3841, 0.0
      %v3896 = vadd.f32 %v3894, %v3895
      %v3897 = vsel %vm1600, %v3842, 0.0
      %v3898 = vadd.f32 %v3896, %v3897
      %v3899 = vsel %vm1600, %v3843, 0.0
      %v3900 = vadd.f32 %v3898, %v3899
      %v3901 = vsel %vm1600, %v3844, 0.0
      %v3902 = vadd.f32 %v3900, %v3901
      %v3903 = vsel %vm1600, %v3845, 0.0
      %v3904 = vadd.f32 %v3902, %v3903
      %v3905 = vsel %vm1600, %v3846, 0.0
      %v3906 = vadd.f32 %v3904, %v3905
      %v3907 = vsel %vm1600, %v3847, 0.0
      %v3908 = vadd.f32 %v3906, %v3907
      %v3909 = vsel %vm1600, %v3848, 0.0
      %v3910 = vadd.f32 %v3908, %v3909
      %v3911 = vsel %vm1600, %v3849, 0.0
      %v3912 = vadd.f32 %v3910, %v3911
      %v3913 = vrot.slane %v3912, 4
      %v3914 = vadd.f32 %v3912, %v3913
      %v3915 = vrot.slane %v3914, 2
      %v3916 = vadd.f32 %v3914, %v3915
      %v3917 = vrot.slane %v3916, 1
      %v3918 = vadd.f32 %v3916, %v3917
      %v3919 = vmul.f32 %v3918, 0.00390625
      %v3920 = vadd.f32 %v3919, 1e-05
      %v3921 = vrsqrt.pop %v3920
      %v3922 = vmul.f32 %v3786, %v3921
      %v3923 = vmul.f32 %v3787, %v3921
      %v3924 = vmul.f32 %v3788, %v3921
      %v3925 = vmul.f32 %v3789, %v3921
      %v3926 = vmul.f32 %v3790, %v3921
      %v3927 = vmul.f32 %v3791, %v3921
      %v3928 = vmul.f32 %v3792, %v3921
      %v3929 = vmul.f32 %v3793, %v3921
      %v3930 = vmul.f32 %v3794, %v3921
      %v3931 = vmul.f32 %v3795, %v3921
      %v3932 = vmul.f32 %v3796, %v3921
      %v3933 = vmul.f32 %v3797, %v3921
      %v3934 = vmul.f32 %v3798, %v3921
      %v3935 = vmul.f32 %v3799, %v3921
      %v3936 = vmul.f32 %v3800, %v3921
      %v3937 = vmul.f32 %v3801, %v3921
      %v3938 = vmul.f32 %v3802, %v3921
      %v3939 = vmul.f32 %v3803, %v3921
      %v3940 = vmul.f32 %v3804, %v3921
      %v3941 = vmul.f32 %v3805, %v3921
      %v3942 = vmul.f32 %v3806, %v3921
      %v3943 = vmul.f32 %v3807, %v3921
      %v3944 = vmul.f32 %v3808, %v3921
      %v3945 = vmul.f32 %v3809, %v3921
      %v3946 = vmul.f32 %v3810, %v3921
      %v3947 = vmul.f32 %v3811, %v3921
      %v3948 = vmul.f32 %v3812, %v3921
      %v3949 = vmul.f32 %v3813, %v3921
      %v3950 = vmul.f32 %v3814, %v3921
      %v3951 = vmul.f32 %v3815, %v3921
      %v3952 = vmul.f32 %v3816, %v3921
      %v3953 = vmul.f32 %v3817, %v3921
      %v3954 = vxor.u32 %v3922, 2147483648
      %v3955 = vxor.u32 %v3923, 2147483648
      %v3956 = vxor.u32 %v3924, 2147483648
      %v3957 = vxor.u32 %v3925, 2147483648
      %v3958 = vxor.u32 %v3926, 2147483648
      %v3959 = vxor.u32 %v3927, 2147483648
      %v3960 = vxor.u32 %v3928, 2147483648
      %v3961 = vxor.u32 %v3929, 2147483648
      %v3962 = vxor.u32 %v3930, 2147483648
      %v3963 = vxor.u32 %v3931, 2147483648
      %v3964 = vxor.u32 %v3932, 2147483648
      %v3965 = vxor.u32 %v3933, 2147483648
      %v3966 = vxor.u32 %v3934, 2147483648
      %v3967 = vxor.u32 %v3935, 2147483648
      %v3968 = vxor.u32 %v3936, 2147483648
      %v3969 = vxor.u32 %v3937, 2147483648
      %v3970 = vxor.u32 %v3938, 2147483648
      %v3971 = vxor.u32 %v3939, 2147483648
      %v3972 = vxor.u32 %v3940, 2147483648
      %v3973 = vxor.u32 %v3941, 2147483648
      %v3974 = vxor.u32 %v3942, 2147483648
      %v3975 = vxor.u32 %v3943, 2147483648
      %v3976 = vxor.u32 %v3944, 2147483648
      %v3977 = vxor.u32 %v3945, 2147483648
      %v3978 = vxor.u32 %v3946, 2147483648
      %v3979 = vxor.u32 %v3947, 2147483648
      %v3980 = vxor.u32 %v3948, 2147483648
      %v3981 = vxor.u32 %v3949, 2147483648
      %v3982 = vxor.u32 %v3950, 2147483648
      %v3983 = vxor.u32 %v3951, 2147483648
      %v3984 = vxor.u32 %v3952, 2147483648
      %v3985 = vxor.u32 %v3953, 2147483648
      %v3986 = vmul.f32 %v3954, 1.442695
      %v3987 = vpow.pop %v3986
      %v3988 = vmul.f32 %v3955, 1.442695
      %v3989 = vpow.pop %v3988
      %v3990 = vmul.f32 %v3956, 1.442695
      %v3991 = vpow.pop %v3990
      %v3992 = vmul.f32 %v3957, 1.442695
      %v3993 = vpow.pop %v3992
      %v3994 = vmul.f32 %v3958, 1.442695
      %v3995 = vpow.pop %v3994
      %v3996 = vmul.f32 %v3959, 1.442695
      %v3997 = vpow.pop %v3996
      %v3998 = vmul.f32 %v3960, 1.442695
      %v3999 = vpow.pop %v3998
      %v4000 = vmul.f32 %v3961, 1.442695
      %v4001 = vpow.pop %v4000
      %v4002 = vmul.f32 %v3962, 1.442695
      %v4003 = vpow.pop %v4002
      %v4004 = vmul.f32 %v3963, 1.442695
      %v4005 = vpow.pop %v4004
      %v4006 = vmul.f32 %v3964, 1.442695
      %v4007 = vpow.pop %v4006
      %v4008 = vmul.f32 %v3965, 1.442695
      %v4009 = vpow.pop %v4008
      %v4010 = vmul.f32 %v3966, 1.442695
      %v4011 = vpow.pop %v4010
      %v4012 = vmul.f32 %v3967, 1.442695
      %v4013 = vpow.pop %v4012
      %v4014 = vmul.f32 %v3968, 1.442695
      %v4015 = vpow.pop %v4014
      %v4016 = vmul.f32 %v3969, 1.442695
      %v4017 = vpow.pop %v4016
      %v4018 = vmul.f32 %v3970, 1.442695
      %v4019 = vpow.pop %v4018
      %v4020 = vmul.f32 %v3971, 1.442695
      %v4021 = vpow.pop %v4020
      %v4022 = vmul.f32 %v3972, 1.442695
      %v4023 = vpow.pop %v4022
      %v4024 = vmul.f32 %v3973, 1.442695
      %v4025 = vpow.pop %v4024
      %v4026 = vmul.f32 %v3974, 1.442695
      %v4027 = vpow.pop %v4026
      %v4028 = vmul.f32 %v3975, 1.442695
      %v4029 = vpow.pop %v4028
      %v4030 = vmul.f32 %v3976, 1.442695
      %v4031 = vpow.pop %v4030
      %v4032 = vmul.f32 %v3977, 1.442695
      %v4033 = vpow.pop %v4032
      %v4034 = vmul.f32 %v3978, 1.442695
      %v4035 = vpow.pop %v4034
      %v4036 = vmul.f32 %v3979, 1.442695
      %v4037 = vpow.pop %v4036
      %v4038 = vmul.f32 %v3980, 1.442695
      %v4039 = vpow.pop %v4038
      %v4040 = vmul.f32 %v3981, 1.442695
      %v4041 = vpow.pop %v4040
      %v4042 = vmul.f32 %v3982, 1.442695
      %v4043 = vpow.pop %v4042
      %v4044 = vmul.f32 %v3983, 1.442695
      %v4045 = vpow.pop %v4044
      %v4046 = vmul.f32 %v3984, 1.442695
      %v4047 = vpow.pop %v4046
      %v4048 = vmul.f32 %v3985, 1.442695
      %v4049 = vpow.pop %v4048
      %v4050 = vadd.f32 %v3987, 1.0
      %v4051 = vadd.f32 %v3989, 1.0
      %v4052 = vadd.f32 %v3991, 1.0
      %v4053 = vadd.f32 %v3993, 1.0
      %v4054 = vadd.f32 %v3995, 1.0
      %v4055 = vadd.f32 %v3997, 1.0
      %v4056 = vadd.f32 %v3999, 1.0
      %v4057 = vadd.f32 %v4001, 1.0
      %v4058 = vadd.f32 %v4003, 1.0
      %v4059 = vadd.f32 %v4005, 1.0
      %v4060 = vadd.f32 %v4007, 1.0
      %v4061 = vadd.f32 %v4009, 1.0
      %v4062 = vadd.f32 %v4011, 1.0
      %v4063 = vadd.f32 %v4013, 1.0
      %v4064 = vadd.f32 %v4015, 1.0
      %v4065 = vadd.f32 %v4017, 1.0
      %v4066 = vadd.f32 %v4019, 1.0
      %v4067 = vadd.f32 %v4021, 1.0
      %v4068 = vadd.f32 %v4023, 1.0
      %v4069 = vadd.f32 %v4025, 1.0
      %v4070 = vadd.f32 %v4027, 1.0
      %v4071 = vadd.f32 %v4029, 1.0
      %v4072 = vadd.f32 %v4031, 1.0
      %v4073 = vadd.f32 %v4033, 1.0
      %v4074 = vadd.f32 %v4035, 1.0
      %v4075 = vadd.f32 %v4037, 1.0
      %v4076 = vadd.f32 %v4039, 1.0
      %v4077 = vadd.f32 %v4041, 1.0
      %v4078 = vadd.f32 %v4043, 1.0
      %v4079 = vadd.f32 %v4045, 1.0
      %v4080 = vadd.f32 %v4047, 1.0
      %v4081 = vadd.f32 %v4049, 1.0
      %v4082 = vrcp.pop %v4050
      %v4083 = vmul.f32 1.0, %v4082
      %v4084 = vrcp.pop %v4051
      %v4085 = vmul.f32 1.0, %v4084
      %v4086 = vrcp.pop %v4052
      %v4087 = vmul.f32 1.0, %v4086
      %v4088 = vrcp.pop %v4053
      %v4089 = vmul.f32 1.0, %v4088
      %v4090 = vrcp.pop %v4054
      %v4091 = vmul.f32 1.0, %v4090
      %v4092 = vrcp.pop %v4055
      %v4093 = vmul.f32 1.0, %v4092
      %v4094 = vrcp.pop %v4056
      %v4095 = vmul.f32 1.0, %v4094
      %v4096 = vrcp.pop %v4057
      %v4097 = vmul.f32 1.0, %v4096
      %v4098 = vrcp.pop %v4058
      %v4099 = vmul.f32 1.0, %v4098
      %v4100 = vrcp.pop %v4059
      %v4101 = vmul.f32 1.0, %v4100
      %v4102 = vrcp.pop %v4060
      %v4103 = vmul.f32 1.0, %v4102
      %v4104 = vrcp.pop %v4061
      %v4105 = vmul.f32 1.0, %v4104
      %v4106 = vrcp.pop %v4062
      %v4107 = vmul.f32 1.0, %v4106
      %v4108 = vrcp.pop %v4063
      %v4109 = vmul.f32 1.0, %v4108
      %v4110 = vrcp.pop %v4064
      %v4111 = vmul.f32 1.0, %v4110
      %v4112 = vrcp.pop %v4065
      %v4113 = vmul.f32 1.0, %v4112
      %v4114 = vrcp.pop %v4066
      %v4115 = vmul.f32 1.0, %v4114
      %v4116 = vrcp.pop %v4067
      %v4117 = vmul.f32 1.0, %v4116
      %v4118 = vrcp.pop %v4068
      %v4119 = vmul.f32 1.0, %v4118
      %v4120 = vrcp.pop %v4069
      %v4121 = vmul.f32 1.0, %v4120
      %v4122 = vrcp.pop %v4070
      %v4123 = vmul.f32 1.0, %v4122
      %v4124 = vrcp.pop %v4071
      %v4125 = vmul.f32 1.0, %v4124
      %v4126 = vrcp.pop %v4072
      %v4127 = vmul.f32 1.0, %v4126
      %v4128 = vrcp.pop %v4073
      %v4129 = vmul.f32 1.0, %v4128
      %v4130 = vrcp.pop %v4074
      %v4131 = vmul.f32 1.0, %v4130
      %v4132 = vrcp.pop %v4075
      %v4133 = vmul.f32 1.0, %v4132
      %v4134 = vrcp.pop %v4076
      %v4135 = vmul.f32 1.0, %v4134
      %v4136 = vrcp.pop %v4077
      %v4137 = vmul.f32 1.0, %v4136
      %v4138 = vrcp.pop %v4078
      %v4139 = vmul.f32 1.0, %v4138
      %v4140 = vrcp.pop %v4079
      %v4141 = vmul.f32 1.0, %v4140
      %v4142 = vrcp.pop %v4080
      %v4143 = vmul.f32 1.0, %v4142
      %v4144 = vrcp.pop %v4081
      %v4145 = vmul.f32 1.0, %v4144
      %v4146 = vmul.f32 %v3922, %v4083
      %v4147 = vmul.f32 %v3923, %v4085
      %v4148 = vmul.f32 %v3924, %v4087
      %v4149 = vmul.f32 %v3925, %v4089
      %v4150 = vmul.f32 %v3926, %v4091
      %v4151 = vmul.f32 %v3927, %v4093
      %v4152 = vmul.f32 %v3928, %v4095
      %v4153 = vmul.f32 %v3929, %v4097
      %v4154 = vmul.f32 %v3930, %v4099
      %v4155 = vmul.f32 %v3931, %v4101
      %v4156 = vmul.f32 %v3932, %v4103
      %v4157 = vmul.f32 %v3933, %v4105
      %v4158 = vmul.f32 %v3934, %v4107
      %v4159 = vmul.f32 %v3935, %v4109
      %v4160 = vmul.f32 %v3936, %v4111
      %v4161 = vmul.f32 %v3937, %v4113
      %v4162 = vmul.f32 %v3938, %v4115
      %v4163 = vmul.f32 %v3939, %v4117
      %v4164 = vmul.f32 %v3940, %v4119
      %v4165 = vmul.f32 %v3941, %v4121
      %v4166 = vmul.f32 %v3942, %v4123
      %v4167 = vmul.f32 %v3943, %v4125
      %v4168 = vmul.f32 %v3944, %v4127
      %v4169 = vmul.f32 %v3945, %v4129
      %v4170 = vmul.f32 %v3946, %v4131
      %v4171 = vmul.f32 %v3947, %v4133
      %v4172 = vmul.f32 %v3948, %v4135
      %v4173 = vmul.f32 %v3949, %v4137
      %v4174 = vmul.f32 %v3950, %v4139
      %v4175 = vmul.f32 %v3951, %v4141
      %v4176 = vmul.f32 %v3952, %v4143
      %v4177 = vmul.f32 %v3953, %v4145
      %v4178 = vadd.f32 %v848, %v4146
      %v4179 = vadd.f32 %v849, %v4147
      %v4180 = vadd.f32 %v850, %v4148
      %v4181 = vadd.f32 %v851, %v4149
      %v4182 = vadd.f32 %v852, %v4150
      %v4183 = vadd.f32 %v853, %v4151
      %v4184 = vadd.f32 %v854, %v4152
      %v4185 = vadd.f32 %v855, %v4153
      %v4186 = vadd.f32 %v856, %v4154
      %v4187 = vadd.f32 %v857, %v4155
      %v4188 = vadd.f32 %v858, %v4156
      %v4189 = vadd.f32 %v859, %v4157
      %v4190 = vadd.f32 %v860, %v4158
      %v4191 = vadd.f32 %v861, %v4159
      %v4192 = vadd.f32 %v862, %v4160
      %v4193 = vadd.f32 %v863, %v4161
      %v4194 = vadd.f32 %v864, %v4162
      %v4195 = vadd.f32 %v865, %v4163
      %v4196 = vadd.f32 %v866, %v4164
      %v4197 = vadd.f32 %v867, %v4165
      %v4198 = vadd.f32 %v868, %v4166
      %v4199 = vadd.f32 %v869, %v4167
      %v4200 = vadd.f32 %v870, %v4168
      %v4201 = vadd.f32 %v871, %v4169
      %v4202 = vadd.f32 %v872, %v4170
      %v4203 = vadd.f32 %v873, %v4171
      %v4204 = vadd.f32 %v874, %v4172
      %v4205 = vadd.f32 %v875, %v4173
      %v4206 = vadd.f32 %v876, %v4174
      %v4207 = vadd.f32 %v877, %v4175
      %v4208 = vadd.f32 %v878, %v4176
      %v4209 = vadd.f32 %v879, %v4177
      %4210 = vst.msk [vmem:[%s224] sm:$0xff] %vm1600, %v4178
      %4211 = vst.msk [vmem:[%s224 + $0x8] sm:$0xff] %vm1600, %v4179
      %4212 = vst.msk [vmem:[%s224 + $0x10] sm:$0xff] %vm1600, %v4180
      %4213 = vst.msk [vmem:[%s224 + $0x18] sm:$0xff] %vm1600, %v4181
      %4214 = vst.msk [vmem:[%s224 + $0x20] sm:$0xff] %vm1600, %v4182
      %4215 = vst.msk [vmem:[%s224 + $0x28] sm:$0xff] %vm1600, %v4183
      %4216 = vst.msk [vmem:[%s224 + $0x30] sm:$0xff] %vm1600, %v4184
      %4217 = vst.msk [vmem:[%s224 + $0x38] sm:$0xff] %vm1600, %v4185
      %4218 = vst.msk [vmem:[%s224 + $0x40] sm:$0xff] %vm1600, %v4186
      %4219 = vst.msk [vmem:[%s224 + $0x48] sm:$0xff] %vm1600, %v4187
      %4220 = vst.msk [vmem:[%s224 + $0x50] sm:$0xff] %vm1600, %v4188
      %4221 = vst.msk [vmem:[%s224 + $0x58] sm:$0xff] %vm1600, %v4189
      %4222 = vst.msk [vmem:[%s224 + $0x60] sm:$0xff] %vm1600, %v4190
      %4223 = vst.msk [vmem:[%s224 + $0x68] sm:$0xff] %vm1600, %v4191
      %4224 = vst.msk [vmem:[%s224 + $0x70] sm:$0xff] %vm1600, %v4192
      %4225 = vst.msk [vmem:[%s224 + $0x78] sm:$0xff] %vm1600, %v4193
      %4226 = vst.msk [vmem:[%s224 + $0x80] sm:$0xff] %vm1600, %v4194
      %4227 = vst.msk [vmem:[%s224 + $0x88] sm:$0xff] %vm1600, %v4195
      %4228 = vst.msk [vmem:[%s224 + $0x90] sm:$0xff] %vm1600, %v4196
      %4229 = vst.msk [vmem:[%s224 + $0x98] sm:$0xff] %vm1600, %v4197
      %4230 = vst.msk [vmem:[%s224 + $0xa0] sm:$0xff] %vm1600, %v4198
      %4231 = vst.msk [vmem:[%s224 + $0xa8] sm:$0xff] %vm1600, %v4199
      %4232 = vst.msk [vmem:[%s224 + $0xb0] sm:$0xff] %vm1600, %v4200
      %4233 = vst.msk [vmem:[%s224 + $0xb8] sm:$0xff] %vm1600, %v4201
      %4234 = vst.msk [vmem:[%s224 + $0xc0] sm:$0xff] %vm1600, %v4202
      %4235 = vst.msk [vmem:[%s224 + $0xc8] sm:$0xff] %vm1600, %v4203
      %4236 = vst.msk [vmem:[%s224 + $0xd0] sm:$0xff] %vm1600, %v4204
      %4237 = vst.msk [vmem:[%s224 + $0xd8] sm:$0xff] %vm1600, %v4205
      %4238 = vst.msk [vmem:[%s224 + $0xe0] sm:$0xff] %vm1600, %v4206
      %4239 = vst.msk [vmem:[%s224 + $0xe8] sm:$0xff] %vm1600, %v4207
      %4240 = vst.msk [vmem:[%s224 + $0xf0] sm:$0xff] %vm1600, %v4208
      %4241 = vst.msk [vmem:[%s224 + $0xf8] sm:$0xff] %vm1600, %v4209
      %p4242 = scmp.lt.s32.totalorder %s16, 1
      %s4243 = scalar_select %p4242, %s16, 1
      %s4244 = smul.addr %s4243, 32
      %s4245 = smul.addr %s4244, 8
      %s4246 = scalar_lea.vmem %s5, %s4245
      // Predicated region
      $region41: #{tpu_custom_call.1} parent=39 // pred_check
        %p4247 = pneg %p144
      $region42: #{tpu_custom_call.1} parent=39 // pred_check_branch
        %4249 = sbr.rel (%p4247) target = $region44
      $region43: #{tpu_custom_call.1} parent=39 // pred_region
        _
      $region44: #{tpu_custom_call.1} parent=39 // pred_fallthru
        _
    $region40: #{tpu_custom_call.1} parent=5 // pred_fallthru
      _
    %p4250 = scmp.le.s32.totalorder 2, %s11
    // Predicated region
    $region45: #{tpu_custom_call.1} parent=5 // pred_check
      %p4251 = pneg %p4250
    $region46: #{tpu_custom_call.1} parent=5 // pred_check_branch
      %4253 = sbr.rel (%p4251) target = $region48
    $region47: #{tpu_custom_call.1} parent=5 // pred_region
      %s4254 = ssub.s32 %s11, 2
      // Predicated region
      $region49: #{tpu_custom_call.1} parent=47 // pred_check
        %p4255 = pneg %p150
      $region50: #{tpu_custom_call.1} parent=47 // pred_check_branch
        %4257 = sbr.rel (%p4255) target = $region52
      $region51: #{tpu_custom_call.1} parent=47 // pred_region
        %p4258 = scmp.lt.s32.totalorder %s17, 1
        %s4259 = scalar_select %p4258, %s17, 1
        %s4260 = smul.addr %s4259, 32
        %s4261 = smul.addr %s4260, 8
        %s4262 = scalar_lea.vmem %s5, %s4261
      $region52: #{tpu_custom_call.1} parent=47 // pred_fallthru
        _
    $region48: #{tpu_custom_call.1} parent=5 // pred_fallthru
      _
  $region6: #{tpu_custom_call.1} parent=0 // loop_footer
    %s15 = sadd.s32 1, %s11
  $region7: #{tpu_custom_call.1} parent=0 // loop_footer_branch
    %10 = sbr.rel target = $region3
  $region8: #{tpu_custom_call.1} parent=0 // loop_exit
    _

</llo_original>
